<compile_context>
chip_gen: v7x
topology: tpu7x:2x2x1
jax: 0.10.0
libtpu: 0.0.40
codegen_flags: <defaults>
</compile_context>

<pallas_src>
import functools

import jax
import jax.numpy as jnp
from jax.experimental import pallas as pl
from jax.experimental.pallas import tpu as pltpu

# ---- "wargs" config (small synthetic sizes) ----
SRC_VOCAB = 20
TRG_VOCAB = 20
SRC_WEMB = 32
TRG_WEMB = 32
ENC_HID = 32
DEC_HID = 32
ALIGN = 32
OUT_SIZE = 32
PAD = 0
EPS = 1e-20  # `epsilon` global used by MaskSoftmax in the reference code


# ----------------------------------------------------------------------------
# small in-kernel helpers
# ----------------------------------------------------------------------------
def _mm(a, b):
    return jnp.dot(a, b, preferred_element_type=jnp.float32)


def _gru_step(xp, m, h, Wh, H):
    """GRU step with the x-side projection (incl. bias / extra conditioning)
    precomputed.  xp: (B, 3H), h: (B, H), Wh: fused (H, 3H), m: (B, 1)."""
    hp = _mm(h, Wh)                                       # 1 MXU push, N = 3H
    z = jax.nn.sigmoid(xp[:, :H] + hp[:, :H])
    r = jax.nn.sigmoid(xp[:, H:2 * H] + hp[:, H:2 * H])
    c = jnp.tanh(xp[:, 2 * H:] + r * hp[:, 2 * H:])
    h_new = (1.0 - z) * h + z * c
    return m * h_new + (1.0 - m) * h                      # keep state where mask==0


# ----------------------------------------------------------------------------
# fused NMT forward kernel (single invocation, no grid)
# ----------------------------------------------------------------------------
def nmt_kernel(
    # dense time-major sequence inputs
    xs_e_ref, xs_m_ref, ys_e_ref, ys_m_ref,
    # encoder GRUs (forward / backward), fused (in, 3H) weights
    ef_Wx_ref, ef_Wh_ref, ef_b_ref,
    eb_Wx_ref, eb_Wh_ref, eb_b_ref,
    # ha / s_init projections
    ha_W_ref, ha_b_ref, si_W_ref, si_b_ref,
    # decoder gold/hypo blend gate
    wg_W_ref, wh_W_ref, wgh_b_ref,
    # decoder GRU1 (with extra conditioning input Wc)
    g1_Wx_ref, g1_Wc_ref, g1_Wh_ref, g1_b_ref,
    # attention
    sa_W_ref, sa_b_ref, a1_W_ref, a1_b_ref,
    # decoder GRU2
    g2_Wx_ref, g2_Wh_ref, g2_b_ref,
    # fused maxout: sc_W = [ls | lc] rows, [even|odd] cols; ly_W, lb likewise
    sc_W_ref, ly_W_ref, lb_ref,
    # output
    logit_ref,
    # VMEM scratch (dense 2-D layouts)
    right_scr, xsh_scr,
    *, L, B, T,
):
    H = ENC_HID
    Hd = DEC_HID
    O = OUT_SIZE

    xs_e = xs_e_ref[...]                                  # (L*B, Dw)
    xs_m = xs_m_ref[...]                                  # (L*B, 1)
    ys_e = ys_e_ref[...]                                  # (T*B, Dw)
    ys_m = ys_m_ref[...]                                  # (T*B, 1)

    ef_Wh = ef_Wh_ref[...]
    eb_Wh = eb_Wh_ref[...]

    # ---------------- encoder: forward GRU ----------------
    # hoisted: x projections for ALL source timesteps in one matmul
    xp_f = _mm(xs_e, ef_Wx_ref[...]) + ef_b_ref[...]      # (L*B, 3H)
    h = jnp.zeros((B, H), jnp.float32)
    for k in range(L):                                    # static trip count
        sl = slice(k * B, (k + 1) * B)
        h = _gru_step(xp_f[sl], xs_m[sl], h, ef_Wh, H)
        right_scr[pl.ds(k * B, B), :] = h

    # ---------------- encoder: backward GRU over forward outputs ----------------
    right = right_scr[...]                                # (L*B, H)
    xp_b = _mm(right, eb_Wx_ref[...]) + eb_b_ref[...]     # hoisted (L*B, 3H)
    h = jnp.zeros((B, H), jnp.float32)
    for k in range(L - 1, -1, -1):
        sl = slice(k * B, (k + 1) * B)
        h = _gru_step(xp_b[sl], xs_m[sl], h, eb_Wh, H)
        xsh_scr[pl.ds(k * B, B), :] = h

    xs_h = xsh_scr[...]                                   # (L*B, H) dense
    uh = _mm(xs_h, ha_W_ref[...]) + ha_b_ref[...]         # (L*B, A) one matmul

    # ---------------- init_state: masked mean over source time ----------------
    xs_h3 = xs_h.reshape(L, B, H)
    xs_m3 = xs_m.reshape(L, B, 1)
    num = jnp.sum(xs_h3 * xs_m3, axis=0)                  # (B, H)
    den = jnp.sum(xs_m3, axis=0)                          # (B, 1)
    den = jnp.where(den > 0.0, den, 1.0)                  # all-PAD column guard
    s = jnp.tanh(_mm(num / den, si_W_ref[...]) + si_b_ref[...])   # (B, Hd)

    # ---------------- decoder: hoist all y_tm1 work over T ----------------
    # With ss_eps == 1.0, y_tm1_hypo is fixed at ys_e[0] for every step, so the
    # blend gate, y_tm1, its GRU1 x-projection and its maxout ly() contribution
    # are all computed for the whole target sequence in a few big matmuls.
    Dw = ys_e.shape[-1]
    y_hypo = ys_e[:B]                                     # (B, Dw)
    hypo_gate = _mm(y_hypo, wh_W_ref[...]) + wgh_b_ref[...]       # (B, Dw)
    g_all = jax.nn.sigmoid(
        _mm(ys_e, wg_W_ref[...]).reshape(T, B, Dw) + hypo_gate[None])
    y_tm1_all = (g_all * ys_e.reshape(T, B, Dw)
                 + (1.0 - g_all) * y_hypo[None]).reshape(T * B, Dw)

    hypo_c = _mm(y_hypo, g1_Wc_ref[...])                  # constant conditioning
    xp1_all = (_mm(y_tm1_all, g1_Wx_ref[...]).reshape(T, B, 3 * Hd)
               + (hypo_c + g1_b_ref[...])[None]).reshape(T * B, 3 * Hd)

    ly_all = _mm(y_tm1_all, ly_W_ref[...]) + lb_ref[...]  # (T*B, 2*O), biases folded

    g1_Wh = g1_Wh_ref[...]
    g2_Wx = g2_Wx_ref[...]
    g2_Wh = g2_Wh_ref[...]
    g2_b = g2_b_ref[...]
    sa_W = sa_W_ref[...]
    sa_b = sa_b_ref[...]
    a1_row = a1_W_ref[...][None, :, :]                    # (1, 1, A)
    a1_b = a1_b_ref[...]                                  # (1, 1)
    sc_W = sc_W_ref[...]                                  # (Hd+E, 2*O)
    uh3 = uh.reshape(L, B, -1)

    outs = []
    for k in range(T):                                    # static trip count
        sl = slice(k * B, (k + 1) * B)
        ym = ys_m[sl]                                     # (B, 1)

        # GRU1(y_tm1, y_mask, s_tm1, y_tm1_hypo): only h@Wh left per step
        s_above = _gru_step(xp1_all[sl], ym, s, g1_Wh, Hd)

        # attention: tanh(sa(s)+uh) -> a1 -> masked softmax over source time
        sa = _mm(s_above, sa_W) + sa_b                    # (B, A)
        t = jnp.tanh(uh3 + sa[None])                      # (L, B, A)
        e = jnp.sum(t * a1_row, axis=-1, keepdims=True) + a1_b      # (L, B, 1)
        e_exp = jnp.exp(e - jnp.max(e, axis=0, keepdims=True)) * xs_m3
        alpha = e_exp / (jnp.sum(e_exp, axis=0, keepdims=True) + EPS)
        attend = jnp.sum(alpha * xs_h3, axis=0)           # (B, E)

        # GRU2(attend, y_mask, s_above)
        xp2 = _mm(attend, g2_Wx) + g2_b
        s = _gru_step(xp2, ym, s_above, g2_Wh, Hd)

        # fused maxout step_out: one [s | attend] matmul + precomputed ly(y_tm1)
        mo = _mm(jnp.concatenate([s, attend], axis=1), sc_W) + ly_all[sl]
        outs.append(jnp.maximum(mo[:, :O], mo[:, O:]) * ym)          # * ys_mask

    # single lane/sublane-dense slab store of all logits
    logit_ref[...] = jnp.concatenate(outs, axis=0)        # (T*B, O)


# ----------------------------------------------------------------------------
# wrapper / glue
# ----------------------------------------------------------------------------
def nmt_forward(packed, srcs, trgs, srcs_m, trgs_m):
    # srcs: (L,B) int32, trgs: (T,B) int32, srcs_m: (L,B) f32, trgs_m: (T,B) f32
    L, B = srcs.shape
    T = trgs.shape[0]
    # pad batch to the f32 sublane count so no (2, F) vregs reach the MXU/VPU;
    # padded columns carry zero masks, so they never affect the real columns.
    B_pad = max(8, ((B + 7) // 8) * 8)
    pad = B_pad - B

    xs_e = jnp.take(packed["src_emb"], srcs, axis=0)      # (L, B, Dw) gather -> XLA
    ys_e = jnp.take(packed["trg_emb"], trgs, axis=0)      # (T, B, Dw)
    if pad:
        xs_e = jnp.pad(xs_e, ((0, 0), (0, pad), (0, 0)))
        ys_e = jnp.pad(ys_e, ((0, 0), (0, pad), (0, 0)))
        srcs_m = jnp.pad(srcs_m, ((0, 0), (0, pad)))
        trgs_m = jnp.pad(trgs_m, ((0, 0), (0, pad)))

    args = (
        xs_e.reshape(L * B_pad, SRC_WEMB),
        srcs_m.reshape(L * B_pad, 1),
        ys_e.reshape(T * B_pad, TRG_WEMB),
        trgs_m.reshape(T * B_pad, 1),
        packed["ef_Wx"], packed["ef_Wh"], packed["ef_b"],
        packed["eb_Wx"], packed["eb_Wh"], packed["eb_b"],
        packed["ha_W"], packed["ha_b"], packed["si_W"], packed["si_b"],
        packed["wg_W"], packed["wh_W"], packed["wgh_b"],
        packed["g1_Wx"], packed["g1_Wc"], packed["g1_Wh"], packed["g1_b"],
        packed["sa_W"], packed["sa_b"], packed["a1_W"], packed["a1_b"],
        packed["g2_Wx"], packed["g2_Wh"], packed["g2_b"],
        packed["sc_W"], packed["ly_W"], packed["lb"],
    )
    out = pl.pallas_call(
        functools.partial(nmt_kernel, L=L, B=B_pad, T=T),
        out_shape=jax.ShapeDtypeStruct((T * B_pad, OUT_SIZE), jnp.float32),
        scratch_shapes=[
            pltpu.VMEM((L * B_pad, ENC_HID), jnp.float32),  # forward-GRU outputs
            pltpu.VMEM((L * B_pad, ENC_HID), jnp.float32),  # encoder output xs_h
        ],
    )(*args)
    return out.reshape(T, B_pad, OUT_SIZE)[:, :B, :]


# ----------------------------------------------------------------------------
# parameter init (same logical parameters as the PyTorch module) + packing
# ----------------------------------------------------------------------------
def init_params(key):
    ks = iter(jax.random.split(key, 64))

    def lin(fan_in, fan_out):
        lim = 1.0 / (float(fan_in) ** 0.5)
        W = jax.random.uniform(next(ks), (fan_in, fan_out), jnp.float32, -lim, lim)
        b = jax.random.uniform(next(ks), (1, fan_out), jnp.float32, -lim, lim)
        return W, b

    def gru(in_size, hid):
        Wx, b = lin(in_size, 3 * hid)   # fused (in, 3H), gate order [z, r, cand]
        Wh, _ = lin(hid, 3 * hid)
        return Wx, Wh, b

    p = {}
    src_emb = 0.1 * jax.random.normal(next(ks), (SRC_VOCAB, SRC_WEMB), jnp.float32)
    p["src_emb"] = src_emb.at[PAD].set(0.0)
    trg_emb = 0.1 * jax.random.normal(next(ks), (TRG_VOCAB, TRG_WEMB), jnp.float32)
    p["trg_emb"] = trg_emb.at[PAD].set(0.0)

    p["enc_f_Wx"], p["enc_f_Wh"], p["enc_f_b"] = gru(SRC_WEMB, ENC_HID)
    p["enc_b_Wx"], p["enc_b_Wh"], p["enc_b_b"] = gru(ENC_HID, ENC_HID)

    p["s_init_W"], p["s_init_b"] = lin(ENC_HID, DEC_HID)
    p["ha_W"], p["ha_b"] = lin(ENC_HID, ALIGN)

    p["wg_W"], p["wg_b"] = lin(TRG_WEMB, TRG_WEMB)
    p["wh_W"], p["wh_b"] = lin(TRG_WEMB, TRG_WEMB)

    p["g1_Wx"], p["g1_Wh"], p["g1_b"] = gru(TRG_WEMB, DEC_HID)
    p["g1_Wc"], _ = lin(TRG_WEMB, 3 * DEC_HID)            # extra conditioning input

    p["sa_W"], p["sa_b"] = lin(DEC_HID, ALIGN)
    p["a1_W"], p["a1_b"] = lin(ALIGN, 1)                  # (A,1), (1,1)

    p["g2_Wx"], p["g2_Wh"], p["g2_b"] = gru(ENC_HID, DEC_HID)

    p["ls_W"], p["ls_b"] = lin(DEC_HID, 2 * OUT_SIZE)
    p["ly_W"], p["ly_b"] = lin(TRG_WEMB, 2 * OUT_SIZE)
    p["lc_W"], p["lc_b"] = lin(ENC_HID, 2 * OUT_SIZE)
    return p


def pack_params(p):
    """Repack the module-style parameters into the kernel layout:
    fused (in, 3H) GRU weights, folded blend-gate bias, transposed a1 row,
    maxout weights de-interleaved to [even | odd] with ls/lc stacked on the
    input axis (for the fused [s | attend] matmul) and biases folded into lb."""

    def deint(W):   # interleaved maxout pair columns -> [even | odd] halves
        return jnp.concatenate([W[:, 0::2], W[:, 1::2]], axis=1)

    q = {"src_emb": p["src_emb"], "trg_emb": p["trg_emb"]}
    q["ef_Wx"], q["ef_Wh"], q["ef_b"] = p["enc_f_Wx"], p["enc_f_Wh"], p["enc_f_b"]
    q["eb_Wx"], q["eb_Wh"], q["eb_b"] = p["enc_b_Wx"], p["enc_b_Wh"], p["enc_b_b"]
    q["ha_W"], q["ha_b"] = p["ha_W"], p["ha_b"]
    q["si_W"], q["si_b"] = p["s_init_W"], p["s_init_b"]
    q["wg_W"], q["wh_W"] = p["wg_W"], p["wh_W"]
    q["wgh_b"] = p["wg_b"] + p["wh_b"]
    q["g1_Wx"], q["g1_Wc"] = p["g1_Wx"], p["g1_Wc"]
    q["g1_Wh"], q["g1_b"] = p["g1_Wh"], p["g1_b"]
    q["sa_W"], q["sa_b"] = p["sa_W"], p["sa_b"]
    q["a1_W"] = p["a1_W"].T                               # (1, ALIGN) row vector
    q["a1_b"] = p["a1_b"]                                 # (1, 1)
    q["g2_Wx"], q["g2_Wh"], q["g2_b"] = p["g2_Wx"], p["g2_Wh"], p["g2_b"]
    q["sc_W"] = jnp.concatenate([deint(p["ls_W"]), deint(p["lc_W"])], axis=0)
    q["ly_W"] = deint(p["ly_W"])
    q["lb"] = deint(p["ls_b"] + p["ly_b"] + p["lc_b"])
    return q


if __name__ == "__main__":
    key = jax.random.PRNGKey(0)
    pkey, dkey = jax.random.split(key)
    params = init_params(pkey)
    packed = pack_params(params)

    L, T, B = 8, 6, 2
    k1, k2 = jax.random.split(dkey)
    srcs = jax.random.randint(k1, (L, B), 1, SRC_VOCAB).astype(jnp.int32)
    trgs = jax.random.randint(k2, (T, B), 1, TRG_VOCAB).astype(jnp.int32)
    # ragged masks: sentence 1 is shorter
    srcs_m = jnp.ones((L, B), jnp.float32).at[6:, 1].set(0.0)
    trgs_m = jnp.ones((T, B), jnp.float32).at[5:, 1].set(0.0)
    srcs = jnp.where(srcs_m > 0, srcs, PAD).astype(jnp.int32)
    trgs = jnp.where(trgs_m > 0, trgs, PAD).astype(jnp.int32)

    nmt_fn = jax.jit(nmt_forward)
    logit = jax.block_until_ready(nmt_fn(packed, srcs, trgs, srcs_m, trgs_m))
    assert logit.shape == (T, B, OUT_SIZE), logit.shape
    assert bool(jnp.all(jnp.isfinite(logit)))
    print("KERNEL_OK")
</pallas_src>

<mosaic_0001>
module attributes {stable_mosaic.version = 11 : i64} {
  func.func @nmt_kernel(%arg0: memref<64x32xf32, #tpu.memory_space<vmem>>, %arg1: memref<64x1xf32, #tpu.memory_space<vmem>>, %arg2: memref<48x32xf32, #tpu.memory_space<vmem>>, %arg3: memref<48x1xf32, #tpu.memory_space<vmem>>, %arg4: memref<32x96xf32, #tpu.memory_space<vmem>>, %arg5: memref<32x96xf32, #tpu.memory_space<vmem>>, %arg6: memref<1x96xf32, #tpu.memory_space<vmem>>, %arg7: memref<32x96xf32, #tpu.memory_space<vmem>>, %arg8: memref<32x96xf32, #tpu.memory_space<vmem>>, %arg9: memref<1x96xf32, #tpu.memory_space<vmem>>, %arg10: memref<32x32xf32, #tpu.memory_space<vmem>>, %arg11: memref<1x32xf32, #tpu.memory_space<vmem>>, %arg12: memref<32x32xf32, #tpu.memory_space<vmem>>, %arg13: memref<1x32xf32, #tpu.memory_space<vmem>>, %arg14: memref<32x32xf32, #tpu.memory_space<vmem>>, %arg15: memref<32x32xf32, #tpu.memory_space<vmem>>, %arg16: memref<1x32xf32, #tpu.memory_space<vmem>>, %arg17: memref<32x96xf32, #tpu.memory_space<vmem>>, %arg18: memref<32x96xf32, #tpu.memory_space<vmem>>, %arg19: memref<32x96xf32, #tpu.memory_space<vmem>>, %arg20: memref<1x96xf32, #tpu.memory_space<vmem>>, %arg21: memref<32x32xf32, #tpu.memory_space<vmem>>, %arg22: memref<1x32xf32, #tpu.memory_space<vmem>>, %arg23: memref<1x32xf32, #tpu.memory_space<vmem>>, %arg24: memref<1x1xf32, #tpu.memory_space<vmem>>, %arg25: memref<32x96xf32, #tpu.memory_space<vmem>>, %arg26: memref<32x96xf32, #tpu.memory_space<vmem>>, %arg27: memref<1x96xf32, #tpu.memory_space<vmem>>, %arg28: memref<64x64xf32, #tpu.memory_space<vmem>>, %arg29: memref<32x64xf32, #tpu.memory_space<vmem>>, %arg30: memref<1x64xf32, #tpu.memory_space<vmem>>, %arg31: memref<48x32xf32, #tpu.memory_space<vmem>>, %arg32: memref<64x32xf32, #tpu.memory_space<vmem>>, %arg33: memref<64x32xf32, #tpu.memory_space<vmem>>) attributes {dimension_semantics = [], scalar_prefetch = 0 : i64, scratch_operands = 2 : i64, tpu.core_type = #tpu.core_type<tc>} {
    %c0 = arith.constant 0 : index
    %c0_0 = arith.constant 0 : index
    %0 = vector.load %arg0[%c0, %c0_0] : memref<64x32xf32, #tpu.memory_space<vmem>>, vector<64x32xf32>
    %c0_1 = arith.constant 0 : index
    %c0_2 = arith.constant 0 : index
    %1 = vector.load %arg1[%c0_1, %c0_2] : memref<64x1xf32, #tpu.memory_space<vmem>>, vector<64x1xf32>
    %c0_3 = arith.constant 0 : index
    %c0_4 = arith.constant 0 : index
    %2 = vector.load %arg2[%c0_3, %c0_4] : memref<48x32xf32, #tpu.memory_space<vmem>>, vector<48x32xf32>
    %c0_5 = arith.constant 0 : index
    %c0_6 = arith.constant 0 : index
    %3 = vector.load %arg3[%c0_5, %c0_6] : memref<48x1xf32, #tpu.memory_space<vmem>>, vector<48x1xf32>
    %c0_7 = arith.constant 0 : index
    %c0_8 = arith.constant 0 : index
    %4 = vector.load %arg5[%c0_7, %c0_8] : memref<32x96xf32, #tpu.memory_space<vmem>>, vector<32x96xf32>
    %c0_9 = arith.constant 0 : index
    %c0_10 = arith.constant 0 : index
    %5 = vector.load %arg8[%c0_9, %c0_10] : memref<32x96xf32, #tpu.memory_space<vmem>>, vector<32x96xf32>
    %c0_11 = arith.constant 0 : index
    %c0_12 = arith.constant 0 : index
    %6 = vector.load %arg4[%c0_11, %c0_12] : memref<32x96xf32, #tpu.memory_space<vmem>>, vector<32x96xf32>
    %cst = arith.constant dense<0.000000e+00> : vector<64x96xf32>
    %7 = tpu.matmul %0, %6, %cst {dimension_numbers = #tpu.dot_dimension_numbers<[1], [0], [0], [1], [0, 0, 1, 1], [], []>} : vector<64x32xf32>, vector<32x96xf32>, vector<64x96xf32> -> vector<64x96xf32>
    %c0_13 = arith.constant 0 : index
    %c0_14 = arith.constant 0 : index
    %8 = vector.load %arg6[%c0_13, %c0_14] : memref<1x96xf32, #tpu.memory_space<vmem>>, vector<1x96xf32>
    %9 = vector.broadcast %8 : vector<1x96xf32> to vector<64x96xf32>
    %10 = arith.addf %7, %9 : vector<64x96xf32>
    %cst_15 = arith.constant 0.000000e+00 : f32
    %11 = vector.broadcast %cst_15 : f32 to vector<8x32xf32>
    %12 = vector.extract_strided_slice %10 {offsets = [0, 0], sizes = [8, 96], strides = [1, 1]} : vector<64x96xf32> to vector<8x96xf32>
    %13 = vector.extract_strided_slice %1 {offsets = [0, 0], sizes = [8, 1], strides = [1, 1]} : vector<64x1xf32> to vector<8x1xf32>
    %cst_16 = arith.constant dense<0.000000e+00> : vector<8x96xf32>
    %14 = tpu.matmul %11, %4, %cst_16 {dimension_numbers = #tpu.dot_dimension_numbers<[1], [0], [0], [1], [0, 0, 1, 1], [], []>} : vector<8x32xf32>, vector<32x96xf32>, vector<8x96xf32> -> vector<8x96xf32>
    %15 = vector.extract_strided_slice %12 {offsets = [0, 0], sizes = [8, 32], strides = [1, 1]} : vector<8x96xf32> to vector<8x32xf32>
    %16 = vector.extract_strided_slice %14 {offsets = [0, 0], sizes = [8, 32], strides = [1, 1]} : vector<8x96xf32> to vector<8x32xf32>
    %17 = arith.addf %15, %16 : vector<8x32xf32>
    %18 = arith.negf %17 : vector<8x32xf32>
    %19 = math.exp %18 : vector<8x32xf32>
    %cst_17 = arith.constant 1.000000e+00 : f32
    %20 = vector.broadcast %cst_17 : f32 to vector<8x32xf32>
    %21 = arith.addf %20, %19 : vector<8x32xf32>
    %22 = arith.divf %20, %21 : vector<8x32xf32>
    %23 = vector.extract_strided_slice %12 {offsets = [0, 32], sizes = [8, 32], strides = [1, 1]} : vector<8x96xf32> to vector<8x32xf32>
    %24 = vector.extract_strided_slice %14 {offsets = [0, 32], sizes = [8, 32], strides = [1, 1]} : vector<8x96xf32> to vector<8x32xf32>
    %25 = arith.addf %23, %24 : vector<8x32xf32>
    %26 = arith.negf %25 : vector<8x32xf32>
    %27 = math.exp %26 : vector<8x32xf32>
    %cst_18 = arith.constant 1.000000e+00 : f32
    %28 = vector.broadcast %cst_18 : f32 to vector<8x32xf32>
    %29 = arith.addf %28, %27 : vector<8x32xf32>
    %30 = arith.divf %28, %29 : vector<8x32xf32>
    %31 = vector.extract_strided_slice %12 {offsets = [0, 64], sizes = [8, 32], strides = [1, 1]} : vector<8x96xf32> to vector<8x32xf32>
    %32 = vector.extract_strided_slice %14 {offsets = [0, 64], sizes = [8, 32], strides = [1, 1]} : vector<8x96xf32> to vector<8x32xf32>
    %33 = arith.mulf %30, %32 : vector<8x32xf32>
    %34 = arith.addf %31, %33 : vector<8x32xf32>
    %35 = math.tanh %34 : vector<8x32xf32>
    %cst_19 = arith.constant 1.000000e+00 : f32
    %36 = vector.broadcast %cst_19 : f32 to vector<8x32xf32>
    %37 = arith.subf %36, %22 : vector<8x32xf32>
    %38 = arith.mulf %37, %11 : vector<8x32xf32>
    %39 = arith.mulf %22, %35 : vector<8x32xf32>
    %40 = arith.addf %38, %39 : vector<8x32xf32>
    %41 = vector.broadcast %13 : vector<8x1xf32> to vector<8x32xf32>
    %42 = arith.mulf %41, %40 : vector<8x32xf32>
    %cst_20 = arith.constant 1.000000e+00 : f32
    %43 = vector.broadcast %cst_20 : f32 to vector<8x1xf32>
    %44 = arith.subf %43, %13 : vector<8x1xf32>
    %45 = vector.broadcast %44 : vector<8x1xf32> to vector<8x32xf32>
    %46 = arith.mulf %45, %11 : vector<8x32xf32>
    %47 = arith.addf %42, %46 : vector<8x32xf32>
    %c0_21 = arith.constant 0 : index
    %c0_22 = arith.constant 0 : index
    %48 = vector.load %arg32[%c0_21, %c0_22] : memref<64x32xf32, #tpu.memory_space<vmem>>, vector<8x32xf32>
    tpu.vector_store %arg32[%c0_21, %c0_22], %47 {strides = array<i32>} : memref<64x32xf32, #tpu.memory_space<vmem>>, vector<8x32xf32>,
    %49 = vector.extract_strided_slice %10 {offsets = [8, 0], sizes = [8, 96], strides = [1, 1]} : vector<64x96xf32> to vector<8x96xf32>
    %50 = vector.extract_strided_slice %1 {offsets = [8, 0], sizes = [8, 1], strides = [1, 1]} : vector<64x1xf32> to vector<8x1xf32>
    %cst_23 = arith.constant dense<0.000000e+00> : vector<8x96xf32>
    %51 = tpu.matmul %47, %4, %cst_23 {dimension_numbers = #tpu.dot_dimension_numbers<[1], [0], [0], [1], [0, 0, 1, 1], [], []>} : vector<8x32xf32>, vector<32x96xf32>, vector<8x96xf32> -> vector<8x96xf32>
    %52 = vector.extract_strided_slice %49 {offsets = [0, 0], sizes = [8, 32], strides = [1, 1]} : vector<8x96xf32> to vector<8x32xf32>
    %53 = vector.extract_strided_slice %51 {offsets = [0, 0], sizes = [8, 32], strides = [1, 1]} : vector<8x96xf32> to vector<8x32xf32>
    %54 = arith.addf %52, %53 : vector<8x32xf32>
    %55 = arith.negf %54 : vector<8x32xf32>
    %56 = math.exp %55 : vector<8x32xf32>
    %cst_24 = arith.constant 1.000000e+00 : f32
    %57 = vector.broadcast %cst_24 : f32 to vector<8x32xf32>
    %58 = arith.addf %57, %56 : vector<8x32xf32>
    %59 = arith.divf %57, %58 : vector<8x32xf32>
    %60 = vector.extract_strided_slice %49 {offsets = [0, 32], sizes = [8, 32], strides = [1, 1]} : vector<8x96xf32> to vector<8x32xf32>
    %61 = vector.extract_strided_slice %51 {offsets = [0, 32], sizes = [8, 32], strides = [1, 1]} : vector<8x96xf32> to vector<8x32xf32>
    %62 = arith.addf %60, %61 : vector<8x32xf32>
    %63 = arith.negf %62 : vector<8x32xf32>
    %64 = math.exp %63 : vector<8x32xf32>
    %cst_25 = arith.constant 1.000000e+00 : f32
    %65 = vector.broadcast %cst_25 : f32 to vector<8x32xf32>
    %66 = arith.addf %65, %64 : vector<8x32xf32>
    %67 = arith.divf %65, %66 : vector<8x32xf32>
    %68 = vector.extract_strided_slice %49 {offsets = [0, 64], sizes = [8, 32], strides = [1, 1]} : vector<8x96xf32> to vector<8x32xf32>
    %69 = vector.extract_strided_slice %51 {offsets = [0, 64], sizes = [8, 32], strides = [1, 1]} : vector<8x96xf32> to vector<8x32xf32>
    %70 = arith.mulf %67, %69 : vector<8x32xf32>
    %71 = arith.addf %68, %70 : vector<8x32xf32>
    %72 = math.tanh %71 : vector<8x32xf32>
    %cst_26 = arith.constant 1.000000e+00 : f32
    %73 = vector.broadcast %cst_26 : f32 to vector<8x32xf32>
    %74 = arith.subf %73, %59 : vector<8x32xf32>
    %75 = arith.mulf %74, %47 : vector<8x32xf32>
    %76 = arith.mulf %59, %72 : vector<8x32xf32>
    %77 = arith.addf %75, %76 : vector<8x32xf32>
    %78 = vector.broadcast %50 : vector<8x1xf32> to vector<8x32xf32>
    %79 = arith.mulf %78, %77 : vector<8x32xf32>
    %cst_27 = arith.constant 1.000000e+00 : f32
    %80 = vector.broadcast %cst_27 : f32 to vector<8x1xf32>
    %81 = arith.subf %80, %50 : vector<8x1xf32>
    %82 = vector.broadcast %81 : vector<8x1xf32> to vector<8x32xf32>
    %83 = arith.mulf %82, %47 : vector<8x32xf32>
    %84 = arith.addf %79, %83 : vector<8x32xf32>
    %c8 = arith.constant 8 : index
    %c0_28 = arith.constant 0 : index
    %85 = vector.load %arg32[%c8, %c0_28] : memref<64x32xf32, #tpu.memory_space<vmem>>, vector<8x32xf32>
    tpu.vector_store %arg32[%c8, %c0_28], %84 {strides = array<i32>} : memref<64x32xf32, #tpu.memory_space<vmem>>, vector<8x32xf32>,
    %86 = vector.extract_strided_slice %10 {offsets = [16, 0], sizes = [8, 96], strides = [1, 1]} : vector<64x96xf32> to vector<8x96xf32>
    %87 = vector.extract_strided_slice %1 {offsets = [16, 0], sizes = [8, 1], strides = [1, 1]} : vector<64x1xf32> to vector<8x1xf32>
    %cst_29 = arith.constant dense<0.000000e+00> : vector<8x96xf32>
    %88 = tpu.matmul %84, %4, %cst_29 {dimension_numbers = #tpu.dot_dimension_numbers<[1], [0], [0], [1], [0, 0, 1, 1], [], []>} : vector<8x32xf32>, vector<32x96xf32>, vector<8x96xf32> -> vector<8x96xf32>
    %89 = vector.extract_strided_slice %86 {offsets = [0, 0], sizes = [8, 32], strides = [1, 1]} : vector<8x96xf32> to vector<8x32xf32>
    %90 = vector.extract_strided_slice %88 {offsets = [0, 0], sizes = [8, 32], strides = [1, 1]} : vector<8x96xf32> to vector<8x32xf32>
    %91 = arith.addf %89, %90 : vector<8x32xf32>
    %92 = arith.negf %91 : vector<8x32xf32>
    %93 = math.exp %92 : vector<8x32xf32>
    %cst_30 = arith.constant 1.000000e+00 : f32
    %94 = vector.broadcast %cst_30 : f32 to vector<8x32xf32>
    %95 = arith.addf %94, %93 : vector<8x32xf32>
    %96 = arith.divf %94, %95 : vector<8x32xf32>
    %97 = vector.extract_strided_slice %86 {offsets = [0, 32], sizes = [8, 32], strides = [1, 1]} : vector<8x96xf32> to vector<8x32xf32>
    %98 = vector.extract_strided_slice %88 {offsets = [0, 32], sizes = [8, 32], strides = [1, 1]} : vector<8x96xf32> to vector<8x32xf32>
    %99 = arith.addf %97, %98 : vector<8x32xf32>
    %100 = arith.negf %99 : vector<8x32xf32>
    %101 = math.exp %100 : vector<8x32xf32>
    %cst_31 = arith.constant 1.000000e+00 : f32
    %102 = vector.broadcast %cst_31 : f32 to vector<8x32xf32>
    %103 = arith.addf %102, %101 : vector<8x32xf32>
    %104 = arith.divf %102, %103 : vector<8x32xf32>
    %105 = vector.extract_strided_slice %86 {offsets = [0, 64], sizes = [8, 32], strides = [1, 1]} : vector<8x96xf32> to vector<8x32xf32>
    %106 = vector.extract_strided_slice %88 {offsets = [0, 64], sizes = [8, 32], strides = [1, 1]} : vector<8x96xf32> to vector<8x32xf32>
    %107 = arith.mulf %104, %106 : vector<8x32xf32>
    %108 = arith.addf %105, %107 : vector<8x32xf32>
    %109 = math.tanh %108 : vector<8x32xf32>
    %cst_32 = arith.constant 1.000000e+00 : f32
    %110 = vector.broadcast %cst_32 : f32 to vector<8x32xf32>
    %111 = arith.subf %110, %96 : vector<8x32xf32>
    %112 = arith.mulf %111, %84 : vector<8x32xf32>
    %113 = arith.mulf %96, %109 : vector<8x32xf32>
    %114 = arith.addf %112, %113 : vector<8x32xf32>
    %115 = vector.broadcast %87 : vector<8x1xf32> to vector<8x32xf32>
    %116 = arith.mulf %115, %114 : vector<8x32xf32>
    %cst_33 = arith.constant 1.000000e+00 : f32
    %117 = vector.broadcast %cst_33 : f32 to vector<8x1xf32>
    %118 = arith.subf %117, %87 : vector<8x1xf32>
    %119 = vector.broadcast %118 : vector<8x1xf32> to vector<8x32xf32>
    %120 = arith.mulf %119, %84 : vector<8x32xf32>
    %121 = arith.addf %116, %120 : vector<8x32xf32>
    %c16 = arith.constant 16 : index
    %c0_34 = arith.constant 0 : index
    %122 = vector.load %arg32[%c16, %c0_34] : memref<64x32xf32, #tpu.memory_space<vmem>>, vector<8x32xf32>
    tpu.vector_store %arg32[%c16, %c0_34], %121 {strides = array<i32>} : memref<64x32xf32, #tpu.memory_space<vmem>>, vector<8x32xf32>,
    %123 = vector.extract_strided_slice %10 {offsets = [24, 0], sizes = [8, 96], strides = [1, 1]} : vector<64x96xf32> to vector<8x96xf32>
    %124 = vector.extract_strided_slice %1 {offsets = [24, 0], sizes = [8, 1], strides = [1, 1]} : vector<64x1xf32> to vector<8x1xf32>
    %cst_35 = arith.constant dense<0.000000e+00> : vector<8x96xf32>
    %125 = tpu.matmul %121, %4, %cst_35 {dimension_numbers = #tpu.dot_dimension_numbers<[1], [0], [0], [1], [0, 0, 1, 1], [], []>} : vector<8x32xf32>, vector<32x96xf32>, vector<8x96xf32> -> vector<8x96xf32>
    %126 = vector.extract_strided_slice %123 {offsets = [0, 0], sizes = [8, 32], strides = [1, 1]} : vector<8x96xf32> to vector<8x32xf32>
    %127 = vector.extract_strided_slice %125 {offsets = [0, 0], sizes = [8, 32], strides = [1, 1]} : vector<8x96xf32> to vector<8x32xf32>
    %128 = arith.addf %126, %127 : vector<8x32xf32>
    %129 = arith.negf %128 : vector<8x32xf32>
    %130 = math.exp %129 : vector<8x32xf32>
    %cst_36 = arith.constant 1.000000e+00 : f32
    %131 = vector.broadcast %cst_36 : f32 to vector<8x32xf32>
    %132 = arith.addf %131, %130 : vector<8x32xf32>
    %133 = arith.divf %131, %132 : vector<8x32xf32>
    %134 = vector.extract_strided_slice %123 {offsets = [0, 32], sizes = [8, 32], strides = [1, 1]} : vector<8x96xf32> to vector<8x32xf32>
    %135 = vector.extract_strided_slice %125 {offsets = [0, 32], sizes = [8, 32], strides = [1, 1]} : vector<8x96xf32> to vector<8x32xf32>
    %136 = arith.addf %134, %135 : vector<8x32xf32>
    %137 = arith.negf %136 : vector<8x32xf32>
    %138 = math.exp %137 : vector<8x32xf32>
    %cst_37 = arith.constant 1.000000e+00 : f32
    %139 = vector.broadcast %cst_37 : f32 to vector<8x32xf32>
    %140 = arith.addf %139, %138 : vector<8x32xf32>
    %141 = arith.divf %139, %140 : vector<8x32xf32>
    %142 = vector.extract_strided_slice %123 {offsets = [0, 64], sizes = [8, 32], strides = [1, 1]} : vector<8x96xf32> to vector<8x32xf32>
    %143 = vector.extract_strided_slice %125 {offsets = [0, 64], sizes = [8, 32], strides = [1, 1]} : vector<8x96xf32> to vector<8x32xf32>
    %144 = arith.mulf %141, %143 : vector<8x32xf32>
    %145 = arith.addf %142, %144 : vector<8x32xf32>
    %146 = math.tanh %145 : vector<8x32xf32>
    %cst_38 = arith.constant 1.000000e+00 : f32
    %147 = vector.broadcast %cst_38 : f32 to vector<8x32xf32>
    %148 = arith.subf %147, %133 : vector<8x32xf32>
    %149 = arith.mulf %148, %121 : vector<8x32xf32>
    %150 = arith.mulf %133, %146 : vector<8x32xf32>
    %151 = arith.addf %149, %150 : vector<8x32xf32>
    %152 = vector.broadcast %124 : vector<8x1xf32> to vector<8x32xf32>
    %153 = arith.mulf %152, %151 : vector<8x32xf32>
    %cst_39 = arith.constant 1.000000e+00 : f32
    %154 = vector.broadcast %cst_39 : f32 to vector<8x1xf32>
    %155 = arith.subf %154, %124 : vector<8x1xf32>
    %156 = vector.broadcast %155 : vector<8x1xf32> to vector<8x32xf32>
    %157 = arith.mulf %156, %121 : vector<8x32xf32>
    %158 = arith.addf %153, %157 : vector<8x32xf32>
    %c24 = arith.constant 24 : index
    %c0_40 = arith.constant 0 : index
    %159 = vector.load %arg32[%c24, %c0_40] : memref<64x32xf32, #tpu.memory_space<vmem>>, vector<8x32xf32>
    tpu.vector_store %arg32[%c24, %c0_40], %158 {strides = array<i32>} : memref<64x32xf32, #tpu.memory_space<vmem>>, vector<8x32xf32>,
    %160 = vector.extract_strided_slice %10 {offsets = [32, 0], sizes = [8, 96], strides = [1, 1]} : vector<64x96xf32> to vector<8x96xf32>
    %161 = vector.extract_strided_slice %1 {offsets = [32, 0], sizes = [8, 1], strides = [1, 1]} : vector<64x1xf32> to vector<8x1xf32>
    %cst_41 = arith.constant dense<0.000000e+00> : vector<8x96xf32>
    %162 = tpu.matmul %158, %4, %cst_41 {dimension_numbers = #tpu.dot_dimension_numbers<[1], [0], [0], [1], [0, 0, 1, 1], [], []>} : vector<8x32xf32>, vector<32x96xf32>, vector<8x96xf32> -> vector<8x96xf32>
    %163 = vector.extract_strided_slice %160 {offsets = [0, 0], sizes = [8, 32], strides = [1, 1]} : vector<8x96xf32> to vector<8x32xf32>
    %164 = vector.extract_strided_slice %162 {offsets = [0, 0], sizes = [8, 32], strides = [1, 1]} : vector<8x96xf32> to vector<8x32xf32>
    %165 = arith.addf %163, %164 : vector<8x32xf32>
    %166 = arith.negf %165 : vector<8x32xf32>
    %167 = math.exp %166 : vector<8x32xf32>
    %cst_42 = arith.constant 1.000000e+00 : f32
    %168 = vector.broadcast %cst_42 : f32 to vector<8x32xf32>
    %169 = arith.addf %168, %167 : vector<8x32xf32>
    %170 = arith.divf %168, %169 : vector<8x32xf32>
    %171 = vector.extract_strided_slice %160 {offsets = [0, 32], sizes = [8, 32], strides = [1, 1]} : vector<8x96xf32> to vector<8x32xf32>
    %172 = vector.extract_strided_slice %162 {offsets = [0, 32], sizes = [8, 32], strides = [1, 1]} : vector<8x96xf32> to vector<8x32xf32>
    %173 = arith.addf %171, %172 : vector<8x32xf32>
    %174 = arith.negf %173 : vector<8x32xf32>
    %175 = math.exp %174 : vector<8x32xf32>
    %cst_43 = arith.constant 1.000000e+00 : f32
    %176 = vector.broadcast %cst_43 : f32 to vector<8x32xf32>
    %177 = arith.addf %176, %175 : vector<8x32xf32>
    %178 = arith.divf %176, %177 : vector<8x32xf32>
    %179 = vector.extract_strided_slice %160 {offsets = [0, 64], sizes = [8, 32], strides = [1, 1]} : vector<8x96xf32> to vector<8x32xf32>
    %180 = vector.extract_strided_slice %162 {offsets = [0, 64], sizes = [8, 32], strides = [1, 1]} : vector<8x96xf32> to vector<8x32xf32>
    %181 = arith.mulf %178, %180 : vector<8x32xf32>
    %182 = arith.addf %179, %181 : vector<8x32xf32>
    %183 = math.tanh %182 : vector<8x32xf32>
    %cst_44 = arith.constant 1.000000e+00 : f32
    %184 = vector.broadcast %cst_44 : f32 to vector<8x32xf32>
    %185 = arith.subf %184, %170 : vector<8x32xf32>
    %186 = arith.mulf %185, %158 : vector<8x32xf32>
    %187 = arith.mulf %170, %183 : vector<8x32xf32>
    %188 = arith.addf %186, %187 : vector<8x32xf32>
    %189 = vector.broadcast %161 : vector<8x1xf32> to vector<8x32xf32>
    %190 = arith.mulf %189, %188 : vector<8x32xf32>
    %cst_45 = arith.constant 1.000000e+00 : f32
    %191 = vector.broadcast %cst_45 : f32 to vector<8x1xf32>
    %192 = arith.subf %191, %161 : vector<8x1xf32>
    %193 = vector.broadcast %192 : vector<8x1xf32> to vector<8x32xf32>
    %194 = arith.mulf %193, %158 : vector<8x32xf32>
    %195 = arith.addf %190, %194 : vector<8x32xf32>
    %c32 = arith.constant 32 : index
    %c0_46 = arith.constant 0 : index
    %196 = vector.load %arg32[%c32, %c0_46] : memref<64x32xf32, #tpu.memory_space<vmem>>, vector<8x32xf32>
    tpu.vector_store %arg32[%c32, %c0_46], %195 {strides = array<i32>} : memref<64x32xf32, #tpu.memory_space<vmem>>, vector<8x32xf32>,
    %197 = vector.extract_strided_slice %10 {offsets = [40, 0], sizes = [8, 96], strides = [1, 1]} : vector<64x96xf32> to vector<8x96xf32>
    %198 = vector.extract_strided_slice %1 {offsets = [40, 0], sizes = [8, 1], strides = [1, 1]} : vector<64x1xf32> to vector<8x1xf32>
    %cst_47 = arith.constant dense<0.000000e+00> : vector<8x96xf32>
    %199 = tpu.matmul %195, %4, %cst_47 {dimension_numbers = #tpu.dot_dimension_numbers<[1], [0], [0], [1], [0, 0, 1, 1], [], []>} : vector<8x32xf32>, vector<32x96xf32>, vector<8x96xf32> -> vector<8x96xf32>
    %200 = vector.extract_strided_slice %197 {offsets = [0, 0], sizes = [8, 32], strides = [1, 1]} : vector<8x96xf32> to vector<8x32xf32>
    %201 = vector.extract_strided_slice %199 {offsets = [0, 0], sizes = [8, 32], strides = [1, 1]} : vector<8x96xf32> to vector<8x32xf32>
    %202 = arith.addf %200, %201 : vector<8x32xf32>
    %203 = arith.negf %202 : vector<8x32xf32>
    %204 = math.exp %203 : vector<8x32xf32>
    %cst_48 = arith.constant 1.000000e+00 : f32
    %205 = vector.broadcast %cst_48 : f32 to vector<8x32xf32>
    %206 = arith.addf %205, %204 : vector<8x32xf32>
    %207 = arith.divf %205, %206 : vector<8x32xf32>
    %208 = vector.extract_strided_slice %197 {offsets = [0, 32], sizes = [8, 32], strides = [1, 1]} : vector<8x96xf32> to vector<8x32xf32>
    %209 = vector.extract_strided_slice %199 {offsets = [0, 32], sizes = [8, 32], strides = [1, 1]} : vector<8x96xf32> to vector<8x32xf32>
    %210 = arith.addf %208, %209 : vector<8x32xf32>
    %211 = arith.negf %210 : vector<8x32xf32>
    %212 = math.exp %211 : vector<8x32xf32>
    %cst_49 = arith.constant 1.000000e+00 : f32
    %213 = vector.broadcast %cst_49 : f32 to vector<8x32xf32>
    %214 = arith.addf %213, %212 : vector<8x32xf32>
    %215 = arith.divf %213, %214 : vector<8x32xf32>
    %216 = vector.extract_strided_slice %197 {offsets = [0, 64], sizes = [8, 32], strides = [1, 1]} : vector<8x96xf32> to vector<8x32xf32>
    %217 = vector.extract_strided_slice %199 {offsets = [0, 64], sizes = [8, 32], strides = [1, 1]} : vector<8x96xf32> to vector<8x32xf32>
    %218 = arith.mulf %215, %217 : vector<8x32xf32>
    %219 = arith.addf %216, %218 : vector<8x32xf32>
    %220 = math.tanh %219 : vector<8x32xf32>
    %cst_50 = arith.constant 1.000000e+00 : f32
    %221 = vector.broadcast %cst_50 : f32 to vector<8x32xf32>
    %222 = arith.subf %221, %207 : vector<8x32xf32>
    %223 = arith.mulf %222, %195 : vector<8x32xf32>
    %224 = arith.mulf %207, %220 : vector<8x32xf32>
    %225 = arith.addf %223, %224 : vector<8x32xf32>
    %226 = vector.broadcast %198 : vector<8x1xf32> to vector<8x32xf32>
    %227 = arith.mulf %226, %225 : vector<8x32xf32>
    %cst_51 = arith.constant 1.000000e+00 : f32
    %228 = vector.broadcast %cst_51 : f32 to vector<8x1xf32>
    %229 = arith.subf %228, %198 : vector<8x1xf32>
    %230 = vector.broadcast %229 : vector<8x1xf32> to vector<8x32xf32>
    %231 = arith.mulf %230, %195 : vector<8x32xf32>
    %232 = arith.addf %227, %231 : vector<8x32xf32>
    %c40 = arith.constant 40 : index
    %c0_52 = arith.constant 0 : index
    %233 = vector.load %arg32[%c40, %c0_52] : memref<64x32xf32, #tpu.memory_space<vmem>>, vector<8x32xf32>
    tpu.vector_store %arg32[%c40, %c0_52], %232 {strides = array<i32>} : memref<64x32xf32, #tpu.memory_space<vmem>>, vector<8x32xf32>,
    %234 = vector.extract_strided_slice %10 {offsets = [48, 0], sizes = [8, 96], strides = [1, 1]} : vector<64x96xf32> to vector<8x96xf32>
    %235 = vector.extract_strided_slice %1 {offsets = [48, 0], sizes = [8, 1], strides = [1, 1]} : vector<64x1xf32> to vector<8x1xf32>
    %cst_53 = arith.constant dense<0.000000e+00> : vector<8x96xf32>
    %236 = tpu.matmul %232, %4, %cst_53 {dimension_numbers = #tpu.dot_dimension_numbers<[1], [0], [0], [1], [0, 0, 1, 1], [], []>} : vector<8x32xf32>, vector<32x96xf32>, vector<8x96xf32> -> vector<8x96xf32>
    %237 = vector.extract_strided_slice %234 {offsets = [0, 0], sizes = [8, 32], strides = [1, 1]} : vector<8x96xf32> to vector<8x32xf32>
    %238 = vector.extract_strided_slice %236 {offsets = [0, 0], sizes = [8, 32], strides = [1, 1]} : vector<8x96xf32> to vector<8x32xf32>
    %239 = arith.addf %237, %238 : vector<8x32xf32>
    %240 = arith.negf %239 : vector<8x32xf32>
    %241 = math.exp %240 : vector<8x32xf32>
    %cst_54 = arith.constant 1.000000e+00 : f32
    %242 = vector.broadcast %cst_54 : f32 to vector<8x32xf32>
    %243 = arith.addf %242, %241 : vector<8x32xf32>
    %244 = arith.divf %242, %243 : vector<8x32xf32>
    %245 = vector.extract_strided_slice %234 {offsets = [0, 32], sizes = [8, 32], strides = [1, 1]} : vector<8x96xf32> to vector<8x32xf32>
    %246 = vector.extract_strided_slice %236 {offsets = [0, 32], sizes = [8, 32], strides = [1, 1]} : vector<8x96xf32> to vector<8x32xf32>
    %247 = arith.addf %245, %246 : vector<8x32xf32>
    %248 = arith.negf %247 : vector<8x32xf32>
    %249 = math.exp %248 : vector<8x32xf32>
    %cst_55 = arith.constant 1.000000e+00 : f32
    %250 = vector.broadcast %cst_55 : f32 to vector<8x32xf32>
    %251 = arith.addf %250, %249 : vector<8x32xf32>
    %252 = arith.divf %250, %251 : vector<8x32xf32>
    %253 = vector.extract_strided_slice %234 {offsets = [0, 64], sizes = [8, 32], strides = [1, 1]} : vector<8x96xf32> to vector<8x32xf32>
    %254 = vector.extract_strided_slice %236 {offsets = [0, 64], sizes = [8, 32], strides = [1, 1]} : vector<8x96xf32> to vector<8x32xf32>
    %255 = arith.mulf %252, %254 : vector<8x32xf32>
    %256 = arith.addf %253, %255 : vector<8x32xf32>
    %257 = math.tanh %256 : vector<8x32xf32>
    %cst_56 = arith.constant 1.000000e+00 : f32
    %258 = vector.broadcast %cst_56 : f32 to vector<8x32xf32>
    %259 = arith.subf %258, %244 : vector<8x32xf32>
    %260 = arith.mulf %259, %232 : vector<8x32xf32>
    %261 = arith.mulf %244, %257 : vector<8x32xf32>
    %262 = arith.addf %260, %261 : vector<8x32xf32>
    %263 = vector.broadcast %235 : vector<8x1xf32> to vector<8x32xf32>
    %264 = arith.mulf %263, %262 : vector<8x32xf32>
    %cst_57 = arith.constant 1.000000e+00 : f32
    %265 = vector.broadcast %cst_57 : f32 to vector<8x1xf32>
    %266 = arith.subf %265, %235 : vector<8x1xf32>
    %267 = vector.broadcast %266 : vector<8x1xf32> to vector<8x32xf32>
    %268 = arith.mulf %267, %232 : vector<8x32xf32>
    %269 = arith.addf %264, %268 : vector<8x32xf32>
    %c48 = arith.constant 48 : index
    %c0_58 = arith.constant 0 : index
    %270 = vector.load %arg32[%c48, %c0_58] : memref<64x32xf32, #tpu.memory_space<vmem>>, vector<8x32xf32>
    tpu.vector_store %arg32[%c48, %c0_58], %269 {strides = array<i32>} : memref<64x32xf32, #tpu.memory_space<vmem>>, vector<8x32xf32>,
    %271 = vector.extract_strided_slice %10 {offsets = [56, 0], sizes = [8, 96], strides = [1, 1]} : vector<64x96xf32> to vector<8x96xf32>
    %272 = vector.extract_strided_slice %1 {offsets = [56, 0], sizes = [8, 1], strides = [1, 1]} : vector<64x1xf32> to vector<8x1xf32>
    %cst_59 = arith.constant dense<0.000000e+00> : vector<8x96xf32>
    %273 = tpu.matmul %269, %4, %cst_59 {dimension_numbers = #tpu.dot_dimension_numbers<[1], [0], [0], [1], [0, 0, 1, 1], [], []>} : vector<8x32xf32>, vector<32x96xf32>, vector<8x96xf32> -> vector<8x96xf32>
    %274 = vector.extract_strided_slice %271 {offsets = [0, 0], sizes = [8, 32], strides = [1, 1]} : vector<8x96xf32> to vector<8x32xf32>
    %275 = vector.extract_strided_slice %273 {offsets = [0, 0], sizes = [8, 32], strides = [1, 1]} : vector<8x96xf32> to vector<8x32xf32>
    %276 = arith.addf %274, %275 : vector<8x32xf32>
    %277 = arith.negf %276 : vector<8x32xf32>
    %278 = math.exp %277 : vector<8x32xf32>
    %cst_60 = arith.constant 1.000000e+00 : f32
    %279 = vector.broadcast %cst_60 : f32 to vector<8x32xf32>
    %280 = arith.addf %279, %278 : vector<8x32xf32>
    %281 = arith.divf %279, %280 : vector<8x32xf32>
    %282 = vector.extract_strided_slice %271 {offsets = [0, 32], sizes = [8, 32], strides = [1, 1]} : vector<8x96xf32> to vector<8x32xf32>
    %283 = vector.extract_strided_slice %273 {offsets = [0, 32], sizes = [8, 32], strides = [1, 1]} : vector<8x96xf32> to vector<8x32xf32>
    %284 = arith.addf %282, %283 : vector<8x32xf32>
    %285 = arith.negf %284 : vector<8x32xf32>
    %286 = math.exp %285 : vector<8x32xf32>
    %cst_61 = arith.constant 1.000000e+00 : f32
    %287 = vector.broadcast %cst_61 : f32 to vector<8x32xf32>
    %288 = arith.addf %287, %286 : vector<8x32xf32>
    %289 = arith.divf %287, %288 : vector<8x32xf32>
    %290 = vector.extract_strided_slice %271 {offsets = [0, 64], sizes = [8, 32], strides = [1, 1]} : vector<8x96xf32> to vector<8x32xf32>
    %291 = vector.extract_strided_slice %273 {offsets = [0, 64], sizes = [8, 32], strides = [1, 1]} : vector<8x96xf32> to vector<8x32xf32>
    %292 = arith.mulf %289, %291 : vector<8x32xf32>
    %293 = arith.addf %290, %292 : vector<8x32xf32>
    %294 = math.tanh %293 : vector<8x32xf32>
    %cst_62 = arith.constant 1.000000e+00 : f32
    %295 = vector.broadcast %cst_62 : f32 to vector<8x32xf32>
    %296 = arith.subf %295, %281 : vector<8x32xf32>
    %297 = arith.mulf %296, %269 : vector<8x32xf32>
    %298 = arith.mulf %281, %294 : vector<8x32xf32>
    %299 = arith.addf %297, %298 : vector<8x32xf32>
    %300 = vector.broadcast %272 : vector<8x1xf32> to vector<8x32xf32>
    %301 = arith.mulf %300, %299 : vector<8x32xf32>
    %cst_63 = arith.constant 1.000000e+00 : f32
    %302 = vector.broadcast %cst_63 : f32 to vector<8x1xf32>
    %303 = arith.subf %302, %272 : vector<8x1xf32>
    %304 = vector.broadcast %303 : vector<8x1xf32> to vector<8x32xf32>
    %305 = arith.mulf %304, %269 : vector<8x32xf32>
    %306 = arith.addf %301, %305 : vector<8x32xf32>
    %c56 = arith.constant 56 : index
    %c0_64 = arith.constant 0 : index
    %307 = vector.load %arg32[%c56, %c0_64] : memref<64x32xf32, #tpu.memory_space<vmem>>, vector<8x32xf32>
    tpu.vector_store %arg32[%c56, %c0_64], %306 {strides = array<i32>} : memref<64x32xf32, #tpu.memory_space<vmem>>, vector<8x32xf32>,
    %c0_65 = arith.constant 0 : index
    %c0_66 = arith.constant 0 : index
    %308 = vector.load %arg32[%c0_65, %c0_66] : memref<64x32xf32, #tpu.memory_space<vmem>>, vector<64x32xf32>
    %c0_67 = arith.constant 0 : index
    %c0_68 = arith.constant 0 : index
    %309 = vector.load %arg7[%c0_67, %c0_68] : memref<32x96xf32, #tpu.memory_space<vmem>>, vector<32x96xf32>
    %cst_69 = arith.constant dense<0.000000e+00> : vector<64x96xf32>
    %310 = tpu.matmul %308, %309, %cst_69 {dimension_numbers = #tpu.dot_dimension_numbers<[1], [0], [0], [1], [0, 0, 1, 1], [], []>} : vector<64x32xf32>, vector<32x96xf32>, vector<64x96xf32> -> vector<64x96xf32>
    %c0_70 = arith.constant 0 : index
    %c0_71 = arith.constant 0 : index
    %311 = vector.load %arg9[%c0_70, %c0_71] : memref<1x96xf32, #tpu.memory_space<vmem>>, vector<1x96xf32>
    %312 = vector.broadcast %311 : vector<1x96xf32> to vector<64x96xf32>
    %313 = arith.addf %310, %312 : vector<64x96xf32>
    %cst_72 = arith.constant 0.000000e+00 : f32
    %314 = vector.broadcast %cst_72 : f32 to vector<8x32xf32>
    %315 = vector.extract_strided_slice %313 {offsets = [56, 0], sizes = [8, 96], strides = [1, 1]} : vector<64x96xf32> to vector<8x96xf32>
    %316 = vector.extract_strided_slice %1 {offsets = [56, 0], sizes = [8, 1], strides = [1, 1]} : vector<64x1xf32> to vector<8x1xf32>
    %cst_73 = arith.constant dense<0.000000e+00> : vector<8x96xf32>
    %317 = tpu.matmul %314, %5, %cst_73 {dimension_numbers = #tpu.dot_dimension_numbers<[1], [0], [0], [1], [0, 0, 1, 1], [], []>} : vector<8x32xf32>, vector<32x96xf32>, vector<8x96xf32> -> vector<8x96xf32>
    %318 = vector.extract_strided_slice %315 {offsets = [0, 0], sizes = [8, 32], strides = [1, 1]} : vector<8x96xf32> to vector<8x32xf32>
    %319 = vector.extract_strided_slice %317 {offsets = [0, 0], sizes = [8, 32], strides = [1, 1]} : vector<8x96xf32> to vector<8x32xf32>
    %320 = arith.addf %318, %319 : vector<8x32xf32>
    %321 = arith.negf %320 : vector<8x32xf32>
    %322 = math.exp %321 : vector<8x32xf32>
    %cst_74 = arith.constant 1.000000e+00 : f32
    %323 = vector.broadcast %cst_74 : f32 to vector<8x32xf32>
    %324 = arith.addf %323, %322 : vector<8x32xf32>
    %325 = arith.divf %323, %324 : vector<8x32xf32>
    %326 = vector.extract_strided_slice %315 {offsets = [0, 32], sizes = [8, 32], strides = [1, 1]} : vector<8x96xf32> to vector<8x32xf32>
    %327 = vector.extract_strided_slice %317 {offsets = [0, 32], sizes = [8, 32], strides = [1, 1]} : vector<8x96xf32> to vector<8x32xf32>
    %328 = arith.addf %326, %327 : vector<8x32xf32>
    %329 = arith.negf %328 : vector<8x32xf32>
    %330 = math.exp %329 : vector<8x32xf32>
    %cst_75 = arith.constant 1.000000e+00 : f32
    %331 = vector.broadcast %cst_75 : f32 to vector<8x32xf32>
    %332 = arith.addf %331, %330 : vector<8x32xf32>
    %333 = arith.divf %331, %332 : vector<8x32xf32>
    %334 = vector.extract_strided_slice %315 {offsets = [0, 64], sizes = [8, 32], strides = [1, 1]} : vector<8x96xf32> to vector<8x32xf32>
    %335 = vector.extract_strided_slice %317 {offsets = [0, 64], sizes = [8, 32], strides = [1, 1]} : vector<8x96xf32> to vector<8x32xf32>
    %336 = arith.mulf %333, %335 : vector<8x32xf32>
    %337 = arith.addf %334, %336 : vector<8x32xf32>
    %338 = math.tanh %337 : vector<8x32xf32>
    %cst_76 = arith.constant 1.000000e+00 : f32
    %339 = vector.broadcast %cst_76 : f32 to vector<8x32xf32>
    %340 = arith.subf %339, %325 : vector<8x32xf32>
    %341 = arith.mulf %340, %314 : vector<8x32xf32>
    %342 = arith.mulf %325, %338 : vector<8x32xf32>
    %343 = arith.addf %341, %342 : vector<8x32xf32>
    %344 = vector.broadcast %316 : vector<8x1xf32> to vector<8x32xf32>
    %345 = arith.mulf %344, %343 : vector<8x32xf32>
    %cst_77 = arith.constant 1.000000e+00 : f32
    %346 = vector.broadcast %cst_77 : f32 to vector<8x1xf32>
    %347 = arith.subf %346, %316 : vector<8x1xf32>
    %348 = vector.broadcast %347 : vector<8x1xf32> to vector<8x32xf32>
    %349 = arith.mulf %348, %314 : vector<8x32xf32>
    %350 = arith.addf %345, %349 : vector<8x32xf32>
    %c56_78 = arith.constant 56 : index
    %c0_79 = arith.constant 0 : index
    %351 = vector.load %arg33[%c56_78, %c0_79] : memref<64x32xf32, #tpu.memory_space<vmem>>, vector<8x32xf32>
    tpu.vector_store %arg33[%c56_78, %c0_79], %350 {strides = array<i32>} : memref<64x32xf32, #tpu.memory_space<vmem>>, vector<8x32xf32>,
    %352 = vector.extract_strided_slice %313 {offsets = [48, 0], sizes = [8, 96], strides = [1, 1]} : vector<64x96xf32> to vector<8x96xf32>
    %353 = vector.extract_strided_slice %1 {offsets = [48, 0], sizes = [8, 1], strides = [1, 1]} : vector<64x1xf32> to vector<8x1xf32>
    %cst_80 = arith.constant dense<0.000000e+00> : vector<8x96xf32>
    %354 = tpu.matmul %350, %5, %cst_80 {dimension_numbers = #tpu.dot_dimension_numbers<[1], [0], [0], [1], [0, 0, 1, 1], [], []>} : vector<8x32xf32>, vector<32x96xf32>, vector<8x96xf32> -> vector<8x96xf32>
    %355 = vector.extract_strided_slice %352 {offsets = [0, 0], sizes = [8, 32], strides = [1, 1]} : vector<8x96xf32> to vector<8x32xf32>
    %356 = vector.extract_strided_slice %354 {offsets = [0, 0], sizes = [8, 32], strides = [1, 1]} : vector<8x96xf32> to vector<8x32xf32>
    %357 = arith.addf %355, %356 : vector<8x32xf32>
    %358 = arith.negf %357 : vector<8x32xf32>
    %359 = math.exp %358 : vector<8x32xf32>
    %cst_81 = arith.constant 1.000000e+00 : f32
    %360 = vector.broadcast %cst_81 : f32 to vector<8x32xf32>
    %361 = arith.addf %360, %359 : vector<8x32xf32>
    %362 = arith.divf %360, %361 : vector<8x32xf32>
    %363 = vector.extract_strided_slice %352 {offsets = [0, 32], sizes = [8, 32], strides = [1, 1]} : vector<8x96xf32> to vector<8x32xf32>
    %364 = vector.extract_strided_slice %354 {offsets = [0, 32], sizes = [8, 32], strides = [1, 1]} : vector<8x96xf32> to vector<8x32xf32>
    %365 = arith.addf %363, %364 : vector<8x32xf32>
    %366 = arith.negf %365 : vector<8x32xf32>
    %367 = math.exp %366 : vector<8x32xf32>
    %cst_82 = arith.constant 1.000000e+00 : f32
    %368 = vector.broadcast %cst_82 : f32 to vector<8x32xf32>
    %369 = arith.addf %368, %367 : vector<8x32xf32>
    %370 = arith.divf %368, %369 : vector<8x32xf32>
    %371 = vector.extract_strided_slice %352 {offsets = [0, 64], sizes = [8, 32], strides = [1, 1]} : vector<8x96xf32> to vector<8x32xf32>
    %372 = vector.extract_strided_slice %354 {offsets = [0, 64], sizes = [8, 32], strides = [1, 1]} : vector<8x96xf32> to vector<8x32xf32>
    %373 = arith.mulf %370, %372 : vector<8x32xf32>
    %374 = arith.addf %371, %373 : vector<8x32xf32>
    %375 = math.tanh %374 : vector<8x32xf32>
    %cst_83 = arith.constant 1.000000e+00 : f32
    %376 = vector.broadcast %cst_83 : f32 to vector<8x32xf32>
    %377 = arith.subf %376, %362 : vector<8x32xf32>
    %378 = arith.mulf %377, %350 : vector<8x32xf32>
    %379 = arith.mulf %362, %375 : vector<8x32xf32>
    %380 = arith.addf %378, %379 : vector<8x32xf32>
    %381 = vector.broadcast %353 : vector<8x1xf32> to vector<8x32xf32>
    %382 = arith.mulf %381, %380 : vector<8x32xf32>
    %cst_84 = arith.constant 1.000000e+00 : f32
    %383 = vector.broadcast %cst_84 : f32 to vector<8x1xf32>
    %384 = arith.subf %383, %353 : vector<8x1xf32>
    %385 = vector.broadcast %384 : vector<8x1xf32> to vector<8x32xf32>
    %386 = arith.mulf %385, %350 : vector<8x32xf32>
    %387 = arith.addf %382, %386 : vector<8x32xf32>
    %c48_85 = arith.constant 48 : index
    %c0_86 = arith.constant 0 : index
    %388 = vector.load %arg33[%c48_85, %c0_86] : memref<64x32xf32, #tpu.memory_space<vmem>>, vector<8x32xf32>
    tpu.vector_store %arg33[%c48_85, %c0_86], %387 {strides = array<i32>} : memref<64x32xf32, #tpu.memory_space<vmem>>, vector<8x32xf32>,
    %389 = vector.extract_strided_slice %313 {offsets = [40, 0], sizes = [8, 96], strides = [1, 1]} : vector<64x96xf32> to vector<8x96xf32>
    %390 = vector.extract_strided_slice %1 {offsets = [40, 0], sizes = [8, 1], strides = [1, 1]} : vector<64x1xf32> to vector<8x1xf32>
    %cst_87 = arith.constant dense<0.000000e+00> : vector<8x96xf32>
    %391 = tpu.matmul %387, %5, %cst_87 {dimension_numbers = #tpu.dot_dimension_numbers<[1], [0], [0], [1], [0, 0, 1, 1], [], []>} : vector<8x32xf32>, vector<32x96xf32>, vector<8x96xf32> -> vector<8x96xf32>
    %392 = vector.extract_strided_slice %389 {offsets = [0, 0], sizes = [8, 32], strides = [1, 1]} : vector<8x96xf32> to vector<8x32xf32>
    %393 = vector.extract_strided_slice %391 {offsets = [0, 0], sizes = [8, 32], strides = [1, 1]} : vector<8x96xf32> to vector<8x32xf32>
    %394 = arith.addf %392, %393 : vector<8x32xf32>
    %395 = arith.negf %394 : vector<8x32xf32>
    %396 = math.exp %395 : vector<8x32xf32>
    %cst_88 = arith.constant 1.000000e+00 : f32
    %397 = vector.broadcast %cst_88 : f32 to vector<8x32xf32>
    %398 = arith.addf %397, %396 : vector<8x32xf32>
    %399 = arith.divf %397, %398 : vector<8x32xf32>
    %400 = vector.extract_strided_slice %389 {offsets = [0, 32], sizes = [8, 32], strides = [1, 1]} : vector<8x96xf32> to vector<8x32xf32>
    %401 = vector.extract_strided_slice %391 {offsets = [0, 32], sizes = [8, 32], strides = [1, 1]} : vector<8x96xf32> to vector<8x32xf32>
    %402 = arith.addf %400, %401 : vector<8x32xf32>
    %403 = arith.negf %402 : vector<8x32xf32>
    %404 = math.exp %403 : vector<8x32xf32>
    %cst_89 = arith.constant 1.000000e+00 : f32
    %405 = vector.broadcast %cst_89 : f32 to vector<8x32xf32>
    %406 = arith.addf %405, %404 : vector<8x32xf32>
    %407 = arith.divf %405, %406 : vector<8x32xf32>
    %408 = vector.extract_strided_slice %389 {offsets = [0, 64], sizes = [8, 32], strides = [1, 1]} : vector<8x96xf32> to vector<8x32xf32>
    %409 = vector.extract_strided_slice %391 {offsets = [0, 64], sizes = [8, 32], strides = [1, 1]} : vector<8x96xf32> to vector<8x32xf32>
    %410 = arith.mulf %407, %409 : vector<8x32xf32>
    %411 = arith.addf %408, %410 : vector<8x32xf32>
    %412 = math.tanh %411 : vector<8x32xf32>
    %cst_90 = arith.constant 1.000000e+00 : f32
    %413 = vector.broadcast %cst_90 : f32 to vector<8x32xf32>
    %414 = arith.subf %413, %399 : vector<8x32xf32>
    %415 = arith.mulf %414, %387 : vector<8x32xf32>
    %416 = arith.mulf %399, %412 : vector<8x32xf32>
    %417 = arith.addf %415, %416 : vector<8x32xf32>
    %418 = vector.broadcast %390 : vector<8x1xf32> to vector<8x32xf32>
    %419 = arith.mulf %418, %417 : vector<8x32xf32>
    %cst_91 = arith.constant 1.000000e+00 : f32
    %420 = vector.broadcast %cst_91 : f32 to vector<8x1xf32>
    %421 = arith.subf %420, %390 : vector<8x1xf32>
    %422 = vector.broadcast %421 : vector<8x1xf32> to vector<8x32xf32>
    %423 = arith.mulf %422, %387 : vector<8x32xf32>
    %424 = arith.addf %419, %423 : vector<8x32xf32>
    %c40_92 = arith.constant 40 : index
    %c0_93 = arith.constant 0 : index
    %425 = vector.load %arg33[%c40_92, %c0_93] : memref<64x32xf32, #tpu.memory_space<vmem>>, vector<8x32xf32>
    tpu.vector_store %arg33[%c40_92, %c0_93], %424 {strides = array<i32>} : memref<64x32xf32, #tpu.memory_space<vmem>>, vector<8x32xf32>,
    %426 = vector.extract_strided_slice %313 {offsets = [32, 0], sizes = [8, 96], strides = [1, 1]} : vector<64x96xf32> to vector<8x96xf32>
    %427 = vector.extract_strided_slice %1 {offsets = [32, 0], sizes = [8, 1], strides = [1, 1]} : vector<64x1xf32> to vector<8x1xf32>
    %cst_94 = arith.constant dense<0.000000e+00> : vector<8x96xf32>
    %428 = tpu.matmul %424, %5, %cst_94 {dimension_numbers = #tpu.dot_dimension_numbers<[1], [0], [0], [1], [0, 0, 1, 1], [], []>} : vector<8x32xf32>, vector<32x96xf32>, vector<8x96xf32> -> vector<8x96xf32>
    %429 = vector.extract_strided_slice %426 {offsets = [0, 0], sizes = [8, 32], strides = [1, 1]} : vector<8x96xf32> to vector<8x32xf32>
    %430 = vector.extract_strided_slice %428 {offsets = [0, 0], sizes = [8, 32], strides = [1, 1]} : vector<8x96xf32> to vector<8x32xf32>
    %431 = arith.addf %429, %430 : vector<8x32xf32>
    %432 = arith.negf %431 : vector<8x32xf32>
    %433 = math.exp %432 : vector<8x32xf32>
    %cst_95 = arith.constant 1.000000e+00 : f32
    %434 = vector.broadcast %cst_95 : f32 to vector<8x32xf32>
    %435 = arith.addf %434, %433 : vector<8x32xf32>
    %436 = arith.divf %434, %435 : vector<8x32xf32>
    %437 = vector.extract_strided_slice %426 {offsets = [0, 32], sizes = [8, 32], strides = [1, 1]} : vector<8x96xf32> to vector<8x32xf32>
    %438 = vector.extract_strided_slice %428 {offsets = [0, 32], sizes = [8, 32], strides = [1, 1]} : vector<8x96xf32> to vector<8x32xf32>
    %439 = arith.addf %437, %438 : vector<8x32xf32>
    %440 = arith.negf %439 : vector<8x32xf32>
    %441 = math.exp %440 : vector<8x32xf32>
    %cst_96 = arith.constant 1.000000e+00 : f32
    %442 = vector.broadcast %cst_96 : f32 to vector<8x32xf32>
    %443 = arith.addf %442, %441 : vector<8x32xf32>
    %444 = arith.divf %442, %443 : vector<8x32xf32>
    %445 = vector.extract_strided_slice %426 {offsets = [0, 64], sizes = [8, 32], strides = [1, 1]} : vector<8x96xf32> to vector<8x32xf32>
    %446 = vector.extract_strided_slice %428 {offsets = [0, 64], sizes = [8, 32], strides = [1, 1]} : vector<8x96xf32> to vector<8x32xf32>
    %447 = arith.mulf %444, %446 : vector<8x32xf32>
    %448 = arith.addf %445, %447 : vector<8x32xf32>
    %449 = math.tanh %448 : vector<8x32xf32>
    %cst_97 = arith.constant 1.000000e+00 : f32
    %450 = vector.broadcast %cst_97 : f32 to vector<8x32xf32>
    %451 = arith.subf %450, %436 : vector<8x32xf32>
    %452 = arith.mulf %451, %424 : vector<8x32xf32>
    %453 = arith.mulf %436, %449 : vector<8x32xf32>
    %454 = arith.addf %452, %453 : vector<8x32xf32>
    %455 = vector.broadcast %427 : vector<8x1xf32> to vector<8x32xf32>
    %456 = arith.mulf %455, %454 : vector<8x32xf32>
    %cst_98 = arith.constant 1.000000e+00 : f32
    %457 = vector.broadcast %cst_98 : f32 to vector<8x1xf32>
    %458 = arith.subf %457, %427 : vector<8x1xf32>
    %459 = vector.broadcast %458 : vector<8x1xf32> to vector<8x32xf32>
    %460 = arith.mulf %459, %424 : vector<8x32xf32>
    %461 = arith.addf %456, %460 : vector<8x32xf32>
    %c32_99 = arith.constant 32 : index
    %c0_100 = arith.constant 0 : index
    %462 = vector.load %arg33[%c32_99, %c0_100] : memref<64x32xf32, #tpu.memory_space<vmem>>, vector<8x32xf32>
    tpu.vector_store %arg33[%c32_99, %c0_100], %461 {strides = array<i32>} : memref<64x32xf32, #tpu.memory_space<vmem>>, vector<8x32xf32>,
    %463 = vector.extract_strided_slice %313 {offsets = [24, 0], sizes = [8, 96], strides = [1, 1]} : vector<64x96xf32> to vector<8x96xf32>
    %464 = vector.extract_strided_slice %1 {offsets = [24, 0], sizes = [8, 1], strides = [1, 1]} : vector<64x1xf32> to vector<8x1xf32>
    %cst_101 = arith.constant dense<0.000000e+00> : vector<8x96xf32>
    %465 = tpu.matmul %461, %5, %cst_101 {dimension_numbers = #tpu.dot_dimension_numbers<[1], [0], [0], [1], [0, 0, 1, 1], [], []>} : vector<8x32xf32>, vector<32x96xf32>, vector<8x96xf32> -> vector<8x96xf32>
    %466 = vector.extract_strided_slice %463 {offsets = [0, 0], sizes = [8, 32], strides = [1, 1]} : vector<8x96xf32> to vector<8x32xf32>
    %467 = vector.extract_strided_slice %465 {offsets = [0, 0], sizes = [8, 32], strides = [1, 1]} : vector<8x96xf32> to vector<8x32xf32>
    %468 = arith.addf %466, %467 : vector<8x32xf32>
    %469 = arith.negf %468 : vector<8x32xf32>
    %470 = math.exp %469 : vector<8x32xf32>
    %cst_102 = arith.constant 1.000000e+00 : f32
    %471 = vector.broadcast %cst_102 : f32 to vector<8x32xf32>
    %472 = arith.addf %471, %470 : vector<8x32xf32>
    %473 = arith.divf %471, %472 : vector<8x32xf32>
    %474 = vector.extract_strided_slice %463 {offsets = [0, 32], sizes = [8, 32], strides = [1, 1]} : vector<8x96xf32> to vector<8x32xf32>
    %475 = vector.extract_strided_slice %465 {offsets = [0, 32], sizes = [8, 32], strides = [1, 1]} : vector<8x96xf32> to vector<8x32xf32>
    %476 = arith.addf %474, %475 : vector<8x32xf32>
    %477 = arith.negf %476 : vector<8x32xf32>
    %478 = math.exp %477 : vector<8x32xf32>
    %cst_103 = arith.constant 1.000000e+00 : f32
    %479 = vector.broadcast %cst_103 : f32 to vector<8x32xf32>
    %480 = arith.addf %479, %478 : vector<8x32xf32>
    %481 = arith.divf %479, %480 : vector<8x32xf32>
    %482 = vector.extract_strided_slice %463 {offsets = [0, 64], sizes = [8, 32], strides = [1, 1]} : vector<8x96xf32> to vector<8x32xf32>
    %483 = vector.extract_strided_slice %465 {offsets = [0, 64], sizes = [8, 32], strides = [1, 1]} : vector<8x96xf32> to vector<8x32xf32>
    %484 = arith.mulf %481, %483 : vector<8x32xf32>
    %485 = arith.addf %482, %484 : vector<8x32xf32>
    %486 = math.tanh %485 : vector<8x32xf32>
    %cst_104 = arith.constant 1.000000e+00 : f32
    %487 = vector.broadcast %cst_104 : f32 to vector<8x32xf32>
    %488 = arith.subf %487, %473 : vector<8x32xf32>
    %489 = arith.mulf %488, %461 : vector<8x32xf32>
    %490 = arith.mulf %473, %486 : vector<8x32xf32>
    %491 = arith.addf %489, %490 : vector<8x32xf32>
    %492 = vector.broadcast %464 : vector<8x1xf32> to vector<8x32xf32>
    %493 = arith.mulf %492, %491 : vector<8x32xf32>
    %cst_105 = arith.constant 1.000000e+00 : f32
    %494 = vector.broadcast %cst_105 : f32 to vector<8x1xf32>
    %495 = arith.subf %494, %464 : vector<8x1xf32>
    %496 = vector.broadcast %495 : vector<8x1xf32> to vector<8x32xf32>
    %497 = arith.mulf %496, %461 : vector<8x32xf32>
    %498 = arith.addf %493, %497 : vector<8x32xf32>
    %c24_106 = arith.constant 24 : index
    %c0_107 = arith.constant 0 : index
    %499 = vector.load %arg33[%c24_106, %c0_107] : memref<64x32xf32, #tpu.memory_space<vmem>>, vector<8x32xf32>
    tpu.vector_store %arg33[%c24_106, %c0_107], %498 {strides = array<i32>} : memref<64x32xf32, #tpu.memory_space<vmem>>, vector<8x32xf32>,
    %500 = vector.extract_strided_slice %313 {offsets = [16, 0], sizes = [8, 96], strides = [1, 1]} : vector<64x96xf32> to vector<8x96xf32>
    %501 = vector.extract_strided_slice %1 {offsets = [16, 0], sizes = [8, 1], strides = [1, 1]} : vector<64x1xf32> to vector<8x1xf32>
    %cst_108 = arith.constant dense<0.000000e+00> : vector<8x96xf32>
    %502 = tpu.matmul %498, %5, %cst_108 {dimension_numbers = #tpu.dot_dimension_numbers<[1], [0], [0], [1], [0, 0, 1, 1], [], []>} : vector<8x32xf32>, vector<32x96xf32>, vector<8x96xf32> -> vector<8x96xf32>
    %503 = vector.extract_strided_slice %500 {offsets = [0, 0], sizes = [8, 32], strides = [1, 1]} : vector<8x96xf32> to vector<8x32xf32>
    %504 = vector.extract_strided_slice %502 {offsets = [0, 0], sizes = [8, 32], strides = [1, 1]} : vector<8x96xf32> to vector<8x32xf32>
    %505 = arith.addf %503, %504 : vector<8x32xf32>
    %506 = arith.negf %505 : vector<8x32xf32>
    %507 = math.exp %506 : vector<8x32xf32>
    %cst_109 = arith.constant 1.000000e+00 : f32
    %508 = vector.broadcast %cst_109 : f32 to vector<8x32xf32>
    %509 = arith.addf %508, %507 : vector<8x32xf32>
    %510 = arith.divf %508, %509 : vector<8x32xf32>
    %511 = vector.extract_strided_slice %500 {offsets = [0, 32], sizes = [8, 32], strides = [1, 1]} : vector<8x96xf32> to vector<8x32xf32>
    %512 = vector.extract_strided_slice %502 {offsets = [0, 32], sizes = [8, 32], strides = [1, 1]} : vector<8x96xf32> to vector<8x32xf32>
    %513 = arith.addf %511, %512 : vector<8x32xf32>
    %514 = arith.negf %513 : vector<8x32xf32>
    %515 = math.exp %514 : vector<8x32xf32>
    %cst_110 = arith.constant 1.000000e+00 : f32
    %516 = vector.broadcast %cst_110 : f32 to vector<8x32xf32>
    %517 = arith.addf %516, %515 : vector<8x32xf32>
    %518 = arith.divf %516, %517 : vector<8x32xf32>
    %519 = vector.extract_strided_slice %500 {offsets = [0, 64], sizes = [8, 32], strides = [1, 1]} : vector<8x96xf32> to vector<8x32xf32>
    %520 = vector.extract_strided_slice %502 {offsets = [0, 64], sizes = [8, 32], strides = [1, 1]} : vector<8x96xf32> to vector<8x32xf32>
    %521 = arith.mulf %518, %520 : vector<8x32xf32>
    %522 = arith.addf %519, %521 : vector<8x32xf32>
    %523 = math.tanh %522 : vector<8x32xf32>
    %cst_111 = arith.constant 1.000000e+00 : f32
    %524 = vector.broadcast %cst_111 : f32 to vector<8x32xf32>
    %525 = arith.subf %524, %510 : vector<8x32xf32>
    %526 = arith.mulf %525, %498 : vector<8x32xf32>
    %527 = arith.mulf %510, %523 : vector<8x32xf32>
    %528 = arith.addf %526, %527 : vector<8x32xf32>
    %529 = vector.broadcast %501 : vector<8x1xf32> to vector<8x32xf32>
    %530 = arith.mulf %529, %528 : vector<8x32xf32>
    %cst_112 = arith.constant 1.000000e+00 : f32
    %531 = vector.broadcast %cst_112 : f32 to vector<8x1xf32>
    %532 = arith.subf %531, %501 : vector<8x1xf32>
    %533 = vector.broadcast %532 : vector<8x1xf32> to vector<8x32xf32>
    %534 = arith.mulf %533, %498 : vector<8x32xf32>
    %535 = arith.addf %530, %534 : vector<8x32xf32>
    %c16_113 = arith.constant 16 : index
    %c0_114 = arith.constant 0 : index
    %536 = vector.load %arg33[%c16_113, %c0_114] : memref<64x32xf32, #tpu.memory_space<vmem>>, vector<8x32xf32>
    tpu.vector_store %arg33[%c16_113, %c0_114], %535 {strides = array<i32>} : memref<64x32xf32, #tpu.memory_space<vmem>>, vector<8x32xf32>,
    %537 = vector.extract_strided_slice %313 {offsets = [8, 0], sizes = [8, 96], strides = [1, 1]} : vector<64x96xf32> to vector<8x96xf32>
    %538 = vector.extract_strided_slice %1 {offsets = [8, 0], sizes = [8, 1], strides = [1, 1]} : vector<64x1xf32> to vector<8x1xf32>
    %cst_115 = arith.constant dense<0.000000e+00> : vector<8x96xf32>
    %539 = tpu.matmul %535, %5, %cst_115 {dimension_numbers = #tpu.dot_dimension_numbers<[1], [0], [0], [1], [0, 0, 1, 1], [], []>} : vector<8x32xf32>, vector<32x96xf32>, vector<8x96xf32> -> vector<8x96xf32>
    %540 = vector.extract_strided_slice %537 {offsets = [0, 0], sizes = [8, 32], strides = [1, 1]} : vector<8x96xf32> to vector<8x32xf32>
    %541 = vector.extract_strided_slice %539 {offsets = [0, 0], sizes = [8, 32], strides = [1, 1]} : vector<8x96xf32> to vector<8x32xf32>
    %542 = arith.addf %540, %541 : vector<8x32xf32>
    %543 = arith.negf %542 : vector<8x32xf32>
    %544 = math.exp %543 : vector<8x32xf32>
    %cst_116 = arith.constant 1.000000e+00 : f32
    %545 = vector.broadcast %cst_116 : f32 to vector<8x32xf32>
    %546 = arith.addf %545, %544 : vector<8x32xf32>
    %547 = arith.divf %545, %546 : vector<8x32xf32>
    %548 = vector.extract_strided_slice %537 {offsets = [0, 32], sizes = [8, 32], strides = [1, 1]} : vector<8x96xf32> to vector<8x32xf32>
    %549 = vector.extract_strided_slice %539 {offsets = [0, 32], sizes = [8, 32], strides = [1, 1]} : vector<8x96xf32> to vector<8x32xf32>
    %550 = arith.addf %548, %549 : vector<8x32xf32>
    %551 = arith.negf %550 : vector<8x32xf32>
    %552 = math.exp %551 : vector<8x32xf32>
    %cst_117 = arith.constant 1.000000e+00 : f32
    %553 = vector.broadcast %cst_117 : f32 to vector<8x32xf32>
    %554 = arith.addf %553, %552 : vector<8x32xf32>
    %555 = arith.divf %553, %554 : vector<8x32xf32>
    %556 = vector.extract_strided_slice %537 {offsets = [0, 64], sizes = [8, 32], strides = [1, 1]} : vector<8x96xf32> to vector<8x32xf32>
    %557 = vector.extract_strided_slice %539 {offsets = [0, 64], sizes = [8, 32], strides = [1, 1]} : vector<8x96xf32> to vector<8x32xf32>
    %558 = arith.mulf %555, %557 : vector<8x32xf32>
    %559 = arith.addf %556, %558 : vector<8x32xf32>
    %560 = math.tanh %559 : vector<8x32xf32>
    %cst_118 = arith.constant 1.000000e+00 : f32
    %561 = vector.broadcast %cst_118 : f32 to vector<8x32xf32>
    %562 = arith.subf %561, %547 : vector<8x32xf32>
    %563 = arith.mulf %562, %535 : vector<8x32xf32>
    %564 = arith.mulf %547, %560 : vector<8x32xf32>
    %565 = arith.addf %563, %564 : vector<8x32xf32>
    %566 = vector.broadcast %538 : vector<8x1xf32> to vector<8x32xf32>
    %567 = arith.mulf %566, %565 : vector<8x32xf32>
    %cst_119 = arith.constant 1.000000e+00 : f32
    %568 = vector.broadcast %cst_119 : f32 to vector<8x1xf32>
    %569 = arith.subf %568, %538 : vector<8x1xf32>
    %570 = vector.broadcast %569 : vector<8x1xf32> to vector<8x32xf32>
    %571 = arith.mulf %570, %535 : vector<8x32xf32>
    %572 = arith.addf %567, %571 : vector<8x32xf32>
    %c8_120 = arith.constant 8 : index
    %c0_121 = arith.constant 0 : index
    %573 = vector.load %arg33[%c8_120, %c0_121] : memref<64x32xf32, #tpu.memory_space<vmem>>, vector<8x32xf32>
    tpu.vector_store %arg33[%c8_120, %c0_121], %572 {strides = array<i32>} : memref<64x32xf32, #tpu.memory_space<vmem>>, vector<8x32xf32>,
    %574 = vector.extract_strided_slice %313 {offsets = [0, 0], sizes = [8, 96], strides = [1, 1]} : vector<64x96xf32> to vector<8x96xf32>
    %575 = vector.extract_strided_slice %1 {offsets = [0, 0], sizes = [8, 1], strides = [1, 1]} : vector<64x1xf32> to vector<8x1xf32>
    %cst_122 = arith.constant dense<0.000000e+00> : vector<8x96xf32>
    %576 = tpu.matmul %572, %5, %cst_122 {dimension_numbers = #tpu.dot_dimension_numbers<[1], [0], [0], [1], [0, 0, 1, 1], [], []>} : vector<8x32xf32>, vector<32x96xf32>, vector<8x96xf32> -> vector<8x96xf32>
    %577 = vector.extract_strided_slice %574 {offsets = [0, 0], sizes = [8, 32], strides = [1, 1]} : vector<8x96xf32> to vector<8x32xf32>
    %578 = vector.extract_strided_slice %576 {offsets = [0, 0], sizes = [8, 32], strides = [1, 1]} : vector<8x96xf32> to vector<8x32xf32>
    %579 = arith.addf %577, %578 : vector<8x32xf32>
    %580 = arith.negf %579 : vector<8x32xf32>
    %581 = math.exp %580 : vector<8x32xf32>
    %cst_123 = arith.constant 1.000000e+00 : f32
    %582 = vector.broadcast %cst_123 : f32 to vector<8x32xf32>
    %583 = arith.addf %582, %581 : vector<8x32xf32>
    %584 = arith.divf %582, %583 : vector<8x32xf32>
    %585 = vector.extract_strided_slice %574 {offsets = [0, 32], sizes = [8, 32], strides = [1, 1]} : vector<8x96xf32> to vector<8x32xf32>
    %586 = vector.extract_strided_slice %576 {offsets = [0, 32], sizes = [8, 32], strides = [1, 1]} : vector<8x96xf32> to vector<8x32xf32>
    %587 = arith.addf %585, %586 : vector<8x32xf32>
    %588 = arith.negf %587 : vector<8x32xf32>
    %589 = math.exp %588 : vector<8x32xf32>
    %cst_124 = arith.constant 1.000000e+00 : f32
    %590 = vector.broadcast %cst_124 : f32 to vector<8x32xf32>
    %591 = arith.addf %590, %589 : vector<8x32xf32>
    %592 = arith.divf %590, %591 : vector<8x32xf32>
    %593 = vector.extract_strided_slice %574 {offsets = [0, 64], sizes = [8, 32], strides = [1, 1]} : vector<8x96xf32> to vector<8x32xf32>
    %594 = vector.extract_strided_slice %576 {offsets = [0, 64], sizes = [8, 32], strides = [1, 1]} : vector<8x96xf32> to vector<8x32xf32>
    %595 = arith.mulf %592, %594 : vector<8x32xf32>
    %596 = arith.addf %593, %595 : vector<8x32xf32>
    %597 = math.tanh %596 : vector<8x32xf32>
    %cst_125 = arith.constant 1.000000e+00 : f32
    %598 = vector.broadcast %cst_125 : f32 to vector<8x32xf32>
    %599 = arith.subf %598, %584 : vector<8x32xf32>
    %600 = arith.mulf %599, %572 : vector<8x32xf32>
    %601 = arith.mulf %584, %597 : vector<8x32xf32>
    %602 = arith.addf %600, %601 : vector<8x32xf32>
    %603 = vector.broadcast %575 : vector<8x1xf32> to vector<8x32xf32>
    %604 = arith.mulf %603, %602 : vector<8x32xf32>
    %cst_126 = arith.constant 1.000000e+00 : f32
    %605 = vector.broadcast %cst_126 : f32 to vector<8x1xf32>
    %606 = arith.subf %605, %575 : vector<8x1xf32>
    %607 = vector.broadcast %606 : vector<8x1xf32> to vector<8x32xf32>
    %608 = arith.mulf %607, %572 : vector<8x32xf32>
    %609 = arith.addf %604, %608 : vector<8x32xf32>
    %c0_127 = arith.constant 0 : index
    %c0_128 = arith.constant 0 : index
    %610 = vector.load %arg33[%c0_127, %c0_128] : memref<64x32xf32, #tpu.memory_space<vmem>>, vector<8x32xf32>
    tpu.vector_store %arg33[%c0_127, %c0_128], %609 {strides = array<i32>} : memref<64x32xf32, #tpu.memory_space<vmem>>, vector<8x32xf32>,
    %c0_129 = arith.constant 0 : index
    %c0_130 = arith.constant 0 : index
    %611 = vector.load %arg33[%c0_129, %c0_130] : memref<64x32xf32, #tpu.memory_space<vmem>>, vector<64x32xf32>
    %c0_131 = arith.constant 0 : index
    %c0_132 = arith.constant 0 : index
    %612 = vector.load %arg10[%c0_131, %c0_132] : memref<32x32xf32, #tpu.memory_space<vmem>>, vector<32x32xf32>
    %cst_133 = arith.constant dense<0.000000e+00> : vector<64x32xf32>
    %613 = tpu.matmul %611, %612, %cst_133 {dimension_numbers = #tpu.dot_dimension_numbers<[1], [0], [0], [1], [0, 0, 1, 1], [], []>} : vector<64x32xf32>, vector<32x32xf32>, vector<64x32xf32> -> vector<64x32xf32>
    %c0_134 = arith.constant 0 : index
    %c0_135 = arith.constant 0 : index
    %614 = vector.load %arg11[%c0_134, %c0_135] : memref<1x32xf32, #tpu.memory_space<vmem>>, vector<1x32xf32>
    %615 = vector.broadcast %614 : vector<1x32xf32> to vector<64x32xf32>
    %616 = arith.addf %613, %615 : vector<64x32xf32>
    %617 = vector.shape_cast %611 : vector<64x32xf32> to vector<8x8x32xf32>
    %618 = vector.shape_cast %1 : vector<64x1xf32> to vector<8x8x1xf32>
    %619 = vector.broadcast %618 : vector<8x8x1xf32> to vector<8x8x32xf32>
    %620 = arith.mulf %617, %619 : vector<8x8x32xf32>
    %cst_136 = arith.constant dense<0.000000e+00> : vector<8x32xf32>
    %621 = vector.multi_reduction <add>, %620, %cst_136 [0] : vector<8x8x32xf32> to vector<8x32xf32>
    %cst_137 = arith.constant dense<0.000000e+00> : vector<8x1xf32>
    %622 = vector.multi_reduction <add>, %618, %cst_137 [0] : vector<8x8x1xf32> to vector<8x1xf32>
    %cst_138 = arith.constant 0.000000e+00 : f32
    %623 = vector.broadcast %cst_138 : f32 to vector<8x1xf32>
    %624 = arith.cmpf ogt, %622, %623 : vector<8x1xf32>
    %cst_139 = arith.constant 1.000000e+00 : f32
    %625 = vector.broadcast %cst_139 : f32 to vector<8x1xf32>
    %626 = arith.select %624, %622, %625 : vector<8x1xi1>, vector<8x1xf32>
    %627 = vector.broadcast %626 : vector<8x1xf32> to vector<8x32xf32>
    %628 = arith.divf %621, %627 : vector<8x32xf32>
    %c0_140 = arith.constant 0 : index
    %c0_141 = arith.constant 0 : index
    %629 = vector.load %arg12[%c0_140, %c0_141] : memref<32x32xf32, #tpu.memory_space<vmem>>, vector<32x32xf32>
    %cst_142 = arith.constant dense<0.000000e+00> : vector<8x32xf32>
    %630 = tpu.matmul %628, %629, %cst_142 {dimension_numbers = #tpu.dot_dimension_numbers<[1], [0], [0], [1], [0, 0, 1, 1], [], []>} : vector<8x32xf32>, vector<32x32xf32>, vector<8x32xf32> -> vector<8x32xf32>
    %c0_143 = arith.constant 0 : index
    %c0_144 = arith.constant 0 : index
    %631 = vector.load %arg13[%c0_143, %c0_144] : memref<1x32xf32, #tpu.memory_space<vmem>>, vector<1x32xf32>
    %632 = vector.broadcast %631 : vector<1x32xf32> to vector<8x32xf32>
    %633 = arith.addf %630, %632 : vector<8x32xf32>
    %634 = math.tanh %633 : vector<8x32xf32>
    %635 = vector.extract_strided_slice %2 {offsets = [0, 0], sizes = [8, 32], strides = [1, 1]} : vector<48x32xf32> to vector<8x32xf32>
    %c0_145 = arith.constant 0 : index
    %c0_146 = arith.constant 0 : index
    %636 = vector.load %arg15[%c0_145, %c0_146] : memref<32x32xf32, #tpu.memory_space<vmem>>, vector<32x32xf32>
    %cst_147 = arith.constant dense<0.000000e+00> : vector<8x32xf32>
    %637 = tpu.matmul %635, %636, %cst_147 {dimension_numbers = #tpu.dot_dimension_numbers<[1], [0], [0], [1], [0, 0, 1, 1], [], []>} : vector<8x32xf32>, vector<32x32xf32>, vector<8x32xf32> -> vector<8x32xf32>
    %c0_148 = arith.constant 0 : index
    %c0_149 = arith.constant 0 : index
    %638 = vector.load %arg16[%c0_148, %c0_149] : memref<1x32xf32, #tpu.memory_space<vmem>>, vector<1x32xf32>
    %639 = vector.broadcast %638 : vector<1x32xf32> to vector<8x32xf32>
    %640 = arith.addf %637, %639 : vector<8x32xf32>
    %c0_150 = arith.constant 0 : index
    %c0_151 = arith.constant 0 : index
    %641 = vector.load %arg14[%c0_150, %c0_151] : memref<32x32xf32, #tpu.memory_space<vmem>>, vector<32x32xf32>
    %cst_152 = arith.constant dense<0.000000e+00> : vector<48x32xf32>
    %642 = tpu.matmul %2, %641, %cst_152 {dimension_numbers = #tpu.dot_dimension_numbers<[1], [0], [0], [1], [0, 0, 1, 1], [], []>} : vector<48x32xf32>, vector<32x32xf32>, vector<48x32xf32> -> vector<48x32xf32>
    %643 = vector.shape_cast %642 : vector<48x32xf32> to vector<6x8x32xf32>
    %644 = vector.shape_cast %640 : vector<8x32xf32> to vector<1x8x32xf32>
    %645 = vector.broadcast %644 : vector<1x8x32xf32> to vector<6x8x32xf32>
    %646 = arith.addf %643, %645 : vector<6x8x32xf32>
    %647 = arith.negf %646 : vector<6x8x32xf32>
    %648 = math.exp %647 : vector<6x8x32xf32>
    %cst_153 = arith.constant 1.000000e+00 : f32
    %649 = vector.broadcast %cst_153 : f32 to vector<6x8x32xf32>
    %650 = arith.addf %649, %648 : vector<6x8x32xf32>
    %651 = arith.divf %649, %650 : vector<6x8x32xf32>
    %652 = vector.shape_cast %2 : vector<48x32xf32> to vector<6x8x32xf32>
    %653 = arith.mulf %651, %652 : vector<6x8x32xf32>
    %cst_154 = arith.constant 1.000000e+00 : f32
    %654 = vector.broadcast %cst_154 : f32 to vector<6x8x32xf32>
    %655 = arith.subf %654, %651 : vector<6x8x32xf32>
    %656 = vector.shape_cast %635 : vector<8x32xf32> to vector<1x8x32xf32>
    %657 = vector.broadcast %656 : vector<1x8x32xf32> to vector<6x8x32xf32>
    %658 = arith.mulf %655, %657 : vector<6x8x32xf32>
    %659 = arith.addf %653, %658 : vector<6x8x32xf32>
    %660 = vector.shape_cast %659 : vector<6x8x32xf32> to vector<48x32xf32>
    %c0_155 = arith.constant 0 : index
    %c0_156 = arith.constant 0 : index
    %661 = vector.load %arg18[%c0_155, %c0_156] : memref<32x96xf32, #tpu.memory_space<vmem>>, vector<32x96xf32>
    %cst_157 = arith.constant dense<0.000000e+00> : vector<8x96xf32>
    %662 = tpu.matmul %635, %661, %cst_157 {dimension_numbers = #tpu.dot_dimension_numbers<[1], [0], [0], [1], [0, 0, 1, 1], [], []>} : vector<8x32xf32>, vector<32x96xf32>, vector<8x96xf32> -> vector<8x96xf32>
    %c0_158 = arith.constant 0 : index
    %c0_159 = arith.constant 0 : index
    %663 = vector.load %arg17[%c0_158, %c0_159] : memref<32x96xf32, #tpu.memory_space<vmem>>, vector<32x96xf32>
    %cst_160 = arith.constant dense<0.000000e+00> : vector<48x96xf32>
    %664 = tpu.matmul %660, %663, %cst_160 {dimension_numbers = #tpu.dot_dimension_numbers<[1], [0], [0], [1], [0, 0, 1, 1], [], []>} : vector<48x32xf32>, vector<32x96xf32>, vector<48x96xf32> -> vector<48x96xf32>
    %665 = vector.shape_cast %664 : vector<48x96xf32> to vector<6x8x96xf32>
    %c0_161 = arith.constant 0 : index
    %c0_162 = arith.constant 0 : index
    %666 = vector.load %arg20[%c0_161, %c0_162] : memref<1x96xf32, #tpu.memory_space<vmem>>, vector<1x96xf32>
    %667 = vector.broadcast %666 : vector<1x96xf32> to vector<8x96xf32>
    %668 = arith.addf %662, %667 : vector<8x96xf32>
    %669 = vector.shape_cast %668 : vector<8x96xf32> to vector<1x8x96xf32>
    %670 = vector.broadcast %669 : vector<1x8x96xf32> to vector<6x8x96xf32>
    %671 = arith.addf %665, %670 : vector<6x8x96xf32>
    %672 = vector.shape_cast %671 : vector<6x8x96xf32> to vector<48x96xf32>
    %c0_163 = arith.constant 0 : index
    %c0_164 = arith.constant 0 : index
    %673 = vector.load %arg29[%c0_163, %c0_164] : memref<32x64xf32, #tpu.memory_space<vmem>>, vector<32x64xf32>
    %cst_165 = arith.constant dense<0.000000e+00> : vector<48x64xf32>
    %674 = tpu.matmul %660, %673, %cst_165 {dimension_numbers = #tpu.dot_dimension_numbers<[1], [0], [0], [1], [0, 0, 1, 1], [], []>} : vector<48x32xf32>, vector<32x64xf32>, vector<48x64xf32> -> vector<48x64xf32>
    %c0_166 = arith.constant 0 : index
    %c0_167 = arith.constant 0 : index
    %675 = vector.load %arg30[%c0_166, %c0_167] : memref<1x64xf32, #tpu.memory_space<vmem>>, vector<1x64xf32>
    %676 = vector.broadcast %675 : vector<1x64xf32> to vector<48x64xf32>
    %677 = arith.addf %674, %676 : vector<48x64xf32>
    %c0_168 = arith.constant 0 : index
    %c0_169 = arith.constant 0 : index
    %678 = vector.load %arg19[%c0_168, %c0_169] : memref<32x96xf32, #tpu.memory_space<vmem>>, vector<32x96xf32>
    %c0_170 = arith.constant 0 : index
    %c0_171 = arith.constant 0 : index
    %679 = vector.load %arg25[%c0_170, %c0_171] : memref<32x96xf32, #tpu.memory_space<vmem>>, vector<32x96xf32>
    %c0_172 = arith.constant 0 : index
    %c0_173 = arith.constant 0 : index
    %680 = vector.load %arg26[%c0_172, %c0_173] : memref<32x96xf32, #tpu.memory_space<vmem>>, vector<32x96xf32>
    %c0_174 = arith.constant 0 : index
    %c0_175 = arith.constant 0 : index
    %681 = vector.load %arg27[%c0_174, %c0_175] : memref<1x96xf32, #tpu.memory_space<vmem>>, vector<1x96xf32>
    %c0_176 = arith.constant 0 : index
    %c0_177 = arith.constant 0 : index
    %682 = vector.load %arg21[%c0_176, %c0_177] : memref<32x32xf32, #tpu.memory_space<vmem>>, vector<32x32xf32>
    %c0_178 = arith.constant 0 : index
    %c0_179 = arith.constant 0 : index
    %683 = vector.load %arg22[%c0_178, %c0_179] : memref<1x32xf32, #tpu.memory_space<vmem>>, vector<1x32xf32>
    %c0_180 = arith.constant 0 : index
    %c0_181 = arith.constant 0 : index
    %684 = vector.load %arg23[%c0_180, %c0_181] : memref<1x32xf32, #tpu.memory_space<vmem>>, vector<1x32xf32>
    %685 = vector.shape_cast %684 : vector<1x32xf32> to vector<1x1x32xf32>
    %c0_182 = arith.constant 0 : index
    %c0_183 = arith.constant 0 : index
    %686 = vector.load %arg24[%c0_182, %c0_183] : memref<1x1xf32, #tpu.memory_space<vmem>>, vector<1x1xf32>
    %c0_184 = arith.constant 0 : index
    %c0_185 = arith.constant 0 : index
    %687 = vector.load %arg28[%c0_184, %c0_185] : memref<64x64xf32, #tpu.memory_space<vmem>>, vector<64x64xf32>
    %688 = vector.shape_cast %616 : vector<64x32xf32> to vector<8x8x32xf32>
    %689 = vector.extract_strided_slice %3 {offsets = [0, 0], sizes = [8, 1], strides = [1, 1]} : vector<48x1xf32> to vector<8x1xf32>
    %690 = vector.extract_strided_slice %672 {offsets = [0, 0], sizes = [8, 96], strides = [1, 1]} : vector<48x96xf32> to vector<8x96xf32>
    %cst_186 = arith.constant dense<0.000000e+00> : vector<8x96xf32>
    %691 = tpu.matmul %634, %678, %cst_186 {dimension_numbers = #tpu.dot_dimension_numbers<[1], [0], [0], [1], [0, 0, 1, 1], [], []>} : vector<8x32xf32>, vector<32x96xf32>, vector<8x96xf32> -> vector<8x96xf32>
    %692 = vector.extract_strided_slice %690 {offsets = [0, 0], sizes = [8, 32], strides = [1, 1]} : vector<8x96xf32> to vector<8x32xf32>
    %693 = vector.extract_strided_slice %691 {offsets = [0, 0], sizes = [8, 32], strides = [1, 1]} : vector<8x96xf32> to vector<8x32xf32>
    %694 = arith.addf %692, %693 : vector<8x32xf32>
    %695 = arith.negf %694 : vector<8x32xf32>
    %696 = math.exp %695 : vector<8x32xf32>
    %cst_187 = arith.constant 1.000000e+00 : f32
    %697 = vector.broadcast %cst_187 : f32 to vector<8x32xf32>
    %698 = arith.addf %697, %696 : vector<8x32xf32>
    %699 = arith.divf %697, %698 : vector<8x32xf32>
    %700 = vector.extract_strided_slice %690 {offsets = [0, 32], sizes = [8, 32], strides = [1, 1]} : vector<8x96xf32> to vector<8x32xf32>
    %701 = vector.extract_strided_slice %691 {offsets = [0, 32], sizes = [8, 32], strides = [1, 1]} : vector<8x96xf32> to vector<8x32xf32>
    %702 = arith.addf %700, %701 : vector<8x32xf32>
    %703 = arith.negf %702 : vector<8x32xf32>
    %704 = math.exp %703 : vector<8x32xf32>
    %cst_188 = arith.constant 1.000000e+00 : f32
    %705 = vector.broadcast %cst_188 : f32 to vector<8x32xf32>
    %706 = arith.addf %705, %704 : vector<8x32xf32>
    %707 = arith.divf %705, %706 : vector<8x32xf32>
    %708 = vector.extract_strided_slice %690 {offsets = [0, 64], sizes = [8, 32], strides = [1, 1]} : vector<8x96xf32> to vector<8x32xf32>
    %709 = vector.extract_strided_slice %691 {offsets = [0, 64], sizes = [8, 32], strides = [1, 1]} : vector<8x96xf32> to vector<8x32xf32>
    %710 = arith.mulf %707, %709 : vector<8x32xf32>
    %711 = arith.addf %708, %710 : vector<8x32xf32>
    %712 = math.tanh %711 : vector<8x32xf32>
    %cst_189 = arith.constant 1.000000e+00 : f32
    %713 = vector.broadcast %cst_189 : f32 to vector<8x32xf32>
    %714 = arith.subf %713, %699 : vector<8x32xf32>
    %715 = arith.mulf %714, %634 : vector<8x32xf32>
    %716 = arith.mulf %699, %712 : vector<8x32xf32>
    %717 = arith.addf %715, %716 : vector<8x32xf32>
    %718 = vector.broadcast %689 : vector<8x1xf32> to vector<8x32xf32>
    %719 = arith.mulf %718, %717 : vector<8x32xf32>
    %cst_190 = arith.constant 1.000000e+00 : f32
    %720 = vector.broadcast %cst_190 : f32 to vector<8x1xf32>
    %721 = arith.subf %720, %689 : vector<8x1xf32>
    %722 = vector.broadcast %721 : vector<8x1xf32> to vector<8x32xf32>
    %723 = arith.mulf %722, %634 : vector<8x32xf32>
    %724 = arith.addf %719, %723 : vector<8x32xf32>
    %cst_191 = arith.constant dense<0.000000e+00> : vector<8x32xf32>
    %725 = tpu.matmul %724, %682, %cst_191 {dimension_numbers = #tpu.dot_dimension_numbers<[1], [0], [0], [1], [0, 0, 1, 1], [], []>} : vector<8x32xf32>, vector<32x32xf32>, vector<8x32xf32> -> vector<8x32xf32>
    %726 = vector.broadcast %683 : vector<1x32xf32> to vector<8x32xf32>
    %727 = arith.addf %725, %726 : vector<8x32xf32>
    %728 = vector.shape_cast %727 : vector<8x32xf32> to vector<1x8x32xf32>
    %729 = vector.broadcast %728 : vector<1x8x32xf32> to vector<8x8x32xf32>
    %730 = arith.addf %688, %729 : vector<8x8x32xf32>
    %731 = math.tanh %730 : vector<8x8x32xf32>
    %732 = vector.broadcast %685 : vector<1x1x32xf32> to vector<8x8x32xf32>
    %733 = arith.mulf %731, %732 : vector<8x8x32xf32>
    %cst_192 = arith.constant dense<0.000000e+00> : vector<8x8xf32>
    %734 = vector.multi_reduction <add>, %733, %cst_192 [2] : vector<8x8x32xf32> to vector<8x8xf32>
    %735 = vector.shape_cast %734 : vector<8x8xf32> to vector<8x8x1xf32>
    %736 = vector.shape_cast %686 : vector<1x1xf32> to vector<1x1x1xf32>
    %737 = vector.broadcast %736 : vector<1x1x1xf32> to vector<8x8x1xf32>
    %738 = arith.addf %735, %737 : vector<8x8x1xf32>
    %cst_193 = arith.constant dense<0xFF800000> : vector<8x1xf32>
    %739 = vector.multi_reduction <maximumf>, %738, %cst_193 [0] : vector<8x8x1xf32> to vector<8x1xf32>
    %740 = vector.shape_cast %739 : vector<8x1xf32> to vector<1x8x1xf32>
    %741 = vector.broadcast %740 : vector<1x8x1xf32> to vector<8x8x1xf32>
    %742 = arith.subf %738, %741 : vector<8x8x1xf32>
    %743 = math.exp %742 : vector<8x8x1xf32>
    %744 = arith.mulf %743, %618 : vector<8x8x1xf32>
    %cst_194 = arith.constant dense<0.000000e+00> : vector<8x1xf32>
    %745 = vector.multi_reduction <add>, %744, %cst_194 [0] : vector<8x8x1xf32> to vector<8x1xf32>
    %746 = vector.shape_cast %745 : vector<8x1xf32> to vector<1x8x1xf32>
    %cst_195 = arith.constant 9.99999968E-21 : f32
    %747 = vector.broadcast %cst_195 : f32 to vector<1x8x1xf32>
    %748 = arith.addf %746, %747 : vector<1x8x1xf32>
    %749 = vector.broadcast %748 : vector<1x8x1xf32> to vector<8x8x1xf32>
    %750 = arith.divf %744, %749 : vector<8x8x1xf32>
    %751 = vector.broadcast %750 : vector<8x8x1xf32> to vector<8x8x32xf32>
    %752 = arith.mulf %751, %617 : vector<8x8x32xf32>
    %cst_196 = arith.constant dense<0.000000e+00> : vector<8x32xf32>
    %753 = vector.multi_reduction <add>, %752, %cst_196 [0] : vector<8x8x32xf32> to vector<8x32xf32>
    %cst_197 = arith.constant dense<0.000000e+00> : vector<8x96xf32>
    %754 = tpu.matmul %753, %679, %cst_197 {dimension_numbers = #tpu.dot_dimension_numbers<[1], [0], [0], [1], [0, 0, 1, 1], [], []>} : vector<8x32xf32>, vector<32x96xf32>, vector<8x96xf32> -> vector<8x96xf32>
    %755 = vector.broadcast %681 : vector<1x96xf32> to vector<8x96xf32>
    %756 = arith.addf %754, %755 : vector<8x96xf32>
    %cst_198 = arith.constant dense<0.000000e+00> : vector<8x96xf32>
    %757 = tpu.matmul %724, %680, %cst_198 {dimension_numbers = #tpu.dot_dimension_numbers<[1], [0], [0], [1], [0, 0, 1, 1], [], []>} : vector<8x32xf32>, vector<32x96xf32>, vector<8x96xf32> -> vector<8x96xf32>
    %758 = vector.extract_strided_slice %756 {offsets = [0, 0], sizes = [8, 32], strides = [1, 1]} : vector<8x96xf32> to vector<8x32xf32>
    %759 = vector.extract_strided_slice %757 {offsets = [0, 0], sizes = [8, 32], strides = [1, 1]} : vector<8x96xf32> to vector<8x32xf32>
    %760 = arith.addf %758, %759 : vector<8x32xf32>
    %761 = arith.negf %760 : vector<8x32xf32>
    %762 = math.exp %761 : vector<8x32xf32>
    %cst_199 = arith.constant 1.000000e+00 : f32
    %763 = vector.broadcast %cst_199 : f32 to vector<8x32xf32>
    %764 = arith.addf %763, %762 : vector<8x32xf32>
    %765 = arith.divf %763, %764 : vector<8x32xf32>
    %766 = vector.extract_strided_slice %756 {offsets = [0, 32], sizes = [8, 32], strides = [1, 1]} : vector<8x96xf32> to vector<8x32xf32>
    %767 = vector.extract_strided_slice %757 {offsets = [0, 32], sizes = [8, 32], strides = [1, 1]} : vector<8x96xf32> to vector<8x32xf32>
    %768 = arith.addf %766, %767 : vector<8x32xf32>
    %769 = arith.negf %768 : vector<8x32xf32>
    %770 = math.exp %769 : vector<8x32xf32>
    %cst_200 = arith.constant 1.000000e+00 : f32
    %771 = vector.broadcast %cst_200 : f32 to vector<8x32xf32>
    %772 = arith.addf %771, %770 : vector<8x32xf32>
    %773 = arith.divf %771, %772 : vector<8x32xf32>
    %774 = vector.extract_strided_slice %756 {offsets = [0, 64], sizes = [8, 32], strides = [1, 1]} : vector<8x96xf32> to vector<8x32xf32>
    %775 = vector.extract_strided_slice %757 {offsets = [0, 64], sizes = [8, 32], strides = [1, 1]} : vector<8x96xf32> to vector<8x32xf32>
    %776 = arith.mulf %773, %775 : vector<8x32xf32>
    %777 = arith.addf %774, %776 : vector<8x32xf32>
    %778 = math.tanh %777 : vector<8x32xf32>
    %cst_201 = arith.constant 1.000000e+00 : f32
    %779 = vector.broadcast %cst_201 : f32 to vector<8x32xf32>
    %780 = arith.subf %779, %765 : vector<8x32xf32>
    %781 = arith.mulf %780, %724 : vector<8x32xf32>
    %782 = arith.mulf %765, %778 : vector<8x32xf32>
    %783 = arith.addf %781, %782 : vector<8x32xf32>
    %784 = vector.broadcast %689 : vector<8x1xf32> to vector<8x32xf32>
    %785 = arith.mulf %784, %783 : vector<8x32xf32>
    %cst_202 = arith.constant 1.000000e+00 : f32
    %786 = vector.broadcast %cst_202 : f32 to vector<8x1xf32>
    %787 = arith.subf %786, %689 : vector<8x1xf32>
    %788 = vector.broadcast %787 : vector<8x1xf32> to vector<8x32xf32>
    %789 = arith.mulf %788, %724 : vector<8x32xf32>
    %790 = arith.addf %785, %789 : vector<8x32xf32>
    %791 = tpu.concatenate %790, %753 in 1 : vector<8x32xf32>, vector<8x32xf32> -> vector<8x64xf32>
    %cst_203 = arith.constant dense<0.000000e+00> : vector<8x64xf32>
    %792 = tpu.matmul %791, %687, %cst_203 {dimension_numbers = #tpu.dot_dimension_numbers<[1], [0], [0], [1], [0, 0, 1, 1], [], []>} : vector<8x64xf32>, vector<64x64xf32>, vector<8x64xf32> -> vector<8x64xf32>
    %793 = vector.extract_strided_slice %677 {offsets = [0, 0], sizes = [8, 64], strides = [1, 1]} : vector<48x64xf32> to vector<8x64xf32>
    %794 = arith.addf %792, %793 : vector<8x64xf32>
    %795 = vector.extract_strided_slice %794 {offsets = [0, 0], sizes = [8, 32], strides = [1, 1]} : vector<8x64xf32> to vector<8x32xf32>
    %796 = vector.extract_strided_slice %794 {offsets = [0, 32], sizes = [8, 32], strides = [1, 1]} : vector<8x64xf32> to vector<8x32xf32>
    %797 = arith.maximumf %795, %796 : vector<8x32xf32>
    %798 = vector.broadcast %689 : vector<8x1xf32> to vector<8x32xf32>
    %799 = arith.mulf %797, %798 : vector<8x32xf32>
    %800 = vector.extract_strided_slice %3 {offsets = [8, 0], sizes = [8, 1], strides = [1, 1]} : vector<48x1xf32> to vector<8x1xf32>
    %801 = vector.extract_strided_slice %672 {offsets = [8, 0], sizes = [8, 96], strides = [1, 1]} : vector<48x96xf32> to vector<8x96xf32>
    %cst_204 = arith.constant dense<0.000000e+00> : vector<8x96xf32>
    %802 = tpu.matmul %790, %678, %cst_204 {dimension_numbers = #tpu.dot_dimension_numbers<[1], [0], [0], [1], [0, 0, 1, 1], [], []>} : vector<8x32xf32>, vector<32x96xf32>, vector<8x96xf32> -> vector<8x96xf32>
    %803 = vector.extract_strided_slice %801 {offsets = [0, 0], sizes = [8, 32], strides = [1, 1]} : vector<8x96xf32> to vector<8x32xf32>
    %804 = vector.extract_strided_slice %802 {offsets = [0, 0], sizes = [8, 32], strides = [1, 1]} : vector<8x96xf32> to vector<8x32xf32>
    %805 = arith.addf %803, %804 : vector<8x32xf32>
    %806 = arith.negf %805 : vector<8x32xf32>
    %807 = math.exp %806 : vector<8x32xf32>
    %cst_205 = arith.constant 1.000000e+00 : f32
    %808 = vector.broadcast %cst_205 : f32 to vector<8x32xf32>
    %809 = arith.addf %808, %807 : vector<8x32xf32>
    %810 = arith.divf %808, %809 : vector<8x32xf32>
    %811 = vector.extract_strided_slice %801 {offsets = [0, 32], sizes = [8, 32], strides = [1, 1]} : vector<8x96xf32> to vector<8x32xf32>
    %812 = vector.extract_strided_slice %802 {offsets = [0, 32], sizes = [8, 32], strides = [1, 1]} : vector<8x96xf32> to vector<8x32xf32>
    %813 = arith.addf %811, %812 : vector<8x32xf32>
    %814 = arith.negf %813 : vector<8x32xf32>
    %815 = math.exp %814 : vector<8x32xf32>
    %cst_206 = arith.constant 1.000000e+00 : f32
    %816 = vector.broadcast %cst_206 : f32 to vector<8x32xf32>
    %817 = arith.addf %816, %815 : vector<8x32xf32>
    %818 = arith.divf %816, %817 : vector<8x32xf32>
    %819 = vector.extract_strided_slice %801 {offsets = [0, 64], sizes = [8, 32], strides = [1, 1]} : vector<8x96xf32> to vector<8x32xf32>
    %820 = vector.extract_strided_slice %802 {offsets = [0, 64], sizes = [8, 32], strides = [1, 1]} : vector<8x96xf32> to vector<8x32xf32>
    %821 = arith.mulf %818, %820 : vector<8x32xf32>
    %822 = arith.addf %819, %821 : vector<8x32xf32>
    %823 = math.tanh %822 : vector<8x32xf32>
    %cst_207 = arith.constant 1.000000e+00 : f32
    %824 = vector.broadcast %cst_207 : f32 to vector<8x32xf32>
    %825 = arith.subf %824, %810 : vector<8x32xf32>
    %826 = arith.mulf %825, %790 : vector<8x32xf32>
    %827 = arith.mulf %810, %823 : vector<8x32xf32>
    %828 = arith.addf %826, %827 : vector<8x32xf32>
    %829 = vector.broadcast %800 : vector<8x1xf32> to vector<8x32xf32>
    %830 = arith.mulf %829, %828 : vector<8x32xf32>
    %cst_208 = arith.constant 1.000000e+00 : f32
    %831 = vector.broadcast %cst_208 : f32 to vector<8x1xf32>
    %832 = arith.subf %831, %800 : vector<8x1xf32>
    %833 = vector.broadcast %832 : vector<8x1xf32> to vector<8x32xf32>
    %834 = arith.mulf %833, %790 : vector<8x32xf32>
    %835 = arith.addf %830, %834 : vector<8x32xf32>
    %cst_209 = arith.constant dense<0.000000e+00> : vector<8x32xf32>
    %836 = tpu.matmul %835, %682, %cst_209 {dimension_numbers = #tpu.dot_dimension_numbers<[1], [0], [0], [1], [0, 0, 1, 1], [], []>} : vector<8x32xf32>, vector<32x32xf32>, vector<8x32xf32> -> vector<8x32xf32>
    %837 = vector.broadcast %683 : vector<1x32xf32> to vector<8x32xf32>
    %838 = arith.addf %836, %837 : vector<8x32xf32>
    %839 = vector.shape_cast %838 : vector<8x32xf32> to vector<1x8x32xf32>
    %840 = vector.broadcast %839 : vector<1x8x32xf32> to vector<8x8x32xf32>
    %841 = arith.addf %688, %840 : vector<8x8x32xf32>
    %842 = math.tanh %841 : vector<8x8x32xf32>
    %843 = vector.broadcast %685 : vector<1x1x32xf32> to vector<8x8x32xf32>
    %844 = arith.mulf %842, %843 : vector<8x8x32xf32>
    %cst_210 = arith.constant dense<0.000000e+00> : vector<8x8xf32>
    %845 = vector.multi_reduction <add>, %844, %cst_210 [2] : vector<8x8x32xf32> to vector<8x8xf32>
    %846 = vector.shape_cast %845 : vector<8x8xf32> to vector<8x8x1xf32>
    %847 = vector.shape_cast %686 : vector<1x1xf32> to vector<1x1x1xf32>
    %848 = vector.broadcast %847 : vector<1x1x1xf32> to vector<8x8x1xf32>
    %849 = arith.addf %846, %848 : vector<8x8x1xf32>
    %cst_211 = arith.constant dense<0xFF800000> : vector<8x1xf32>
    %850 = vector.multi_reduction <maximumf>, %849, %cst_211 [0] : vector<8x8x1xf32> to vector<8x1xf32>
    %851 = vector.shape_cast %850 : vector<8x1xf32> to vector<1x8x1xf32>
    %852 = vector.broadcast %851 : vector<1x8x1xf32> to vector<8x8x1xf32>
    %853 = arith.subf %849, %852 : vector<8x8x1xf32>
    %854 = math.exp %853 : vector<8x8x1xf32>
    %855 = arith.mulf %854, %618 : vector<8x8x1xf32>
    %cst_212 = arith.constant dense<0.000000e+00> : vector<8x1xf32>
    %856 = vector.multi_reduction <add>, %855, %cst_212 [0] : vector<8x8x1xf32> to vector<8x1xf32>
    %857 = vector.shape_cast %856 : vector<8x1xf32> to vector<1x8x1xf32>
    %cst_213 = arith.constant 9.99999968E-21 : f32
    %858 = vector.broadcast %cst_213 : f32 to vector<1x8x1xf32>
    %859 = arith.addf %857, %858 : vector<1x8x1xf32>
    %860 = vector.broadcast %859 : vector<1x8x1xf32> to vector<8x8x1xf32>
    %861 = arith.divf %855, %860 : vector<8x8x1xf32>
    %862 = vector.broadcast %861 : vector<8x8x1xf32> to vector<8x8x32xf32>
    %863 = arith.mulf %862, %617 : vector<8x8x32xf32>
    %cst_214 = arith.constant dense<0.000000e+00> : vector<8x32xf32>
    %864 = vector.multi_reduction <add>, %863, %cst_214 [0] : vector<8x8x32xf32> to vector<8x32xf32>
    %cst_215 = arith.constant dense<0.000000e+00> : vector<8x96xf32>
    %865 = tpu.matmul %864, %679, %cst_215 {dimension_numbers = #tpu.dot_dimension_numbers<[1], [0], [0], [1], [0, 0, 1, 1], [], []>} : vector<8x32xf32>, vector<32x96xf32>, vector<8x96xf32> -> vector<8x96xf32>
    %866 = vector.broadcast %681 : vector<1x96xf32> to vector<8x96xf32>
    %867 = arith.addf %865, %866 : vector<8x96xf32>
    %cst_216 = arith.constant dense<0.000000e+00> : vector<8x96xf32>
    %868 = tpu.matmul %835, %680, %cst_216 {dimension_numbers = #tpu.dot_dimension_numbers<[1], [0], [0], [1], [0, 0, 1, 1], [], []>} : vector<8x32xf32>, vector<32x96xf32>, vector<8x96xf32> -> vector<8x96xf32>
    %869 = vector.extract_strided_slice %867 {offsets = [0, 0], sizes = [8, 32], strides = [1, 1]} : vector<8x96xf32> to vector<8x32xf32>
    %870 = vector.extract_strided_slice %868 {offsets = [0, 0], sizes = [8, 32], strides = [1, 1]} : vector<8x96xf32> to vector<8x32xf32>
    %871 = arith.addf %869, %870 : vector<8x32xf32>
    %872 = arith.negf %871 : vector<8x32xf32>
    %873 = math.exp %872 : vector<8x32xf32>
    %cst_217 = arith.constant 1.000000e+00 : f32
    %874 = vector.broadcast %cst_217 : f32 to vector<8x32xf32>
    %875 = arith.addf %874, %873 : vector<8x32xf32>
    %876 = arith.divf %874, %875 : vector<8x32xf32>
    %877 = vector.extract_strided_slice %867 {offsets = [0, 32], sizes = [8, 32], strides = [1, 1]} : vector<8x96xf32> to vector<8x32xf32>
    %878 = vector.extract_strided_slice %868 {offsets = [0, 32], sizes = [8, 32], strides = [1, 1]} : vector<8x96xf32> to vector<8x32xf32>
    %879 = arith.addf %877, %878 : vector<8x32xf32>
    %880 = arith.negf %879 : vector<8x32xf32>
    %881 = math.exp %880 : vector<8x32xf32>
    %cst_218 = arith.constant 1.000000e+00 : f32
    %882 = vector.broadcast %cst_218 : f32 to vector<8x32xf32>
    %883 = arith.addf %882, %881 : vector<8x32xf32>
    %884 = arith.divf %882, %883 : vector<8x32xf32>
    %885 = vector.extract_strided_slice %867 {offsets = [0, 64], sizes = [8, 32], strides = [1, 1]} : vector<8x96xf32> to vector<8x32xf32>
    %886 = vector.extract_strided_slice %868 {offsets = [0, 64], sizes = [8, 32], strides = [1, 1]} : vector<8x96xf32> to vector<8x32xf32>
    %887 = arith.mulf %884, %886 : vector<8x32xf32>
    %888 = arith.addf %885, %887 : vector<8x32xf32>
    %889 = math.tanh %888 : vector<8x32xf32>
    %cst_219 = arith.constant 1.000000e+00 : f32
    %890 = vector.broadcast %cst_219 : f32 to vector<8x32xf32>
    %891 = arith.subf %890, %876 : vector<8x32xf32>
    %892 = arith.mulf %891, %835 : vector<8x32xf32>
    %893 = arith.mulf %876, %889 : vector<8x32xf32>
    %894 = arith.addf %892, %893 : vector<8x32xf32>
    %895 = vector.broadcast %800 : vector<8x1xf32> to vector<8x32xf32>
    %896 = arith.mulf %895, %894 : vector<8x32xf32>
    %cst_220 = arith.constant 1.000000e+00 : f32
    %897 = vector.broadcast %cst_220 : f32 to vector<8x1xf32>
    %898 = arith.subf %897, %800 : vector<8x1xf32>
    %899 = vector.broadcast %898 : vector<8x1xf32> to vector<8x32xf32>
    %900 = arith.mulf %899, %835 : vector<8x32xf32>
    %901 = arith.addf %896, %900 : vector<8x32xf32>
    %902 = tpu.concatenate %901, %864 in 1 : vector<8x32xf32>, vector<8x32xf32> -> vector<8x64xf32>
    %cst_221 = arith.constant dense<0.000000e+00> : vector<8x64xf32>
    %903 = tpu.matmul %902, %687, %cst_221 {dimension_numbers = #tpu.dot_dimension_numbers<[1], [0], [0], [1], [0, 0, 1, 1], [], []>} : vector<8x64xf32>, vector<64x64xf32>, vector<8x64xf32> -> vector<8x64xf32>
    %904 = vector.extract_strided_slice %677 {offsets = [8, 0], sizes = [8, 64], strides = [1, 1]} : vector<48x64xf32> to vector<8x64xf32>
    %905 = arith.addf %903, %904 : vector<8x64xf32>
    %906 = vector.extract_strided_slice %905 {offsets = [0, 0], sizes = [8, 32], strides = [1, 1]} : vector<8x64xf32> to vector<8x32xf32>
    %907 = vector.extract_strided_slice %905 {offsets = [0, 32], sizes = [8, 32], strides = [1, 1]} : vector<8x64xf32> to vector<8x32xf32>
    %908 = arith.maximumf %906, %907 : vector<8x32xf32>
    %909 = vector.broadcast %800 : vector<8x1xf32> to vector<8x32xf32>
    %910 = arith.mulf %908, %909 : vector<8x32xf32>
    %911 = vector.extract_strided_slice %3 {offsets = [16, 0], sizes = [8, 1], strides = [1, 1]} : vector<48x1xf32> to vector<8x1xf32>
    %912 = vector.extract_strided_slice %672 {offsets = [16, 0], sizes = [8, 96], strides = [1, 1]} : vector<48x96xf32> to vector<8x96xf32>
    %cst_222 = arith.constant dense<0.000000e+00> : vector<8x96xf32>
    %913 = tpu.matmul %901, %678, %cst_222 {dimension_numbers = #tpu.dot_dimension_numbers<[1], [0], [0], [1], [0, 0, 1, 1], [], []>} : vector<8x32xf32>, vector<32x96xf32>, vector<8x96xf32> -> vector<8x96xf32>
    %914 = vector.extract_strided_slice %912 {offsets = [0, 0], sizes = [8, 32], strides = [1, 1]} : vector<8x96xf32> to vector<8x32xf32>
    %915 = vector.extract_strided_slice %913 {offsets = [0, 0], sizes = [8, 32], strides = [1, 1]} : vector<8x96xf32> to vector<8x32xf32>
    %916 = arith.addf %914, %915 : vector<8x32xf32>
    %917 = arith.negf %916 : vector<8x32xf32>
    %918 = math.exp %917 : vector<8x32xf32>
    %cst_223 = arith.constant 1.000000e+00 : f32
    %919 = vector.broadcast %cst_223 : f32 to vector<8x32xf32>
    %920 = arith.addf %919, %918 : vector<8x32xf32>
    %921 = arith.divf %919, %920 : vector<8x32xf32>
    %922 = vector.extract_strided_slice %912 {offsets = [0, 32], sizes = [8, 32], strides = [1, 1]} : vector<8x96xf32> to vector<8x32xf32>
    %923 = vector.extract_strided_slice %913 {offsets = [0, 32], sizes = [8, 32], strides = [1, 1]} : vector<8x96xf32> to vector<8x32xf32>
    %924 = arith.addf %922, %923 : vector<8x32xf32>
    %925 = arith.negf %924 : vector<8x32xf32>
    %926 = math.exp %925 : vector<8x32xf32>
    %cst_224 = arith.constant 1.000000e+00 : f32
    %927 = vector.broadcast %cst_224 : f32 to vector<8x32xf32>
    %928 = arith.addf %927, %926 : vector<8x32xf32>
    %929 = arith.divf %927, %928 : vector<8x32xf32>
    %930 = vector.extract_strided_slice %912 {offsets = [0, 64], sizes = [8, 32], strides = [1, 1]} : vector<8x96xf32> to vector<8x32xf32>
    %931 = vector.extract_strided_slice %913 {offsets = [0, 64], sizes = [8, 32], strides = [1, 1]} : vector<8x96xf32> to vector<8x32xf32>
    %932 = arith.mulf %929, %931 : vector<8x32xf32>
    %933 = arith.addf %930, %932 : vector<8x32xf32>
    %934 = math.tanh %933 : vector<8x32xf32>
    %cst_225 = arith.constant 1.000000e+00 : f32
    %935 = vector.broadcast %cst_225 : f32 to vector<8x32xf32>
    %936 = arith.subf %935, %921 : vector<8x32xf32>
    %937 = arith.mulf %936, %901 : vector<8x32xf32>
    %938 = arith.mulf %921, %934 : vector<8x32xf32>
    %939 = arith.addf %937, %938 : vector<8x32xf32>
    %940 = vector.broadcast %911 : vector<8x1xf32> to vector<8x32xf32>
    %941 = arith.mulf %940, %939 : vector<8x32xf32>
    %cst_226 = arith.constant 1.000000e+00 : f32
    %942 = vector.broadcast %cst_226 : f32 to vector<8x1xf32>
    %943 = arith.subf %942, %911 : vector<8x1xf32>
    %944 = vector.broadcast %943 : vector<8x1xf32> to vector<8x32xf32>
    %945 = arith.mulf %944, %901 : vector<8x32xf32>
    %946 = arith.addf %941, %945 : vector<8x32xf32>
    %cst_227 = arith.constant dense<0.000000e+00> : vector<8x32xf32>
    %947 = tpu.matmul %946, %682, %cst_227 {dimension_numbers = #tpu.dot_dimension_numbers<[1], [0], [0], [1], [0, 0, 1, 1], [], []>} : vector<8x32xf32>, vector<32x32xf32>, vector<8x32xf32> -> vector<8x32xf32>
    %948 = vector.broadcast %683 : vector<1x32xf32> to vector<8x32xf32>
    %949 = arith.addf %947, %948 : vector<8x32xf32>
    %950 = vector.shape_cast %949 : vector<8x32xf32> to vector<1x8x32xf32>
    %951 = vector.broadcast %950 : vector<1x8x32xf32> to vector<8x8x32xf32>
    %952 = arith.addf %688, %951 : vector<8x8x32xf32>
    %953 = math.tanh %952 : vector<8x8x32xf32>
    %954 = vector.broadcast %685 : vector<1x1x32xf32> to vector<8x8x32xf32>
    %955 = arith.mulf %953, %954 : vector<8x8x32xf32>
    %cst_228 = arith.constant dense<0.000000e+00> : vector<8x8xf32>
    %956 = vector.multi_reduction <add>, %955, %cst_228 [2] : vector<8x8x32xf32> to vector<8x8xf32>
    %957 = vector.shape_cast %956 : vector<8x8xf32> to vector<8x8x1xf32>
    %958 = vector.shape_cast %686 : vector<1x1xf32> to vector<1x1x1xf32>
    %959 = vector.broadcast %958 : vector<1x1x1xf32> to vector<8x8x1xf32>
    %960 = arith.addf %957, %959 : vector<8x8x1xf32>
    %cst_229 = arith.constant dense<0xFF800000> : vector<8x1xf32>
    %961 = vector.multi_reduction <maximumf>, %960, %cst_229 [0] : vector<8x8x1xf32> to vector<8x1xf32>
    %962 = vector.shape_cast %961 : vector<8x1xf32> to vector<1x8x1xf32>
    %963 = vector.broadcast %962 : vector<1x8x1xf32> to vector<8x8x1xf32>
    %964 = arith.subf %960, %963 : vector<8x8x1xf32>
    %965 = math.exp %964 : vector<8x8x1xf32>
    %966 = arith.mulf %965, %618 : vector<8x8x1xf32>
    %cst_230 = arith.constant dense<0.000000e+00> : vector<8x1xf32>
    %967 = vector.multi_reduction <add>, %966, %cst_230 [0] : vector<8x8x1xf32> to vector<8x1xf32>
    %968 = vector.shape_cast %967 : vector<8x1xf32> to vector<1x8x1xf32>
    %cst_231 = arith.constant 9.99999968E-21 : f32
    %969 = vector.broadcast %cst_231 : f32 to vector<1x8x1xf32>
    %970 = arith.addf %968, %969 : vector<1x8x1xf32>
    %971 = vector.broadcast %970 : vector<1x8x1xf32> to vector<8x8x1xf32>
    %972 = arith.divf %966, %971 : vector<8x8x1xf32>
    %973 = vector.broadcast %972 : vector<8x8x1xf32> to vector<8x8x32xf32>
    %974 = arith.mulf %973, %617 : vector<8x8x32xf32>
    %cst_232 = arith.constant dense<0.000000e+00> : vector<8x32xf32>
    %975 = vector.multi_reduction <add>, %974, %cst_232 [0] : vector<8x8x32xf32> to vector<8x32xf32>
    %cst_233 = arith.constant dense<0.000000e+00> : vector<8x96xf32>
    %976 = tpu.matmul %975, %679, %cst_233 {dimension_numbers = #tpu.dot_dimension_numbers<[1], [0], [0], [1], [0, 0, 1, 1], [], []>} : vector<8x32xf32>, vector<32x96xf32>, vector<8x96xf32> -> vector<8x96xf32>
    %977 = vector.broadcast %681 : vector<1x96xf32> to vector<8x96xf32>
    %978 = arith.addf %976, %977 : vector<8x96xf32>
    %cst_234 = arith.constant dense<0.000000e+00> : vector<8x96xf32>
    %979 = tpu.matmul %946, %680, %cst_234 {dimension_numbers = #tpu.dot_dimension_numbers<[1], [0], [0], [1], [0, 0, 1, 1], [], []>} : vector<8x32xf32>, vector<32x96xf32>, vector<8x96xf32> -> vector<8x96xf32>
    %980 = vector.extract_strided_slice %978 {offsets = [0, 0], sizes = [8, 32], strides = [1, 1]} : vector<8x96xf32> to vector<8x32xf32>
    %981 = vector.extract_strided_slice %979 {offsets = [0, 0], sizes = [8, 32], strides = [1, 1]} : vector<8x96xf32> to vector<8x32xf32>
    %982 = arith.addf %980, %981 : vector<8x32xf32>
    %983 = arith.negf %982 : vector<8x32xf32>
    %984 = math.exp %983 : vector<8x32xf32>
    %cst_235 = arith.constant 1.000000e+00 : f32
    %985 = vector.broadcast %cst_235 : f32 to vector<8x32xf32>
    %986 = arith.addf %985, %984 : vector<8x32xf32>
    %987 = arith.divf %985, %986 : vector<8x32xf32>
    %988 = vector.extract_strided_slice %978 {offsets = [0, 32], sizes = [8, 32], strides = [1, 1]} : vector<8x96xf32> to vector<8x32xf32>
    %989 = vector.extract_strided_slice %979 {offsets = [0, 32], sizes = [8, 32], strides = [1, 1]} : vector<8x96xf32> to vector<8x32xf32>
    %990 = arith.addf %988, %989 : vector<8x32xf32>
    %991 = arith.negf %990 : vector<8x32xf32>
    %992 = math.exp %991 : vector<8x32xf32>
    %cst_236 = arith.constant 1.000000e+00 : f32
    %993 = vector.broadcast %cst_236 : f32 to vector<8x32xf32>
    %994 = arith.addf %993, %992 : vector<8x32xf32>
    %995 = arith.divf %993, %994 : vector<8x32xf32>
    %996 = vector.extract_strided_slice %978 {offsets = [0, 64], sizes = [8, 32], strides = [1, 1]} : vector<8x96xf32> to vector<8x32xf32>
    %997 = vector.extract_strided_slice %979 {offsets = [0, 64], sizes = [8, 32], strides = [1, 1]} : vector<8x96xf32> to vector<8x32xf32>
    %998 = arith.mulf %995, %997 : vector<8x32xf32>
    %999 = arith.addf %996, %998 : vector<8x32xf32>
    %1000 = math.tanh %999 : vector<8x32xf32>
    %cst_237 = arith.constant 1.000000e+00 : f32
    %1001 = vector.broadcast %cst_237 : f32 to vector<8x32xf32>
    %1002 = arith.subf %1001, %987 : vector<8x32xf32>
    %1003 = arith.mulf %1002, %946 : vector<8x32xf32>
    %1004 = arith.mulf %987, %1000 : vector<8x32xf32>
    %1005 = arith.addf %1003, %1004 : vector<8x32xf32>
    %1006 = vector.broadcast %911 : vector<8x1xf32> to vector<8x32xf32>
    %1007 = arith.mulf %1006, %1005 : vector<8x32xf32>
    %cst_238 = arith.constant 1.000000e+00 : f32
    %1008 = vector.broadcast %cst_238 : f32 to vector<8x1xf32>
    %1009 = arith.subf %1008, %911 : vector<8x1xf32>
    %1010 = vector.broadcast %1009 : vector<8x1xf32> to vector<8x32xf32>
    %1011 = arith.mulf %1010, %946 : vector<8x32xf32>
    %1012 = arith.addf %1007, %1011 : vector<8x32xf32>
    %1013 = tpu.concatenate %1012, %975 in 1 : vector<8x32xf32>, vector<8x32xf32> -> vector<8x64xf32>
    %cst_239 = arith.constant dense<0.000000e+00> : vector<8x64xf32>
    %1014 = tpu.matmul %1013, %687, %cst_239 {dimension_numbers = #tpu.dot_dimension_numbers<[1], [0], [0], [1], [0, 0, 1, 1], [], []>} : vector<8x64xf32>, vector<64x64xf32>, vector<8x64xf32> -> vector<8x64xf32>
    %1015 = vector.extract_strided_slice %677 {offsets = [16, 0], sizes = [8, 64], strides = [1, 1]} : vector<48x64xf32> to vector<8x64xf32>
    %1016 = arith.addf %1014, %1015 : vector<8x64xf32>
    %1017 = vector.extract_strided_slice %1016 {offsets = [0, 0], sizes = [8, 32], strides = [1, 1]} : vector<8x64xf32> to vector<8x32xf32>
    %1018 = vector.extract_strided_slice %1016 {offsets = [0, 32], sizes = [8, 32], strides = [1, 1]} : vector<8x64xf32> to vector<8x32xf32>
    %1019 = arith.maximumf %1017, %1018 : vector<8x32xf32>
    %1020 = vector.broadcast %911 : vector<8x1xf32> to vector<8x32xf32>
    %1021 = arith.mulf %1019, %1020 : vector<8x32xf32>
    %1022 = vector.extract_strided_slice %3 {offsets = [24, 0], sizes = [8, 1], strides = [1, 1]} : vector<48x1xf32> to vector<8x1xf32>
    %1023 = vector.extract_strided_slice %672 {offsets = [24, 0], sizes = [8, 96], strides = [1, 1]} : vector<48x96xf32> to vector<8x96xf32>
    %cst_240 = arith.constant dense<0.000000e+00> : vector<8x96xf32>
    %1024 = tpu.matmul %1012, %678, %cst_240 {dimension_numbers = #tpu.dot_dimension_numbers<[1], [0], [0], [1], [0, 0, 1, 1], [], []>} : vector<8x32xf32>, vector<32x96xf32>, vector<8x96xf32> -> vector<8x96xf32>
    %1025 = vector.extract_strided_slice %1023 {offsets = [0, 0], sizes = [8, 32], strides = [1, 1]} : vector<8x96xf32> to vector<8x32xf32>
    %1026 = vector.extract_strided_slice %1024 {offsets = [0, 0], sizes = [8, 32], strides = [1, 1]} : vector<8x96xf32> to vector<8x32xf32>
    %1027 = arith.addf %1025, %1026 : vector<8x32xf32>
    %1028 = arith.negf %1027 : vector<8x32xf32>
    %1029 = math.exp %1028 : vector<8x32xf32>
    %cst_241 = arith.constant 1.000000e+00 : f32
    %1030 = vector.broadcast %cst_241 : f32 to vector<8x32xf32>
    %1031 = arith.addf %1030, %1029 : vector<8x32xf32>
    %1032 = arith.divf %1030, %1031 : vector<8x32xf32>
    %1033 = vector.extract_strided_slice %1023 {offsets = [0, 32], sizes = [8, 32], strides = [1, 1]} : vector<8x96xf32> to vector<8x32xf32>
    %1034 = vector.extract_strided_slice %1024 {offsets = [0, 32], sizes = [8, 32], strides = [1, 1]} : vector<8x96xf32> to vector<8x32xf32>
    %1035 = arith.addf %1033, %1034 : vector<8x32xf32>
    %1036 = arith.negf %1035 : vector<8x32xf32>
    %1037 = math.exp %1036 : vector<8x32xf32>
    %cst_242 = arith.constant 1.000000e+00 : f32
    %1038 = vector.broadcast %cst_242 : f32 to vector<8x32xf32>
    %1039 = arith.addf %1038, %1037 : vector<8x32xf32>
    %1040 = arith.divf %1038, %1039 : vector<8x32xf32>
    %1041 = vector.extract_strided_slice %1023 {offsets = [0, 64], sizes = [8, 32], strides = [1, 1]} : vector<8x96xf32> to vector<8x32xf32>
    %1042 = vector.extract_strided_slice %1024 {offsets = [0, 64], sizes = [8, 32], strides = [1, 1]} : vector<8x96xf32> to vector<8x32xf32>
    %1043 = arith.mulf %1040, %1042 : vector<8x32xf32>
    %1044 = arith.addf %1041, %1043 : vector<8x32xf32>
    %1045 = math.tanh %1044 : vector<8x32xf32>
    %cst_243 = arith.constant 1.000000e+00 : f32
    %1046 = vector.broadcast %cst_243 : f32 to vector<8x32xf32>
    %1047 = arith.subf %1046, %1032 : vector<8x32xf32>
    %1048 = arith.mulf %1047, %1012 : vector<8x32xf32>
    %1049 = arith.mulf %1032, %1045 : vector<8x32xf32>
    %1050 = arith.addf %1048, %1049 : vector<8x32xf32>
    %1051 = vector.broadcast %1022 : vector<8x1xf32> to vector<8x32xf32>
    %1052 = arith.mulf %1051, %1050 : vector<8x32xf32>
    %cst_244 = arith.constant 1.000000e+00 : f32
    %1053 = vector.broadcast %cst_244 : f32 to vector<8x1xf32>
    %1054 = arith.subf %1053, %1022 : vector<8x1xf32>
    %1055 = vector.broadcast %1054 : vector<8x1xf32> to vector<8x32xf32>
    %1056 = arith.mulf %1055, %1012 : vector<8x32xf32>
    %1057 = arith.addf %1052, %1056 : vector<8x32xf32>
    %cst_245 = arith.constant dense<0.000000e+00> : vector<8x32xf32>
    %1058 = tpu.matmul %1057, %682, %cst_245 {dimension_numbers = #tpu.dot_dimension_numbers<[1], [0], [0], [1], [0, 0, 1, 1], [], []>} : vector<8x32xf32>, vector<32x32xf32>, vector<8x32xf32> -> vector<8x32xf32>
    %1059 = vector.broadcast %683 : vector<1x32xf32> to vector<8x32xf32>
    %1060 = arith.addf %1058, %1059 : vector<8x32xf32>
    %1061 = vector.shape_cast %1060 : vector<8x32xf32> to vector<1x8x32xf32>
    %1062 = vector.broadcast %1061 : vector<1x8x32xf32> to vector<8x8x32xf32>
    %1063 = arith.addf %688, %1062 : vector<8x8x32xf32>
    %1064 = math.tanh %1063 : vector<8x8x32xf32>
    %1065 = vector.broadcast %685 : vector<1x1x32xf32> to vector<8x8x32xf32>
    %1066 = arith.mulf %1064, %1065 : vector<8x8x32xf32>
    %cst_246 = arith.constant dense<0.000000e+00> : vector<8x8xf32>
    %1067 = vector.multi_reduction <add>, %1066, %cst_246 [2] : vector<8x8x32xf32> to vector<8x8xf32>
    %1068 = vector.shape_cast %1067 : vector<8x8xf32> to vector<8x8x1xf32>
    %1069 = vector.shape_cast %686 : vector<1x1xf32> to vector<1x1x1xf32>
    %1070 = vector.broadcast %1069 : vector<1x1x1xf32> to vector<8x8x1xf32>
    %1071 = arith.addf %1068, %1070 : vector<8x8x1xf32>
    %cst_247 = arith.constant dense<0xFF800000> : vector<8x1xf32>
    %1072 = vector.multi_reduction <maximumf>, %1071, %cst_247 [0] : vector<8x8x1xf32> to vector<8x1xf32>
    %1073 = vector.shape_cast %1072 : vector<8x1xf32> to vector<1x8x1xf32>
    %1074 = vector.broadcast %1073 : vector<1x8x1xf32> to vector<8x8x1xf32>
    %1075 = arith.subf %1071, %1074 : vector<8x8x1xf32>
    %1076 = math.exp %1075 : vector<8x8x1xf32>
    %1077 = arith.mulf %1076, %618 : vector<8x8x1xf32>
    %cst_248 = arith.constant dense<0.000000e+00> : vector<8x1xf32>
    %1078 = vector.multi_reduction <add>, %1077, %cst_248 [0] : vector<8x8x1xf32> to vector<8x1xf32>
    %1079 = vector.shape_cast %1078 : vector<8x1xf32> to vector<1x8x1xf32>
    %cst_249 = arith.constant 9.99999968E-21 : f32
    %1080 = vector.broadcast %cst_249 : f32 to vector<1x8x1xf32>
    %1081 = arith.addf %1079, %1080 : vector<1x8x1xf32>
    %1082 = vector.broadcast %1081 : vector<1x8x1xf32> to vector<8x8x1xf32>
    %1083 = arith.divf %1077, %1082 : vector<8x8x1xf32>
    %1084 = vector.broadcast %1083 : vector<8x8x1xf32> to vector<8x8x32xf32>
    %1085 = arith.mulf %1084, %617 : vector<8x8x32xf32>
    %cst_250 = arith.constant dense<0.000000e+00> : vector<8x32xf32>
    %1086 = vector.multi_reduction <add>, %1085, %cst_250 [0] : vector<8x8x32xf32> to vector<8x32xf32>
    %cst_251 = arith.constant dense<0.000000e+00> : vector<8x96xf32>
    %1087 = tpu.matmul %1086, %679, %cst_251 {dimension_numbers = #tpu.dot_dimension_numbers<[1], [0], [0], [1], [0, 0, 1, 1], [], []>} : vector<8x32xf32>, vector<32x96xf32>, vector<8x96xf32> -> vector<8x96xf32>
    %1088 = vector.broadcast %681 : vector<1x96xf32> to vector<8x96xf32>
    %1089 = arith.addf %1087, %1088 : vector<8x96xf32>
    %cst_252 = arith.constant dense<0.000000e+00> : vector<8x96xf32>
    %1090 = tpu.matmul %1057, %680, %cst_252 {dimension_numbers = #tpu.dot_dimension_numbers<[1], [0], [0], [1], [0, 0, 1, 1], [], []>} : vector<8x32xf32>, vector<32x96xf32>, vector<8x96xf32> -> vector<8x96xf32>
    %1091 = vector.extract_strided_slice %1089 {offsets = [0, 0], sizes = [8, 32], strides = [1, 1]} : vector<8x96xf32> to vector<8x32xf32>
    %1092 = vector.extract_strided_slice %1090 {offsets = [0, 0], sizes = [8, 32], strides = [1, 1]} : vector<8x96xf32> to vector<8x32xf32>
    %1093 = arith.addf %1091, %1092 : vector<8x32xf32>
    %1094 = arith.negf %1093 : vector<8x32xf32>
    %1095 = math.exp %1094 : vector<8x32xf32>
    %cst_253 = arith.constant 1.000000e+00 : f32
    %1096 = vector.broadcast %cst_253 : f32 to vector<8x32xf32>
    %1097 = arith.addf %1096, %1095 : vector<8x32xf32>
    %1098 = arith.divf %1096, %1097 : vector<8x32xf32>
    %1099 = vector.extract_strided_slice %1089 {offsets = [0, 32], sizes = [8, 32], strides = [1, 1]} : vector<8x96xf32> to vector<8x32xf32>
    %1100 = vector.extract_strided_slice %1090 {offsets = [0, 32], sizes = [8, 32], strides = [1, 1]} : vector<8x96xf32> to vector<8x32xf32>
    %1101 = arith.addf %1099, %1100 : vector<8x32xf32>
    %1102 = arith.negf %1101 : vector<8x32xf32>
    %1103 = math.exp %1102 : vector<8x32xf32>
    %cst_254 = arith.constant 1.000000e+00 : f32
    %1104 = vector.broadcast %cst_254 : f32 to vector<8x32xf32>
    %1105 = arith.addf %1104, %1103 : vector<8x32xf32>
    %1106 = arith.divf %1104, %1105 : vector<8x32xf32>
    %1107 = vector.extract_strided_slice %1089 {offsets = [0, 64], sizes = [8, 32], strides = [1, 1]} : vector<8x96xf32> to vector<8x32xf32>
    %1108 = vector.extract_strided_slice %1090 {offsets = [0, 64], sizes = [8, 32], strides = [1, 1]} : vector<8x96xf32> to vector<8x32xf32>
    %1109 = arith.mulf %1106, %1108 : vector<8x32xf32>
    %1110 = arith.addf %1107, %1109 : vector<8x32xf32>
    %1111 = math.tanh %1110 : vector<8x32xf32>
    %cst_255 = arith.constant 1.000000e+00 : f32
    %1112 = vector.broadcast %cst_255 : f32 to vector<8x32xf32>
    %1113 = arith.subf %1112, %1098 : vector<8x32xf32>
    %1114 = arith.mulf %1113, %1057 : vector<8x32xf32>
    %1115 = arith.mulf %1098, %1111 : vector<8x32xf32>
    %1116 = arith.addf %1114, %1115 : vector<8x32xf32>
    %1117 = vector.broadcast %1022 : vector<8x1xf32> to vector<8x32xf32>
    %1118 = arith.mulf %1117, %1116 : vector<8x32xf32>
    %cst_256 = arith.constant 1.000000e+00 : f32
    %1119 = vector.broadcast %cst_256 : f32 to vector<8x1xf32>
    %1120 = arith.subf %1119, %1022 : vector<8x1xf32>
    %1121 = vector.broadcast %1120 : vector<8x1xf32> to vector<8x32xf32>
    %1122 = arith.mulf %1121, %1057 : vector<8x32xf32>
    %1123 = arith.addf %1118, %1122 : vector<8x32xf32>
    %1124 = tpu.concatenate %1123, %1086 in 1 : vector<8x32xf32>, vector<8x32xf32> -> vector<8x64xf32>
    %cst_257 = arith.constant dense<0.000000e+00> : vector<8x64xf32>
    %1125 = tpu.matmul %1124, %687, %cst_257 {dimension_numbers = #tpu.dot_dimension_numbers<[1], [0], [0], [1], [0, 0, 1, 1], [], []>} : vector<8x64xf32>, vector<64x64xf32>, vector<8x64xf32> -> vector<8x64xf32>
    %1126 = vector.extract_strided_slice %677 {offsets = [24, 0], sizes = [8, 64], strides = [1, 1]} : vector<48x64xf32> to vector<8x64xf32>
    %1127 = arith.addf %1125, %1126 : vector<8x64xf32>
    %1128 = vector.extract_strided_slice %1127 {offsets = [0, 0], sizes = [8, 32], strides = [1, 1]} : vector<8x64xf32> to vector<8x32xf32>
    %1129 = vector.extract_strided_slice %1127 {offsets = [0, 32], sizes = [8, 32], strides = [1, 1]} : vector<8x64xf32> to vector<8x32xf32>
    %1130 = arith.maximumf %1128, %1129 : vector<8x32xf32>
    %1131 = vector.broadcast %1022 : vector<8x1xf32> to vector<8x32xf32>
    %1132 = arith.mulf %1130, %1131 : vector<8x32xf32>
    %1133 = vector.extract_strided_slice %3 {offsets = [32, 0], sizes = [8, 1], strides = [1, 1]} : vector<48x1xf32> to vector<8x1xf32>
    %1134 = vector.extract_strided_slice %672 {offsets = [32, 0], sizes = [8, 96], strides = [1, 1]} : vector<48x96xf32> to vector<8x96xf32>
    %cst_258 = arith.constant dense<0.000000e+00> : vector<8x96xf32>
    %1135 = tpu.matmul %1123, %678, %cst_258 {dimension_numbers = #tpu.dot_dimension_numbers<[1], [0], [0], [1], [0, 0, 1, 1], [], []>} : vector<8x32xf32>, vector<32x96xf32>, vector<8x96xf32> -> vector<8x96xf32>
    %1136 = vector.extract_strided_slice %1134 {offsets = [0, 0], sizes = [8, 32], strides = [1, 1]} : vector<8x96xf32> to vector<8x32xf32>
    %1137 = vector.extract_strided_slice %1135 {offsets = [0, 0], sizes = [8, 32], strides = [1, 1]} : vector<8x96xf32> to vector<8x32xf32>
    %1138 = arith.addf %1136, %1137 : vector<8x32xf32>
    %1139 = arith.negf %1138 : vector<8x32xf32>
    %1140 = math.exp %1139 : vector<8x32xf32>
    %cst_259 = arith.constant 1.000000e+00 : f32
    %1141 = vector.broadcast %cst_259 : f32 to vector<8x32xf32>
    %1142 = arith.addf %1141, %1140 : vector<8x32xf32>
    %1143 = arith.divf %1141, %1142 : vector<8x32xf32>
    %1144 = vector.extract_strided_slice %1134 {offsets = [0, 32], sizes = [8, 32], strides = [1, 1]} : vector<8x96xf32> to vector<8x32xf32>
    %1145 = vector.extract_strided_slice %1135 {offsets = [0, 32], sizes = [8, 32], strides = [1, 1]} : vector<8x96xf32> to vector<8x32xf32>
    %1146 = arith.addf %1144, %1145 : vector<8x32xf32>
    %1147 = arith.negf %1146 : vector<8x32xf32>
    %1148 = math.exp %1147 : vector<8x32xf32>
    %cst_260 = arith.constant 1.000000e+00 : f32
    %1149 = vector.broadcast %cst_260 : f32 to vector<8x32xf32>
    %1150 = arith.addf %1149, %1148 : vector<8x32xf32>
    %1151 = arith.divf %1149, %1150 : vector<8x32xf32>
    %1152 = vector.extract_strided_slice %1134 {offsets = [0, 64], sizes = [8, 32], strides = [1, 1]} : vector<8x96xf32> to vector<8x32xf32>
    %1153 = vector.extract_strided_slice %1135 {offsets = [0, 64], sizes = [8, 32], strides = [1, 1]} : vector<8x96xf32> to vector<8x32xf32>
    %1154 = arith.mulf %1151, %1153 : vector<8x32xf32>
    %1155 = arith.addf %1152, %1154 : vector<8x32xf32>
    %1156 = math.tanh %1155 : vector<8x32xf32>
    %cst_261 = arith.constant 1.000000e+00 : f32
    %1157 = vector.broadcast %cst_261 : f32 to vector<8x32xf32>
    %1158 = arith.subf %1157, %1143 : vector<8x32xf32>
    %1159 = arith.mulf %1158, %1123 : vector<8x32xf32>
    %1160 = arith.mulf %1143, %1156 : vector<8x32xf32>
    %1161 = arith.addf %1159, %1160 : vector<8x32xf32>
    %1162 = vector.broadcast %1133 : vector<8x1xf32> to vector<8x32xf32>
    %1163 = arith.mulf %1162, %1161 : vector<8x32xf32>
    %cst_262 = arith.constant 1.000000e+00 : f32
    %1164 = vector.broadcast %cst_262 : f32 to vector<8x1xf32>
    %1165 = arith.subf %1164, %1133 : vector<8x1xf32>
    %1166 = vector.broadcast %1165 : vector<8x1xf32> to vector<8x32xf32>
    %1167 = arith.mulf %1166, %1123 : vector<8x32xf32>
    %1168 = arith.addf %1163, %1167 : vector<8x32xf32>
    %cst_263 = arith.constant dense<0.000000e+00> : vector<8x32xf32>
    %1169 = tpu.matmul %1168, %682, %cst_263 {dimension_numbers = #tpu.dot_dimension_numbers<[1], [0], [0], [1], [0, 0, 1, 1], [], []>} : vector<8x32xf32>, vector<32x32xf32>, vector<8x32xf32> -> vector<8x32xf32>
    %1170 = vector.broadcast %683 : vector<1x32xf32> to vector<8x32xf32>
    %1171 = arith.addf %1169, %1170 : vector<8x32xf32>
    %1172 = vector.shape_cast %1171 : vector<8x32xf32> to vector<1x8x32xf32>
    %1173 = vector.broadcast %1172 : vector<1x8x32xf32> to vector<8x8x32xf32>
    %1174 = arith.addf %688, %1173 : vector<8x8x32xf32>
    %1175 = math.tanh %1174 : vector<8x8x32xf32>
    %1176 = vector.broadcast %685 : vector<1x1x32xf32> to vector<8x8x32xf32>
    %1177 = arith.mulf %1175, %1176 : vector<8x8x32xf32>
    %cst_264 = arith.constant dense<0.000000e+00> : vector<8x8xf32>
    %1178 = vector.multi_reduction <add>, %1177, %cst_264 [2] : vector<8x8x32xf32> to vector<8x8xf32>
    %1179 = vector.shape_cast %1178 : vector<8x8xf32> to vector<8x8x1xf32>
    %1180 = vector.shape_cast %686 : vector<1x1xf32> to vector<1x1x1xf32>
    %1181 = vector.broadcast %1180 : vector<1x1x1xf32> to vector<8x8x1xf32>
    %1182 = arith.addf %1179, %1181 : vector<8x8x1xf32>
    %cst_265 = arith.constant dense<0xFF800000> : vector<8x1xf32>
    %1183 = vector.multi_reduction <maximumf>, %1182, %cst_265 [0] : vector<8x8x1xf32> to vector<8x1xf32>
    %1184 = vector.shape_cast %1183 : vector<8x1xf32> to vector<1x8x1xf32>
    %1185 = vector.broadcast %1184 : vector<1x8x1xf32> to vector<8x8x1xf32>
    %1186 = arith.subf %1182, %1185 : vector<8x8x1xf32>
    %1187 = math.exp %1186 : vector<8x8x1xf32>
    %1188 = arith.mulf %1187, %618 : vector<8x8x1xf32>
    %cst_266 = arith.constant dense<0.000000e+00> : vector<8x1xf32>
    %1189 = vector.multi_reduction <add>, %1188, %cst_266 [0] : vector<8x8x1xf32> to vector<8x1xf32>
    %1190 = vector.shape_cast %1189 : vector<8x1xf32> to vector<1x8x1xf32>
    %cst_267 = arith.constant 9.99999968E-21 : f32
    %1191 = vector.broadcast %cst_267 : f32 to vector<1x8x1xf32>
    %1192 = arith.addf %1190, %1191 : vector<1x8x1xf32>
    %1193 = vector.broadcast %1192 : vector<1x8x1xf32> to vector<8x8x1xf32>
    %1194 = arith.divf %1188, %1193 : vector<8x8x1xf32>
    %1195 = vector.broadcast %1194 : vector<8x8x1xf32> to vector<8x8x32xf32>
    %1196 = arith.mulf %1195, %617 : vector<8x8x32xf32>
    %cst_268 = arith.constant dense<0.000000e+00> : vector<8x32xf32>
    %1197 = vector.multi_reduction <add>, %1196, %cst_268 [0] : vector<8x8x32xf32> to vector<8x32xf32>
    %cst_269 = arith.constant dense<0.000000e+00> : vector<8x96xf32>
    %1198 = tpu.matmul %1197, %679, %cst_269 {dimension_numbers = #tpu.dot_dimension_numbers<[1], [0], [0], [1], [0, 0, 1, 1], [], []>} : vector<8x32xf32>, vector<32x96xf32>, vector<8x96xf32> -> vector<8x96xf32>
    %1199 = vector.broadcast %681 : vector<1x96xf32> to vector<8x96xf32>
    %1200 = arith.addf %1198, %1199 : vector<8x96xf32>
    %cst_270 = arith.constant dense<0.000000e+00> : vector<8x96xf32>
    %1201 = tpu.matmul %1168, %680, %cst_270 {dimension_numbers = #tpu.dot_dimension_numbers<[1], [0], [0], [1], [0, 0, 1, 1], [], []>} : vector<8x32xf32>, vector<32x96xf32>, vector<8x96xf32> -> vector<8x96xf32>
    %1202 = vector.extract_strided_slice %1200 {offsets = [0, 0], sizes = [8, 32], strides = [1, 1]} : vector<8x96xf32> to vector<8x32xf32>
    %1203 = vector.extract_strided_slice %1201 {offsets = [0, 0], sizes = [8, 32], strides = [1, 1]} : vector<8x96xf32> to vector<8x32xf32>
    %1204 = arith.addf %1202, %1203 : vector<8x32xf32>
    %1205 = arith.negf %1204 : vector<8x32xf32>
    %1206 = math.exp %1205 : vector<8x32xf32>
    %cst_271 = arith.constant 1.000000e+00 : f32
    %1207 = vector.broadcast %cst_271 : f32 to vector<8x32xf32>
    %1208 = arith.addf %1207, %1206 : vector<8x32xf32>
    %1209 = arith.divf %1207, %1208 : vector<8x32xf32>
    %1210 = vector.extract_strided_slice %1200 {offsets = [0, 32], sizes = [8, 32], strides = [1, 1]} : vector<8x96xf32> to vector<8x32xf32>
    %1211 = vector.extract_strided_slice %1201 {offsets = [0, 32], sizes = [8, 32], strides = [1, 1]} : vector<8x96xf32> to vector<8x32xf32>
    %1212 = arith.addf %1210, %1211 : vector<8x32xf32>
    %1213 = arith.negf %1212 : vector<8x32xf32>
    %1214 = math.exp %1213 : vector<8x32xf32>
    %cst_272 = arith.constant 1.000000e+00 : f32
    %1215 = vector.broadcast %cst_272 : f32 to vector<8x32xf32>
    %1216 = arith.addf %1215, %1214 : vector<8x32xf32>
    %1217 = arith.divf %1215, %1216 : vector<8x32xf32>
    %1218 = vector.extract_strided_slice %1200 {offsets = [0, 64], sizes = [8, 32], strides = [1, 1]} : vector<8x96xf32> to vector<8x32xf32>
    %1219 = vector.extract_strided_slice %1201 {offsets = [0, 64], sizes = [8, 32], strides = [1, 1]} : vector<8x96xf32> to vector<8x32xf32>
    %1220 = arith.mulf %1217, %1219 : vector<8x32xf32>
    %1221 = arith.addf %1218, %1220 : vector<8x32xf32>
    %1222 = math.tanh %1221 : vector<8x32xf32>
    %cst_273 = arith.constant 1.000000e+00 : f32
    %1223 = vector.broadcast %cst_273 : f32 to vector<8x32xf32>
    %1224 = arith.subf %1223, %1209 : vector<8x32xf32>
    %1225 = arith.mulf %1224, %1168 : vector<8x32xf32>
    %1226 = arith.mulf %1209, %1222 : vector<8x32xf32>
    %1227 = arith.addf %1225, %1226 : vector<8x32xf32>
    %1228 = vector.broadcast %1133 : vector<8x1xf32> to vector<8x32xf32>
    %1229 = arith.mulf %1228, %1227 : vector<8x32xf32>
    %cst_274 = arith.constant 1.000000e+00 : f32
    %1230 = vector.broadcast %cst_274 : f32 to vector<8x1xf32>
    %1231 = arith.subf %1230, %1133 : vector<8x1xf32>
    %1232 = vector.broadcast %1231 : vector<8x1xf32> to vector<8x32xf32>
    %1233 = arith.mulf %1232, %1168 : vector<8x32xf32>
    %1234 = arith.addf %1229, %1233 : vector<8x32xf32>
    %1235 = tpu.concatenate %1234, %1197 in 1 : vector<8x32xf32>, vector<8x32xf32> -> vector<8x64xf32>
    %cst_275 = arith.constant dense<0.000000e+00> : vector<8x64xf32>
    %1236 = tpu.matmul %1235, %687, %cst_275 {dimension_numbers = #tpu.dot_dimension_numbers<[1], [0], [0], [1], [0, 0, 1, 1], [], []>} : vector<8x64xf32>, vector<64x64xf32>, vector<8x64xf32> -> vector<8x64xf32>
    %1237 = vector.extract_strided_slice %677 {offsets = [32, 0], sizes = [8, 64], strides = [1, 1]} : vector<48x64xf32> to vector<8x64xf32>
    %1238 = arith.addf %1236, %1237 : vector<8x64xf32>
    %1239 = vector.extract_strided_slice %1238 {offsets = [0, 0], sizes = [8, 32], strides = [1, 1]} : vector<8x64xf32> to vector<8x32xf32>
    %1240 = vector.extract_strided_slice %1238 {offsets = [0, 32], sizes = [8, 32], strides = [1, 1]} : vector<8x64xf32> to vector<8x32xf32>
    %1241 = arith.maximumf %1239, %1240 : vector<8x32xf32>
    %1242 = vector.broadcast %1133 : vector<8x1xf32> to vector<8x32xf32>
    %1243 = arith.mulf %1241, %1242 : vector<8x32xf32>
    %1244 = vector.extract_strided_slice %3 {offsets = [40, 0], sizes = [8, 1], strides = [1, 1]} : vector<48x1xf32> to vector<8x1xf32>
    %1245 = vector.extract_strided_slice %672 {offsets = [40, 0], sizes = [8, 96], strides = [1, 1]} : vector<48x96xf32> to vector<8x96xf32>
    %cst_276 = arith.constant dense<0.000000e+00> : vector<8x96xf32>
    %1246 = tpu.matmul %1234, %678, %cst_276 {dimension_numbers = #tpu.dot_dimension_numbers<[1], [0], [0], [1], [0, 0, 1, 1], [], []>} : vector<8x32xf32>, vector<32x96xf32>, vector<8x96xf32> -> vector<8x96xf32>
    %1247 = vector.extract_strided_slice %1245 {offsets = [0, 0], sizes = [8, 32], strides = [1, 1]} : vector<8x96xf32> to vector<8x32xf32>
    %1248 = vector.extract_strided_slice %1246 {offsets = [0, 0], sizes = [8, 32], strides = [1, 1]} : vector<8x96xf32> to vector<8x32xf32>
    %1249 = arith.addf %1247, %1248 : vector<8x32xf32>
    %1250 = arith.negf %1249 : vector<8x32xf32>
    %1251 = math.exp %1250 : vector<8x32xf32>
    %cst_277 = arith.constant 1.000000e+00 : f32
    %1252 = vector.broadcast %cst_277 : f32 to vector<8x32xf32>
    %1253 = arith.addf %1252, %1251 : vector<8x32xf32>
    %1254 = arith.divf %1252, %1253 : vector<8x32xf32>
    %1255 = vector.extract_strided_slice %1245 {offsets = [0, 32], sizes = [8, 32], strides = [1, 1]} : vector<8x96xf32> to vector<8x32xf32>
    %1256 = vector.extract_strided_slice %1246 {offsets = [0, 32], sizes = [8, 32], strides = [1, 1]} : vector<8x96xf32> to vector<8x32xf32>
    %1257 = arith.addf %1255, %1256 : vector<8x32xf32>
    %1258 = arith.negf %1257 : vector<8x32xf32>
    %1259 = math.exp %1258 : vector<8x32xf32>
    %cst_278 = arith.constant 1.000000e+00 : f32
    %1260 = vector.broadcast %cst_278 : f32 to vector<8x32xf32>
    %1261 = arith.addf %1260, %1259 : vector<8x32xf32>
    %1262 = arith.divf %1260, %1261 : vector<8x32xf32>
    %1263 = vector.extract_strided_slice %1245 {offsets = [0, 64], sizes = [8, 32], strides = [1, 1]} : vector<8x96xf32> to vector<8x32xf32>
    %1264 = vector.extract_strided_slice %1246 {offsets = [0, 64], sizes = [8, 32], strides = [1, 1]} : vector<8x96xf32> to vector<8x32xf32>
    %1265 = arith.mulf %1262, %1264 : vector<8x32xf32>
    %1266 = arith.addf %1263, %1265 : vector<8x32xf32>
    %1267 = math.tanh %1266 : vector<8x32xf32>
    %cst_279 = arith.constant 1.000000e+00 : f32
    %1268 = vector.broadcast %cst_279 : f32 to vector<8x32xf32>
    %1269 = arith.subf %1268, %1254 : vector<8x32xf32>
    %1270 = arith.mulf %1269, %1234 : vector<8x32xf32>
    %1271 = arith.mulf %1254, %1267 : vector<8x32xf32>
    %1272 = arith.addf %1270, %1271 : vector<8x32xf32>
    %1273 = vector.broadcast %1244 : vector<8x1xf32> to vector<8x32xf32>
    %1274 = arith.mulf %1273, %1272 : vector<8x32xf32>
    %cst_280 = arith.constant 1.000000e+00 : f32
    %1275 = vector.broadcast %cst_280 : f32 to vector<8x1xf32>
    %1276 = arith.subf %1275, %1244 : vector<8x1xf32>
    %1277 = vector.broadcast %1276 : vector<8x1xf32> to vector<8x32xf32>
    %1278 = arith.mulf %1277, %1234 : vector<8x32xf32>
    %1279 = arith.addf %1274, %1278 : vector<8x32xf32>
    %cst_281 = arith.constant dense<0.000000e+00> : vector<8x32xf32>
    %1280 = tpu.matmul %1279, %682, %cst_281 {dimension_numbers = #tpu.dot_dimension_numbers<[1], [0], [0], [1], [0, 0, 1, 1], [], []>} : vector<8x32xf32>, vector<32x32xf32>, vector<8x32xf32> -> vector<8x32xf32>
    %1281 = vector.broadcast %683 : vector<1x32xf32> to vector<8x32xf32>
    %1282 = arith.addf %1280, %1281 : vector<8x32xf32>
    %1283 = vector.shape_cast %1282 : vector<8x32xf32> to vector<1x8x32xf32>
    %1284 = vector.broadcast %1283 : vector<1x8x32xf32> to vector<8x8x32xf32>
    %1285 = arith.addf %688, %1284 : vector<8x8x32xf32>
    %1286 = math.tanh %1285 : vector<8x8x32xf32>
    %1287 = vector.broadcast %685 : vector<1x1x32xf32> to vector<8x8x32xf32>
    %1288 = arith.mulf %1286, %1287 : vector<8x8x32xf32>
    %cst_282 = arith.constant dense<0.000000e+00> : vector<8x8xf32>
    %1289 = vector.multi_reduction <add>, %1288, %cst_282 [2] : vector<8x8x32xf32> to vector<8x8xf32>
    %1290 = vector.shape_cast %1289 : vector<8x8xf32> to vector<8x8x1xf32>
    %1291 = vector.shape_cast %686 : vector<1x1xf32> to vector<1x1x1xf32>
    %1292 = vector.broadcast %1291 : vector<1x1x1xf32> to vector<8x8x1xf32>
    %1293 = arith.addf %1290, %1292 : vector<8x8x1xf32>
    %cst_283 = arith.constant dense<0xFF800000> : vector<8x1xf32>
    %1294 = vector.multi_reduction <maximumf>, %1293, %cst_283 [0] : vector<8x8x1xf32> to vector<8x1xf32>
    %1295 = vector.shape_cast %1294 : vector<8x1xf32> to vector<1x8x1xf32>
    %1296 = vector.broadcast %1295 : vector<1x8x1xf32> to vector<8x8x1xf32>
    %1297 = arith.subf %1293, %1296 : vector<8x8x1xf32>
    %1298 = math.exp %1297 : vector<8x8x1xf32>
    %1299 = arith.mulf %1298, %618 : vector<8x8x1xf32>
    %cst_284 = arith.constant dense<0.000000e+00> : vector<8x1xf32>
    %1300 = vector.multi_reduction <add>, %1299, %cst_284 [0] : vector<8x8x1xf32> to vector<8x1xf32>
    %1301 = vector.shape_cast %1300 : vector<8x1xf32> to vector<1x8x1xf32>
    %cst_285 = arith.constant 9.99999968E-21 : f32
    %1302 = vector.broadcast %cst_285 : f32 to vector<1x8x1xf32>
    %1303 = arith.addf %1301, %1302 : vector<1x8x1xf32>
    %1304 = vector.broadcast %1303 : vector<1x8x1xf32> to vector<8x8x1xf32>
    %1305 = arith.divf %1299, %1304 : vector<8x8x1xf32>
    %1306 = vector.broadcast %1305 : vector<8x8x1xf32> to vector<8x8x32xf32>
    %1307 = arith.mulf %1306, %617 : vector<8x8x32xf32>
    %cst_286 = arith.constant dense<0.000000e+00> : vector<8x32xf32>
    %1308 = vector.multi_reduction <add>, %1307, %cst_286 [0] : vector<8x8x32xf32> to vector<8x32xf32>
    %cst_287 = arith.constant dense<0.000000e+00> : vector<8x96xf32>
    %1309 = tpu.matmul %1308, %679, %cst_287 {dimension_numbers = #tpu.dot_dimension_numbers<[1], [0], [0], [1], [0, 0, 1, 1], [], []>} : vector<8x32xf32>, vector<32x96xf32>, vector<8x96xf32> -> vector<8x96xf32>
    %1310 = vector.broadcast %681 : vector<1x96xf32> to vector<8x96xf32>
    %1311 = arith.addf %1309, %1310 : vector<8x96xf32>
    %cst_288 = arith.constant dense<0.000000e+00> : vector<8x96xf32>
    %1312 = tpu.matmul %1279, %680, %cst_288 {dimension_numbers = #tpu.dot_dimension_numbers<[1], [0], [0], [1], [0, 0, 1, 1], [], []>} : vector<8x32xf32>, vector<32x96xf32>, vector<8x96xf32> -> vector<8x96xf32>
    %1313 = vector.extract_strided_slice %1311 {offsets = [0, 0], sizes = [8, 32], strides = [1, 1]} : vector<8x96xf32> to vector<8x32xf32>
    %1314 = vector.extract_strided_slice %1312 {offsets = [0, 0], sizes = [8, 32], strides = [1, 1]} : vector<8x96xf32> to vector<8x32xf32>
    %1315 = arith.addf %1313, %1314 : vector<8x32xf32>
    %1316 = arith.negf %1315 : vector<8x32xf32>
    %1317 = math.exp %1316 : vector<8x32xf32>
    %cst_289 = arith.constant 1.000000e+00 : f32
    %1318 = vector.broadcast %cst_289 : f32 to vector<8x32xf32>
    %1319 = arith.addf %1318, %1317 : vector<8x32xf32>
    %1320 = arith.divf %1318, %1319 : vector<8x32xf32>
    %1321 = vector.extract_strided_slice %1311 {offsets = [0, 32], sizes = [8, 32], strides = [1, 1]} : vector<8x96xf32> to vector<8x32xf32>
    %1322 = vector.extract_strided_slice %1312 {offsets = [0, 32], sizes = [8, 32], strides = [1, 1]} : vector<8x96xf32> to vector<8x32xf32>
    %1323 = arith.addf %1321, %1322 : vector<8x32xf32>
    %1324 = arith.negf %1323 : vector<8x32xf32>
    %1325 = math.exp %1324 : vector<8x32xf32>
    %cst_290 = arith.constant 1.000000e+00 : f32
    %1326 = vector.broadcast %cst_290 : f32 to vector<8x32xf32>
    %1327 = arith.addf %1326, %1325 : vector<8x32xf32>
    %1328 = arith.divf %1326, %1327 : vector<8x32xf32>
    %1329 = vector.extract_strided_slice %1311 {offsets = [0, 64], sizes = [8, 32], strides = [1, 1]} : vector<8x96xf32> to vector<8x32xf32>
    %1330 = vector.extract_strided_slice %1312 {offsets = [0, 64], sizes = [8, 32], strides = [1, 1]} : vector<8x96xf32> to vector<8x32xf32>
    %1331 = arith.mulf %1328, %1330 : vector<8x32xf32>
    %1332 = arith.addf %1329, %1331 : vector<8x32xf32>
    %1333 = math.tanh %1332 : vector<8x32xf32>
    %cst_291 = arith.constant 1.000000e+00 : f32
    %1334 = vector.broadcast %cst_291 : f32 to vector<8x32xf32>
    %1335 = arith.subf %1334, %1320 : vector<8x32xf32>
    %1336 = arith.mulf %1335, %1279 : vector<8x32xf32>
    %1337 = arith.mulf %1320, %1333 : vector<8x32xf32>
    %1338 = arith.addf %1336, %1337 : vector<8x32xf32>
    %1339 = vector.broadcast %1244 : vector<8x1xf32> to vector<8x32xf32>
    %1340 = arith.mulf %1339, %1338 : vector<8x32xf32>
    %cst_292 = arith.constant 1.000000e+00 : f32
    %1341 = vector.broadcast %cst_292 : f32 to vector<8x1xf32>
    %1342 = arith.subf %1341, %1244 : vector<8x1xf32>
    %1343 = vector.broadcast %1342 : vector<8x1xf32> to vector<8x32xf32>
    %1344 = arith.mulf %1343, %1279 : vector<8x32xf32>
    %1345 = arith.addf %1340, %1344 : vector<8x32xf32>
    %1346 = tpu.concatenate %1345, %1308 in 1 : vector<8x32xf32>, vector<8x32xf32> -> vector<8x64xf32>
    %cst_293 = arith.constant dense<0.000000e+00> : vector<8x64xf32>
    %1347 = tpu.matmul %1346, %687, %cst_293 {dimension_numbers = #tpu.dot_dimension_numbers<[1], [0], [0], [1], [0, 0, 1, 1], [], []>} : vector<8x64xf32>, vector<64x64xf32>, vector<8x64xf32> -> vector<8x64xf32>
    %1348 = vector.extract_strided_slice %677 {offsets = [40, 0], sizes = [8, 64], strides = [1, 1]} : vector<48x64xf32> to vector<8x64xf32>
    %1349 = arith.addf %1347, %1348 : vector<8x64xf32>
    %1350 = vector.extract_strided_slice %1349 {offsets = [0, 0], sizes = [8, 32], strides = [1, 1]} : vector<8x64xf32> to vector<8x32xf32>
    %1351 = vector.extract_strided_slice %1349 {offsets = [0, 32], sizes = [8, 32], strides = [1, 1]} : vector<8x64xf32> to vector<8x32xf32>
    %1352 = arith.maximumf %1350, %1351 : vector<8x32xf32>
    %1353 = vector.broadcast %1244 : vector<8x1xf32> to vector<8x32xf32>
    %1354 = arith.mulf %1352, %1353 : vector<8x32xf32>
    %1355 = tpu.concatenate %799, %910, %1021, %1132, %1243, %1354 in 0 : vector<8x32xf32>, vector<8x32xf32>, vector<8x32xf32>, vector<8x32xf32>, vector<8x32xf32>, vector<8x32xf32> -> vector<48x32xf32>
    %c0_294 = arith.constant 0 : index
    %c0_295 = arith.constant 0 : index
    %1356 = vector.load %arg31[%c0_294, %c0_295] : memref<48x32xf32, #tpu.memory_space<vmem>>, vector<48x32xf32>
    tpu.vector_store %arg31[%c0_294, %c0_295], %1355 {strides = array<i32>} : memref<48x32xf32, #tpu.memory_space<vmem>>, vector<48x32xf32>,
    return
  }
}

</mosaic_0001>

<llo_original>
// kernel: nmt_forward.1
$region0: #{nmt_forward.1}
  #allocation0 [shape = 'u32[]', space=smem, size = 0x4, offset = 0x4, fixed_abs, tag = 'smem constant byte address 0x4 - core index']
  #allocation1 [shape = 'u32[144,128]{1,0:T(1,128)}', space=vmem, size = 0x12000, scoped, tag = 'internal scratch']
  #allocation2 [shape = 'f32[64,32]{1,0:T(8,128)}', space=vmem, size = 0x8000, scoped, tag = 'scratch operand']
  #allocation3 [shape = 'f32[64,32]{1,0:T(8,128)}', space=vmem, size = 0x8000, scoped, tag = 'scratch operand']
  #allocation4 [shape = 'f32[1,1]{1,0:T(1,128)S(1)}', space=vmem, size = 0x200, scoped, tag = 'scoped memory for nmt_forward.1']
  %s0 = inlined_call_operand.smem [shape: u32[32], index: -1, kind: input, shape index: {}]
  %s1 = sld [smem:[%s0]]
  %s2 = scalar_lea.smem %s0, 1
  %s3 = sld [smem:[%s2]]
  %s4 = scalar_lea.smem %s0, 2
  %s5 = sld [smem:[%s4]]
  %s6 = scalar_lea.smem %s0, 3
  %s7 = sld [smem:[%s6]]
  %s8 = scalar_lea.smem %s0, 4
  %s9 = sld [smem:[%s8]]
  %s10 = scalar_lea.smem %s0, 5
  %s11 = sld [smem:[%s10]]
  %s12 = scalar_lea.smem %s0, 6
  %s13 = sld [smem:[%s12]]
  %s14 = scalar_lea.smem %s0, 7
  %s15 = sld [smem:[%s14]]
  %s16 = scalar_lea.smem %s0, 8
  %s17 = sld [smem:[%s16]]
  %s18 = scalar_lea.smem %s0, 9
  %s19 = sld [smem:[%s18]]
  %s20 = scalar_lea.smem %s0, 10
  %s21 = sld [smem:[%s20]]
  %s22 = scalar_lea.smem %s0, 11
  %s23 = sld [smem:[%s22]]
  %s24 = scalar_lea.smem %s0, 12
  %s25 = sld [smem:[%s24]]
  %s26 = scalar_lea.smem %s0, 13
  %s27 = sld [smem:[%s26]]
  %s28 = scalar_lea.smem %s0, 14
  %s29 = sld [smem:[%s28]]
  %s30 = scalar_lea.smem %s0, 15
  %s31 = sld [smem:[%s30]]
  %s32 = scalar_lea.smem %s0, 16
  %s33 = sld [smem:[%s32]]
  %s34 = scalar_lea.smem %s0, 17
  %s35 = sld [smem:[%s34]]
  %s36 = scalar_lea.smem %s0, 18
  %s37 = sld [smem:[%s36]]
  %s38 = scalar_lea.smem %s0, 19
  %s39 = sld [smem:[%s38]]
  %s40 = scalar_lea.smem %s0, 20
  %s41 = sld [smem:[%s40]]
  %s42 = scalar_lea.smem %s0, 21
  %s43 = sld [smem:[%s42]]
  %s44 = scalar_lea.smem %s0, 22
  %s45 = sld [smem:[%s44]]
  %s46 = scalar_lea.smem %s0, 23
  %s47 = sld [smem:[%s46]]
  %s48 = scalar_lea.smem %s0, 24
  %s49 = sld [smem:[%s48]]
  %s50 = scalar_lea.smem %s0, 25
  %s51 = sld [smem:[%s50]]
  %s52 = scalar_lea.smem %s0, 26
  %s53 = sld [smem:[%s52]]
  %s54 = scalar_lea.smem %s0, 27
  %s55 = sld [smem:[%s54]]
  %s56 = scalar_lea.smem %s0, 28
  %s57 = sld [smem:[%s56]]
  %s58 = scalar_lea.smem %s0, 29
  %s59 = sld [smem:[%s58]]
  %s60 = scalar_lea.smem %s0, 30
  %s61 = sld [smem:[%s60]]
  %s62 = scalar_lea.smem %s0, 31
  %s63 = sld [smem:[%s62]]
  %s64 = sld [smem:[#allocation0]]
  $region134: #{nmt_forward.1} parent=0
    _
  %s66 = ssub.s32 1, %s64
  %s67 = scalar_select 0, %s66, %s64
  %v68 = vstv %s49
  %69 = vst [vmem:[#allocation4] sm:$0x1] %v68
  // Predicated region
  $region2: #{nmt_forward.1} parent=0 // pred_check
    _
  $region3: #{nmt_forward.1} parent=0 // pred_check_branch
    %71 = sbr.rel (0) target = $region5
  $region4: #{nmt_forward.1} parent=0 // pred_region
    _
  $region5: #{nmt_forward.1} parent=0 // pred_fallthru
    _
  // Predicated region
  $region6: #{nmt_forward.1} parent=0 // pred_check
    _
  $region7: #{nmt_forward.1} parent=0 // pred_check_branch
    %73 = sbr.rel (0) target = $region9
  $region8: #{nmt_forward.1} parent=0 // pred_region
    _
  $region9: #{nmt_forward.1} parent=0 // pred_fallthru
    _
  // Predicated region
  $region10: #{nmt_forward.1} parent=0 // pred_check
    _
  $region11: #{nmt_forward.1} parent=0 // pred_check_branch
    %75 = sbr.rel (0) target = $region13
  $region12: #{nmt_forward.1} parent=0 // pred_region
    _
  $region13: #{nmt_forward.1} parent=0 // pred_fallthru
    _
  // Predicated region
  $region14: #{nmt_forward.1} parent=0 // pred_check
    _
  $region15: #{nmt_forward.1} parent=0 // pred_check_branch
    %77 = sbr.rel (0) target = $region17
  $region16: #{nmt_forward.1} parent=0 // pred_region
    _
  $region17: #{nmt_forward.1} parent=0 // pred_fallthru
    _
  // Predicated region
  $region18: #{nmt_forward.1} parent=0 // pred_check
    _
  $region19: #{nmt_forward.1} parent=0 // pred_check_branch
    %79 = sbr.rel (0) target = $region21
  $region20: #{nmt_forward.1} parent=0 // pred_region
    _
  $region21: #{nmt_forward.1} parent=0 // pred_fallthru
    _
  // Predicated region
  $region22: #{nmt_forward.1} parent=0 // pred_check
    _
  $region23: #{nmt_forward.1} parent=0 // pred_check_branch
    %81 = sbr.rel (0) target = $region25
  $region24: #{nmt_forward.1} parent=0 // pred_region
    _
  $region25: #{nmt_forward.1} parent=0 // pred_fallthru
    _
  // Predicated region
  $region26: #{nmt_forward.1} parent=0 // pred_check
    _
  $region27: #{nmt_forward.1} parent=0 // pred_check_branch
    %83 = sbr.rel (0) target = $region29
  $region28: #{nmt_forward.1} parent=0 // pred_region
    _
  $region29: #{nmt_forward.1} parent=0 // pred_fallthru
    _
  // Predicated region
  $region30: #{nmt_forward.1} parent=0 // pred_check
    _
  $region31: #{nmt_forward.1} parent=0 // pred_check_branch
    %85 = sbr.rel (0) target = $region33
  $region32: #{nmt_forward.1} parent=0 // pred_region
    _
  $region33: #{nmt_forward.1} parent=0 // pred_fallthru
    _
  // Predicated region
  $region34: #{nmt_forward.1} parent=0 // pred_check
    _
  $region35: #{nmt_forward.1} parent=0 // pred_check_branch
    %87 = sbr.rel (0) target = $region37
  $region36: #{nmt_forward.1} parent=0 // pred_region
    _
  $region37: #{nmt_forward.1} parent=0 // pred_fallthru
    _
  // Predicated region
  $region38: #{nmt_forward.1} parent=0 // pred_check
    _
  $region39: #{nmt_forward.1} parent=0 // pred_check_branch
    %89 = sbr.rel (0) target = $region41
  $region40: #{nmt_forward.1} parent=0 // pred_region
    _
  $region41: #{nmt_forward.1} parent=0 // pred_fallthru
    _
  // Predicated region
  $region42: #{nmt_forward.1} parent=0 // pred_check
    _
  $region43: #{nmt_forward.1} parent=0 // pred_check_branch
    %91 = sbr.rel (0) target = $region45
  $region44: #{nmt_forward.1} parent=0 // pred_region
    _
  $region45: #{nmt_forward.1} parent=0 // pred_fallthru
    _
  // Predicated region
  $region46: #{nmt_forward.1} parent=0 // pred_check
    _
  $region47: #{nmt_forward.1} parent=0 // pred_check_branch
    %93 = sbr.rel (0) target = $region49
  $region48: #{nmt_forward.1} parent=0 // pred_region
    _
  $region49: #{nmt_forward.1} parent=0 // pred_fallthru
    _
  // Predicated region
  $region50: #{nmt_forward.1} parent=0 // pred_check
    _
  $region51: #{nmt_forward.1} parent=0 // pred_check_branch
    %95 = sbr.rel (0) target = $region53
  $region52: #{nmt_forward.1} parent=0 // pred_region
    _
  $region53: #{nmt_forward.1} parent=0 // pred_fallthru
    _
  // Predicated region
  $region54: #{nmt_forward.1} parent=0 // pred_check
    _
  $region55: #{nmt_forward.1} parent=0 // pred_check_branch
    %97 = sbr.rel (0) target = $region57
  $region56: #{nmt_forward.1} parent=0 // pred_region
    _
  $region57: #{nmt_forward.1} parent=0 // pred_fallthru
    _
  // Predicated region
  $region58: #{nmt_forward.1} parent=0 // pred_check
    _
  $region59: #{nmt_forward.1} parent=0 // pred_check_branch
    %99 = sbr.rel (0) target = $region61
  $region60: #{nmt_forward.1} parent=0 // pred_region
    _
  $region61: #{nmt_forward.1} parent=0 // pred_fallthru
    _
  // Predicated region
  $region62: #{nmt_forward.1} parent=0 // pred_check
    _
  $region63: #{nmt_forward.1} parent=0 // pred_check_branch
    %101 = sbr.rel (0) target = $region65
  $region64: #{nmt_forward.1} parent=0 // pred_region
    _
  $region65: #{nmt_forward.1} parent=0 // pred_fallthru
    _
  // Predicated region
  $region66: #{nmt_forward.1} parent=0 // pred_check
    _
  $region67: #{nmt_forward.1} parent=0 // pred_check_branch
    %103 = sbr.rel (0) target = $region69
  $region68: #{nmt_forward.1} parent=0 // pred_region
    _
  $region69: #{nmt_forward.1} parent=0 // pred_fallthru
    _
  // Predicated region
  $region70: #{nmt_forward.1} parent=0 // pred_check
    _
  $region71: #{nmt_forward.1} parent=0 // pred_check_branch
    %105 = sbr.rel (0) target = $region73
  $region72: #{nmt_forward.1} parent=0 // pred_region
    _
  $region73: #{nmt_forward.1} parent=0 // pred_fallthru
    _
  // Predicated region
  $region74: #{nmt_forward.1} parent=0 // pred_check
    _
  $region75: #{nmt_forward.1} parent=0 // pred_check_branch
    %107 = sbr.rel (0) target = $region77
  $region76: #{nmt_forward.1} parent=0 // pred_region
    _
  $region77: #{nmt_forward.1} parent=0 // pred_fallthru
    _
  // Predicated region
  $region78: #{nmt_forward.1} parent=0 // pred_check
    _
  $region79: #{nmt_forward.1} parent=0 // pred_check_branch
    %109 = sbr.rel (0) target = $region81
  $region80: #{nmt_forward.1} parent=0 // pred_region
    _
  $region81: #{nmt_forward.1} parent=0 // pred_fallthru
    _
  // Predicated region
  $region82: #{nmt_forward.1} parent=0 // pred_check
    _
  $region83: #{nmt_forward.1} parent=0 // pred_check_branch
    %111 = sbr.rel (0) target = $region85
  $region84: #{nmt_forward.1} parent=0 // pred_region
    _
  $region85: #{nmt_forward.1} parent=0 // pred_fallthru
    _
  // Predicated region
  $region86: #{nmt_forward.1} parent=0 // pred_check
    _
  $region87: #{nmt_forward.1} parent=0 // pred_check_branch
    %113 = sbr.rel (0) target = $region89
  $region88: #{nmt_forward.1} parent=0 // pred_region
    _
  $region89: #{nmt_forward.1} parent=0 // pred_fallthru
    _
  // Predicated region
  $region90: #{nmt_forward.1} parent=0 // pred_check
    _
  $region91: #{nmt_forward.1} parent=0 // pred_check_branch
    %115 = sbr.rel (0) target = $region93
  $region92: #{nmt_forward.1} parent=0 // pred_region
    _
  $region93: #{nmt_forward.1} parent=0 // pred_fallthru
    _
  // Predicated region
  $region94: #{nmt_forward.1} parent=0 // pred_check
    _
  $region95: #{nmt_forward.1} parent=0 // pred_check_branch
    %117 = sbr.rel (0) target = $region97
  $region96: #{nmt_forward.1} parent=0 // pred_region
    _
  $region97: #{nmt_forward.1} parent=0 // pred_fallthru
    _
  // Predicated region
  $region98: #{nmt_forward.1} parent=0 // pred_check
    _
  $region99: #{nmt_forward.1} parent=0 // pred_check_branch
    %119 = sbr.rel (0) target = $region101
  $region100: #{nmt_forward.1} parent=0 // pred_region
    _
  $region101: #{nmt_forward.1} parent=0 // pred_fallthru
    _
  // Predicated region
  $region102: #{nmt_forward.1} parent=0 // pred_check
    _
  $region103: #{nmt_forward.1} parent=0 // pred_check_branch
    %121 = sbr.rel (0) target = $region105
  $region104: #{nmt_forward.1} parent=0 // pred_region
    _
  $region105: #{nmt_forward.1} parent=0 // pred_fallthru
    _
  // Predicated region
  $region106: #{nmt_forward.1} parent=0 // pred_check
    _
  $region107: #{nmt_forward.1} parent=0 // pred_check_branch
    %123 = sbr.rel (0) target = $region109
  $region108: #{nmt_forward.1} parent=0 // pred_region
    _
  $region109: #{nmt_forward.1} parent=0 // pred_fallthru
    _
  // Predicated region
  $region110: #{nmt_forward.1} parent=0 // pred_check
    _
  $region111: #{nmt_forward.1} parent=0 // pred_check_branch
    %125 = sbr.rel (0) target = $region113
  $region112: #{nmt_forward.1} parent=0 // pred_region
    _
  $region113: #{nmt_forward.1} parent=0 // pred_fallthru
    _
  // Predicated region
  $region114: #{nmt_forward.1} parent=0 // pred_check
    _
  $region115: #{nmt_forward.1} parent=0 // pred_check_branch
    %127 = sbr.rel (0) target = $region117
  $region116: #{nmt_forward.1} parent=0 // pred_region
    _
  $region117: #{nmt_forward.1} parent=0 // pred_fallthru
    _
  // Predicated region
  $region118: #{nmt_forward.1} parent=0 // pred_check
    _
  $region119: #{nmt_forward.1} parent=0 // pred_check_branch
    %129 = sbr.rel (0) target = $region121
  $region120: #{nmt_forward.1} parent=0 // pred_region
    _
  $region121: #{nmt_forward.1} parent=0 // pred_fallthru
    _
  // Predicated region
  $region122: #{nmt_forward.1} parent=0 // pred_check
    _
  $region123: #{nmt_forward.1} parent=0 // pred_check_branch
    %131 = sbr.rel (0) target = $region125
  $region124: #{nmt_forward.1} parent=0 // pred_region
    _
  $region125: #{nmt_forward.1} parent=0 // pred_fallthru
    _
  %v132 = vld [vmem:[%s1] sm:$0xff]
  %v133 = vld [vmem:[%s1 + $0x8] sm:$0xff]
  %v134 = vld [vmem:[%s1 + $0x10] sm:$0xff]
  %v135 = vld [vmem:[%s1 + $0x18] sm:$0xff]
  %v136 = vld [vmem:[%s1 + $0x20] sm:$0xff]
  %v137 = vld [vmem:[%s1 + $0x28] sm:$0xff]
  %v138 = vld [vmem:[%s1 + $0x30] sm:$0xff]
  %v139 = vld [vmem:[%s1 + $0x38] sm:$0xff]
  %v140 = vld [vmem:[%s3] sm:$0xff]
  %v141 = vld [vmem:[%s3 + $0x8] sm:$0xff]
  %v142 = vld [vmem:[%s3 + $0x10] sm:$0xff]
  %v143 = vld [vmem:[%s3 + $0x18] sm:$0xff]
  %v144 = vld [vmem:[%s3 + $0x20] sm:$0xff]
  %v145 = vld [vmem:[%s3 + $0x28] sm:$0xff]
  %v146 = vld [vmem:[%s3 + $0x30] sm:$0xff]
  %v147 = vld [vmem:[%s3 + $0x38] sm:$0xff]
  %v148 = vld [vmem:[%s5] sm:$0xff]
  %v149 = vld [vmem:[%s5 + $0x8] sm:$0xff]
  %v150 = vld [vmem:[%s5 + $0x10] sm:$0xff]
  %v151 = vld [vmem:[%s5 + $0x18] sm:$0xff]
  %v152 = vld [vmem:[%s5 + $0x20] sm:$0xff]
  %v153 = vld [vmem:[%s5 + $0x28] sm:$0xff]
  %v154 = vld [vmem:[%s7] sm:$0xff]
  %v155 = vld [vmem:[%s7 + $0x8] sm:$0xff]
  %v156 = vld [vmem:[%s7 + $0x10] sm:$0xff]
  %v157 = vld [vmem:[%s7 + $0x18] sm:$0xff]
  %v158 = vld [vmem:[%s7 + $0x20] sm:$0xff]
  %v159 = vld [vmem:[%s7 + $0x28] sm:$0xff]
  %v160 = vld [vmem:[%s11] sm:$0xff]
  %v161 = vld [vmem:[%s11 + $0x8] sm:$0xff]
  %v162 = vld [vmem:[%s11 + $0x10] sm:$0xff]
  %v163 = vld [vmem:[%s11 + $0x18] sm:$0xff]
  %v164 = vld [vmem:[%s17] sm:$0xff]
  %v165 = vld [vmem:[%s17 + $0x8] sm:$0xff]
  %v166 = vld [vmem:[%s17 + $0x10] sm:$0xff]
  %v167 = vld [vmem:[%s17 + $0x18] sm:$0xff]
  %v168 = vld [vmem:[%s9] sm:$0xff]
  %v169 = vld [vmem:[%s9 + $0x8] sm:$0xff]
  %v170 = vld [vmem:[%s9 + $0x10] sm:$0xff]
  %v171 = vld [vmem:[%s9 + $0x18] sm:$0xff]
  %v172 = vld [vmem:[%s13] sm:$0x1]
  %v174 = vlaneseq
  %v175 = vshrl.u32 %v174, 7
  %v176 = vsub.s32 0, %v175
  %v177 = vrot.slane %v172, %v176
  %vm179 = vcmask 261120
  %v181 = vsel %vm179, %v132, 0
  %v184 = vsel %vm179, %v133, 0
  %v187 = vsel %vm179, %v134, 0
  %v190 = vsel %vm179, %v135, 0
  %v193 = vsel %vm179, %v136, 0
  %v196 = vsel %vm179, %v137, 0
  %v199 = vsel %vm179, %v138, 0
  %v202 = vsel %vm179, %v139, 0
  %204 = vmatprep.subr.mxu0 0.0
  %205 = vmatpush1.msra.mxu0 %v168
  %206 = vmatprep.subr.mxu0 0.0
  %207 = vmatpush1.msra.mxu0 %v169
  %208 = vmatprep.subr.mxu0 0.0
  %209 = vmatpush1.msra.mxu0 %v170
  %210 = vmatprep.subr.mxu0 0.0
  %211 = vmatpush1.msra.mxu0 %v171
  %212 = vmatprep.subr.mxu0 0.0
  %213 = vmatpush1.msra.mxu0 0.0
  %214 = vmatprep.subr.mxu0 0.0
  %215 = vmatpush1.msra.mxu0 0.0
  %216 = vmatprep.subr.mxu0 0.0
  %217 = vmatpush1.msra.mxu0 0.0
  %218 = vmatprep.subr.mxu0 0.0
  %219 = vmatpush1.msra.mxu0 0.0
  %220 = vmatprep.subr.mxu0 0.0
  %221 = vmatpush1.msra.mxu0 0.0
  %222 = vmatprep.subr.mxu0 0.0
  %223 = vmatpush1.msra.mxu0 0.0
  %224 = vmatprep.subr.mxu0 0.0
  %225 = vmatpush1.msra.mxu0 0.0
  %226 = vmatprep.subr.mxu0 0.0
  %227 = vmatpush1.msra.mxu0 0.0
  %228 = vmatprep.subr.mxu0 0.0
  %229 = vmatpush1.msra.mxu0 0.0
  %230 = vmatprep.subr.mxu0 0.0
  %231 = vmatpush1.msra.mxu0 0.0
  %232 = vmatprep.subr.mxu0 0.0
  %233 = vmatpush1.msra.mxu0 0.0
  %234 = vmatprep.subr.mxu0 0.0
  %235 = vmatpush1.msra.mxu0 0.0
  %236 = vmatprep.subr.mxu0 0.0
  %237 = vmatpush1.msra.mxu0 0.0
  %238 = vmatprep.subr.mxu0 0.0
  %239 = vmatpush1.msra.mxu0 0.0
  %240 = vmatprep.subr.mxu0 0.0
  %241 = vmatpush1.msra.mxu0 0.0
  %242 = vmatprep.subr.mxu0 0.0
  %243 = vmatpush1.msra.mxu0 0.0
  %244 = vmatprep.subr.mxu0 0.0
  %245 = vmatpush1.msra.mxu0 0.0
  %246 = vmatprep.subr.mxu0 0.0
  %247 = vmatpush1.msra.mxu0 0.0
  %248 = vmatprep.subr.mxu0 0.0
  %249 = vmatpush1.msra.mxu0 0.0
  %250 = vmatprep.subr.mxu0 0.0
  %251 = vmatpush1.msra.mxu0 0.0
  %252 = vmatprep.subr.mxu0 0.0
  %253 = vmatpush1.msra.mxu0 0.0
  %254 = vmatprep.subr.mxu0 0.0
  %255 = vmatpush1.msra.mxu0 0.0
  %256 = vmatprep.subr.mxu0 0.0
  %257 = vmatpush1.msra.mxu0 0.0
  %258 = vmatprep.subr.mxu0 0.0
  %259 = vmatpush1.msra.mxu0 0.0
  %260 = vmatprep.subr.mxu0 0.0
  %261 = vmatpush1.msra.mxu0 0.0
  %262 = vmatprep.subr.mxu0 0.0
  %263 = vmatpush1.msra.mxu0 0.0
  %264 = vmatprep.subr.mxu0 0.0
  %265 = vmatpush1.msra.mxu0 0.0
  %266 = vmatprep.subr.mxu0 0.0
  %267 = vmatpush1.msra.mxu0 0.0
  %268 = vmatprep.mubr.f32.mxu0 0.0
  %269 = vmatmul.mubr.f32.gmra.mrb[0].mxu0 %v181
  %v270 = vpop.f32.mrb[0].mxu0
  %v271 = vadd.f32 %v177, %v270
  %v272 = vpop.f32.mrb[0].mxu0
  %273 = vmatprep.mubr.f32.mxu0 0.0
  %274 = vmatmul.mubr.f32.gmra.mrb[0].mxu0 %v184
  %v275 = vpop.f32.mrb[0].mxu0
  %v276 = vadd.f32 %v177, %v275
  %v277 = vpop.f32.mrb[0].mxu0
  %278 = vmatprep.mubr.f32.mxu0 0.0
  %279 = vmatmul.mubr.f32.gmra.mrb[0].mxu0 %v187
  %v280 = vpop.f32.mrb[0].mxu0
  %v281 = vadd.f32 %v177, %v280
  %v282 = vpop.f32.mrb[0].mxu0
  %283 = vmatprep.mubr.f32.mxu0 0.0
  %284 = vmatmul.mubr.f32.gmra.mrb[0].mxu0 %v190
  %v285 = vpop.f32.mrb[0].mxu0
  %v286 = vadd.f32 %v177, %v285
  %v287 = vpop.f32.mrb[0].mxu0
  %288 = vmatprep.mubr.f32.mxu0 0.0
  %289 = vmatmul.mubr.f32.gmra.mrb[0].mxu0 %v193
  %v290 = vpop.f32.mrb[0].mxu0
  %v291 = vadd.f32 %v177, %v290
  %v292 = vpop.f32.mrb[0].mxu0
  %293 = vmatprep.mubr.f32.mxu0 0.0
  %294 = vmatmul.mubr.f32.gmra.mrb[0].mxu0 %v196
  %v295 = vpop.f32.mrb[0].mxu0
  %v296 = vadd.f32 %v177, %v295
  %v297 = vpop.f32.mrb[0].mxu0
  %298 = vmatprep.mubr.f32.mxu0 0.0
  %299 = vmatmul.mubr.f32.gmra.mrb[0].mxu0 %v199
  %v300 = vpop.f32.mrb[0].mxu0
  %v301 = vadd.f32 %v177, %v300
  %v302 = vpop.f32.mrb[0].mxu0
  %303 = vmatprep.mubr.f32.mxu0 0.0
  %304 = vmatmul.mubr.f32.gmra.mrb[0].mxu0 %v202
  %v305 = vpop.f32.mrb[0].mxu0
  %v306 = vadd.f32 %v177, %v305
  %v307 = vpop.f32.mrb[0].mxu0
  %308 = vdwg.mxu0
  %v310 = vsel %vm179, 0.0, 0
  %312 = vmatprep.subr.mxu0 0.0
  %313 = vmatpush1.msra.mxu0 %v160
  %314 = vmatprep.subr.mxu0 0.0
  %315 = vmatpush1.msra.mxu0 %v161
  %316 = vmatprep.subr.mxu0 0.0
  %317 = vmatpush1.msra.mxu0 %v162
  %318 = vmatprep.subr.mxu0 0.0
  %319 = vmatpush1.msra.mxu0 %v163
  %320 = vmatprep.subr.mxu0 0.0
  %321 = vmatpush1.msra.mxu0 0.0
  %322 = vmatprep.subr.mxu0 0.0
  %323 = vmatpush1.msra.mxu0 0.0
  %324 = vmatprep.subr.mxu0 0.0
  %325 = vmatpush1.msra.mxu0 0.0
  %326 = vmatprep.subr.mxu0 0.0
  %327 = vmatpush1.msra.mxu0 0.0
  %328 = vmatprep.subr.mxu0 0.0
  %329 = vmatpush1.msra.mxu0 0.0
  %330 = vmatprep.subr.mxu0 0.0
  %331 = vmatpush1.msra.mxu0 0.0
  %332 = vmatprep.subr.mxu0 0.0
  %333 = vmatpush1.msra.mxu0 0.0
  %334 = vmatprep.subr.mxu0 0.0
  %335 = vmatpush1.msra.mxu0 0.0
  %336 = vmatprep.subr.mxu0 0.0
  %337 = vmatpush1.msra.mxu0 0.0
  %338 = vmatprep.subr.mxu0 0.0
  %339 = vmatpush1.msra.mxu0 0.0
  %340 = vmatprep.subr.mxu0 0.0
  %341 = vmatpush1.msra.mxu0 0.0
  %342 = vmatprep.subr.mxu0 0.0
  %343 = vmatpush1.msra.mxu0 0.0
  %344 = vmatprep.subr.mxu0 0.0
  %345 = vmatpush1.msra.mxu0 0.0
  %346 = vmatprep.subr.mxu0 0.0
  %347 = vmatpush1.msra.mxu0 0.0
  %348 = vmatprep.subr.mxu0 0.0
  %349 = vmatpush1.msra.mxu0 0.0
  %350 = vmatprep.subr.mxu0 0.0
  %351 = vmatpush1.msra.mxu0 0.0
  %352 = vmatprep.subr.mxu0 0.0
  %353 = vmatpush1.msra.mxu0 0.0
  %354 = vmatprep.subr.mxu0 0.0
  %355 = vmatpush1.msra.mxu0 0.0
  %356 = vmatprep.subr.mxu0 0.0
  %357 = vmatpush1.msra.mxu0 0.0
  %358 = vmatprep.subr.mxu0 0.0
  %359 = vmatpush1.msra.mxu0 0.0
  %360 = vmatprep.subr.mxu0 0.0
  %361 = vmatpush1.msra.mxu0 0.0
  %362 = vmatprep.subr.mxu0 0.0
  %363 = vmatpush1.msra.mxu0 0.0
  %364 = vmatprep.subr.mxu0 0.0
  %365 = vmatpush1.msra.mxu0 0.0
  %366 = vmatprep.subr.mxu0 0.0
  %367 = vmatpush1.msra.mxu0 0.0
  %368 = vmatprep.subr.mxu0 0.0
  %369 = vmatpush1.msra.mxu0 0.0
  %370 = vmatprep.subr.mxu0 0.0
  %371 = vmatpush1.msra.mxu0 0.0
  %372 = vmatprep.subr.mxu0 0.0
  %373 = vmatpush1.msra.mxu0 0.0
  %374 = vmatprep.subr.mxu0 0.0
  %375 = vmatpush1.msra.mxu0 0.0
  %376 = vmatprep.mubr.f32.mxu0 0.0
  %377 = vmatmul.mubr.f32.gmra.mrb[0].mxu0 %v310
  %v378 = vpop.f32.mrb[0].mxu0
  %v379 = vadd.f32 0.0, %v378
  %v380 = vpop.f32.mrb[0].mxu0
  %381 = vdwg.mxu0
  %v382 = vadd.f32 %v271, %v379
  %v383 = vxor.u32 %v382, 2147483648
  %v384 = vmul.f32 %v383, 1.442695
  %v385 = vpow.pop %v384
  %v386 = vadd.f32 %v385, 1.0
  %v387 = vrcp.pop %v386
  %v388 = vmul.f32 1.0, %v387
  %390 = vrot.lane.b32.xlu0 %v379, 96
  %v391 = vpop.permute.xlu0 %390
  %v393 = vmul.f32 %v388, %v391
  %395 = vrot.lane.b32.xlu0 %v393, 32
  %v396 = vpop.permute.xlu0 %395
  %v398 = vadd.f32 %v271, %v396
  %v399 = vtanh.pop %v398
  %v400 = vsub.f32 1.0, %v388
  %v401 = vmul.f32 %v400, 0.0
  %403 = vrot.lane.b32.xlu0 %v399, 64
  %v404 = vpop.permute.xlu0 %403
  %v406 = vmul.f32 %v388, %v404
  %v407 = vadd.f32 %v401, %v406
  %409 = vset.pattern.permute.xlu0 0
  %410 = vperm.xlu0 %409, %v140
  %v411 = vpop.permute.xlu0 %410
  %v413 = vmul.f32 %v411, %v407
  %v414 = vsub.f32 1.0, %v140
  %416 = vset.pattern.permute.xlu0 0
  %417 = vperm.xlu0 %416, %v414
  %v418 = vpop.permute.xlu0 %417
  %v420 = vmul.f32 %v418, 0.0
  %v421 = vadd.f32 %v413, %v420
  %422 = vst.msk [vmem:[#allocation2] sm:$0xff] %vm179, %v421
  %v424 = vsel %vm179, %v421, 0
  %426 = vmatprep.subr.mxu0 0.0
  %427 = vmatpush1.msra.mxu0 %v160
  %428 = vmatprep.subr.mxu0 0.0
  %429 = vmatpush1.msra.mxu0 %v161
  %430 = vmatprep.subr.mxu0 0.0
  %431 = vmatpush1.msra.mxu0 %v162
  %432 = vmatprep.subr.mxu0 0.0
  %433 = vmatpush1.msra.mxu0 %v163
  %434 = vmatprep.subr.mxu0 0.0
  %435 = vmatpush1.msra.mxu0 0.0
  %436 = vmatprep.subr.mxu0 0.0
  %437 = vmatpush1.msra.mxu0 0.0
  %438 = vmatprep.subr.mxu0 0.0
  %439 = vmatpush1.msra.mxu0 0.0
  %440 = vmatprep.subr.mxu0 0.0
  %441 = vmatpush1.msra.mxu0 0.0
  %442 = vmatprep.subr.mxu0 0.0
  %443 = vmatpush1.msra.mxu0 0.0
  %444 = vmatprep.subr.mxu0 0.0
  %445 = vmatpush1.msra.mxu0 0.0
  %446 = vmatprep.subr.mxu0 0.0
  %447 = vmatpush1.msra.mxu0 0.0
  %448 = vmatprep.subr.mxu0 0.0
  %449 = vmatpush1.msra.mxu0 0.0
  %450 = vmatprep.subr.mxu0 0.0
  %451 = vmatpush1.msra.mxu0 0.0
  %452 = vmatprep.subr.mxu0 0.0
  %453 = vmatpush1.msra.mxu0 0.0
  %454 = vmatprep.subr.mxu0 0.0
  %455 = vmatpush1.msra.mxu0 0.0
  %456 = vmatprep.subr.mxu0 0.0
  %457 = vmatpush1.msra.mxu0 0.0
  %458 = vmatprep.subr.mxu0 0.0
  %459 = vmatpush1.msra.mxu0 0.0
  %460 = vmatprep.subr.mxu0 0.0
  %461 = vmatpush1.msra.mxu0 0.0
  %462 = vmatprep.subr.mxu0 0.0
  %463 = vmatpush1.msra.mxu0 0.0
  %464 = vmatprep.subr.mxu0 0.0
  %465 = vmatpush1.msra.mxu0 0.0
  %466 = vmatprep.subr.mxu0 0.0
  %467 = vmatpush1.msra.mxu0 0.0
  %468 = vmatprep.subr.mxu0 0.0
  %469 = vmatpush1.msra.mxu0 0.0
  %470 = vmatprep.subr.mxu0 0.0
  %471 = vmatpush1.msra.mxu0 0.0
  %472 = vmatprep.subr.mxu0 0.0
  %473 = vmatpush1.msra.mxu0 0.0
  %474 = vmatprep.subr.mxu0 0.0
  %475 = vmatpush1.msra.mxu0 0.0
  %476 = vmatprep.subr.mxu0 0.0
  %477 = vmatpush1.msra.mxu0 0.0
  %478 = vmatprep.subr.mxu0 0.0
  %479 = vmatpush1.msra.mxu0 0.0
  %480 = vmatprep.subr.mxu0 0.0
  %481 = vmatpush1.msra.mxu0 0.0
  %482 = vmatprep.subr.mxu0 0.0
  %483 = vmatpush1.msra.mxu0 0.0
  %484 = vmatprep.subr.mxu0 0.0
  %485 = vmatpush1.msra.mxu0 0.0
  %486 = vmatprep.subr.mxu0 0.0
  %487 = vmatpush1.msra.mxu0 0.0
  %488 = vmatprep.subr.mxu0 0.0
  %489 = vmatpush1.msra.mxu0 0.0
  %490 = vmatprep.mubr.f32.mxu0 0.0
  %491 = vmatmul.mubr.f32.gmra.mrb[0].mxu0 %v424
  %v492 = vpop.f32.mrb[0].mxu0
  %v493 = vadd.f32 0.0, %v492
  %v494 = vpop.f32.mrb[0].mxu0
  %495 = vdwg.mxu0
  %v496 = vadd.f32 %v276, %v493
  %v497 = vxor.u32 %v496, 2147483648
  %v498 = vmul.f32 %v497, 1.442695
  %v499 = vpow.pop %v498
  %v500 = vadd.f32 %v499, 1.0
  %v501 = vrcp.pop %v500
  %v502 = vmul.f32 1.0, %v501
  %504 = vrot.lane.b32.xlu0 %v493, 96
  %v505 = vpop.permute.xlu0 %504
  %v507 = vmul.f32 %v502, %v505
  %509 = vrot.lane.b32.xlu0 %v507, 32
  %v510 = vpop.permute.xlu0 %509
  %v512 = vadd.f32 %v276, %v510
  %v513 = vtanh.pop %v512
  %v514 = vsub.f32 1.0, %v502
  %v515 = vmul.f32 %v514, %v421
  %517 = vrot.lane.b32.xlu0 %v513, 64
  %v518 = vpop.permute.xlu0 %517
  %v520 = vmul.f32 %v502, %v518
  %v521 = vadd.f32 %v515, %v520
  %523 = vset.pattern.permute.xlu0 0
  %524 = vperm.xlu0 %523, %v141
  %v525 = vpop.permute.xlu0 %524
  %v527 = vmul.f32 %v525, %v521
  %v528 = vsub.f32 1.0, %v141
  %530 = vset.pattern.permute.xlu0 0
  %531 = vperm.xlu0 %530, %v528
  %v532 = vpop.permute.xlu0 %531
  %v534 = vmul.f32 %v532, %v421
  %v535 = vadd.f32 %v527, %v534
  %536 = vst.msk [vmem:[#allocation2 + $0x8] sm:$0xff] %vm179, %v535
  %v538 = vsel %vm179, %v535, 0
  %540 = vmatprep.subr.mxu0 0.0
  %541 = vmatpush1.msra.mxu0 %v160
  %542 = vmatprep.subr.mxu0 0.0
  %543 = vmatpush1.msra.mxu0 %v161
  %544 = vmatprep.subr.mxu0 0.0
  %545 = vmatpush1.msra.mxu0 %v162
  %546 = vmatprep.subr.mxu0 0.0
  %547 = vmatpush1.msra.mxu0 %v163
  %548 = vmatprep.subr.mxu0 0.0
  %549 = vmatpush1.msra.mxu0 0.0
  %550 = vmatprep.subr.mxu0 0.0
  %551 = vmatpush1.msra.mxu0 0.0
  %552 = vmatprep.subr.mxu0 0.0
  %553 = vmatpush1.msra.mxu0 0.0
  %554 = vmatprep.subr.mxu0 0.0
  %555 = vmatpush1.msra.mxu0 0.0
  %556 = vmatprep.subr.mxu0 0.0
  %557 = vmatpush1.msra.mxu0 0.0
  %558 = vmatprep.subr.mxu0 0.0
  %559 = vmatpush1.msra.mxu0 0.0
  %560 = vmatprep.subr.mxu0 0.0
  %561 = vmatpush1.msra.mxu0 0.0
  %562 = vmatprep.subr.mxu0 0.0
  %563 = vmatpush1.msra.mxu0 0.0
  %564 = vmatprep.subr.mxu0 0.0
  %565 = vmatpush1.msra.mxu0 0.0
  %566 = vmatprep.subr.mxu0 0.0
  %567 = vmatpush1.msra.mxu0 0.0
  %568 = vmatprep.subr.mxu0 0.0
  %569 = vmatpush1.msra.mxu0 0.0
  %570 = vmatprep.subr.mxu0 0.0
  %571 = vmatpush1.msra.mxu0 0.0
  %572 = vmatprep.subr.mxu0 0.0
  %573 = vmatpush1.msra.mxu0 0.0
  %574 = vmatprep.subr.mxu0 0.0
  %575 = vmatpush1.msra.mxu0 0.0
  %576 = vmatprep.subr.mxu0 0.0
  %577 = vmatpush1.msra.mxu0 0.0
  %578 = vmatprep.subr.mxu0 0.0
  %579 = vmatpush1.msra.mxu0 0.0
  %580 = vmatprep.subr.mxu0 0.0
  %581 = vmatpush1.msra.mxu0 0.0
  %582 = vmatprep.subr.mxu0 0.0
  %583 = vmatpush1.msra.mxu0 0.0
  %584 = vmatprep.subr.mxu0 0.0
  %585 = vmatpush1.msra.mxu0 0.0
  %586 = vmatprep.subr.mxu0 0.0
  %587 = vmatpush1.msra.mxu0 0.0
  %588 = vmatprep.subr.mxu0 0.0
  %589 = vmatpush1.msra.mxu0 0.0
  %590 = vmatprep.subr.mxu0 0.0
  %591 = vmatpush1.msra.mxu0 0.0
  %592 = vmatprep.subr.mxu0 0.0
  %593 = vmatpush1.msra.mxu0 0.0
  %594 = vmatprep.subr.mxu0 0.0
  %595 = vmatpush1.msra.mxu0 0.0
  %596 = vmatprep.subr.mxu0 0.0
  %597 = vmatpush1.msra.mxu0 0.0
  %598 = vmatprep.subr.mxu0 0.0
  %599 = vmatpush1.msra.mxu0 0.0
  %600 = vmatprep.subr.mxu0 0.0
  %601 = vmatpush1.msra.mxu0 0.0
  %602 = vmatprep.subr.mxu0 0.0
  %603 = vmatpush1.msra.mxu0 0.0
  %604 = vmatprep.mubr.f32.mxu0 0.0
  %605 = vmatmul.mubr.f32.gmra.mrb[0].mxu0 %v538
  %v606 = vpop.f32.mrb[0].mxu0
  %v607 = vadd.f32 0.0, %v606
  %v608 = vpop.f32.mrb[0].mxu0
  %609 = vdwg.mxu0
  %v610 = vadd.f32 %v281, %v607
  %v611 = vxor.u32 %v610, 2147483648
  %v612 = vmul.f32 %v611, 1.442695
  %v613 = vpow.pop %v612
  %v614 = vadd.f32 %v613, 1.0
  %v615 = vrcp.pop %v614
  %v616 = vmul.f32 1.0, %v615
  %618 = vrot.lane.b32.xlu0 %v607, 96
  %v619 = vpop.permute.xlu0 %618
  %v621 = vmul.f32 %v616, %v619
  %623 = vrot.lane.b32.xlu0 %v621, 32
  %v624 = vpop.permute.xlu0 %623
  %v626 = vadd.f32 %v281, %v624
  %v627 = vtanh.pop %v626
  %v628 = vsub.f32 1.0, %v616
  %v629 = vmul.f32 %v628, %v535
  %631 = vrot.lane.b32.xlu0 %v627, 64
  %v632 = vpop.permute.xlu0 %631
  %v634 = vmul.f32 %v616, %v632
  %v635 = vadd.f32 %v629, %v634
  %637 = vset.pattern.permute.xlu0 0
  %638 = vperm.xlu0 %637, %v142
  %v639 = vpop.permute.xlu0 %638
  %v641 = vmul.f32 %v639, %v635
  %v642 = vsub.f32 1.0, %v142
  %644 = vset.pattern.permute.xlu0 0
  %645 = vperm.xlu0 %644, %v642
  %v646 = vpop.permute.xlu0 %645
  %v648 = vmul.f32 %v646, %v535
  %v649 = vadd.f32 %v641, %v648
  %650 = vst.msk [vmem:[#allocation2 + $0x10] sm:$0xff] %vm179, %v649
  %v652 = vsel %vm179, %v649, 0
  %654 = vmatprep.subr.mxu0 0.0
  %655 = vmatpush1.msra.mxu0 %v160
  %656 = vmatprep.subr.mxu0 0.0
  %657 = vmatpush1.msra.mxu0 %v161
  %658 = vmatprep.subr.mxu0 0.0
  %659 = vmatpush1.msra.mxu0 %v162
  %660 = vmatprep.subr.mxu0 0.0
  %661 = vmatpush1.msra.mxu0 %v163
  %662 = vmatprep.subr.mxu0 0.0
  %663 = vmatpush1.msra.mxu0 0.0
  %664 = vmatprep.subr.mxu0 0.0
  %665 = vmatpush1.msra.mxu0 0.0
  %666 = vmatprep.subr.mxu0 0.0
  %667 = vmatpush1.msra.mxu0 0.0
  %668 = vmatprep.subr.mxu0 0.0
  %669 = vmatpush1.msra.mxu0 0.0
  %670 = vmatprep.subr.mxu0 0.0
  %671 = vmatpush1.msra.mxu0 0.0
  %672 = vmatprep.subr.mxu0 0.0
  %673 = vmatpush1.msra.mxu0 0.0
  %674 = vmatprep.subr.mxu0 0.0
  %675 = vmatpush1.msra.mxu0 0.0
  %676 = vmatprep.subr.mxu0 0.0
  %677 = vmatpush1.msra.mxu0 0.0
  %678 = vmatprep.subr.mxu0 0.0
  %679 = vmatpush1.msra.mxu0 0.0
  %680 = vmatprep.subr.mxu0 0.0
  %681 = vmatpush1.msra.mxu0 0.0
  %682 = vmatprep.subr.mxu0 0.0
  %683 = vmatpush1.msra.mxu0 0.0
  %684 = vmatprep.subr.mxu0 0.0
  %685 = vmatpush1.msra.mxu0 0.0
  %686 = vmatprep.subr.mxu0 0.0
  %687 = vmatpush1.msra.mxu0 0.0
  %688 = vmatprep.subr.mxu0 0.0
  %689 = vmatpush1.msra.mxu0 0.0
  %690 = vmatprep.subr.mxu0 0.0
  %691 = vmatpush1.msra.mxu0 0.0
  %692 = vmatprep.subr.mxu0 0.0
  %693 = vmatpush1.msra.mxu0 0.0
  %694 = vmatprep.subr.mxu0 0.0
  %695 = vmatpush1.msra.mxu0 0.0
  %696 = vmatprep.subr.mxu0 0.0
  %697 = vmatpush1.msra.mxu0 0.0
  %698 = vmatprep.subr.mxu0 0.0
  %699 = vmatpush1.msra.mxu0 0.0
  %700 = vmatprep.subr.mxu0 0.0
  %701 = vmatpush1.msra.mxu0 0.0
  %702 = vmatprep.subr.mxu0 0.0
  %703 = vmatpush1.msra.mxu0 0.0
  %704 = vmatprep.subr.mxu0 0.0
  %705 = vmatpush1.msra.mxu0 0.0
  %706 = vmatprep.subr.mxu0 0.0
  %707 = vmatpush1.msra.mxu0 0.0
  %708 = vmatprep.subr.mxu0 0.0
  %709 = vmatpush1.msra.mxu0 0.0
  %710 = vmatprep.subr.mxu0 0.0
  %711 = vmatpush1.msra.mxu0 0.0
  %712 = vmatprep.subr.mxu0 0.0
  %713 = vmatpush1.msra.mxu0 0.0
  %714 = vmatprep.subr.mxu0 0.0
  %715 = vmatpush1.msra.mxu0 0.0
  %716 = vmatprep.subr.mxu0 0.0
  %717 = vmatpush1.msra.mxu0 0.0
  %718 = vmatprep.mubr.f32.mxu0 0.0
  %719 = vmatmul.mubr.f32.gmra.mrb[0].mxu0 %v652
  %v720 = vpop.f32.mrb[0].mxu0
  %v721 = vadd.f32 0.0, %v720
  %v722 = vpop.f32.mrb[0].mxu0
  %723 = vdwg.mxu0
  %v724 = vadd.f32 %v286, %v721
  %v725 = vxor.u32 %v724, 2147483648
  %v726 = vmul.f32 %v725, 1.442695
  %v727 = vpow.pop %v726
  %v728 = vadd.f32 %v727, 1.0
  %v729 = vrcp.pop %v728
  %v730 = vmul.f32 1.0, %v729
  %732 = vrot.lane.b32.xlu0 %v721, 96
  %v733 = vpop.permute.xlu0 %732
  %v735 = vmul.f32 %v730, %v733
  %737 = vrot.lane.b32.xlu0 %v735, 32
  %v738 = vpop.permute.xlu0 %737
  %v740 = vadd.f32 %v286, %v738
  %v741 = vtanh.pop %v740
  %v742 = vsub.f32 1.0, %v730
  %v743 = vmul.f32 %v742, %v649
  %745 = vrot.lane.b32.xlu0 %v741, 64
  %v746 = vpop.permute.xlu0 %745
  %v748 = vmul.f32 %v730, %v746
  %v749 = vadd.f32 %v743, %v748
  %751 = vset.pattern.permute.xlu0 0
  %752 = vperm.xlu0 %751, %v143
  %v753 = vpop.permute.xlu0 %752
  %v755 = vmul.f32 %v753, %v749
  %v756 = vsub.f32 1.0, %v143
  %758 = vset.pattern.permute.xlu0 0
  %759 = vperm.xlu0 %758, %v756
  %v760 = vpop.permute.xlu0 %759
  %v762 = vmul.f32 %v760, %v649
  %v763 = vadd.f32 %v755, %v762
  %764 = vst.msk [vmem:[#allocation2 + $0x18] sm:$0xff] %vm179, %v763
  %v766 = vsel %vm179, %v763, 0
  %768 = vmatprep.subr.mxu0 0.0
  %769 = vmatpush1.msra.mxu0 %v160
  %770 = vmatprep.subr.mxu0 0.0
  %771 = vmatpush1.msra.mxu0 %v161
  %772 = vmatprep.subr.mxu0 0.0
  %773 = vmatpush1.msra.mxu0 %v162
  %774 = vmatprep.subr.mxu0 0.0
  %775 = vmatpush1.msra.mxu0 %v163
  %776 = vmatprep.subr.mxu0 0.0
  %777 = vmatpush1.msra.mxu0 0.0
  %778 = vmatprep.subr.mxu0 0.0
  %779 = vmatpush1.msra.mxu0 0.0
  %780 = vmatprep.subr.mxu0 0.0
  %781 = vmatpush1.msra.mxu0 0.0
  %782 = vmatprep.subr.mxu0 0.0
  %783 = vmatpush1.msra.mxu0 0.0
  %784 = vmatprep.subr.mxu0 0.0
  %785 = vmatpush1.msra.mxu0 0.0
  %786 = vmatprep.subr.mxu0 0.0
  %787 = vmatpush1.msra.mxu0 0.0
  %788 = vmatprep.subr.mxu0 0.0
  %789 = vmatpush1.msra.mxu0 0.0
  %790 = vmatprep.subr.mxu0 0.0
  %791 = vmatpush1.msra.mxu0 0.0
  %792 = vmatprep.subr.mxu0 0.0
  %793 = vmatpush1.msra.mxu0 0.0
  %794 = vmatprep.subr.mxu0 0.0
  %795 = vmatpush1.msra.mxu0 0.0
  %796 = vmatprep.subr.mxu0 0.0
  %797 = vmatpush1.msra.mxu0 0.0
  %798 = vmatprep.subr.mxu0 0.0
  %799 = vmatpush1.msra.mxu0 0.0
  %800 = vmatprep.subr.mxu0 0.0
  %801 = vmatpush1.msra.mxu0 0.0
  %802 = vmatprep.subr.mxu0 0.0
  %803 = vmatpush1.msra.mxu0 0.0
  %804 = vmatprep.subr.mxu0 0.0
  %805 = vmatpush1.msra.mxu0 0.0
  %806 = vmatprep.subr.mxu0 0.0
  %807 = vmatpush1.msra.mxu0 0.0
  %808 = vmatprep.subr.mxu0 0.0
  %809 = vmatpush1.msra.mxu0 0.0
  %810 = vmatprep.subr.mxu0 0.0
  %811 = vmatpush1.msra.mxu0 0.0
  %812 = vmatprep.subr.mxu0 0.0
  %813 = vmatpush1.msra.mxu0 0.0
  %814 = vmatprep.subr.mxu0 0.0
  %815 = vmatpush1.msra.mxu0 0.0
  %816 = vmatprep.subr.mxu0 0.0
  %817 = vmatpush1.msra.mxu0 0.0
  %818 = vmatprep.subr.mxu0 0.0
  %819 = vmatpush1.msra.mxu0 0.0
  %820 = vmatprep.subr.mxu0 0.0
  %821 = vmatpush1.msra.mxu0 0.0
  %822 = vmatprep.subr.mxu0 0.0
  %823 = vmatpush1.msra.mxu0 0.0
  %824 = vmatprep.subr.mxu0 0.0
  %825 = vmatpush1.msra.mxu0 0.0
  %826 = vmatprep.subr.mxu0 0.0
  %827 = vmatpush1.msra.mxu0 0.0
  %828 = vmatprep.subr.mxu0 0.0
  %829 = vmatpush1.msra.mxu0 0.0
  %830 = vmatprep.subr.mxu0 0.0
  %831 = vmatpush1.msra.mxu0 0.0
  %832 = vmatprep.mubr.f32.mxu0 0.0
  %833 = vmatmul.mubr.f32.gmra.mrb[0].mxu0 %v766
  %v834 = vpop.f32.mrb[0].mxu0
  %v835 = vadd.f32 0.0, %v834
  %v836 = vpop.f32.mrb[0].mxu0
  %837 = vdwg.mxu0
  %v838 = vadd.f32 %v291, %v835
  %v839 = vxor.u32 %v838, 2147483648
  %v840 = vmul.f32 %v839, 1.442695
  %v841 = vpow.pop %v840
  %v842 = vadd.f32 %v841, 1.0
  %v843 = vrcp.pop %v842
  %v844 = vmul.f32 1.0, %v843
  %846 = vrot.lane.b32.xlu0 %v835, 96
  %v847 = vpop.permute.xlu0 %846
  %v849 = vmul.f32 %v844, %v847
  %851 = vrot.lane.b32.xlu0 %v849, 32
  %v852 = vpop.permute.xlu0 %851
  %v854 = vadd.f32 %v291, %v852
  %v855 = vtanh.pop %v854
  %v856 = vsub.f32 1.0, %v844
  %v857 = vmul.f32 %v856, %v763
  %859 = vrot.lane.b32.xlu0 %v855, 64
  %v860 = vpop.permute.xlu0 %859
  %v862 = vmul.f32 %v844, %v860
  %v863 = vadd.f32 %v857, %v862
  %865 = vset.pattern.permute.xlu0 0
  %866 = vperm.xlu0 %865, %v144
  %v867 = vpop.permute.xlu0 %866
  %v869 = vmul.f32 %v867, %v863
  %v870 = vsub.f32 1.0, %v144
  %872 = vset.pattern.permute.xlu0 0
  %873 = vperm.xlu0 %872, %v870
  %v874 = vpop.permute.xlu0 %873
  %v876 = vmul.f32 %v874, %v763
  %v877 = vadd.f32 %v869, %v876
  %878 = vst.msk [vmem:[#allocation2 + $0x20] sm:$0xff] %vm179, %v877
  %v880 = vsel %vm179, %v877, 0
  %882 = vmatprep.subr.mxu0 0.0
  %883 = vmatpush1.msra.mxu0 %v160
  %884 = vmatprep.subr.mxu0 0.0
  %885 = vmatpush1.msra.mxu0 %v161
  %886 = vmatprep.subr.mxu0 0.0
  %887 = vmatpush1.msra.mxu0 %v162
  %888 = vmatprep.subr.mxu0 0.0
  %889 = vmatpush1.msra.mxu0 %v163
  %890 = vmatprep.subr.mxu0 0.0
  %891 = vmatpush1.msra.mxu0 0.0
  %892 = vmatprep.subr.mxu0 0.0
  %893 = vmatpush1.msra.mxu0 0.0
  %894 = vmatprep.subr.mxu0 0.0
  %895 = vmatpush1.msra.mxu0 0.0
  %896 = vmatprep.subr.mxu0 0.0
  %897 = vmatpush1.msra.mxu0 0.0
  %898 = vmatprep.subr.mxu0 0.0
  %899 = vmatpush1.msra.mxu0 0.0
  %900 = vmatprep.subr.mxu0 0.0
  %901 = vmatpush1.msra.mxu0 0.0
  %902 = vmatprep.subr.mxu0 0.0
  %903 = vmatpush1.msra.mxu0 0.0
  %904 = vmatprep.subr.mxu0 0.0
  %905 = vmatpush1.msra.mxu0 0.0
  %906 = vmatprep.subr.mxu0 0.0
  %907 = vmatpush1.msra.mxu0 0.0
  %908 = vmatprep.subr.mxu0 0.0
  %909 = vmatpush1.msra.mxu0 0.0
  %910 = vmatprep.subr.mxu0 0.0
  %911 = vmatpush1.msra.mxu0 0.0
  %912 = vmatprep.subr.mxu0 0.0
  %913 = vmatpush1.msra.mxu0 0.0
  %914 = vmatprep.subr.mxu0 0.0
  %915 = vmatpush1.msra.mxu0 0.0
  %916 = vmatprep.subr.mxu0 0.0
  %917 = vmatpush1.msra.mxu0 0.0
  %918 = vmatprep.subr.mxu0 0.0
  %919 = vmatpush1.msra.mxu0 0.0
  %920 = vmatprep.subr.mxu0 0.0
  %921 = vmatpush1.msra.mxu0 0.0
  %922 = vmatprep.subr.mxu0 0.0
  %923 = vmatpush1.msra.mxu0 0.0
  %924 = vmatprep.subr.mxu0 0.0
  %925 = vmatpush1.msra.mxu0 0.0
  %926 = vmatprep.subr.mxu0 0.0
  %927 = vmatpush1.msra.mxu0 0.0
  %928 = vmatprep.subr.mxu0 0.0
  %929 = vmatpush1.msra.mxu0 0.0
  %930 = vmatprep.subr.mxu0 0.0
  %931 = vmatpush1.msra.mxu0 0.0
  %932 = vmatprep.subr.mxu0 0.0
  %933 = vmatpush1.msra.mxu0 0.0
  %934 = vmatprep.subr.mxu0 0.0
  %935 = vmatpush1.msra.mxu0 0.0
  %936 = vmatprep.subr.mxu0 0.0
  %937 = vmatpush1.msra.mxu0 0.0
  %938 = vmatprep.subr.mxu0 0.0
  %939 = vmatpush1.msra.mxu0 0.0
  %940 = vmatprep.subr.mxu0 0.0
  %941 = vmatpush1.msra.mxu0 0.0
  %942 = vmatprep.subr.mxu0 0.0
  %943 = vmatpush1.msra.mxu0 0.0
  %944 = vmatprep.subr.mxu0 0.0
  %945 = vmatpush1.msra.mxu0 0.0
  %946 = vmatprep.mubr.f32.mxu0 0.0
  %947 = vmatmul.mubr.f32.gmra.mrb[0].mxu0 %v880
  %v948 = vpop.f32.mrb[0].mxu0
  %v949 = vadd.f32 0.0, %v948
  %v950 = vpop.f32.mrb[0].mxu0
  %951 = vdwg.mxu0
  %v952 = vadd.f32 %v296, %v949
  %v953 = vxor.u32 %v952, 2147483648
  %v954 = vmul.f32 %v953, 1.442695
  %v955 = vpow.pop %v954
  %v956 = vadd.f32 %v955, 1.0
  %v957 = vrcp.pop %v956
  %v958 = vmul.f32 1.0, %v957
  %960 = vrot.lane.b32.xlu0 %v949, 96
  %v961 = vpop.permute.xlu0 %960
  %v963 = vmul.f32 %v958, %v961
  %965 = vrot.lane.b32.xlu0 %v963, 32
  %v966 = vpop.permute.xlu0 %965
  %v968 = vadd.f32 %v296, %v966
  %v969 = vtanh.pop %v968
  %v970 = vsub.f32 1.0, %v958
  %v971 = vmul.f32 %v970, %v877
  %973 = vrot.lane.b32.xlu0 %v969, 64
  %v974 = vpop.permute.xlu0 %973
  %v976 = vmul.f32 %v958, %v974
  %v977 = vadd.f32 %v971, %v976
  %979 = vset.pattern.permute.xlu0 0
  %980 = vperm.xlu0 %979, %v145
  %v981 = vpop.permute.xlu0 %980
  %v983 = vmul.f32 %v981, %v977
  %v984 = vsub.f32 1.0, %v145
  %986 = vset.pattern.permute.xlu0 0
  %987 = vperm.xlu0 %986, %v984
  %v988 = vpop.permute.xlu0 %987
  %v990 = vmul.f32 %v988, %v877
  %v991 = vadd.f32 %v983, %v990
  %992 = vst.msk [vmem:[#allocation2 + $0x28] sm:$0xff] %vm179, %v991
  %v994 = vsel %vm179, %v991, 0
  %996 = vmatprep.subr.mxu0 0.0
  %997 = vmatpush1.msra.mxu0 %v160
  %998 = vmatprep.subr.mxu0 0.0
  %999 = vmatpush1.msra.mxu0 %v161
  %1000 = vmatprep.subr.mxu0 0.0
  %1001 = vmatpush1.msra.mxu0 %v162
  %1002 = vmatprep.subr.mxu0 0.0
  %1003 = vmatpush1.msra.mxu0 %v163
  %1004 = vmatprep.subr.mxu0 0.0
  %1005 = vmatpush1.msra.mxu0 0.0
  %1006 = vmatprep.subr.mxu0 0.0
  %1007 = vmatpush1.msra.mxu0 0.0
  %1008 = vmatprep.subr.mxu0 0.0
  %1009 = vmatpush1.msra.mxu0 0.0
  %1010 = vmatprep.subr.mxu0 0.0
  %1011 = vmatpush1.msra.mxu0 0.0
  %1012 = vmatprep.subr.mxu0 0.0
  %1013 = vmatpush1.msra.mxu0 0.0
  %1014 = vmatprep.subr.mxu0 0.0
  %1015 = vmatpush1.msra.mxu0 0.0
  %1016 = vmatprep.subr.mxu0 0.0
  %1017 = vmatpush1.msra.mxu0 0.0
  %1018 = vmatprep.subr.mxu0 0.0
  %1019 = vmatpush1.msra.mxu0 0.0
  %1020 = vmatprep.subr.mxu0 0.0
  %1021 = vmatpush1.msra.mxu0 0.0
  %1022 = vmatprep.subr.mxu0 0.0
  %1023 = vmatpush1.msra.mxu0 0.0
  %1024 = vmatprep.subr.mxu0 0.0
  %1025 = vmatpush1.msra.mxu0 0.0
  %1026 = vmatprep.subr.mxu0 0.0
  %1027 = vmatpush1.msra.mxu0 0.0
  %1028 = vmatprep.subr.mxu0 0.0
  %1029 = vmatpush1.msra.mxu0 0.0
  %1030 = vmatprep.subr.mxu0 0.0
  %1031 = vmatpush1.msra.mxu0 0.0
  %1032 = vmatprep.subr.mxu0 0.0
  %1033 = vmatpush1.msra.mxu0 0.0
  %1034 = vmatprep.subr.mxu0 0.0
  %1035 = vmatpush1.msra.mxu0 0.0
  %1036 = vmatprep.subr.mxu0 0.0
  %1037 = vmatpush1.msra.mxu0 0.0
  %1038 = vmatprep.subr.mxu0 0.0
  %1039 = vmatpush1.msra.mxu0 0.0
  %1040 = vmatprep.subr.mxu0 0.0
  %1041 = vmatpush1.msra.mxu0 0.0
  %1042 = vmatprep.subr.mxu0 0.0
  %1043 = vmatpush1.msra.mxu0 0.0
  %1044 = vmatprep.subr.mxu0 0.0
  %1045 = vmatpush1.msra.mxu0 0.0
  %1046 = vmatprep.subr.mxu0 0.0
  %1047 = vmatpush1.msra.mxu0 0.0
  %1048 = vmatprep.subr.mxu0 0.0
  %1049 = vmatpush1.msra.mxu0 0.0
  %1050 = vmatprep.subr.mxu0 0.0
  %1051 = vmatpush1.msra.mxu0 0.0
  %1052 = vmatprep.subr.mxu0 0.0
  %1053 = vmatpush1.msra.mxu0 0.0
  %1054 = vmatprep.subr.mxu0 0.0
  %1055 = vmatpush1.msra.mxu0 0.0
  %1056 = vmatprep.subr.mxu0 0.0
  %1057 = vmatpush1.msra.mxu0 0.0
  %1058 = vmatprep.subr.mxu0 0.0
  %1059 = vmatpush1.msra.mxu0 0.0
  %1060 = vmatprep.mubr.f32.mxu0 0.0
  %1061 = vmatmul.mubr.f32.gmra.mrb[0].mxu0 %v994
  %v1062 = vpop.f32.mrb[0].mxu0
  %v1063 = vadd.f32 0.0, %v1062
  %v1064 = vpop.f32.mrb[0].mxu0
  %1065 = vdwg.mxu0
  %v1066 = vadd.f32 %v301, %v1063
  %v1067 = vxor.u32 %v1066, 2147483648
  %v1068 = vmul.f32 %v1067, 1.442695
  %v1069 = vpow.pop %v1068
  %v1070 = vadd.f32 %v1069, 1.0
  %v1071 = vrcp.pop %v1070
  %v1072 = vmul.f32 1.0, %v1071
  %1074 = vrot.lane.b32.xlu0 %v1063, 96
  %v1075 = vpop.permute.xlu0 %1074
  %v1077 = vmul.f32 %v1072, %v1075
  %1079 = vrot.lane.b32.xlu0 %v1077, 32
  %v1080 = vpop.permute.xlu0 %1079
  %v1082 = vadd.f32 %v301, %v1080
  %v1083 = vtanh.pop %v1082
  %v1084 = vsub.f32 1.0, %v1072
  %v1085 = vmul.f32 %v1084, %v991
  %1087 = vrot.lane.b32.xlu0 %v1083, 64
  %v1088 = vpop.permute.xlu0 %1087
  %v1090 = vmul.f32 %v1072, %v1088
  %v1091 = vadd.f32 %v1085, %v1090
  %1093 = vset.pattern.permute.xlu0 0
  %1094 = vperm.xlu0 %1093, %v146
  %v1095 = vpop.permute.xlu0 %1094
  %v1097 = vmul.f32 %v1095, %v1091
  %v1098 = vsub.f32 1.0, %v146
  %1100 = vset.pattern.permute.xlu0 0
  %1101 = vperm.xlu0 %1100, %v1098
  %v1102 = vpop.permute.xlu0 %1101
  %v1104 = vmul.f32 %v1102, %v991
  %v1105 = vadd.f32 %v1097, %v1104
  %1106 = vst.msk [vmem:[#allocation2 + $0x30] sm:$0xff] %vm179, %v1105
  %v1108 = vsel %vm179, %v1105, 0
  %1110 = vmatprep.subr.mxu0 0.0
  %1111 = vmatpush1.msra.mxu0 %v160
  %1112 = vmatprep.subr.mxu0 0.0
  %1113 = vmatpush1.msra.mxu0 %v161
  %1114 = vmatprep.subr.mxu0 0.0
  %1115 = vmatpush1.msra.mxu0 %v162
  %1116 = vmatprep.subr.mxu0 0.0
  %1117 = vmatpush1.msra.mxu0 %v163
  %1118 = vmatprep.subr.mxu0 0.0
  %1119 = vmatpush1.msra.mxu0 0.0
  %1120 = vmatprep.subr.mxu0 0.0
  %1121 = vmatpush1.msra.mxu0 0.0
  %1122 = vmatprep.subr.mxu0 0.0
  %1123 = vmatpush1.msra.mxu0 0.0
  %1124 = vmatprep.subr.mxu0 0.0
  %1125 = vmatpush1.msra.mxu0 0.0
  %1126 = vmatprep.subr.mxu0 0.0
  %1127 = vmatpush1.msra.mxu0 0.0
  %1128 = vmatprep.subr.mxu0 0.0
  %1129 = vmatpush1.msra.mxu0 0.0
  %1130 = vmatprep.subr.mxu0 0.0
  %1131 = vmatpush1.msra.mxu0 0.0
  %1132 = vmatprep.subr.mxu0 0.0
  %1133 = vmatpush1.msra.mxu0 0.0
  %1134 = vmatprep.subr.mxu0 0.0
  %1135 = vmatpush1.msra.mxu0 0.0
  %1136 = vmatprep.subr.mxu0 0.0
  %1137 = vmatpush1.msra.mxu0 0.0
  %1138 = vmatprep.subr.mxu0 0.0
  %1139 = vmatpush1.msra.mxu0 0.0
  %1140 = vmatprep.subr.mxu0 0.0
  %1141 = vmatpush1.msra.mxu0 0.0
  %1142 = vmatprep.subr.mxu0 0.0
  %1143 = vmatpush1.msra.mxu0 0.0
  %1144 = vmatprep.subr.mxu0 0.0
  %1145 = vmatpush1.msra.mxu0 0.0
  %1146 = vmatprep.subr.mxu0 0.0
  %1147 = vmatpush1.msra.mxu0 0.0
  %1148 = vmatprep.subr.mxu0 0.0
  %1149 = vmatpush1.msra.mxu0 0.0
  %1150 = vmatprep.subr.mxu0 0.0
  %1151 = vmatpush1.msra.mxu0 0.0
  %1152 = vmatprep.subr.mxu0 0.0
  %1153 = vmatpush1.msra.mxu0 0.0
  %1154 = vmatprep.subr.mxu0 0.0
  %1155 = vmatpush1.msra.mxu0 0.0
  %1156 = vmatprep.subr.mxu0 0.0
  %1157 = vmatpush1.msra.mxu0 0.0
  %1158 = vmatprep.subr.mxu0 0.0
  %1159 = vmatpush1.msra.mxu0 0.0
  %1160 = vmatprep.subr.mxu0 0.0
  %1161 = vmatpush1.msra.mxu0 0.0
  %1162 = vmatprep.subr.mxu0 0.0
  %1163 = vmatpush1.msra.mxu0 0.0
  %1164 = vmatprep.subr.mxu0 0.0
  %1165 = vmatpush1.msra.mxu0 0.0
  %1166 = vmatprep.subr.mxu0 0.0
  %1167 = vmatpush1.msra.mxu0 0.0
  %1168 = vmatprep.subr.mxu0 0.0
  %1169 = vmatpush1.msra.mxu0 0.0
  %1170 = vmatprep.subr.mxu0 0.0
  %1171 = vmatpush1.msra.mxu0 0.0
  %1172 = vmatprep.subr.mxu0 0.0
  %1173 = vmatpush1.msra.mxu0 0.0
  %1174 = vmatprep.mubr.f32.mxu0 0.0
  %1175 = vmatmul.mubr.f32.gmra.mrb[0].mxu0 %v1108
  %v1176 = vpop.f32.mrb[0].mxu0
  %v1177 = vadd.f32 0.0, %v1176
  %v1178 = vpop.f32.mrb[0].mxu0
  %1179 = vdwg.mxu0
  %v1180 = vadd.f32 %v306, %v1177
  %v1181 = vxor.u32 %v1180, 2147483648
  %v1182 = vmul.f32 %v1181, 1.442695
  %v1183 = vpow.pop %v1182
  %v1184 = vadd.f32 %v1183, 1.0
  %v1185 = vrcp.pop %v1184
  %v1186 = vmul.f32 1.0, %v1185
  %1188 = vrot.lane.b32.xlu0 %v1177, 96
  %v1189 = vpop.permute.xlu0 %1188
  %v1191 = vmul.f32 %v1186, %v1189
  %1193 = vrot.lane.b32.xlu0 %v1191, 32
  %v1194 = vpop.permute.xlu0 %1193
  %v1196 = vadd.f32 %v306, %v1194
  %v1197 = vtanh.pop %v1196
  %v1198 = vsub.f32 1.0, %v1186
  %v1199 = vmul.f32 %v1198, %v1105
  %1201 = vrot.lane.b32.xlu0 %v1197, 64
  %v1202 = vpop.permute.xlu0 %1201
  %v1204 = vmul.f32 %v1186, %v1202
  %v1205 = vadd.f32 %v1199, %v1204
  %1207 = vset.pattern.permute.xlu0 0
  %1208 = vperm.xlu0 %1207, %v147
  %v1209 = vpop.permute.xlu0 %1208
  %v1211 = vmul.f32 %v1209, %v1205
  %v1212 = vsub.f32 1.0, %v147
  %1214 = vset.pattern.permute.xlu0 0
  %1215 = vperm.xlu0 %1214, %v1212
  %v1216 = vpop.permute.xlu0 %1215
  %v1218 = vmul.f32 %v1216, %v1105
  %v1219 = vadd.f32 %v1211, %v1218
  %1220 = vst.msk [vmem:[#allocation2 + $0x38] sm:$0xff] %vm179, %v1219
  %v1221 = vld [vmem:[#allocation2] sm:$0xff]
  %v1222 = vld [vmem:[#allocation2 + $0x8] sm:$0xff]
  %v1223 = vld [vmem:[#allocation2 + $0x10] sm:$0xff]
  %v1224 = vld [vmem:[#allocation2 + $0x18] sm:$0xff]
  %v1225 = vld [vmem:[#allocation2 + $0x20] sm:$0xff]
  %v1226 = vld [vmem:[#allocation2 + $0x28] sm:$0xff]
  %v1227 = vld [vmem:[#allocation2 + $0x30] sm:$0xff]
  %v1228 = vld [vmem:[#allocation2 + $0x38] sm:$0xff]
  %v1229 = vld [vmem:[%s15] sm:$0xff]
  %v1230 = vld [vmem:[%s15 + $0x8] sm:$0xff]
  %v1231 = vld [vmem:[%s15 + $0x10] sm:$0xff]
  %v1232 = vld [vmem:[%s15 + $0x18] sm:$0xff]
  %v1233 = vld [vmem:[%s19] sm:$0x1]
  %v1235 = vlaneseq
  %v1236 = vshrl.u32 %v1235, 7
  %v1237 = vsub.s32 0, %v1236
  %v1238 = vrot.slane %v1233, %v1237
  %v1241 = vsel %vm179, %v1221, 0
  %v1244 = vsel %vm179, %v1222, 0
  %v1247 = vsel %vm179, %v1223, 0
  %v1250 = vsel %vm179, %v1224, 0
  %v1253 = vsel %vm179, %v1225, 0
  %v1256 = vsel %vm179, %v1226, 0
  %v1259 = vsel %vm179, %v1227, 0
  %v1262 = vsel %vm179, %v1228, 0
  %1264 = vmatprep.subr.mxu0 0.0
  %1265 = vmatpush1.msra.mxu0 %v1229
  %1266 = vmatprep.subr.mxu0 0.0
  %1267 = vmatpush1.msra.mxu0 %v1230
  %1268 = vmatprep.subr.mxu0 0.0
  %1269 = vmatpush1.msra.mxu0 %v1231
  %1270 = vmatprep.subr.mxu0 0.0
  %1271 = vmatpush1.msra.mxu0 %v1232
  %1272 = vmatprep.subr.mxu0 0.0
  %1273 = vmatpush1.msra.mxu0 0.0
  %1274 = vmatprep.subr.mxu0 0.0
  %1275 = vmatpush1.msra.mxu0 0.0
  %1276 = vmatprep.subr.mxu0 0.0
  %1277 = vmatpush1.msra.mxu0 0.0
  %1278 = vmatprep.subr.mxu0 0.0
  %1279 = vmatpush1.msra.mxu0 0.0
  %1280 = vmatprep.subr.mxu0 0.0
  %1281 = vmatpush1.msra.mxu0 0.0
  %1282 = vmatprep.subr.mxu0 0.0
  %1283 = vmatpush1.msra.mxu0 0.0
  %1284 = vmatprep.subr.mxu0 0.0
  %1285 = vmatpush1.msra.mxu0 0.0
  %1286 = vmatprep.subr.mxu0 0.0
  %1287 = vmatpush1.msra.mxu0 0.0
  %1288 = vmatprep.subr.mxu0 0.0
  %1289 = vmatpush1.msra.mxu0 0.0
  %1290 = vmatprep.subr.mxu0 0.0
  %1291 = vmatpush1.msra.mxu0 0.0
  %1292 = vmatprep.subr.mxu0 0.0
  %1293 = vmatpush1.msra.mxu0 0.0
  %1294 = vmatprep.subr.mxu0 0.0
  %1295 = vmatpush1.msra.mxu0 0.0
  %1296 = vmatprep.subr.mxu0 0.0
  %1297 = vmatpush1.msra.mxu0 0.0
  %1298 = vmatprep.subr.mxu0 0.0
  %1299 = vmatpush1.msra.mxu0 0.0
  %1300 = vmatprep.subr.mxu0 0.0
  %1301 = vmatpush1.msra.mxu0 0.0
  %1302 = vmatprep.subr.mxu0 0.0
  %1303 = vmatpush1.msra.mxu0 0.0
  %1304 = vmatprep.subr.mxu0 0.0
  %1305 = vmatpush1.msra.mxu0 0.0
  %1306 = vmatprep.subr.mxu0 0.0
  %1307 = vmatpush1.msra.mxu0 0.0
  %1308 = vmatprep.subr.mxu0 0.0
  %1309 = vmatpush1.msra.mxu0 0.0
  %1310 = vmatprep.subr.mxu0 0.0
  %1311 = vmatpush1.msra.mxu0 0.0
  %1312 = vmatprep.subr.mxu0 0.0
  %1313 = vmatpush1.msra.mxu0 0.0
  %1314 = vmatprep.subr.mxu0 0.0
  %1315 = vmatpush1.msra.mxu0 0.0
  %1316 = vmatprep.subr.mxu0 0.0
  %1317 = vmatpush1.msra.mxu0 0.0
  %1318 = vmatprep.subr.mxu0 0.0
  %1319 = vmatpush1.msra.mxu0 0.0
  %1320 = vmatprep.subr.mxu0 0.0
  %1321 = vmatpush1.msra.mxu0 0.0
  %1322 = vmatprep.subr.mxu0 0.0
  %1323 = vmatpush1.msra.mxu0 0.0
  %1324 = vmatprep.subr.mxu0 0.0
  %1325 = vmatpush1.msra.mxu0 0.0
  %1326 = vmatprep.subr.mxu0 0.0
  %1327 = vmatpush1.msra.mxu0 0.0
  %1328 = vmatprep.mubr.f32.mxu0 0.0
  %1329 = vmatmul.mubr.f32.gmra.mrb[0].mxu0 %v1241
  %v1330 = vpop.f32.mrb[0].mxu0
  %v1331 = vadd.f32 %v1238, %v1330
  %v1332 = vpop.f32.mrb[0].mxu0
  %1333 = vmatprep.mubr.f32.mxu0 0.0
  %1334 = vmatmul.mubr.f32.gmra.mrb[0].mxu0 %v1244
  %v1335 = vpop.f32.mrb[0].mxu0
  %v1336 = vadd.f32 %v1238, %v1335
  %v1337 = vpop.f32.mrb[0].mxu0
  %1338 = vmatprep.mubr.f32.mxu0 0.0
  %1339 = vmatmul.mubr.f32.gmra.mrb[0].mxu0 %v1247
  %v1340 = vpop.f32.mrb[0].mxu0
  %v1341 = vadd.f32 %v1238, %v1340
  %v1342 = vpop.f32.mrb[0].mxu0
  %1343 = vmatprep.mubr.f32.mxu0 0.0
  %1344 = vmatmul.mubr.f32.gmra.mrb[0].mxu0 %v1250
  %v1345 = vpop.f32.mrb[0].mxu0
  %v1346 = vadd.f32 %v1238, %v1345
  %v1347 = vpop.f32.mrb[0].mxu0
  %1348 = vmatprep.mubr.f32.mxu0 0.0
  %1349 = vmatmul.mubr.f32.gmra.mrb[0].mxu0 %v1253
  %v1350 = vpop.f32.mrb[0].mxu0
  %v1351 = vadd.f32 %v1238, %v1350
  %v1352 = vpop.f32.mrb[0].mxu0
  %1353 = vmatprep.mubr.f32.mxu0 0.0
  %1354 = vmatmul.mubr.f32.gmra.mrb[0].mxu0 %v1256
  %v1355 = vpop.f32.mrb[0].mxu0
  %v1356 = vadd.f32 %v1238, %v1355
  %v1357 = vpop.f32.mrb[0].mxu0
  %1358 = vmatprep.mubr.f32.mxu0 0.0
  %1359 = vmatmul.mubr.f32.gmra.mrb[0].mxu0 %v1259
  %v1360 = vpop.f32.mrb[0].mxu0
  %v1361 = vadd.f32 %v1238, %v1360
  %v1362 = vpop.f32.mrb[0].mxu0
  %1363 = vmatprep.mubr.f32.mxu0 0.0
  %1364 = vmatmul.mubr.f32.gmra.mrb[0].mxu0 %v1262
  %v1365 = vpop.f32.mrb[0].mxu0
  %v1366 = vadd.f32 %v1238, %v1365
  %v1367 = vpop.f32.mrb[0].mxu0
  %1368 = vdwg.mxu0
  %1369 = vmatprep.subr.mxu0 0.0
  %1370 = vmatpush1.msra.mxu0 %v164
  %1371 = vmatprep.subr.mxu0 0.0
  %1372 = vmatpush1.msra.mxu0 %v165
  %1373 = vmatprep.subr.mxu0 0.0
  %1374 = vmatpush1.msra.mxu0 %v166
  %1375 = vmatprep.subr.mxu0 0.0
  %1376 = vmatpush1.msra.mxu0 %v167
  %1377 = vmatprep.subr.mxu0 0.0
  %1378 = vmatpush1.msra.mxu0 0.0
  %1379 = vmatprep.subr.mxu0 0.0
  %1380 = vmatpush1.msra.mxu0 0.0
  %1381 = vmatprep.subr.mxu0 0.0
  %1382 = vmatpush1.msra.mxu0 0.0
  %1383 = vmatprep.subr.mxu0 0.0
  %1384 = vmatpush1.msra.mxu0 0.0
  %1385 = vmatprep.subr.mxu0 0.0
  %1386 = vmatpush1.msra.mxu0 0.0
  %1387 = vmatprep.subr.mxu0 0.0
  %1388 = vmatpush1.msra.mxu0 0.0
  %1389 = vmatprep.subr.mxu0 0.0
  %1390 = vmatpush1.msra.mxu0 0.0
  %1391 = vmatprep.subr.mxu0 0.0
  %1392 = vmatpush1.msra.mxu0 0.0
  %1393 = vmatprep.subr.mxu0 0.0
  %1394 = vmatpush1.msra.mxu0 0.0
  %1395 = vmatprep.subr.mxu0 0.0
  %1396 = vmatpush1.msra.mxu0 0.0
  %1397 = vmatprep.subr.mxu0 0.0
  %1398 = vmatpush1.msra.mxu0 0.0
  %1399 = vmatprep.subr.mxu0 0.0
  %1400 = vmatpush1.msra.mxu0 0.0
  %1401 = vmatprep.subr.mxu0 0.0
  %1402 = vmatpush1.msra.mxu0 0.0
  %1403 = vmatprep.subr.mxu0 0.0
  %1404 = vmatpush1.msra.mxu0 0.0
  %1405 = vmatprep.subr.mxu0 0.0
  %1406 = vmatpush1.msra.mxu0 0.0
  %1407 = vmatprep.subr.mxu0 0.0
  %1408 = vmatpush1.msra.mxu0 0.0
  %1409 = vmatprep.subr.mxu0 0.0
  %1410 = vmatpush1.msra.mxu0 0.0
  %1411 = vmatprep.subr.mxu0 0.0
  %1412 = vmatpush1.msra.mxu0 0.0
  %1413 = vmatprep.subr.mxu0 0.0
  %1414 = vmatpush1.msra.mxu0 0.0
  %1415 = vmatprep.subr.mxu0 0.0
  %1416 = vmatpush1.msra.mxu0 0.0
  %1417 = vmatprep.subr.mxu0 0.0
  %1418 = vmatpush1.msra.mxu0 0.0
  %1419 = vmatprep.subr.mxu0 0.0
  %1420 = vmatpush1.msra.mxu0 0.0
  %1421 = vmatprep.subr.mxu0 0.0
  %1422 = vmatpush1.msra.mxu0 0.0
  %1423 = vmatprep.subr.mxu0 0.0
  %1424 = vmatpush1.msra.mxu0 0.0
  %1425 = vmatprep.subr.mxu0 0.0
  %1426 = vmatpush1.msra.mxu0 0.0
  %1427 = vmatprep.subr.mxu0 0.0
  %1428 = vmatpush1.msra.mxu0 0.0
  %1429 = vmatprep.subr.mxu0 0.0
  %1430 = vmatpush1.msra.mxu0 0.0
  %1431 = vmatprep.subr.mxu0 0.0
  %1432 = vmatpush1.msra.mxu0 0.0
  %1433 = vmatprep.mubr.f32.mxu0 0.0
  %1434 = vmatmul.mubr.f32.gmra.mrb[0].mxu0 %v310
  %v1435 = vpop.f32.mrb[0].mxu0
  %v1436 = vadd.f32 0.0, %v1435
  %v1437 = vpop.f32.mrb[0].mxu0
  %1438 = vdwg.mxu0
  %v1439 = vadd.f32 %v1366, %v1436
  %v1440 = vxor.u32 %v1439, 2147483648
  %v1441 = vmul.f32 %v1440, 1.442695
  %v1442 = vpow.pop %v1441
  %v1443 = vadd.f32 %v1442, 1.0
  %v1444 = vrcp.pop %v1443
  %v1445 = vmul.f32 1.0, %v1444
  %1447 = vrot.lane.b32.xlu0 %v1436, 96
  %v1448 = vpop.permute.xlu0 %1447
  %v1450 = vmul.f32 %v1445, %v1448
  %1452 = vrot.lane.b32.xlu0 %v1450, 32
  %v1453 = vpop.permute.xlu0 %1452
  %v1455 = vadd.f32 %v1366, %v1453
  %v1456 = vtanh.pop %v1455
  %v1457 = vsub.f32 1.0, %v1445
  %v1458 = vmul.f32 %v1457, 0.0
  %1460 = vrot.lane.b32.xlu0 %v1456, 64
  %v1461 = vpop.permute.xlu0 %1460
  %v1463 = vmul.f32 %v1445, %v1461
  %v1464 = vadd.f32 %v1458, %v1463
  %v1465 = vmul.f32 %v1209, %v1464
  %v1466 = vmul.f32 %v1216, 0.0
  %v1467 = vadd.f32 %v1465, %v1466
  %1468 = vst.msk [vmem:[#allocation3 + $0x38] sm:$0xff] %vm179, %v1467
  %v1470 = vsel %vm179, %v1467, 0
  %1472 = vmatprep.subr.mxu0 0.0
  %1473 = vmatpush1.msra.mxu0 %v164
  %1474 = vmatprep.subr.mxu0 0.0
  %1475 = vmatpush1.msra.mxu0 %v165
  %1476 = vmatprep.subr.mxu0 0.0
  %1477 = vmatpush1.msra.mxu0 %v166
  %1478 = vmatprep.subr.mxu0 0.0
  %1479 = vmatpush1.msra.mxu0 %v167
  %1480 = vmatprep.subr.mxu0 0.0
  %1481 = vmatpush1.msra.mxu0 0.0
  %1482 = vmatprep.subr.mxu0 0.0
  %1483 = vmatpush1.msra.mxu0 0.0
  %1484 = vmatprep.subr.mxu0 0.0
  %1485 = vmatpush1.msra.mxu0 0.0
  %1486 = vmatprep.subr.mxu0 0.0
  %1487 = vmatpush1.msra.mxu0 0.0
  %1488 = vmatprep.subr.mxu0 0.0
  %1489 = vmatpush1.msra.mxu0 0.0
  %1490 = vmatprep.subr.mxu0 0.0
  %1491 = vmatpush1.msra.mxu0 0.0
  %1492 = vmatprep.subr.mxu0 0.0
  %1493 = vmatpush1.msra.mxu0 0.0
  %1494 = vmatprep.subr.mxu0 0.0
  %1495 = vmatpush1.msra.mxu0 0.0
  %1496 = vmatprep.subr.mxu0 0.0
  %1497 = vmatpush1.msra.mxu0 0.0
  %1498 = vmatprep.subr.mxu0 0.0
  %1499 = vmatpush1.msra.mxu0 0.0
  %1500 = vmatprep.subr.mxu0 0.0
  %1501 = vmatpush1.msra.mxu0 0.0
  %1502 = vmatprep.subr.mxu0 0.0
  %1503 = vmatpush1.msra.mxu0 0.0
  %1504 = vmatprep.subr.mxu0 0.0
  %1505 = vmatpush1.msra.mxu0 0.0
  %1506 = vmatprep.subr.mxu0 0.0
  %1507 = vmatpush1.msra.mxu0 0.0
  %1508 = vmatprep.subr.mxu0 0.0
  %1509 = vmatpush1.msra.mxu0 0.0
  %1510 = vmatprep.subr.mxu0 0.0
  %1511 = vmatpush1.msra.mxu0 0.0
  %1512 = vmatprep.subr.mxu0 0.0
  %1513 = vmatpush1.msra.mxu0 0.0
  %1514 = vmatprep.subr.mxu0 0.0
  %1515 = vmatpush1.msra.mxu0 0.0
  %1516 = vmatprep.subr.mxu0 0.0
  %1517 = vmatpush1.msra.mxu0 0.0
  %1518 = vmatprep.subr.mxu0 0.0
  %1519 = vmatpush1.msra.mxu0 0.0
  %1520 = vmatprep.subr.mxu0 0.0
  %1521 = vmatpush1.msra.mxu0 0.0
  %1522 = vmatprep.subr.mxu0 0.0
  %1523 = vmatpush1.msra.mxu0 0.0
  %1524 = vmatprep.subr.mxu0 0.0
  %1525 = vmatpush1.msra.mxu0 0.0
  %1526 = vmatprep.subr.mxu0 0.0
  %1527 = vmatpush1.msra.mxu0 0.0
  %1528 = vmatprep.subr.mxu0 0.0
  %1529 = vmatpush1.msra.mxu0 0.0
  %1530 = vmatprep.subr.mxu0 0.0
  %1531 = vmatpush1.msra.mxu0 0.0
  %1532 = vmatprep.subr.mxu0 0.0
  %1533 = vmatpush1.msra.mxu0 0.0
  %1534 = vmatprep.subr.mxu0 0.0
  %1535 = vmatpush1.msra.mxu0 0.0
  %1536 = vmatprep.mubr.f32.mxu0 0.0
  %1537 = vmatmul.mubr.f32.gmra.mrb[0].mxu0 %v1470
  %v1538 = vpop.f32.mrb[0].mxu0
  %v1539 = vadd.f32 0.0, %v1538
  %v1540 = vpop.f32.mrb[0].mxu0
  %1541 = vdwg.mxu0
  %v1542 = vadd.f32 %v1361, %v1539
  %v1543 = vxor.u32 %v1542, 2147483648
  %v1544 = vmul.f32 %v1543, 1.442695
  %v1545 = vpow.pop %v1544
  %v1546 = vadd.f32 %v1545, 1.0
  %v1547 = vrcp.pop %v1546
  %v1548 = vmul.f32 1.0, %v1547
  %1550 = vrot.lane.b32.xlu0 %v1539, 96
  %v1551 = vpop.permute.xlu0 %1550
  %v1553 = vmul.f32 %v1548, %v1551
  %1555 = vrot.lane.b32.xlu0 %v1553, 32
  %v1556 = vpop.permute.xlu0 %1555
  %v1558 = vadd.f32 %v1361, %v1556
  %v1559 = vtanh.pop %v1558
  %v1560 = vsub.f32 1.0, %v1548
  %v1561 = vmul.f32 %v1560, %v1467
  %1563 = vrot.lane.b32.xlu0 %v1559, 64
  %v1564 = vpop.permute.xlu0 %1563
  %v1566 = vmul.f32 %v1548, %v1564
  %v1567 = vadd.f32 %v1561, %v1566
  %v1568 = vmul.f32 %v1095, %v1567
  %v1569 = vmul.f32 %v1102, %v1467
  %v1570 = vadd.f32 %v1568, %v1569
  %1571 = vst.msk [vmem:[#allocation3 + $0x30] sm:$0xff] %vm179, %v1570
  %v1573 = vsel %vm179, %v1570, 0
  %1575 = vmatprep.subr.mxu0 0.0
  %1576 = vmatpush1.msra.mxu0 %v164
  %1577 = vmatprep.subr.mxu0 0.0
  %1578 = vmatpush1.msra.mxu0 %v165
  %1579 = vmatprep.subr.mxu0 0.0
  %1580 = vmatpush1.msra.mxu0 %v166
  %1581 = vmatprep.subr.mxu0 0.0
  %1582 = vmatpush1.msra.mxu0 %v167
  %1583 = vmatprep.subr.mxu0 0.0
  %1584 = vmatpush1.msra.mxu0 0.0
  %1585 = vmatprep.subr.mxu0 0.0
  %1586 = vmatpush1.msra.mxu0 0.0
  %1587 = vmatprep.subr.mxu0 0.0
  %1588 = vmatpush1.msra.mxu0 0.0
  %1589 = vmatprep.subr.mxu0 0.0
  %1590 = vmatpush1.msra.mxu0 0.0
  %1591 = vmatprep.subr.mxu0 0.0
  %1592 = vmatpush1.msra.mxu0 0.0
  %1593 = vmatprep.subr.mxu0 0.0
  %1594 = vmatpush1.msra.mxu0 0.0
  %1595 = vmatprep.subr.mxu0 0.0
  %1596 = vmatpush1.msra.mxu0 0.0
  %1597 = vmatprep.subr.mxu0 0.0
  %1598 = vmatpush1.msra.mxu0 0.0
  %1599 = vmatprep.subr.mxu0 0.0
  %1600 = vmatpush1.msra.mxu0 0.0
  %1601 = vmatprep.subr.mxu0 0.0
  %1602 = vmatpush1.msra.mxu0 0.0
  %1603 = vmatprep.subr.mxu0 0.0
  %1604 = vmatpush1.msra.mxu0 0.0
  %1605 = vmatprep.subr.mxu0 0.0
  %1606 = vmatpush1.msra.mxu0 0.0
  %1607 = vmatprep.subr.mxu0 0.0
  %1608 = vmatpush1.msra.mxu0 0.0
  %1609 = vmatprep.subr.mxu0 0.0
  %1610 = vmatpush1.msra.mxu0 0.0
  %1611 = vmatprep.subr.mxu0 0.0
  %1612 = vmatpush1.msra.mxu0 0.0
  %1613 = vmatprep.subr.mxu0 0.0
  %1614 = vmatpush1.msra.mxu0 0.0
  %1615 = vmatprep.subr.mxu0 0.0
  %1616 = vmatpush1.msra.mxu0 0.0
  %1617 = vmatprep.subr.mxu0 0.0
  %1618 = vmatpush1.msra.mxu0 0.0
  %1619 = vmatprep.subr.mxu0 0.0
  %1620 = vmatpush1.msra.mxu0 0.0
  %1621 = vmatprep.subr.mxu0 0.0
  %1622 = vmatpush1.msra.mxu0 0.0
  %1623 = vmatprep.subr.mxu0 0.0
  %1624 = vmatpush1.msra.mxu0 0.0
  %1625 = vmatprep.subr.mxu0 0.0
  %1626 = vmatpush1.msra.mxu0 0.0
  %1627 = vmatprep.subr.mxu0 0.0
  %1628 = vmatpush1.msra.mxu0 0.0
  %1629 = vmatprep.subr.mxu0 0.0
  %1630 = vmatpush1.msra.mxu0 0.0
  %1631 = vmatprep.subr.mxu0 0.0
  %1632 = vmatpush1.msra.mxu0 0.0
  %1633 = vmatprep.subr.mxu0 0.0
  %1634 = vmatpush1.msra.mxu0 0.0
  %1635 = vmatprep.subr.mxu0 0.0
  %1636 = vmatpush1.msra.mxu0 0.0
  %1637 = vmatprep.subr.mxu0 0.0
  %1638 = vmatpush1.msra.mxu0 0.0
  %1639 = vmatprep.mubr.f32.mxu0 0.0
  %1640 = vmatmul.mubr.f32.gmra.mrb[0].mxu0 %v1573
  %v1641 = vpop.f32.mrb[0].mxu0
  %v1642 = vadd.f32 0.0, %v1641
  %v1643 = vpop.f32.mrb[0].mxu0
  %1644 = vdwg.mxu0
  %v1645 = vadd.f32 %v1356, %v1642
  %v1646 = vxor.u32 %v1645, 2147483648
  %v1647 = vmul.f32 %v1646, 1.442695
  %v1648 = vpow.pop %v1647
  %v1649 = vadd.f32 %v1648, 1.0
  %v1650 = vrcp.pop %v1649
  %v1651 = vmul.f32 1.0, %v1650
  %1653 = vrot.lane.b32.xlu0 %v1642, 96
  %v1654 = vpop.permute.xlu0 %1653
  %v1656 = vmul.f32 %v1651, %v1654
  %1658 = vrot.lane.b32.xlu0 %v1656, 32
  %v1659 = vpop.permute.xlu0 %1658
  %v1661 = vadd.f32 %v1356, %v1659
  %v1662 = vtanh.pop %v1661
  %v1663 = vsub.f32 1.0, %v1651
  %v1664 = vmul.f32 %v1663, %v1570
  %1666 = vrot.lane.b32.xlu0 %v1662, 64
  %v1667 = vpop.permute.xlu0 %1666
  %v1669 = vmul.f32 %v1651, %v1667
  %v1670 = vadd.f32 %v1664, %v1669
  %v1671 = vmul.f32 %v981, %v1670
  %v1672 = vmul.f32 %v988, %v1570
  %v1673 = vadd.f32 %v1671, %v1672
  %1674 = vst.msk [vmem:[#allocation3 + $0x28] sm:$0xff] %vm179, %v1673
  %v1676 = vsel %vm179, %v1673, 0
  %1678 = vmatprep.subr.mxu0 0.0
  %1679 = vmatpush1.msra.mxu0 %v164
  %1680 = vmatprep.subr.mxu0 0.0
  %1681 = vmatpush1.msra.mxu0 %v165
  %1682 = vmatprep.subr.mxu0 0.0
  %1683 = vmatpush1.msra.mxu0 %v166
  %1684 = vmatprep.subr.mxu0 0.0
  %1685 = vmatpush1.msra.mxu0 %v167
  %1686 = vmatprep.subr.mxu0 0.0
  %1687 = vmatpush1.msra.mxu0 0.0
  %1688 = vmatprep.subr.mxu0 0.0
  %1689 = vmatpush1.msra.mxu0 0.0
  %1690 = vmatprep.subr.mxu0 0.0
  %1691 = vmatpush1.msra.mxu0 0.0
  %1692 = vmatprep.subr.mxu0 0.0
  %1693 = vmatpush1.msra.mxu0 0.0
  %1694 = vmatprep.subr.mxu0 0.0
  %1695 = vmatpush1.msra.mxu0 0.0
  %1696 = vmatprep.subr.mxu0 0.0
  %1697 = vmatpush1.msra.mxu0 0.0
  %1698 = vmatprep.subr.mxu0 0.0
  %1699 = vmatpush1.msra.mxu0 0.0
  %1700 = vmatprep.subr.mxu0 0.0
  %1701 = vmatpush1.msra.mxu0 0.0
  %1702 = vmatprep.subr.mxu0 0.0
  %1703 = vmatpush1.msra.mxu0 0.0
  %1704 = vmatprep.subr.mxu0 0.0
  %1705 = vmatpush1.msra.mxu0 0.0
  %1706 = vmatprep.subr.mxu0 0.0
  %1707 = vmatpush1.msra.mxu0 0.0
  %1708 = vmatprep.subr.mxu0 0.0
  %1709 = vmatpush1.msra.mxu0 0.0
  %1710 = vmatprep.subr.mxu0 0.0
  %1711 = vmatpush1.msra.mxu0 0.0
  %1712 = vmatprep.subr.mxu0 0.0
  %1713 = vmatpush1.msra.mxu0 0.0
  %1714 = vmatprep.subr.mxu0 0.0
  %1715 = vmatpush1.msra.mxu0 0.0
  %1716 = vmatprep.subr.mxu0 0.0
  %1717 = vmatpush1.msra.mxu0 0.0
  %1718 = vmatprep.subr.mxu0 0.0
  %1719 = vmatpush1.msra.mxu0 0.0
  %1720 = vmatprep.subr.mxu0 0.0
  %1721 = vmatpush1.msra.mxu0 0.0
  %1722 = vmatprep.subr.mxu0 0.0
  %1723 = vmatpush1.msra.mxu0 0.0
  %1724 = vmatprep.subr.mxu0 0.0
  %1725 = vmatpush1.msra.mxu0 0.0
  %1726 = vmatprep.subr.mxu0 0.0
  %1727 = vmatpush1.msra.mxu0 0.0
  %1728 = vmatprep.subr.mxu0 0.0
  %1729 = vmatpush1.msra.mxu0 0.0
  %1730 = vmatprep.subr.mxu0 0.0
  %1731 = vmatpush1.msra.mxu0 0.0
  %1732 = vmatprep.subr.mxu0 0.0
  %1733 = vmatpush1.msra.mxu0 0.0
  %1734 = vmatprep.subr.mxu0 0.0
  %1735 = vmatpush1.msra.mxu0 0.0
  %1736 = vmatprep.subr.mxu0 0.0
  %1737 = vmatpush1.msra.mxu0 0.0
  %1738 = vmatprep.subr.mxu0 0.0
  %1739 = vmatpush1.msra.mxu0 0.0
  %1740 = vmatprep.subr.mxu0 0.0
  %1741 = vmatpush1.msra.mxu0 0.0
  %1742 = vmatprep.mubr.f32.mxu0 0.0
  %1743 = vmatmul.mubr.f32.gmra.mrb[0].mxu0 %v1676
  %v1744 = vpop.f32.mrb[0].mxu0
  %v1745 = vadd.f32 0.0, %v1744
  %v1746 = vpop.f32.mrb[0].mxu0
  %1747 = vdwg.mxu0
  %v1748 = vadd.f32 %v1351, %v1745
  %v1749 = vxor.u32 %v1748, 2147483648
  %v1750 = vmul.f32 %v1749, 1.442695
  %v1751 = vpow.pop %v1750
  %v1752 = vadd.f32 %v1751, 1.0
  %v1753 = vrcp.pop %v1752
  %v1754 = vmul.f32 1.0, %v1753
  %1756 = vrot.lane.b32.xlu0 %v1745, 96
  %v1757 = vpop.permute.xlu0 %1756
  %v1759 = vmul.f32 %v1754, %v1757
  %1761 = vrot.lane.b32.xlu0 %v1759, 32
  %v1762 = vpop.permute.xlu0 %1761
  %v1764 = vadd.f32 %v1351, %v1762
  %v1765 = vtanh.pop %v1764
  %v1766 = vsub.f32 1.0, %v1754
  %v1767 = vmul.f32 %v1766, %v1673
  %1769 = vrot.lane.b32.xlu0 %v1765, 64
  %v1770 = vpop.permute.xlu0 %1769
  %v1772 = vmul.f32 %v1754, %v1770
  %v1773 = vadd.f32 %v1767, %v1772
  %v1774 = vmul.f32 %v867, %v1773
  %v1775 = vmul.f32 %v874, %v1673
  %v1776 = vadd.f32 %v1774, %v1775
  %1777 = vst.msk [vmem:[#allocation3 + $0x20] sm:$0xff] %vm179, %v1776
  %v1779 = vsel %vm179, %v1776, 0
  %1781 = vmatprep.subr.mxu0 0.0
  %1782 = vmatpush1.msra.mxu0 %v164
  %1783 = vmatprep.subr.mxu0 0.0
  %1784 = vmatpush1.msra.mxu0 %v165
  %1785 = vmatprep.subr.mxu0 0.0
  %1786 = vmatpush1.msra.mxu0 %v166
  %1787 = vmatprep.subr.mxu0 0.0
  %1788 = vmatpush1.msra.mxu0 %v167
  %1789 = vmatprep.subr.mxu0 0.0
  %1790 = vmatpush1.msra.mxu0 0.0
  %1791 = vmatprep.subr.mxu0 0.0
  %1792 = vmatpush1.msra.mxu0 0.0
  %1793 = vmatprep.subr.mxu0 0.0
  %1794 = vmatpush1.msra.mxu0 0.0
  %1795 = vmatprep.subr.mxu0 0.0
  %1796 = vmatpush1.msra.mxu0 0.0
  %1797 = vmatprep.subr.mxu0 0.0
  %1798 = vmatpush1.msra.mxu0 0.0
  %1799 = vmatprep.subr.mxu0 0.0
  %1800 = vmatpush1.msra.mxu0 0.0
  %1801 = vmatprep.subr.mxu0 0.0
  %1802 = vmatpush1.msra.mxu0 0.0
  %1803 = vmatprep.subr.mxu0 0.0
  %1804 = vmatpush1.msra.mxu0 0.0
  %1805 = vmatprep.subr.mxu0 0.0
  %1806 = vmatpush1.msra.mxu0 0.0
  %1807 = vmatprep.subr.mxu0 0.0
  %1808 = vmatpush1.msra.mxu0 0.0
  %1809 = vmatprep.subr.mxu0 0.0
  %1810 = vmatpush1.msra.mxu0 0.0
  %1811 = vmatprep.subr.mxu0 0.0
  %1812 = vmatpush1.msra.mxu0 0.0
  %1813 = vmatprep.subr.mxu0 0.0
  %1814 = vmatpush1.msra.mxu0 0.0
  %1815 = vmatprep.subr.mxu0 0.0
  %1816 = vmatpush1.msra.mxu0 0.0
  %1817 = vmatprep.subr.mxu0 0.0
  %1818 = vmatpush1.msra.mxu0 0.0
  %1819 = vmatprep.subr.mxu0 0.0
  %1820 = vmatpush1.msra.mxu0 0.0
  %1821 = vmatprep.subr.mxu0 0.0
  %1822 = vmatpush1.msra.mxu0 0.0
  %1823 = vmatprep.subr.mxu0 0.0
  %1824 = vmatpush1.msra.mxu0 0.0
  %1825 = vmatprep.subr.mxu0 0.0
  %1826 = vmatpush1.msra.mxu0 0.0
  %1827 = vmatprep.subr.mxu0 0.0
  %1828 = vmatpush1.msra.mxu0 0.0
  %1829 = vmatprep.subr.mxu0 0.0
  %1830 = vmatpush1.msra.mxu0 0.0
  %1831 = vmatprep.subr.mxu0 0.0
  %1832 = vmatpush1.msra.mxu0 0.0
  %1833 = vmatprep.subr.mxu0 0.0
  %1834 = vmatpush1.msra.mxu0 0.0
  %1835 = vmatprep.subr.mxu0 0.0
  %1836 = vmatpush1.msra.mxu0 0.0
  %1837 = vmatprep.subr.mxu0 0.0
  %1838 = vmatpush1.msra.mxu0 0.0
  %1839 = vmatprep.subr.mxu0 0.0
  %1840 = vmatpush1.msra.mxu0 0.0
  %1841 = vmatprep.subr.mxu0 0.0
  %1842 = vmatpush1.msra.mxu0 0.0
  %1843 = vmatprep.subr.mxu0 0.0
  %1844 = vmatpush1.msra.mxu0 0.0
  %1845 = vmatprep.mubr.f32.mxu0 0.0
  %1846 = vmatmul.mubr.f32.gmra.mrb[0].mxu0 %v1779
  %v1847 = vpop.f32.mrb[0].mxu0
  %v1848 = vadd.f32 0.0, %v1847
  %v1849 = vpop.f32.mrb[0].mxu0
  %1850 = vdwg.mxu0
  %v1851 = vadd.f32 %v1346, %v1848
  %v1852 = vxor.u32 %v1851, 2147483648
  %v1853 = vmul.f32 %v1852, 1.442695
  %v1854 = vpow.pop %v1853
  %v1855 = vadd.f32 %v1854, 1.0
  %v1856 = vrcp.pop %v1855
  %v1857 = vmul.f32 1.0, %v1856
  %1859 = vrot.lane.b32.xlu0 %v1848, 96
  %v1860 = vpop.permute.xlu0 %1859
  %v1862 = vmul.f32 %v1857, %v1860
  %1864 = vrot.lane.b32.xlu0 %v1862, 32
  %v1865 = vpop.permute.xlu0 %1864
  %v1867 = vadd.f32 %v1346, %v1865
  %v1868 = vtanh.pop %v1867
  %v1869 = vsub.f32 1.0, %v1857
  %v1870 = vmul.f32 %v1869, %v1776
  %1872 = vrot.lane.b32.xlu0 %v1868, 64
  %v1873 = vpop.permute.xlu0 %1872
  %v1875 = vmul.f32 %v1857, %v1873
  %v1876 = vadd.f32 %v1870, %v1875
  %v1877 = vmul.f32 %v753, %v1876
  %v1878 = vmul.f32 %v760, %v1776
  %v1879 = vadd.f32 %v1877, %v1878
  %1880 = vst.msk [vmem:[#allocation3 + $0x18] sm:$0xff] %vm179, %v1879
  %v1882 = vsel %vm179, %v1879, 0
  %1884 = vmatprep.subr.mxu0 0.0
  %1885 = vmatpush1.msra.mxu0 %v164
  %1886 = vmatprep.subr.mxu0 0.0
  %1887 = vmatpush1.msra.mxu0 %v165
  %1888 = vmatprep.subr.mxu0 0.0
  %1889 = vmatpush1.msra.mxu0 %v166
  %1890 = vmatprep.subr.mxu0 0.0
  %1891 = vmatpush1.msra.mxu0 %v167
  %1892 = vmatprep.subr.mxu0 0.0
  %1893 = vmatpush1.msra.mxu0 0.0
  %1894 = vmatprep.subr.mxu0 0.0
  %1895 = vmatpush1.msra.mxu0 0.0
  %1896 = vmatprep.subr.mxu0 0.0
  %1897 = vmatpush1.msra.mxu0 0.0
  %1898 = vmatprep.subr.mxu0 0.0
  %1899 = vmatpush1.msra.mxu0 0.0
  %1900 = vmatprep.subr.mxu0 0.0
  %1901 = vmatpush1.msra.mxu0 0.0
  %1902 = vmatprep.subr.mxu0 0.0
  %1903 = vmatpush1.msra.mxu0 0.0
  %1904 = vmatprep.subr.mxu0 0.0
  %1905 = vmatpush1.msra.mxu0 0.0
  %1906 = vmatprep.subr.mxu0 0.0
  %1907 = vmatpush1.msra.mxu0 0.0
  %1908 = vmatprep.subr.mxu0 0.0
  %1909 = vmatpush1.msra.mxu0 0.0
  %1910 = vmatprep.subr.mxu0 0.0
  %1911 = vmatpush1.msra.mxu0 0.0
  %1912 = vmatprep.subr.mxu0 0.0
  %1913 = vmatpush1.msra.mxu0 0.0
  %1914 = vmatprep.subr.mxu0 0.0
  %1915 = vmatpush1.msra.mxu0 0.0
  %1916 = vmatprep.subr.mxu0 0.0
  %1917 = vmatpush1.msra.mxu0 0.0
  %1918 = vmatprep.subr.mxu0 0.0
  %1919 = vmatpush1.msra.mxu0 0.0
  %1920 = vmatprep.subr.mxu0 0.0
  %1921 = vmatpush1.msra.mxu0 0.0
  %1922 = vmatprep.subr.mxu0 0.0
  %1923 = vmatpush1.msra.mxu0 0.0
  %1924 = vmatprep.subr.mxu0 0.0
  %1925 = vmatpush1.msra.mxu0 0.0
  %1926 = vmatprep.subr.mxu0 0.0
  %1927 = vmatpush1.msra.mxu0 0.0
  %1928 = vmatprep.subr.mxu0 0.0
  %1929 = vmatpush1.msra.mxu0 0.0
  %1930 = vmatprep.subr.mxu0 0.0
  %1931 = vmatpush1.msra.mxu0 0.0
  %1932 = vmatprep.subr.mxu0 0.0
  %1933 = vmatpush1.msra.mxu0 0.0
  %1934 = vmatprep.subr.mxu0 0.0
  %1935 = vmatpush1.msra.mxu0 0.0
  %1936 = vmatprep.subr.mxu0 0.0
  %1937 = vmatpush1.msra.mxu0 0.0
  %1938 = vmatprep.subr.mxu0 0.0
  %1939 = vmatpush1.msra.mxu0 0.0
  %1940 = vmatprep.subr.mxu0 0.0
  %1941 = vmatpush1.msra.mxu0 0.0
  %1942 = vmatprep.subr.mxu0 0.0
  %1943 = vmatpush1.msra.mxu0 0.0
  %1944 = vmatprep.subr.mxu0 0.0
  %1945 = vmatpush1.msra.mxu0 0.0
  %1946 = vmatprep.subr.mxu0 0.0
  %1947 = vmatpush1.msra.mxu0 0.0
  %1948 = vmatprep.mubr.f32.mxu0 0.0
  %1949 = vmatmul.mubr.f32.gmra.mrb[0].mxu0 %v1882
  %v1950 = vpop.f32.mrb[0].mxu0
  %v1951 = vadd.f32 0.0, %v1950
  %v1952 = vpop.f32.mrb[0].mxu0
  %1953 = vdwg.mxu0
  %v1954 = vadd.f32 %v1341, %v1951
  %v1955 = vxor.u32 %v1954, 2147483648
  %v1956 = vmul.f32 %v1955, 1.442695
  %v1957 = vpow.pop %v1956
  %v1958 = vadd.f32 %v1957, 1.0
  %v1959 = vrcp.pop %v1958
  %v1960 = vmul.f32 1.0, %v1959
  %1962 = vrot.lane.b32.xlu0 %v1951, 96
  %v1963 = vpop.permute.xlu0 %1962
  %v1965 = vmul.f32 %v1960, %v1963
  %1967 = vrot.lane.b32.xlu0 %v1965, 32
  %v1968 = vpop.permute.xlu0 %1967
  %v1970 = vadd.f32 %v1341, %v1968
  %v1971 = vtanh.pop %v1970
  %v1972 = vsub.f32 1.0, %v1960
  %v1973 = vmul.f32 %v1972, %v1879
  %1975 = vrot.lane.b32.xlu0 %v1971, 64
  %v1976 = vpop.permute.xlu0 %1975
  %v1978 = vmul.f32 %v1960, %v1976
  %v1979 = vadd.f32 %v1973, %v1978
  %v1980 = vmul.f32 %v639, %v1979
  %v1981 = vmul.f32 %v646, %v1879
  %v1982 = vadd.f32 %v1980, %v1981
  %1983 = vst.msk [vmem:[#allocation3 + $0x10] sm:$0xff] %vm179, %v1982
  %v1985 = vsel %vm179, %v1982, 0
  %1987 = vmatprep.subr.mxu0 0.0
  %1988 = vmatpush1.msra.mxu0 %v164
  %1989 = vmatprep.subr.mxu0 0.0
  %1990 = vmatpush1.msra.mxu0 %v165
  %1991 = vmatprep.subr.mxu0 0.0
  %1992 = vmatpush1.msra.mxu0 %v166
  %1993 = vmatprep.subr.mxu0 0.0
  %1994 = vmatpush1.msra.mxu0 %v167
  %1995 = vmatprep.subr.mxu0 0.0
  %1996 = vmatpush1.msra.mxu0 0.0
  %1997 = vmatprep.subr.mxu0 0.0
  %1998 = vmatpush1.msra.mxu0 0.0
  %1999 = vmatprep.subr.mxu0 0.0
  %2000 = vmatpush1.msra.mxu0 0.0
  %2001 = vmatprep.subr.mxu0 0.0
  %2002 = vmatpush1.msra.mxu0 0.0
  %2003 = vmatprep.subr.mxu0 0.0
  %2004 = vmatpush1.msra.mxu0 0.0
  %2005 = vmatprep.subr.mxu0 0.0
  %2006 = vmatpush1.msra.mxu0 0.0
  %2007 = vmatprep.subr.mxu0 0.0
  %2008 = vmatpush1.msra.mxu0 0.0
  %2009 = vmatprep.subr.mxu0 0.0
  %2010 = vmatpush1.msra.mxu0 0.0
  %2011 = vmatprep.subr.mxu0 0.0
  %2012 = vmatpush1.msra.mxu0 0.0
  %2013 = vmatprep.subr.mxu0 0.0
  %2014 = vmatpush1.msra.mxu0 0.0
  %2015 = vmatprep.subr.mxu0 0.0
  %2016 = vmatpush1.msra.mxu0 0.0
  %2017 = vmatprep.subr.mxu0 0.0
  %2018 = vmatpush1.msra.mxu0 0.0
  %2019 = vmatprep.subr.mxu0 0.0
  %2020 = vmatpush1.msra.mxu0 0.0
  %2021 = vmatprep.subr.mxu0 0.0
  %2022 = vmatpush1.msra.mxu0 0.0
  %2023 = vmatprep.subr.mxu0 0.0
  %2024 = vmatpush1.msra.mxu0 0.0
  %2025 = vmatprep.subr.mxu0 0.0
  %2026 = vmatpush1.msra.mxu0 0.0
  %2027 = vmatprep.subr.mxu0 0.0
  %2028 = vmatpush1.msra.mxu0 0.0
  %2029 = vmatprep.subr.mxu0 0.0
  %2030 = vmatpush1.msra.mxu0 0.0
  %2031 = vmatprep.subr.mxu0 0.0
  %2032 = vmatpush1.msra.mxu0 0.0
  %2033 = vmatprep.subr.mxu0 0.0
  %2034 = vmatpush1.msra.mxu0 0.0
  %2035 = vmatprep.subr.mxu0 0.0
  %2036 = vmatpush1.msra.mxu0 0.0
  %2037 = vmatprep.subr.mxu0 0.0
  %2038 = vmatpush1.msra.mxu0 0.0
  %2039 = vmatprep.subr.mxu0 0.0
  %2040 = vmatpush1.msra.mxu0 0.0
  %2041 = vmatprep.subr.mxu0 0.0
  %2042 = vmatpush1.msra.mxu0 0.0
  %2043 = vmatprep.subr.mxu0 0.0
  %2044 = vmatpush1.msra.mxu0 0.0
  %2045 = vmatprep.subr.mxu0 0.0
  %2046 = vmatpush1.msra.mxu0 0.0
  %2047 = vmatprep.subr.mxu0 0.0
  %2048 = vmatpush1.msra.mxu0 0.0
  %2049 = vmatprep.subr.mxu0 0.0
  %2050 = vmatpush1.msra.mxu0 0.0
  %2051 = vmatprep.mubr.f32.mxu0 0.0
  %2052 = vmatmul.mubr.f32.gmra.mrb[0].mxu0 %v1985
  %v2053 = vpop.f32.mrb[0].mxu0
  %v2054 = vadd.f32 0.0, %v2053
  %v2055 = vpop.f32.mrb[0].mxu0
  %2056 = vdwg.mxu0
  %v2057 = vadd.f32 %v1336, %v2054
  %v2058 = vxor.u32 %v2057, 2147483648
  %v2059 = vmul.f32 %v2058, 1.442695
  %v2060 = vpow.pop %v2059
  %v2061 = vadd.f32 %v2060, 1.0
  %v2062 = vrcp.pop %v2061
  %v2063 = vmul.f32 1.0, %v2062
  %2065 = vrot.lane.b32.xlu0 %v2054, 96
  %v2066 = vpop.permute.xlu0 %2065
  %v2068 = vmul.f32 %v2063, %v2066
  %2070 = vrot.lane.b32.xlu0 %v2068, 32
  %v2071 = vpop.permute.xlu0 %2070
  %v2073 = vadd.f32 %v1336, %v2071
  %v2074 = vtanh.pop %v2073
  %v2075 = vsub.f32 1.0, %v2063
  %v2076 = vmul.f32 %v2075, %v1982
  %2078 = vrot.lane.b32.xlu0 %v2074, 64
  %v2079 = vpop.permute.xlu0 %2078
  %v2081 = vmul.f32 %v2063, %v2079
  %v2082 = vadd.f32 %v2076, %v2081
  %v2083 = vmul.f32 %v525, %v2082
  %v2084 = vmul.f32 %v532, %v1982
  %v2085 = vadd.f32 %v2083, %v2084
  %2086 = vst.msk [vmem:[#allocation3 + $0x8] sm:$0xff] %vm179, %v2085
  %v2088 = vsel %vm179, %v2085, 0
  %2090 = vmatprep.subr.mxu0 0.0
  %2091 = vmatpush1.msra.mxu0 %v164
  %2092 = vmatprep.subr.mxu0 0.0
  %2093 = vmatpush1.msra.mxu0 %v165
  %2094 = vmatprep.subr.mxu0 0.0
  %2095 = vmatpush1.msra.mxu0 %v166
  %2096 = vmatprep.subr.mxu0 0.0
  %2097 = vmatpush1.msra.mxu0 %v167
  %2098 = vmatprep.subr.mxu0 0.0
  %2099 = vmatpush1.msra.mxu0 0.0
  %2100 = vmatprep.subr.mxu0 0.0
  %2101 = vmatpush1.msra.mxu0 0.0
  %2102 = vmatprep.subr.mxu0 0.0
  %2103 = vmatpush1.msra.mxu0 0.0
  %2104 = vmatprep.subr.mxu0 0.0
  %2105 = vmatpush1.msra.mxu0 0.0
  %2106 = vmatprep.subr.mxu0 0.0
  %2107 = vmatpush1.msra.mxu0 0.0
  %2108 = vmatprep.subr.mxu0 0.0
  %2109 = vmatpush1.msra.mxu0 0.0
  %2110 = vmatprep.subr.mxu0 0.0
  %2111 = vmatpush1.msra.mxu0 0.0
  %2112 = vmatprep.subr.mxu0 0.0
  %2113 = vmatpush1.msra.mxu0 0.0
  %2114 = vmatprep.subr.mxu0 0.0
  %2115 = vmatpush1.msra.mxu0 0.0
  %2116 = vmatprep.subr.mxu0 0.0
  %2117 = vmatpush1.msra.mxu0 0.0
  %2118 = vmatprep.subr.mxu0 0.0
  %2119 = vmatpush1.msra.mxu0 0.0
  %2120 = vmatprep.subr.mxu0 0.0
  %2121 = vmatpush1.msra.mxu0 0.0
  %2122 = vmatprep.subr.mxu0 0.0
  %2123 = vmatpush1.msra.mxu0 0.0
  %2124 = vmatprep.subr.mxu0 0.0
  %2125 = vmatpush1.msra.mxu0 0.0
  %2126 = vmatprep.subr.mxu0 0.0
  %2127 = vmatpush1.msra.mxu0 0.0
  %2128 = vmatprep.subr.mxu0 0.0
  %2129 = vmatpush1.msra.mxu0 0.0
  %2130 = vmatprep.subr.mxu0 0.0
  %2131 = vmatpush1.msra.mxu0 0.0
  %2132 = vmatprep.subr.mxu0 0.0
  %2133 = vmatpush1.msra.mxu0 0.0
  %2134 = vmatprep.subr.mxu0 0.0
  %2135 = vmatpush1.msra.mxu0 0.0
  %2136 = vmatprep.subr.mxu0 0.0
  %2137 = vmatpush1.msra.mxu0 0.0
  %2138 = vmatprep.subr.mxu0 0.0
  %2139 = vmatpush1.msra.mxu0 0.0
  %2140 = vmatprep.subr.mxu0 0.0
  %2141 = vmatpush1.msra.mxu0 0.0
  %2142 = vmatprep.subr.mxu0 0.0
  %2143 = vmatpush1.msra.mxu0 0.0
  %2144 = vmatprep.subr.mxu0 0.0
  %2145 = vmatpush1.msra.mxu0 0.0
  %2146 = vmatprep.subr.mxu0 0.0
  %2147 = vmatpush1.msra.mxu0 0.0
  %2148 = vmatprep.subr.mxu0 0.0
  %2149 = vmatpush1.msra.mxu0 0.0
  %2150 = vmatprep.subr.mxu0 0.0
  %2151 = vmatpush1.msra.mxu0 0.0
  %2152 = vmatprep.subr.mxu0 0.0
  %2153 = vmatpush1.msra.mxu0 0.0
  %2154 = vmatprep.mubr.f32.mxu0 0.0
  %2155 = vmatmul.mubr.f32.gmra.mrb[0].mxu0 %v2088
  %v2156 = vpop.f32.mrb[0].mxu0
  %v2157 = vadd.f32 0.0, %v2156
  %v2158 = vpop.f32.mrb[0].mxu0
  %2159 = vdwg.mxu0
  %v2160 = vadd.f32 %v1331, %v2157
  %v2161 = vxor.u32 %v2160, 2147483648
  %v2162 = vmul.f32 %v2161, 1.442695
  %v2163 = vpow.pop %v2162
  %v2164 = vadd.f32 %v2163, 1.0
  %v2165 = vrcp.pop %v2164
  %v2166 = vmul.f32 1.0, %v2165
  %2168 = vrot.lane.b32.xlu0 %v2157, 96
  %v2169 = vpop.permute.xlu0 %2168
  %v2171 = vmul.f32 %v2166, %v2169
  %2173 = vrot.lane.b32.xlu0 %v2171, 32
  %v2174 = vpop.permute.xlu0 %2173
  %v2176 = vadd.f32 %v1331, %v2174
  %v2177 = vtanh.pop %v2176
  %v2178 = vsub.f32 1.0, %v2166
  %v2179 = vmul.f32 %v2178, %v2085
  %2181 = vrot.lane.b32.xlu0 %v2177, 64
  %v2182 = vpop.permute.xlu0 %2181
  %v2184 = vmul.f32 %v2166, %v2182
  %v2185 = vadd.f32 %v2179, %v2184
  %v2186 = vmul.f32 %v411, %v2185
  %v2187 = vmul.f32 %v418, %v2085
  %v2188 = vadd.f32 %v2186, %v2187
  %2189 = vst.msk [vmem:[#allocation3] sm:$0xff] %vm179, %v2188
  %v2190 = vld [vmem:[#allocation3] sm:$0xff]
  %v2191 = vld [vmem:[#allocation3 + $0x8] sm:$0xff]
  %v2192 = vld [vmem:[#allocation3 + $0x10] sm:$0xff]
  %v2193 = vld [vmem:[#allocation3 + $0x18] sm:$0xff]
  %v2194 = vld [vmem:[#allocation3 + $0x20] sm:$0xff]
  %v2195 = vld [vmem:[#allocation3 + $0x28] sm:$0xff]
  %v2196 = vld [vmem:[#allocation3 + $0x30] sm:$0xff]
  %v2197 = vld [vmem:[#allocation3 + $0x38] sm:$0xff]
  %v2198 = vld [vmem:[%s21] sm:$0xff]
  %v2199 = vld [vmem:[%s21 + $0x8] sm:$0xff]
  %v2200 = vld [vmem:[%s21 + $0x10] sm:$0xff]
  %v2201 = vld [vmem:[%s21 + $0x18] sm:$0xff]
  %v2202 = vld [vmem:[%s23] sm:$0x1]
  %v2204 = vlaneseq
  %v2205 = vshrl.u32 %v2204, 7
  %v2206 = vsub.s32 0, %v2205
  %v2207 = vrot.slane %v2202, %v2206
  %v2210 = vsel %vm179, %v2190, 0
  %v2213 = vsel %vm179, %v2191, 0
  %v2216 = vsel %vm179, %v2192, 0
  %v2219 = vsel %vm179, %v2193, 0
  %v2222 = vsel %vm179, %v2194, 0
  %v2225 = vsel %vm179, %v2195, 0
  %v2228 = vsel %vm179, %v2196, 0
  %v2231 = vsel %vm179, %v2197, 0
  %2233 = vmatprep.subr.mxu0 0.0
  %2234 = vmatpush1.msra.mxu0 %v2198
  %2235 = vmatprep.subr.mxu0 0.0
  %2236 = vmatpush1.msra.mxu0 %v2199
  %2237 = vmatprep.subr.mxu0 0.0
  %2238 = vmatpush1.msra.mxu0 %v2200
  %2239 = vmatprep.subr.mxu0 0.0
  %2240 = vmatpush1.msra.mxu0 %v2201
  %2241 = vmatprep.subr.mxu0 0.0
  %2242 = vmatpush1.msra.mxu0 0.0
  %2243 = vmatprep.subr.mxu0 0.0
  %2244 = vmatpush1.msra.mxu0 0.0
  %2245 = vmatprep.subr.mxu0 0.0
  %2246 = vmatpush1.msra.mxu0 0.0
  %2247 = vmatprep.subr.mxu0 0.0
  %2248 = vmatpush1.msra.mxu0 0.0
  %2249 = vmatprep.subr.mxu0 0.0
  %2250 = vmatpush1.msra.mxu0 0.0
  %2251 = vmatprep.subr.mxu0 0.0
  %2252 = vmatpush1.msra.mxu0 0.0
  %2253 = vmatprep.subr.mxu0 0.0
  %2254 = vmatpush1.msra.mxu0 0.0
  %2255 = vmatprep.subr.mxu0 0.0
  %2256 = vmatpush1.msra.mxu0 0.0
  %2257 = vmatprep.subr.mxu0 0.0
  %2258 = vmatpush1.msra.mxu0 0.0
  %2259 = vmatprep.subr.mxu0 0.0
  %2260 = vmatpush1.msra.mxu0 0.0
  %2261 = vmatprep.subr.mxu0 0.0
  %2262 = vmatpush1.msra.mxu0 0.0
  %2263 = vmatprep.subr.mxu0 0.0
  %2264 = vmatpush1.msra.mxu0 0.0
  %2265 = vmatprep.subr.mxu0 0.0
  %2266 = vmatpush1.msra.mxu0 0.0
  %2267 = vmatprep.subr.mxu0 0.0
  %2268 = vmatpush1.msra.mxu0 0.0
  %2269 = vmatprep.subr.mxu0 0.0
  %2270 = vmatpush1.msra.mxu0 0.0
  %2271 = vmatprep.subr.mxu0 0.0
  %2272 = vmatpush1.msra.mxu0 0.0
  %2273 = vmatprep.subr.mxu0 0.0
  %2274 = vmatpush1.msra.mxu0 0.0
  %2275 = vmatprep.subr.mxu0 0.0
  %2276 = vmatpush1.msra.mxu0 0.0
  %2277 = vmatprep.subr.mxu0 0.0
  %2278 = vmatpush1.msra.mxu0 0.0
  %2279 = vmatprep.subr.mxu0 0.0
  %2280 = vmatpush1.msra.mxu0 0.0
  %2281 = vmatprep.subr.mxu0 0.0
  %2282 = vmatpush1.msra.mxu0 0.0
  %2283 = vmatprep.subr.mxu0 0.0
  %2284 = vmatpush1.msra.mxu0 0.0
  %2285 = vmatprep.subr.mxu0 0.0
  %2286 = vmatpush1.msra.mxu0 0.0
  %2287 = vmatprep.subr.mxu0 0.0
  %2288 = vmatpush1.msra.mxu0 0.0
  %2289 = vmatprep.subr.mxu0 0.0
  %2290 = vmatpush1.msra.mxu0 0.0
  %2291 = vmatprep.subr.mxu0 0.0
  %2292 = vmatpush1.msra.mxu0 0.0
  %2293 = vmatprep.subr.mxu0 0.0
  %2294 = vmatpush1.msra.mxu0 0.0
  %2295 = vmatprep.subr.mxu0 0.0
  %2296 = vmatpush1.msra.mxu0 0.0
  %2297 = vmatprep.mubr.f32.mxu0 0.0
  %2298 = vmatmul.mubr.f32.gmra.mrb[0].mxu0 %v2210
  %v2299 = vpop.f32.mrb[0].mxu0
  %v2300 = vadd.f32 %v2207, %v2299
  %v2301 = vpop.f32.mrb[0].mxu0
  %2302 = vmatprep.mubr.f32.mxu0 0.0
  %2303 = vmatmul.mubr.f32.gmra.mrb[0].mxu0 %v2213
  %v2304 = vpop.f32.mrb[0].mxu0
  %v2305 = vadd.f32 %v2207, %v2304
  %v2306 = vpop.f32.mrb[0].mxu0
  %2307 = vmatprep.mubr.f32.mxu0 0.0
  %2308 = vmatmul.mubr.f32.gmra.mrb[0].mxu0 %v2216
  %v2309 = vpop.f32.mrb[0].mxu0
  %v2310 = vadd.f32 %v2207, %v2309
  %v2311 = vpop.f32.mrb[0].mxu0
  %2312 = vmatprep.mubr.f32.mxu0 0.0
  %2313 = vmatmul.mubr.f32.gmra.mrb[0].mxu0 %v2219
  %v2314 = vpop.f32.mrb[0].mxu0
  %v2315 = vadd.f32 %v2207, %v2314
  %v2316 = vpop.f32.mrb[0].mxu0
  %2317 = vmatprep.mubr.f32.mxu0 0.0
  %2318 = vmatmul.mubr.f32.gmra.mrb[0].mxu0 %v2222
  %v2319 = vpop.f32.mrb[0].mxu0
  %v2320 = vadd.f32 %v2207, %v2319
  %v2321 = vpop.f32.mrb[0].mxu0
  %2322 = vmatprep.mubr.f32.mxu0 0.0
  %2323 = vmatmul.mubr.f32.gmra.mrb[0].mxu0 %v2225
  %v2324 = vpop.f32.mrb[0].mxu0
  %v2325 = vadd.f32 %v2207, %v2324
  %v2326 = vpop.f32.mrb[0].mxu0
  %2327 = vmatprep.mubr.f32.mxu0 0.0
  %2328 = vmatmul.mubr.f32.gmra.mrb[0].mxu0 %v2228
  %v2329 = vpop.f32.mrb[0].mxu0
  %v2330 = vadd.f32 %v2207, %v2329
  %v2331 = vpop.f32.mrb[0].mxu0
  %2332 = vmatprep.mubr.f32.mxu0 0.0
  %2333 = vmatmul.mubr.f32.gmra.mrb[0].mxu0 %v2231
  %v2334 = vpop.f32.mrb[0].mxu0
  %v2335 = vadd.f32 %v2207, %v2334
  %v2336 = vpop.f32.mrb[0].mxu0
  %2337 = vdwg.mxu0
  %v2338 = vmul.f32 %v2190, %v411
  %v2339 = vmul.f32 %v2191, %v525
  %v2340 = vmul.f32 %v2192, %v639
  %v2341 = vmul.f32 %v2193, %v753
  %v2342 = vmul.f32 %v2194, %v867
  %v2343 = vmul.f32 %v2195, %v981
  %v2344 = vmul.f32 %v2196, %v1095
  %v2345 = vmul.f32 %v2197, %v1209
  %v2346 = vsel %vm179, %v2338, 0.0
  %v2347 = vsel %vm179, %v2339, 0.0
  %v2348 = vadd.f32 %v2346, %v2347
  %v2349 = vsel %vm179, %v2340, 0.0
  %v2350 = vadd.f32 %v2348, %v2349
  %v2351 = vsel %vm179, %v2341, 0.0
  %v2352 = vadd.f32 %v2350, %v2351
  %v2353 = vsel %vm179, %v2342, 0.0
  %v2354 = vadd.f32 %v2352, %v2353
  %v2355 = vsel %vm179, %v2343, 0.0
  %v2356 = vadd.f32 %v2354, %v2355
  %v2357 = vsel %vm179, %v2344, 0.0
  %v2358 = vadd.f32 %v2356, %v2357
  %v2359 = vsel %vm179, %v2345, 0.0
  %v2360 = vadd.f32 %v2358, %v2359
  %vm2361 = vcmask 7168
  %v2362 = vsel %vm2361, %v140, 0.0
  %v2363 = vsel %vm2361, %v141, 0.0
  %v2364 = vadd.f32 %v2362, %v2363
  %v2365 = vsel %vm2361, %v142, 0.0
  %v2366 = vadd.f32 %v2364, %v2365
  %v2367 = vsel %vm2361, %v143, 0.0
  %v2368 = vadd.f32 %v2366, %v2367
  %v2369 = vsel %vm2361, %v144, 0.0
  %v2370 = vadd.f32 %v2368, %v2369
  %v2371 = vsel %vm2361, %v145, 0.0
  %v2372 = vadd.f32 %v2370, %v2371
  %v2373 = vsel %vm2361, %v146, 0.0
  %v2374 = vadd.f32 %v2372, %v2373
  %v2375 = vsel %vm2361, %v147, 0.0
  %v2376 = vadd.f32 %v2374, %v2375
  %vm2377 = vcmp.gt.f32.partialorder %v2376, 0.0
  %v2378 = vsel %vm2377, %v2376, 1.0
  %2380 = vset.pattern.permute.xlu0 0
  %2381 = vperm.xlu0 %2380, %v2378
  %v2382 = vpop.permute.xlu0 %2381
  %v2384 = vrcp.pop %v2382
  %v2385 = vmul.f32 %v2360, %v2384
  %v2386 = vld [vmem:[%s25] sm:$0xff]
  %v2387 = vld [vmem:[%s25 + $0x8] sm:$0xff]
  %v2388 = vld [vmem:[%s25 + $0x10] sm:$0xff]
  %v2389 = vld [vmem:[%s25 + $0x18] sm:$0xff]
  %v2390 = vld [vmem:[%s27] sm:$0x1]
  %v2392 = vlaneseq
  %v2393 = vshrl.u32 %v2392, 7
  %v2394 = vsub.s32 0, %v2393
  %v2395 = vrot.slane %v2390, %v2394
  %v2398 = vsel %vm179, %v2385, 0
  %2400 = vmatprep.subr.mxu0 0.0
  %2401 = vmatpush1.msra.mxu0 %v2386
  %2402 = vmatprep.subr.mxu0 0.0
  %2403 = vmatpush1.msra.mxu0 %v2387
  %2404 = vmatprep.subr.mxu0 0.0
  %2405 = vmatpush1.msra.mxu0 %v2388
  %2406 = vmatprep.subr.mxu0 0.0
  %2407 = vmatpush1.msra.mxu0 %v2389
  %2408 = vmatprep.subr.mxu0 0.0
  %2409 = vmatpush1.msra.mxu0 0.0
  %2410 = vmatprep.subr.mxu0 0.0
  %2411 = vmatpush1.msra.mxu0 0.0
  %2412 = vmatprep.subr.mxu0 0.0
  %2413 = vmatpush1.msra.mxu0 0.0
  %2414 = vmatprep.subr.mxu0 0.0
  %2415 = vmatpush1.msra.mxu0 0.0
  %2416 = vmatprep.subr.mxu0 0.0
  %2417 = vmatpush1.msra.mxu0 0.0
  %2418 = vmatprep.subr.mxu0 0.0
  %2419 = vmatpush1.msra.mxu0 0.0
  %2420 = vmatprep.subr.mxu0 0.0
  %2421 = vmatpush1.msra.mxu0 0.0
  %2422 = vmatprep.subr.mxu0 0.0
  %2423 = vmatpush1.msra.mxu0 0.0
  %2424 = vmatprep.subr.mxu0 0.0
  %2425 = vmatpush1.msra.mxu0 0.0
  %2426 = vmatprep.subr.mxu0 0.0
  %2427 = vmatpush1.msra.mxu0 0.0
  %2428 = vmatprep.subr.mxu0 0.0
  %2429 = vmatpush1.msra.mxu0 0.0
  %2430 = vmatprep.subr.mxu0 0.0
  %2431 = vmatpush1.msra.mxu0 0.0
  %2432 = vmatprep.subr.mxu0 0.0
  %2433 = vmatpush1.msra.mxu0 0.0
  %2434 = vmatprep.subr.mxu0 0.0
  %2435 = vmatpush1.msra.mxu0 0.0
  %2436 = vmatprep.subr.mxu0 0.0
  %2437 = vmatpush1.msra.mxu0 0.0
  %2438 = vmatprep.subr.mxu0 0.0
  %2439 = vmatpush1.msra.mxu0 0.0
  %2440 = vmatprep.subr.mxu0 0.0
  %2441 = vmatpush1.msra.mxu0 0.0
  %2442 = vmatprep.subr.mxu0 0.0
  %2443 = vmatpush1.msra.mxu0 0.0
  %2444 = vmatprep.subr.mxu0 0.0
  %2445 = vmatpush1.msra.mxu0 0.0
  %2446 = vmatprep.subr.mxu0 0.0
  %2447 = vmatpush1.msra.mxu0 0.0
  %2448 = vmatprep.subr.mxu0 0.0
  %2449 = vmatpush1.msra.mxu0 0.0
  %2450 = vmatprep.subr.mxu0 0.0
  %2451 = vmatpush1.msra.mxu0 0.0
  %2452 = vmatprep.subr.mxu0 0.0
  %2453 = vmatpush1.msra.mxu0 0.0
  %2454 = vmatprep.subr.mxu0 0.0
  %2455 = vmatpush1.msra.mxu0 0.0
  %2456 = vmatprep.subr.mxu0 0.0
  %2457 = vmatpush1.msra.mxu0 0.0
  %2458 = vmatprep.subr.mxu0 0.0
  %2459 = vmatpush1.msra.mxu0 0.0
  %2460 = vmatprep.subr.mxu0 0.0
  %2461 = vmatpush1.msra.mxu0 0.0
  %2462 = vmatprep.subr.mxu0 0.0
  %2463 = vmatpush1.msra.mxu0 0.0
  %2464 = vmatprep.mubr.f32.mxu0 0.0
  %2465 = vmatmul.mubr.f32.gmra.mrb[0].mxu0 %v2398
  %v2466 = vpop.f32.mrb[0].mxu0
  %v2467 = vadd.f32 %v2395, %v2466
  %v2468 = vpop.f32.mrb[0].mxu0
  %2469 = vdwg.mxu0
  %v2470 = vtanh.pop %v2467
  %v2471 = vld [vmem:[%s31] sm:$0xff]
  %v2472 = vld [vmem:[%s31 + $0x8] sm:$0xff]
  %v2473 = vld [vmem:[%s31 + $0x10] sm:$0xff]
  %v2474 = vld [vmem:[%s31 + $0x18] sm:$0xff]
  %v2475 = vld [vmem:[%s33] sm:$0x1]
  %v2477 = vlaneseq
  %v2478 = vshrl.u32 %v2477, 7
  %v2479 = vsub.s32 0, %v2478
  %v2480 = vrot.slane %v2475, %v2479
  %v2483 = vsel %vm179, %v148, 0
  %2485 = vmatprep.subr.mxu0 0.0
  %2486 = vmatpush1.msra.mxu0 %v2471
  %2487 = vmatprep.subr.mxu0 0.0
  %2488 = vmatpush1.msra.mxu0 %v2472
  %2489 = vmatprep.subr.mxu0 0.0
  %2490 = vmatpush1.msra.mxu0 %v2473
  %2491 = vmatprep.subr.mxu0 0.0
  %2492 = vmatpush1.msra.mxu0 %v2474
  %2493 = vmatprep.subr.mxu0 0.0
  %2494 = vmatpush1.msra.mxu0 0.0
  %2495 = vmatprep.subr.mxu0 0.0
  %2496 = vmatpush1.msra.mxu0 0.0
  %2497 = vmatprep.subr.mxu0 0.0
  %2498 = vmatpush1.msra.mxu0 0.0
  %2499 = vmatprep.subr.mxu0 0.0
  %2500 = vmatpush1.msra.mxu0 0.0
  %2501 = vmatprep.subr.mxu0 0.0
  %2502 = vmatpush1.msra.mxu0 0.0
  %2503 = vmatprep.subr.mxu0 0.0
  %2504 = vmatpush1.msra.mxu0 0.0
  %2505 = vmatprep.subr.mxu0 0.0
  %2506 = vmatpush1.msra.mxu0 0.0
  %2507 = vmatprep.subr.mxu0 0.0
  %2508 = vmatpush1.msra.mxu0 0.0
  %2509 = vmatprep.subr.mxu0 0.0
  %2510 = vmatpush1.msra.mxu0 0.0
  %2511 = vmatprep.subr.mxu0 0.0
  %2512 = vmatpush1.msra.mxu0 0.0
  %2513 = vmatprep.subr.mxu0 0.0
  %2514 = vmatpush1.msra.mxu0 0.0
  %2515 = vmatprep.subr.mxu0 0.0
  %2516 = vmatpush1.msra.mxu0 0.0
  %2517 = vmatprep.subr.mxu0 0.0
  %2518 = vmatpush1.msra.mxu0 0.0
  %2519 = vmatprep.subr.mxu0 0.0
  %2520 = vmatpush1.msra.mxu0 0.0
  %2521 = vmatprep.subr.mxu0 0.0
  %2522 = vmatpush1.msra.mxu0 0.0
  %2523 = vmatprep.subr.mxu0 0.0
  %2524 = vmatpush1.msra.mxu0 0.0
  %2525 = vmatprep.subr.mxu0 0.0
  %2526 = vmatpush1.msra.mxu0 0.0
  %2527 = vmatprep.subr.mxu0 0.0
  %2528 = vmatpush1.msra.mxu0 0.0
  %2529 = vmatprep.subr.mxu0 0.0
  %2530 = vmatpush1.msra.mxu0 0.0
  %2531 = vmatprep.subr.mxu0 0.0
  %2532 = vmatpush1.msra.mxu0 0.0
  %2533 = vmatprep.subr.mxu0 0.0
  %2534 = vmatpush1.msra.mxu0 0.0
  %2535 = vmatprep.subr.mxu0 0.0
  %2536 = vmatpush1.msra.mxu0 0.0
  %2537 = vmatprep.subr.mxu0 0.0
  %2538 = vmatpush1.msra.mxu0 0.0
  %2539 = vmatprep.subr.mxu0 0.0
  %2540 = vmatpush1.msra.mxu0 0.0
  %2541 = vmatprep.subr.mxu0 0.0
  %2542 = vmatpush1.msra.mxu0 0.0
  %2543 = vmatprep.subr.mxu0 0.0
  %2544 = vmatpush1.msra.mxu0 0.0
  %2545 = vmatprep.subr.mxu0 0.0
  %2546 = vmatpush1.msra.mxu0 0.0
  %2547 = vmatprep.subr.mxu0 0.0
  %2548 = vmatpush1.msra.mxu0 0.0
  %2549 = vmatprep.mubr.f32.mxu0 0.0
  %2550 = vmatmul.mubr.f32.gmra.mrb[0].mxu0 %v2483
  %v2551 = vpop.f32.mrb[0].mxu0
  %v2552 = vadd.f32 %v2480, %v2551
  %v2553 = vpop.f32.mrb[0].mxu0
  %2554 = vdwg.mxu0
  %v2555 = vld [vmem:[%s29] sm:$0xff]
  %v2556 = vld [vmem:[%s29 + $0x8] sm:$0xff]
  %v2557 = vld [vmem:[%s29 + $0x10] sm:$0xff]
  %v2558 = vld [vmem:[%s29 + $0x18] sm:$0xff]
  %v2560 = vsel %vm179, %v149, 0
  %v2563 = vsel %vm179, %v150, 0
  %v2566 = vsel %vm179, %v151, 0
  %v2569 = vsel %vm179, %v152, 0
  %v2572 = vsel %vm179, %v153, 0
  %2574 = vmatprep.subr.mxu0 0.0
  %2575 = vmatpush1.msra.mxu0 %v2555
  %2576 = vmatprep.subr.mxu0 0.0
  %2577 = vmatpush1.msra.mxu0 %v2556
  %2578 = vmatprep.subr.mxu0 0.0
  %2579 = vmatpush1.msra.mxu0 %v2557
  %2580 = vmatprep.subr.mxu0 0.0
  %2581 = vmatpush1.msra.mxu0 %v2558
  %2582 = vmatprep.subr.mxu0 0.0
  %2583 = vmatpush1.msra.mxu0 0.0
  %2584 = vmatprep.subr.mxu0 0.0
  %2585 = vmatpush1.msra.mxu0 0.0
  %2586 = vmatprep.subr.mxu0 0.0
  %2587 = vmatpush1.msra.mxu0 0.0
  %2588 = vmatprep.subr.mxu0 0.0
  %2589 = vmatpush1.msra.mxu0 0.0
  %2590 = vmatprep.subr.mxu0 0.0
  %2591 = vmatpush1.msra.mxu0 0.0
  %2592 = vmatprep.subr.mxu0 0.0
  %2593 = vmatpush1.msra.mxu0 0.0
  %2594 = vmatprep.subr.mxu0 0.0
  %2595 = vmatpush1.msra.mxu0 0.0
  %2596 = vmatprep.subr.mxu0 0.0
  %2597 = vmatpush1.msra.mxu0 0.0
  %2598 = vmatprep.subr.mxu0 0.0
  %2599 = vmatpush1.msra.mxu0 0.0
  %2600 = vmatprep.subr.mxu0 0.0
  %2601 = vmatpush1.msra.mxu0 0.0
  %2602 = vmatprep.subr.mxu0 0.0
  %2603 = vmatpush1.msra.mxu0 0.0
  %2604 = vmatprep.subr.mxu0 0.0
  %2605 = vmatpush1.msra.mxu0 0.0
  %2606 = vmatprep.subr.mxu0 0.0
  %2607 = vmatpush1.msra.mxu0 0.0
  %2608 = vmatprep.subr.mxu0 0.0
  %2609 = vmatpush1.msra.mxu0 0.0
  %2610 = vmatprep.subr.mxu0 0.0
  %2611 = vmatpush1.msra.mxu0 0.0
  %2612 = vmatprep.subr.mxu0 0.0
  %2613 = vmatpush1.msra.mxu0 0.0
  %2614 = vmatprep.subr.mxu0 0.0
  %2615 = vmatpush1.msra.mxu0 0.0
  %2616 = vmatprep.subr.mxu0 0.0
  %2617 = vmatpush1.msra.mxu0 0.0
  %2618 = vmatprep.subr.mxu0 0.0
  %2619 = vmatpush1.msra.mxu0 0.0
  %2620 = vmatprep.subr.mxu0 0.0
  %2621 = vmatpush1.msra.mxu0 0.0
  %2622 = vmatprep.subr.mxu0 0.0
  %2623 = vmatpush1.msra.mxu0 0.0
  %2624 = vmatprep.subr.mxu0 0.0
  %2625 = vmatpush1.msra.mxu0 0.0
  %2626 = vmatprep.subr.mxu0 0.0
  %2627 = vmatpush1.msra.mxu0 0.0
  %2628 = vmatprep.subr.mxu0 0.0
  %2629 = vmatpush1.msra.mxu0 0.0
  %2630 = vmatprep.subr.mxu0 0.0
  %2631 = vmatpush1.msra.mxu0 0.0
  %2632 = vmatprep.subr.mxu0 0.0
  %2633 = vmatpush1.msra.mxu0 0.0
  %2634 = vmatprep.subr.mxu0 0.0
  %2635 = vmatpush1.msra.mxu0 0.0
  %2636 = vmatprep.subr.mxu0 0.0
  %2637 = vmatpush1.msra.mxu0 0.0
  %2638 = vmatprep.mubr.f32.mxu0 0.0
  %2639 = vmatmul.mubr.f32.gmra.mrb[0].mxu0 %v2483
  %v2640 = vpop.f32.mrb[0].mxu0
  %v2641 = vadd.f32 0.0, %v2640
  %v2642 = vpop.f32.mrb[0].mxu0
  %2643 = vmatprep.mubr.f32.mxu0 0.0
  %2644 = vmatmul.mubr.f32.gmra.mrb[0].mxu0 %v2560
  %v2645 = vpop.f32.mrb[0].mxu0
  %v2646 = vadd.f32 0.0, %v2645
  %v2647 = vpop.f32.mrb[0].mxu0
  %2648 = vmatprep.mubr.f32.mxu0 0.0
  %2649 = vmatmul.mubr.f32.gmra.mrb[0].mxu0 %v2563
  %v2650 = vpop.f32.mrb[0].mxu0
  %v2651 = vadd.f32 0.0, %v2650
  %v2652 = vpop.f32.mrb[0].mxu0
  %2653 = vmatprep.mubr.f32.mxu0 0.0
  %2654 = vmatmul.mubr.f32.gmra.mrb[0].mxu0 %v2566
  %v2655 = vpop.f32.mrb[0].mxu0
  %v2656 = vadd.f32 0.0, %v2655
  %v2657 = vpop.f32.mrb[0].mxu0
  %2658 = vmatprep.mubr.f32.mxu0 0.0
  %2659 = vmatmul.mubr.f32.gmra.mrb[0].mxu0 %v2569
  %v2660 = vpop.f32.mrb[0].mxu0
  %v2661 = vadd.f32 0.0, %v2660
  %v2662 = vpop.f32.mrb[0].mxu0
  %2663 = vmatprep.mubr.f32.mxu0 0.0
  %2664 = vmatmul.mubr.f32.gmra.mrb[0].mxu0 %v2572
  %v2665 = vpop.f32.mrb[0].mxu0
  %v2666 = vadd.f32 0.0, %v2665
  %v2667 = vpop.f32.mrb[0].mxu0
  %2668 = vdwg.mxu0
  %v2669 = vadd.f32 %v2641, %v2552
  %v2670 = vadd.f32 %v2646, %v2552
  %v2671 = vadd.f32 %v2651, %v2552
  %v2672 = vadd.f32 %v2656, %v2552
  %v2673 = vadd.f32 %v2661, %v2552
  %v2674 = vadd.f32 %v2666, %v2552
  %v2675 = vxor.u32 %v2669, 2147483648
  %v2676 = vxor.u32 %v2670, 2147483648
  %v2677 = vxor.u32 %v2671, 2147483648
  %v2678 = vxor.u32 %v2672, 2147483648
  %v2679 = vxor.u32 %v2673, 2147483648
  %v2680 = vxor.u32 %v2674, 2147483648
  %v2681 = vmul.f32 %v2675, 1.442695
  %v2682 = vpow.pop %v2681
  %v2683 = vmul.f32 %v2676, 1.442695
  %v2684 = vpow.pop %v2683
  %v2685 = vmul.f32 %v2677, 1.442695
  %v2686 = vpow.pop %v2685
  %v2687 = vmul.f32 %v2678, 1.442695
  %v2688 = vpow.pop %v2687
  %v2689 = vmul.f32 %v2679, 1.442695
  %v2690 = vpow.pop %v2689
  %v2691 = vmul.f32 %v2680, 1.442695
  %v2692 = vpow.pop %v2691
  %v2693 = vadd.f32 %v2682, 1.0
  %v2694 = vadd.f32 %v2684, 1.0
  %v2695 = vadd.f32 %v2686, 1.0
  %v2696 = vadd.f32 %v2688, 1.0
  %v2697 = vadd.f32 %v2690, 1.0
  %v2698 = vadd.f32 %v2692, 1.0
  %v2699 = vrcp.pop %v2693
  %v2700 = vmul.f32 1.0, %v2699
  %v2701 = vrcp.pop %v2694
  %v2702 = vmul.f32 1.0, %v2701
  %v2703 = vrcp.pop %v2695
  %v2704 = vmul.f32 1.0, %v2703
  %v2705 = vrcp.pop %v2696
  %v2706 = vmul.f32 1.0, %v2705
  %v2707 = vrcp.pop %v2697
  %v2708 = vmul.f32 1.0, %v2707
  %v2709 = vrcp.pop %v2698
  %v2710 = vmul.f32 1.0, %v2709
  %v2711 = vmul.f32 %v2700, %v148
  %v2712 = vmul.f32 %v2702, %v149
  %v2713 = vmul.f32 %v2704, %v150
  %v2714 = vmul.f32 %v2706, %v151
  %v2715 = vmul.f32 %v2708, %v152
  %v2716 = vmul.f32 %v2710, %v153
  %v2717 = vsub.f32 1.0, %v2700
  %v2718 = vsub.f32 1.0, %v2702
  %v2719 = vsub.f32 1.0, %v2704
  %v2720 = vsub.f32 1.0, %v2706
  %v2721 = vsub.f32 1.0, %v2708
  %v2722 = vsub.f32 1.0, %v2710
  %v2723 = vmul.f32 %v2717, %v148
  %v2724 = vmul.f32 %v2718, %v148
  %v2725 = vmul.f32 %v2719, %v148
  %v2726 = vmul.f32 %v2720, %v148
  %v2727 = vmul.f32 %v2721, %v148
  %v2728 = vmul.f32 %v2722, %v148
  %v2729 = vadd.f32 %v2711, %v2723
  %v2730 = vadd.f32 %v2712, %v2724
  %v2731 = vadd.f32 %v2713, %v2725
  %v2732 = vadd.f32 %v2714, %v2726
  %v2733 = vadd.f32 %v2715, %v2727
  %v2734 = vadd.f32 %v2716, %v2728
  %v2735 = vld [vmem:[%s37] sm:$0xff]
  %v2736 = vld [vmem:[%s37 + $0x8] sm:$0xff]
  %v2737 = vld [vmem:[%s37 + $0x10] sm:$0xff]
  %v2738 = vld [vmem:[%s37 + $0x18] sm:$0xff]
  %v2739 = vld [vmem:[%s35] sm:$0xff]
  %v2740 = vld [vmem:[%s35 + $0x8] sm:$0xff]
  %v2741 = vld [vmem:[%s35 + $0x10] sm:$0xff]
  %v2742 = vld [vmem:[%s35 + $0x18] sm:$0xff]
  %v2744 = vsel %vm179, %v2729, 0
  %v2747 = vsel %vm179, %v2730, 0
  %v2750 = vsel %vm179, %v2731, 0
  %v2753 = vsel %vm179, %v2732, 0
  %v2756 = vsel %vm179, %v2733, 0
  %v2759 = vsel %vm179, %v2734, 0
  %2761 = vmatprep.subr.mxu0 0.0
  %2762 = vmatpush1.msra.mxu0 %v2739
  %2763 = vmatprep.subr.mxu0 0.0
  %2764 = vmatpush1.msra.mxu0 %v2740
  %2765 = vmatprep.subr.mxu0 0.0
  %2766 = vmatpush1.msra.mxu0 %v2741
  %2767 = vmatprep.subr.mxu0 0.0
  %2768 = vmatpush1.msra.mxu0 %v2742
  %2769 = vmatprep.subr.mxu0 0.0
  %2770 = vmatpush1.msra.mxu0 0.0
  %2771 = vmatprep.subr.mxu0 0.0
  %2772 = vmatpush1.msra.mxu0 0.0
  %2773 = vmatprep.subr.mxu0 0.0
  %2774 = vmatpush1.msra.mxu0 0.0
  %2775 = vmatprep.subr.mxu0 0.0
  %2776 = vmatpush1.msra.mxu0 0.0
  %2777 = vmatprep.subr.mxu0 0.0
  %2778 = vmatpush1.msra.mxu0 0.0
  %2779 = vmatprep.subr.mxu0 0.0
  %2780 = vmatpush1.msra.mxu0 0.0
  %2781 = vmatprep.subr.mxu0 0.0
  %2782 = vmatpush1.msra.mxu0 0.0
  %2783 = vmatprep.subr.mxu0 0.0
  %2784 = vmatpush1.msra.mxu0 0.0
  %2785 = vmatprep.subr.mxu0 0.0
  %2786 = vmatpush1.msra.mxu0 0.0
  %2787 = vmatprep.subr.mxu0 0.0
  %2788 = vmatpush1.msra.mxu0 0.0
  %2789 = vmatprep.subr.mxu0 0.0
  %2790 = vmatpush1.msra.mxu0 0.0
  %2791 = vmatprep.subr.mxu0 0.0
  %2792 = vmatpush1.msra.mxu0 0.0
  %2793 = vmatprep.subr.mxu0 0.0
  %2794 = vmatpush1.msra.mxu0 0.0
  %2795 = vmatprep.subr.mxu0 0.0
  %2796 = vmatpush1.msra.mxu0 0.0
  %2797 = vmatprep.subr.mxu0 0.0
  %2798 = vmatpush1.msra.mxu0 0.0
  %2799 = vmatprep.subr.mxu0 0.0
  %2800 = vmatpush1.msra.mxu0 0.0
  %2801 = vmatprep.subr.mxu0 0.0
  %2802 = vmatpush1.msra.mxu0 0.0
  %2803 = vmatprep.subr.mxu0 0.0
  %2804 = vmatpush1.msra.mxu0 0.0
  %2805 = vmatprep.subr.mxu0 0.0
  %2806 = vmatpush1.msra.mxu0 0.0
  %2807 = vmatprep.subr.mxu0 0.0
  %2808 = vmatpush1.msra.mxu0 0.0
  %2809 = vmatprep.subr.mxu0 0.0
  %2810 = vmatpush1.msra.mxu0 0.0
  %2811 = vmatprep.subr.mxu0 0.0
  %2812 = vmatpush1.msra.mxu0 0.0
  %2813 = vmatprep.subr.mxu0 0.0
  %2814 = vmatpush1.msra.mxu0 0.0
  %2815 = vmatprep.subr.mxu0 0.0
  %2816 = vmatpush1.msra.mxu0 0.0
  %2817 = vmatprep.subr.mxu0 0.0
  %2818 = vmatpush1.msra.mxu0 0.0
  %2819 = vmatprep.subr.mxu0 0.0
  %2820 = vmatpush1.msra.mxu0 0.0
  %2821 = vmatprep.subr.mxu0 0.0
  %2822 = vmatpush1.msra.mxu0 0.0
  %2823 = vmatprep.subr.mxu0 0.0
  %2824 = vmatpush1.msra.mxu0 0.0
  %2825 = vmatprep.mubr.f32.mxu0 0.0
  %2826 = vmatmul.mubr.f32.gmra.mrb[0].mxu0 %v2744
  %v2827 = vpop.f32.mrb[0].mxu0
  %v2828 = vadd.f32 0.0, %v2827
  %v2829 = vpop.f32.mrb[0].mxu0
  %2830 = vmatprep.mubr.f32.mxu0 0.0
  %2831 = vmatmul.mubr.f32.gmra.mrb[0].mxu0 %v2747
  %v2832 = vpop.f32.mrb[0].mxu0
  %v2833 = vadd.f32 0.0, %v2832
  %v2834 = vpop.f32.mrb[0].mxu0
  %2835 = vmatprep.mubr.f32.mxu0 0.0
  %2836 = vmatmul.mubr.f32.gmra.mrb[0].mxu0 %v2750
  %v2837 = vpop.f32.mrb[0].mxu0
  %v2838 = vadd.f32 0.0, %v2837
  %v2839 = vpop.f32.mrb[0].mxu0
  %2840 = vmatprep.mubr.f32.mxu0 0.0
  %2841 = vmatmul.mubr.f32.gmra.mrb[0].mxu0 %v2753
  %v2842 = vpop.f32.mrb[0].mxu0
  %v2843 = vadd.f32 0.0, %v2842
  %v2844 = vpop.f32.mrb[0].mxu0
  %2845 = vmatprep.mubr.f32.mxu0 0.0
  %2846 = vmatmul.mubr.f32.gmra.mrb[0].mxu0 %v2756
  %v2847 = vpop.f32.mrb[0].mxu0
  %v2848 = vadd.f32 0.0, %v2847
  %v2849 = vpop.f32.mrb[0].mxu0
  %2850 = vmatprep.mubr.f32.mxu0 0.0
  %2851 = vmatmul.mubr.f32.gmra.mrb[0].mxu0 %v2759
  %v2852 = vpop.f32.mrb[0].mxu0
  %v2853 = vadd.f32 0.0, %v2852
  %v2854 = vpop.f32.mrb[0].mxu0
  %2855 = vdwg.mxu0
  %v2856 = vld [vmem:[%s41] sm:$0x1]
  %v2858 = vlaneseq
  %v2859 = vshrl.u32 %v2858, 7
  %v2860 = vsub.s32 0, %v2859
  %v2861 = vrot.slane %v2856, %v2860
  %2863 = vmatprep.subr.mxu0 0.0
  %2864 = vmatpush1.msra.mxu0 %v2735
  %2865 = vmatprep.subr.mxu0 0.0
  %2866 = vmatpush1.msra.mxu0 %v2736
  %2867 = vmatprep.subr.mxu0 0.0
  %2868 = vmatpush1.msra.mxu0 %v2737
  %2869 = vmatprep.subr.mxu0 0.0
  %2870 = vmatpush1.msra.mxu0 %v2738
  %2871 = vmatprep.subr.mxu0 0.0
  %2872 = vmatpush1.msra.mxu0 0.0
  %2873 = vmatprep.subr.mxu0 0.0
  %2874 = vmatpush1.msra.mxu0 0.0
  %2875 = vmatprep.subr.mxu0 0.0
  %2876 = vmatpush1.msra.mxu0 0.0
  %2877 = vmatprep.subr.mxu0 0.0
  %2878 = vmatpush1.msra.mxu0 0.0
  %2879 = vmatprep.subr.mxu0 0.0
  %2880 = vmatpush1.msra.mxu0 0.0
  %2881 = vmatprep.subr.mxu0 0.0
  %2882 = vmatpush1.msra.mxu0 0.0
  %2883 = vmatprep.subr.mxu0 0.0
  %2884 = vmatpush1.msra.mxu0 0.0
  %2885 = vmatprep.subr.mxu0 0.0
  %2886 = vmatpush1.msra.mxu0 0.0
  %2887 = vmatprep.subr.mxu0 0.0
  %2888 = vmatpush1.msra.mxu0 0.0
  %2889 = vmatprep.subr.mxu0 0.0
  %2890 = vmatpush1.msra.mxu0 0.0
  %2891 = vmatprep.subr.mxu0 0.0
  %2892 = vmatpush1.msra.mxu0 0.0
  %2893 = vmatprep.subr.mxu0 0.0
  %2894 = vmatpush1.msra.mxu0 0.0
  %2895 = vmatprep.subr.mxu0 0.0
  %2896 = vmatpush1.msra.mxu0 0.0
  %2897 = vmatprep.subr.mxu0 0.0
  %2898 = vmatpush1.msra.mxu0 0.0
  %2899 = vmatprep.subr.mxu0 0.0
  %2900 = vmatpush1.msra.mxu0 0.0
  %2901 = vmatprep.subr.mxu0 0.0
  %2902 = vmatpush1.msra.mxu0 0.0
  %2903 = vmatprep.subr.mxu0 0.0
  %2904 = vmatpush1.msra.mxu0 0.0
  %2905 = vmatprep.subr.mxu0 0.0
  %2906 = vmatpush1.msra.mxu0 0.0
  %2907 = vmatprep.subr.mxu0 0.0
  %2908 = vmatpush1.msra.mxu0 0.0
  %2909 = vmatprep.subr.mxu0 0.0
  %2910 = vmatpush1.msra.mxu0 0.0
  %2911 = vmatprep.subr.mxu0 0.0
  %2912 = vmatpush1.msra.mxu0 0.0
  %2913 = vmatprep.subr.mxu0 0.0
  %2914 = vmatpush1.msra.mxu0 0.0
  %2915 = vmatprep.subr.mxu0 0.0
  %2916 = vmatpush1.msra.mxu0 0.0
  %2917 = vmatprep.subr.mxu0 0.0
  %2918 = vmatpush1.msra.mxu0 0.0
  %2919 = vmatprep.subr.mxu0 0.0
  %2920 = vmatpush1.msra.mxu0 0.0
  %2921 = vmatprep.subr.mxu0 0.0
  %2922 = vmatpush1.msra.mxu0 0.0
  %2923 = vmatprep.subr.mxu0 0.0
  %2924 = vmatpush1.msra.mxu0 0.0
  %2925 = vmatprep.subr.mxu0 0.0
  %2926 = vmatpush1.msra.mxu0 0.0
  %2927 = vmatprep.mubr.f32.mxu0 0.0
  %2928 = vmatmul.mubr.f32.gmra.mrb[0].mxu0 %v2483
  %v2929 = vpop.f32.mrb[0].mxu0
  %v2930 = vadd.f32 %v2861, %v2929
  %v2931 = vpop.f32.mrb[0].mxu0
  %2932 = vdwg.mxu0
  %v2933 = vadd.f32 %v2828, %v2930
  %v2934 = vadd.f32 %v2833, %v2930
  %v2935 = vadd.f32 %v2838, %v2930
  %v2936 = vadd.f32 %v2843, %v2930
  %v2937 = vadd.f32 %v2848, %v2930
  %v2938 = vadd.f32 %v2853, %v2930
  %v2939 = vld [vmem:[%s59] sm:$0xff]
  %v2940 = vld [vmem:[%s59 + $0x8] sm:$0xff]
  %v2941 = vld [vmem:[%s59 + $0x10] sm:$0xff]
  %v2942 = vld [vmem:[%s59 + $0x18] sm:$0xff]
  %v2943 = vld [vmem:[%s61] sm:$0x1]
  %v2945 = vlaneseq
  %v2946 = vshrl.u32 %v2945, 7
  %v2947 = vsub.s32 0, %v2946
  %v2948 = vrot.slane %v2943, %v2947
  %2950 = vmatprep.subr.mxu0 0.0
  %2951 = vmatpush1.msra.mxu0 %v2939
  %2952 = vmatprep.subr.mxu0 0.0
  %2953 = vmatpush1.msra.mxu0 %v2940
  %2954 = vmatprep.subr.mxu0 0.0
  %2955 = vmatpush1.msra.mxu0 %v2941
  %2956 = vmatprep.subr.mxu0 0.0
  %2957 = vmatpush1.msra.mxu0 %v2942
  %2958 = vmatprep.subr.mxu0 0.0
  %2959 = vmatpush1.msra.mxu0 0.0
  %2960 = vmatprep.subr.mxu0 0.0
  %2961 = vmatpush1.msra.mxu0 0.0
  %2962 = vmatprep.subr.mxu0 0.0
  %2963 = vmatpush1.msra.mxu0 0.0
  %2964 = vmatprep.subr.mxu0 0.0
  %2965 = vmatpush1.msra.mxu0 0.0
  %2966 = vmatprep.subr.mxu0 0.0
  %2967 = vmatpush1.msra.mxu0 0.0
  %2968 = vmatprep.subr.mxu0 0.0
  %2969 = vmatpush1.msra.mxu0 0.0
  %2970 = vmatprep.subr.mxu0 0.0
  %2971 = vmatpush1.msra.mxu0 0.0
  %2972 = vmatprep.subr.mxu0 0.0
  %2973 = vmatpush1.msra.mxu0 0.0
  %2974 = vmatprep.subr.mxu0 0.0
  %2975 = vmatpush1.msra.mxu0 0.0
  %2976 = vmatprep.subr.mxu0 0.0
  %2977 = vmatpush1.msra.mxu0 0.0
  %2978 = vmatprep.subr.mxu0 0.0
  %2979 = vmatpush1.msra.mxu0 0.0
  %2980 = vmatprep.subr.mxu0 0.0
  %2981 = vmatpush1.msra.mxu0 0.0
  %2982 = vmatprep.subr.mxu0 0.0
  %2983 = vmatpush1.msra.mxu0 0.0
  %2984 = vmatprep.subr.mxu0 0.0
  %2985 = vmatpush1.msra.mxu0 0.0
  %2986 = vmatprep.subr.mxu0 0.0
  %2987 = vmatpush1.msra.mxu0 0.0
  %2988 = vmatprep.subr.mxu0 0.0
  %2989 = vmatpush1.msra.mxu0 0.0
  %2990 = vmatprep.subr.mxu0 0.0
  %2991 = vmatpush1.msra.mxu0 0.0
  %2992 = vmatprep.subr.mxu0 0.0
  %2993 = vmatpush1.msra.mxu0 0.0
  %2994 = vmatprep.subr.mxu0 0.0
  %2995 = vmatpush1.msra.mxu0 0.0
  %2996 = vmatprep.subr.mxu0 0.0
  %2997 = vmatpush1.msra.mxu0 0.0
  %2998 = vmatprep.subr.mxu0 0.0
  %2999 = vmatpush1.msra.mxu0 0.0
  %3000 = vmatprep.subr.mxu0 0.0
  %3001 = vmatpush1.msra.mxu0 0.0
  %3002 = vmatprep.subr.mxu0 0.0
  %3003 = vmatpush1.msra.mxu0 0.0
  %3004 = vmatprep.subr.mxu0 0.0
  %3005 = vmatpush1.msra.mxu0 0.0
  %3006 = vmatprep.subr.mxu0 0.0
  %3007 = vmatpush1.msra.mxu0 0.0
  %3008 = vmatprep.subr.mxu0 0.0
  %3009 = vmatpush1.msra.mxu0 0.0
  %3010 = vmatprep.subr.mxu0 0.0
  %3011 = vmatpush1.msra.mxu0 0.0
  %3012 = vmatprep.subr.mxu0 0.0
  %3013 = vmatpush1.msra.mxu0 0.0
  %3014 = vmatprep.mubr.f32.mxu0 0.0
  %3015 = vmatmul.mubr.f32.gmra.mrb[0].mxu0 %v2744
  %v3016 = vpop.f32.mrb[0].mxu0
  %v3017 = vadd.f32 %v2948, %v3016
  %v3018 = vpop.f32.mrb[0].mxu0
  %3019 = vmatprep.mubr.f32.mxu0 0.0
  %3020 = vmatmul.mubr.f32.gmra.mrb[0].mxu0 %v2747
  %v3021 = vpop.f32.mrb[0].mxu0
  %v3022 = vadd.f32 %v2948, %v3021
  %v3023 = vpop.f32.mrb[0].mxu0
  %3024 = vmatprep.mubr.f32.mxu0 0.0
  %3025 = vmatmul.mubr.f32.gmra.mrb[0].mxu0 %v2750
  %v3026 = vpop.f32.mrb[0].mxu0
  %v3027 = vadd.f32 %v2948, %v3026
  %v3028 = vpop.f32.mrb[0].mxu0
  %3029 = vmatprep.mubr.f32.mxu0 0.0
  %3030 = vmatmul.mubr.f32.gmra.mrb[0].mxu0 %v2753
  %v3031 = vpop.f32.mrb[0].mxu0
  %v3032 = vadd.f32 %v2948, %v3031
  %v3033 = vpop.f32.mrb[0].mxu0
  %3034 = vmatprep.mubr.f32.mxu0 0.0
  %3035 = vmatmul.mubr.f32.gmra.mrb[0].mxu0 %v2756
  %v3036 = vpop.f32.mrb[0].mxu0
  %v3037 = vadd.f32 %v2948, %v3036
  %v3038 = vpop.f32.mrb[0].mxu0
  %3039 = vmatprep.mubr.f32.mxu0 0.0
  %3040 = vmatmul.mubr.f32.gmra.mrb[0].mxu0 %v2759
  %v3041 = vpop.f32.mrb[0].mxu0
  %v3042 = vadd.f32 %v2948, %v3041
  %v3043 = vpop.f32.mrb[0].mxu0
  %3044 = vdwg.mxu0
  %v3045 = vld [vmem:[%s39] sm:$0xff]
  %v3046 = vld [vmem:[%s39 + $0x8] sm:$0xff]
  %v3047 = vld [vmem:[%s39 + $0x10] sm:$0xff]
  %v3048 = vld [vmem:[%s39 + $0x18] sm:$0xff]
  %v3049 = vld [vmem:[%s51] sm:$0xff]
  %v3050 = vld [vmem:[%s51 + $0x8] sm:$0xff]
  %v3051 = vld [vmem:[%s51 + $0x10] sm:$0xff]
  %v3052 = vld [vmem:[%s51 + $0x18] sm:$0xff]
  %v3053 = vld [vmem:[%s53] sm:$0xff]
  %v3054 = vld [vmem:[%s53 + $0x8] sm:$0xff]
  %v3055 = vld [vmem:[%s53 + $0x10] sm:$0xff]
  %v3056 = vld [vmem:[%s53 + $0x18] sm:$0xff]
  %v3057 = vld [vmem:[%s55] sm:$0x1]
  %v3058 = vld [vmem:[%s43] sm:$0xff]
  %v3059 = vld [vmem:[%s43 + $0x8] sm:$0xff]
  %v3060 = vld [vmem:[%s43 + $0x10] sm:$0xff]
  %v3061 = vld [vmem:[%s43 + $0x18] sm:$0xff]
  %v3062 = vld [vmem:[%s45] sm:$0x1]
  %v3063 = vld [vmem:[%s47] sm:$0x1]
  %v3064 = vld [vmem:[#allocation4] sm:$0x1]
  %v3065 = vld [vmem:[%s57] sm:$0xff]
  %v3066 = vld [vmem:[%s57 + $0x8] sm:$0xff]
  %v3067 = vld [vmem:[%s57 + $0x10] sm:$0xff]
  %v3068 = vld [vmem:[%s57 + $0x18] sm:$0xff]
  %v3069 = vld [vmem:[%s57 + $0x20] sm:$0xff]
  %v3070 = vld [vmem:[%s57 + $0x28] sm:$0xff]
  %v3071 = vld [vmem:[%s57 + $0x30] sm:$0xff]
  %v3072 = vld [vmem:[%s57 + $0x38] sm:$0xff]
  %v3074 = vsel %vm179, %v2470, 0
  %3076 = vmatprep.subr.mxu0 0.0
  %3077 = vmatpush1.msra.mxu0 %v3045
  %3078 = vmatprep.subr.mxu0 0.0
  %3079 = vmatpush1.msra.mxu0 %v3046
  %3080 = vmatprep.subr.mxu0 0.0
  %3081 = vmatpush1.msra.mxu0 %v3047
  %3082 = vmatprep.subr.mxu0 0.0
  %3083 = vmatpush1.msra.mxu0 %v3048
  %3084 = vmatprep.subr.mxu0 0.0
  %3085 = vmatpush1.msra.mxu0 0.0
  %3086 = vmatprep.subr.mxu0 0.0
  %3087 = vmatpush1.msra.mxu0 0.0
  %3088 = vmatprep.subr.mxu0 0.0
  %3089 = vmatpush1.msra.mxu0 0.0
  %3090 = vmatprep.subr.mxu0 0.0
  %3091 = vmatpush1.msra.mxu0 0.0
  %3092 = vmatprep.subr.mxu0 0.0
  %3093 = vmatpush1.msra.mxu0 0.0
  %3094 = vmatprep.subr.mxu0 0.0
  %3095 = vmatpush1.msra.mxu0 0.0
  %3096 = vmatprep.subr.mxu0 0.0
  %3097 = vmatpush1.msra.mxu0 0.0
  %3098 = vmatprep.subr.mxu0 0.0
  %3099 = vmatpush1.msra.mxu0 0.0
  %3100 = vmatprep.subr.mxu0 0.0
  %3101 = vmatpush1.msra.mxu0 0.0
  %3102 = vmatprep.subr.mxu0 0.0
  %3103 = vmatpush1.msra.mxu0 0.0
  %3104 = vmatprep.subr.mxu0 0.0
  %3105 = vmatpush1.msra.mxu0 0.0
  %3106 = vmatprep.subr.mxu0 0.0
  %3107 = vmatpush1.msra.mxu0 0.0
  %3108 = vmatprep.subr.mxu0 0.0
  %3109 = vmatpush1.msra.mxu0 0.0
  %3110 = vmatprep.subr.mxu0 0.0
  %3111 = vmatpush1.msra.mxu0 0.0
  %3112 = vmatprep.subr.mxu0 0.0
  %3113 = vmatpush1.msra.mxu0 0.0
  %3114 = vmatprep.subr.mxu0 0.0
  %3115 = vmatpush1.msra.mxu0 0.0
  %3116 = vmatprep.subr.mxu0 0.0
  %3117 = vmatpush1.msra.mxu0 0.0
  %3118 = vmatprep.subr.mxu0 0.0
  %3119 = vmatpush1.msra.mxu0 0.0
  %3120 = vmatprep.subr.mxu0 0.0
  %3121 = vmatpush1.msra.mxu0 0.0
  %3122 = vmatprep.subr.mxu0 0.0
  %3123 = vmatpush1.msra.mxu0 0.0
  %3124 = vmatprep.subr.mxu0 0.0
  %3125 = vmatpush1.msra.mxu0 0.0
  %3126 = vmatprep.subr.mxu0 0.0
  %3127 = vmatpush1.msra.mxu0 0.0
  %3128 = vmatprep.subr.mxu0 0.0
  %3129 = vmatpush1.msra.mxu0 0.0
  %3130 = vmatprep.subr.mxu0 0.0
  %3131 = vmatpush1.msra.mxu0 0.0
  %3132 = vmatprep.subr.mxu0 0.0
  %3133 = vmatpush1.msra.mxu0 0.0
  %3134 = vmatprep.subr.mxu0 0.0
  %3135 = vmatpush1.msra.mxu0 0.0
  %3136 = vmatprep.subr.mxu0 0.0
  %3137 = vmatpush1.msra.mxu0 0.0
  %3138 = vmatprep.subr.mxu0 0.0
  %3139 = vmatpush1.msra.mxu0 0.0
  %3140 = vmatprep.mubr.f32.mxu0 0.0
  %3141 = vmatmul.mubr.f32.gmra.mrb[0].mxu0 %v3074
  %v3142 = vpop.f32.mrb[0].mxu0
  %v3143 = vadd.f32 0.0, %v3142
  %v3144 = vpop.f32.mrb[0].mxu0
  %3145 = vdwg.mxu0
  %v3146 = vadd.f32 %v2933, %v3143
  %v3147 = vxor.u32 %v3146, 2147483648
  %v3148 = vmul.f32 %v3147, 1.442695
  %v3149 = vpow.pop %v3148
  %v3150 = vadd.f32 %v3149, 1.0
  %v3151 = vrcp.pop %v3150
  %v3152 = vmul.f32 1.0, %v3151
  %3154 = vrot.lane.b32.xlu0 %v3143, 96
  %v3155 = vpop.permute.xlu0 %3154
  %v3157 = vmul.f32 %v3152, %v3155
  %3159 = vrot.lane.b32.xlu0 %v3157, 32
  %v3160 = vpop.permute.xlu0 %3159
  %v3162 = vadd.f32 %v2933, %v3160
  %v3163 = vtanh.pop %v3162
  %v3164 = vsub.f32 1.0, %v3152
  %v3165 = vmul.f32 %v3164, %v2470
  %3167 = vrot.lane.b32.xlu0 %v3163, 64
  %v3168 = vpop.permute.xlu0 %3167
  %v3170 = vmul.f32 %v3152, %v3168
  %v3171 = vadd.f32 %v3165, %v3170
  %3173 = vset.pattern.permute.xlu0 0
  %3174 = vperm.xlu0 %3173, %v154
  %v3175 = vpop.permute.xlu0 %3174
  %v3177 = vmul.f32 %v3175, %v3171
  %v3178 = vsub.f32 1.0, %v154
  %3180 = vset.pattern.permute.xlu0 0
  %3181 = vperm.xlu0 %3180, %v3178
  %v3182 = vpop.permute.xlu0 %3181
  %v3184 = vmul.f32 %v3182, %v2470
  %v3185 = vadd.f32 %v3177, %v3184
  %v3187 = vlaneseq
  %v3188 = vshrl.u32 %v3187, 7
  %v3189 = vsub.s32 0, %v3188
  %v3190 = vrot.slane %v3062, %v3189
  %v3193 = vsel %vm179, %v3185, 0
  %3195 = vmatprep.subr.mxu0 0.0
  %3196 = vmatpush1.msra.mxu0 %v3058
  %3197 = vmatprep.subr.mxu0 0.0
  %3198 = vmatpush1.msra.mxu0 %v3059
  %3199 = vmatprep.subr.mxu0 0.0
  %3200 = vmatpush1.msra.mxu0 %v3060
  %3201 = vmatprep.subr.mxu0 0.0
  %3202 = vmatpush1.msra.mxu0 %v3061
  %3203 = vmatprep.subr.mxu0 0.0
  %3204 = vmatpush1.msra.mxu0 0.0
  %3205 = vmatprep.subr.mxu0 0.0
  %3206 = vmatpush1.msra.mxu0 0.0
  %3207 = vmatprep.subr.mxu0 0.0
  %3208 = vmatpush1.msra.mxu0 0.0
  %3209 = vmatprep.subr.mxu0 0.0
  %3210 = vmatpush1.msra.mxu0 0.0
  %3211 = vmatprep.subr.mxu0 0.0
  %3212 = vmatpush1.msra.mxu0 0.0
  %3213 = vmatprep.subr.mxu0 0.0
  %3214 = vmatpush1.msra.mxu0 0.0
  %3215 = vmatprep.subr.mxu0 0.0
  %3216 = vmatpush1.msra.mxu0 0.0
  %3217 = vmatprep.subr.mxu0 0.0
  %3218 = vmatpush1.msra.mxu0 0.0
  %3219 = vmatprep.subr.mxu0 0.0
  %3220 = vmatpush1.msra.mxu0 0.0
  %3221 = vmatprep.subr.mxu0 0.0
  %3222 = vmatpush1.msra.mxu0 0.0
  %3223 = vmatprep.subr.mxu0 0.0
  %3224 = vmatpush1.msra.mxu0 0.0
  %3225 = vmatprep.subr.mxu0 0.0
  %3226 = vmatpush1.msra.mxu0 0.0
  %3227 = vmatprep.subr.mxu0 0.0
  %3228 = vmatpush1.msra.mxu0 0.0
  %3229 = vmatprep.subr.mxu0 0.0
  %3230 = vmatpush1.msra.mxu0 0.0
  %3231 = vmatprep.subr.mxu0 0.0
  %3232 = vmatpush1.msra.mxu0 0.0
  %3233 = vmatprep.subr.mxu0 0.0
  %3234 = vmatpush1.msra.mxu0 0.0
  %3235 = vmatprep.subr.mxu0 0.0
  %3236 = vmatpush1.msra.mxu0 0.0
  %3237 = vmatprep.subr.mxu0 0.0
  %3238 = vmatpush1.msra.mxu0 0.0
  %3239 = vmatprep.subr.mxu0 0.0
  %3240 = vmatpush1.msra.mxu0 0.0
  %3241 = vmatprep.subr.mxu0 0.0
  %3242 = vmatpush1.msra.mxu0 0.0
  %3243 = vmatprep.subr.mxu0 0.0
  %3244 = vmatpush1.msra.mxu0 0.0
  %3245 = vmatprep.subr.mxu0 0.0
  %3246 = vmatpush1.msra.mxu0 0.0
  %3247 = vmatprep.subr.mxu0 0.0
  %3248 = vmatpush1.msra.mxu0 0.0
  %3249 = vmatprep.subr.mxu0 0.0
  %3250 = vmatpush1.msra.mxu0 0.0
  %3251 = vmatprep.subr.mxu0 0.0
  %3252 = vmatpush1.msra.mxu0 0.0
  %3253 = vmatprep.subr.mxu0 0.0
  %3254 = vmatpush1.msra.mxu0 0.0
  %3255 = vmatprep.subr.mxu0 0.0
  %3256 = vmatpush1.msra.mxu0 0.0
  %3257 = vmatprep.subr.mxu0 0.0
  %3258 = vmatpush1.msra.mxu0 0.0
  %3259 = vmatprep.mubr.f32.mxu0 0.0
  %3260 = vmatmul.mubr.f32.gmra.mrb[0].mxu0 %v3193
  %v3261 = vpop.f32.mrb[0].mxu0
  %v3262 = vadd.f32 %v3190, %v3261
  %v3263 = vpop.f32.mrb[0].mxu0
  %3264 = vdwg.mxu0
  %v3265 = vadd.f32 %v2300, %v3262
  %v3266 = vadd.f32 %v2305, %v3262
  %v3267 = vadd.f32 %v2310, %v3262
  %v3268 = vadd.f32 %v2315, %v3262
  %v3269 = vadd.f32 %v2320, %v3262
  %v3270 = vadd.f32 %v2325, %v3262
  %v3271 = vadd.f32 %v2330, %v3262
  %v3272 = vadd.f32 %v2335, %v3262
  %v3273 = vtanh.pop %v3265
  %v3274 = vtanh.pop %v3266
  %v3275 = vtanh.pop %v3267
  %v3276 = vtanh.pop %v3268
  %v3277 = vtanh.pop %v3269
  %v3278 = vtanh.pop %v3270
  %v3279 = vtanh.pop %v3271
  %v3280 = vtanh.pop %v3272
  %v3282 = vlaneseq
  %v3283 = vshrl.u32 %v3282, 7
  %v3284 = vsub.s32 0, %v3283
  %v3285 = vrot.slane %v3063, %v3284
  %v3287 = vmul.f32 %v3273, %v3285
  %v3288 = vmul.f32 %v3274, %v3285
  %v3289 = vmul.f32 %v3275, %v3285
  %v3290 = vmul.f32 %v3276, %v3285
  %v3291 = vmul.f32 %v3277, %v3285
  %v3292 = vmul.f32 %v3278, %v3285
  %v3293 = vmul.f32 %v3279, %v3285
  %v3294 = vmul.f32 %v3280, %v3285
  %v3295 = vsel %vm179, %v3287, 0.0
  %3296 = vadd.xlane.f32.xlu0 %v3295
  %v3297 = vpop.xlane.xlu0 %3296
  %v3298 = vsel %vm179, %v3288, 0.0
  %3299 = vadd.xlane.f32.xlu0 %v3298
  %v3300 = vpop.xlane.xlu0 %3299
  %v3301 = vsel %vm179, %v3289, 0.0
  %3302 = vadd.xlane.f32.xlu0 %v3301
  %v3303 = vpop.xlane.xlu0 %3302
  %v3304 = vsel %vm179, %v3290, 0.0
  %3305 = vadd.xlane.f32.xlu0 %v3304
  %v3306 = vpop.xlane.xlu0 %3305
  %v3307 = vsel %vm179, %v3291, 0.0
  %3308 = vadd.xlane.f32.xlu0 %v3307
  %v3309 = vpop.xlane.xlu0 %3308
  %v3310 = vsel %vm179, %v3292, 0.0
  %3311 = vadd.xlane.f32.xlu0 %v3310
  %v3312 = vpop.xlane.xlu0 %3311
  %v3313 = vsel %vm179, %v3293, 0.0
  %3314 = vadd.xlane.f32.xlu0 %v3313
  %v3315 = vpop.xlane.xlu0 %3314
  %v3316 = vsel %vm179, %v3294, 0.0
  %3317 = vadd.xlane.f32.xlu0 %v3316
  %v3318 = vpop.xlane.xlu0 %3317
  %v3320 = vlaneseq
  %v3321 = vshrl.u32 %v3320, 7
  %v3322 = vsub.s32 0, %v3321
  %v3323 = vrot.slane %v3064, %v3322
  %v3325 = vadd.f32 %v3297, %v3323
  %v3326 = vadd.f32 %v3300, %v3323
  %v3327 = vadd.f32 %v3303, %v3323
  %v3328 = vadd.f32 %v3306, %v3323
  %v3329 = vadd.f32 %v3309, %v3323
  %v3330 = vadd.f32 %v3312, %v3323
  %v3331 = vadd.f32 %v3315, %v3323
  %v3332 = vadd.f32 %v3318, %v3323
  %v3333 = vsel %vm2361, %v3325, -inf
  %v3334 = vsel %vm2361, %v3326, -inf
  %v3335 = vsel %vm2361, %v3327, -inf
  %v3336 = vsel %vm2361, %v3328, -inf
  %v3337 = vsel %vm2361, %v3329, -inf
  %v3338 = vmax.f32 %v3333, %v3337
  %v3339 = vsel %vm2361, %v3330, -inf
  %v3340 = vmax.f32 %v3334, %v3339
  %v3341 = vsel %vm2361, %v3331, -inf
  %v3342 = vmax.f32 %v3335, %v3341
  %v3343 = vsel %vm2361, %v3332, -inf
  %v3344 = vmax.f32 %v3336, %v3343
  %v3345 = vmax.f32 %v3338, %v3340
  %v3346 = vmax.f32 %v3342, %v3344
  %v3347 = vmax.f32 %v3345, %v3346
  %v3348 = vsub.f32 %v3325, %v3347
  %v3349 = vsub.f32 %v3326, %v3347
  %v3350 = vsub.f32 %v3327, %v3347
  %v3351 = vsub.f32 %v3328, %v3347
  %v3352 = vsub.f32 %v3329, %v3347
  %v3353 = vsub.f32 %v3330, %v3347
  %v3354 = vsub.f32 %v3331, %v3347
  %v3355 = vsub.f32 %v3332, %v3347
  %v3356 = vmul.f32 %v3348, 1.442695
  %v3357 = vpow.pop %v3356
  %v3358 = vmul.f32 %v3349, 1.442695
  %v3359 = vpow.pop %v3358
  %v3360 = vmul.f32 %v3350, 1.442695
  %v3361 = vpow.pop %v3360
  %v3362 = vmul.f32 %v3351, 1.442695
  %v3363 = vpow.pop %v3362
  %v3364 = vmul.f32 %v3352, 1.442695
  %v3365 = vpow.pop %v3364
  %v3366 = vmul.f32 %v3353, 1.442695
  %v3367 = vpow.pop %v3366
  %v3368 = vmul.f32 %v3354, 1.442695
  %v3369 = vpow.pop %v3368
  %v3370 = vmul.f32 %v3355, 1.442695
  %v3371 = vpow.pop %v3370
  %v3372 = vmul.f32 %v3357, %v140
  %v3373 = vmul.f32 %v3359, %v141
  %v3374 = vmul.f32 %v3361, %v142
  %v3375 = vmul.f32 %v3363, %v143
  %v3376 = vmul.f32 %v3365, %v144
  %v3377 = vmul.f32 %v3367, %v145
  %v3378 = vmul.f32 %v3369, %v146
  %v3379 = vmul.f32 %v3371, %v147
  %v3380 = vsel %vm2361, %v3372, 0.0
  %v3381 = vsel %vm2361, %v3373, 0.0
  %v3382 = vadd.f32 %v3380, %v3381
  %v3383 = vsel %vm2361, %v3374, 0.0
  %v3384 = vadd.f32 %v3382, %v3383
  %v3385 = vsel %vm2361, %v3375, 0.0
  %v3386 = vadd.f32 %v3384, %v3385
  %v3387 = vsel %vm2361, %v3376, 0.0
  %v3388 = vadd.f32 %v3386, %v3387
  %v3389 = vsel %vm2361, %v3377, 0.0
  %v3390 = vadd.f32 %v3388, %v3389
  %v3391 = vsel %vm2361, %v3378, 0.0
  %v3392 = vadd.f32 %v3390, %v3391
  %v3393 = vsel %vm2361, %v3379, 0.0
  %v3394 = vadd.f32 %v3392, %v3393
  %v3395 = vadd.f32 %v3394, 1e-20
  %v3396 = vrcp.pop %v3395
  %v3397 = vmul.f32 %v3372, %v3396
  %v3398 = vmul.f32 %v3373, %v3396
  %v3399 = vmul.f32 %v3374, %v3396
  %v3400 = vmul.f32 %v3375, %v3396
  %v3401 = vmul.f32 %v3376, %v3396
  %v3402 = vmul.f32 %v3377, %v3396
  %v3403 = vmul.f32 %v3378, %v3396
  %v3404 = vmul.f32 %v3379, %v3396
  %3406 = vset.pattern.permute.xlu0 0
  %3407 = vperm.xlu0 %3406, %v3397
  %v3408 = vpop.permute.xlu0 %3407
  %3411 = vset.pattern.permute.xlu0 0
  %3412 = vperm.xlu0 %3411, %v3398
  %v3413 = vpop.permute.xlu0 %3412
  %3416 = vset.pattern.permute.xlu0 0
  %3417 = vperm.xlu0 %3416, %v3399
  %v3418 = vpop.permute.xlu0 %3417
  %3421 = vset.pattern.permute.xlu0 0
  %3422 = vperm.xlu0 %3421, %v3400
  %v3423 = vpop.permute.xlu0 %3422
  %3426 = vset.pattern.permute.xlu0 0
  %3427 = vperm.xlu0 %3426, %v3401
  %v3428 = vpop.permute.xlu0 %3427
  %3431 = vset.pattern.permute.xlu0 0
  %3432 = vperm.xlu0 %3431, %v3402
  %v3433 = vpop.permute.xlu0 %3432
  %3436 = vset.pattern.permute.xlu0 0
  %3437 = vperm.xlu0 %3436, %v3403
  %v3438 = vpop.permute.xlu0 %3437
  %3441 = vset.pattern.permute.xlu0 0
  %3442 = vperm.xlu0 %3441, %v3404
  %v3443 = vpop.permute.xlu0 %3442
  %v3445 = vmul.f32 %v3408, %v2190
  %v3446 = vmul.f32 %v3413, %v2191
  %v3447 = vmul.f32 %v3418, %v2192
  %v3448 = vmul.f32 %v3423, %v2193
  %v3449 = vmul.f32 %v3428, %v2194
  %v3450 = vmul.f32 %v3433, %v2195
  %v3451 = vmul.f32 %v3438, %v2196
  %v3452 = vmul.f32 %v3443, %v2197
  %v3453 = vsel %vm179, %v3445, 0.0
  %v3454 = vsel %vm179, %v3446, 0.0
  %v3455 = vadd.f32 %v3453, %v3454
  %v3456 = vsel %vm179, %v3447, 0.0
  %v3457 = vadd.f32 %v3455, %v3456
  %v3458 = vsel %vm179, %v3448, 0.0
  %v3459 = vadd.f32 %v3457, %v3458
  %v3460 = vsel %vm179, %v3449, 0.0
  %v3461 = vadd.f32 %v3459, %v3460
  %v3462 = vsel %vm179, %v3450, 0.0
  %v3463 = vadd.f32 %v3461, %v3462
  %v3464 = vsel %vm179, %v3451, 0.0
  %v3465 = vadd.f32 %v3463, %v3464
  %v3466 = vsel %vm179, %v3452, 0.0
  %v3467 = vadd.f32 %v3465, %v3466
  %v3469 = vlaneseq
  %v3470 = vshrl.u32 %v3469, 7
  %v3471 = vsub.s32 0, %v3470
  %v3472 = vrot.slane %v3057, %v3471
  %v3475 = vsel %vm179, %v3467, 0
  %3477 = vmatprep.subr.mxu0 0.0
  %3478 = vmatpush1.msra.mxu0 %v3049
  %3479 = vmatprep.subr.mxu0 0.0
  %3480 = vmatpush1.msra.mxu0 %v3050
  %3481 = vmatprep.subr.mxu0 0.0
  %3482 = vmatpush1.msra.mxu0 %v3051
  %3483 = vmatprep.subr.mxu0 0.0
  %3484 = vmatpush1.msra.mxu0 %v3052
  %3485 = vmatprep.subr.mxu0 0.0
  %3486 = vmatpush1.msra.mxu0 0.0
  %3487 = vmatprep.subr.mxu0 0.0
  %3488 = vmatpush1.msra.mxu0 0.0
  %3489 = vmatprep.subr.mxu0 0.0
  %3490 = vmatpush1.msra.mxu0 0.0
  %3491 = vmatprep.subr.mxu0 0.0
  %3492 = vmatpush1.msra.mxu0 0.0
  %3493 = vmatprep.subr.mxu0 0.0
  %3494 = vmatpush1.msra.mxu0 0.0
  %3495 = vmatprep.subr.mxu0 0.0
  %3496 = vmatpush1.msra.mxu0 0.0
  %3497 = vmatprep.subr.mxu0 0.0
  %3498 = vmatpush1.msra.mxu0 0.0
  %3499 = vmatprep.subr.mxu0 0.0
  %3500 = vmatpush1.msra.mxu0 0.0
  %3501 = vmatprep.subr.mxu0 0.0
  %3502 = vmatpush1.msra.mxu0 0.0
  %3503 = vmatprep.subr.mxu0 0.0
  %3504 = vmatpush1.msra.mxu0 0.0
  %3505 = vmatprep.subr.mxu0 0.0
  %3506 = vmatpush1.msra.mxu0 0.0
  %3507 = vmatprep.subr.mxu0 0.0
  %3508 = vmatpush1.msra.mxu0 0.0
  %3509 = vmatprep.subr.mxu0 0.0
  %3510 = vmatpush1.msra.mxu0 0.0
  %3511 = vmatprep.subr.mxu0 0.0
  %3512 = vmatpush1.msra.mxu0 0.0
  %3513 = vmatprep.subr.mxu0 0.0
  %3514 = vmatpush1.msra.mxu0 0.0
  %3515 = vmatprep.subr.mxu0 0.0
  %3516 = vmatpush1.msra.mxu0 0.0
  %3517 = vmatprep.subr.mxu0 0.0
  %3518 = vmatpush1.msra.mxu0 0.0
  %3519 = vmatprep.subr.mxu0 0.0
  %3520 = vmatpush1.msra.mxu0 0.0
  %3521 = vmatprep.subr.mxu0 0.0
  %3522 = vmatpush1.msra.mxu0 0.0
  %3523 = vmatprep.subr.mxu0 0.0
  %3524 = vmatpush1.msra.mxu0 0.0
  %3525 = vmatprep.subr.mxu0 0.0
  %3526 = vmatpush1.msra.mxu0 0.0
  %3527 = vmatprep.subr.mxu0 0.0
  %3528 = vmatpush1.msra.mxu0 0.0
  %3529 = vmatprep.subr.mxu0 0.0
  %3530 = vmatpush1.msra.mxu0 0.0
  %3531 = vmatprep.subr.mxu0 0.0
  %3532 = vmatpush1.msra.mxu0 0.0
  %3533 = vmatprep.subr.mxu0 0.0
  %3534 = vmatpush1.msra.mxu0 0.0
  %3535 = vmatprep.subr.mxu0 0.0
  %3536 = vmatpush1.msra.mxu0 0.0
  %3537 = vmatprep.subr.mxu0 0.0
  %3538 = vmatpush1.msra.mxu0 0.0
  %3539 = vmatprep.subr.mxu0 0.0
  %3540 = vmatpush1.msra.mxu0 0.0
  %3541 = vmatprep.mubr.f32.mxu0 0.0
  %3542 = vmatmul.mubr.f32.gmra.mrb[0].mxu0 %v3475
  %v3543 = vpop.f32.mrb[0].mxu0
  %v3544 = vadd.f32 %v3472, %v3543
  %v3545 = vpop.f32.mrb[0].mxu0
  %3546 = vdwg.mxu0
  %3547 = vmatprep.subr.mxu0 0.0
  %3548 = vmatpush1.msra.mxu0 %v3053
  %3549 = vmatprep.subr.mxu0 0.0
  %3550 = vmatpush1.msra.mxu0 %v3054
  %3551 = vmatprep.subr.mxu0 0.0
  %3552 = vmatpush1.msra.mxu0 %v3055
  %3553 = vmatprep.subr.mxu0 0.0
  %3554 = vmatpush1.msra.mxu0 %v3056
  %3555 = vmatprep.subr.mxu0 0.0
  %3556 = vmatpush1.msra.mxu0 0.0
  %3557 = vmatprep.subr.mxu0 0.0
  %3558 = vmatpush1.msra.mxu0 0.0
  %3559 = vmatprep.subr.mxu0 0.0
  %3560 = vmatpush1.msra.mxu0 0.0
  %3561 = vmatprep.subr.mxu0 0.0
  %3562 = vmatpush1.msra.mxu0 0.0
  %3563 = vmatprep.subr.mxu0 0.0
  %3564 = vmatpush1.msra.mxu0 0.0
  %3565 = vmatprep.subr.mxu0 0.0
  %3566 = vmatpush1.msra.mxu0 0.0
  %3567 = vmatprep.subr.mxu0 0.0
  %3568 = vmatpush1.msra.mxu0 0.0
  %3569 = vmatprep.subr.mxu0 0.0
  %3570 = vmatpush1.msra.mxu0 0.0
  %3571 = vmatprep.subr.mxu0 0.0
  %3572 = vmatpush1.msra.mxu0 0.0
  %3573 = vmatprep.subr.mxu0 0.0
  %3574 = vmatpush1.msra.mxu0 0.0
  %3575 = vmatprep.subr.mxu0 0.0
  %3576 = vmatpush1.msra.mxu0 0.0
  %3577 = vmatprep.subr.mxu0 0.0
  %3578 = vmatpush1.msra.mxu0 0.0
  %3579 = vmatprep.subr.mxu0 0.0
  %3580 = vmatpush1.msra.mxu0 0.0
  %3581 = vmatprep.subr.mxu0 0.0
  %3582 = vmatpush1.msra.mxu0 0.0
  %3583 = vmatprep.subr.mxu0 0.0
  %3584 = vmatpush1.msra.mxu0 0.0
  %3585 = vmatprep.subr.mxu0 0.0
  %3586 = vmatpush1.msra.mxu0 0.0
  %3587 = vmatprep.subr.mxu0 0.0
  %3588 = vmatpush1.msra.mxu0 0.0
  %3589 = vmatprep.subr.mxu0 0.0
  %3590 = vmatpush1.msra.mxu0 0.0
  %3591 = vmatprep.subr.mxu0 0.0
  %3592 = vmatpush1.msra.mxu0 0.0
  %3593 = vmatprep.subr.mxu0 0.0
  %3594 = vmatpush1.msra.mxu0 0.0
  %3595 = vmatprep.subr.mxu0 0.0
  %3596 = vmatpush1.msra.mxu0 0.0
  %3597 = vmatprep.subr.mxu0 0.0
  %3598 = vmatpush1.msra.mxu0 0.0
  %3599 = vmatprep.subr.mxu0 0.0
  %3600 = vmatpush1.msra.mxu0 0.0
  %3601 = vmatprep.subr.mxu0 0.0
  %3602 = vmatpush1.msra.mxu0 0.0
  %3603 = vmatprep.subr.mxu0 0.0
  %3604 = vmatpush1.msra.mxu0 0.0
  %3605 = vmatprep.subr.mxu0 0.0
  %3606 = vmatpush1.msra.mxu0 0.0
  %3607 = vmatprep.subr.mxu0 0.0
  %3608 = vmatpush1.msra.mxu0 0.0
  %3609 = vmatprep.subr.mxu0 0.0
  %3610 = vmatpush1.msra.mxu0 0.0
  %3611 = vmatprep.mubr.f32.mxu0 0.0
  %3612 = vmatmul.mubr.f32.gmra.mrb[0].mxu0 %v3193
  %v3613 = vpop.f32.mrb[0].mxu0
  %v3614 = vadd.f32 0.0, %v3613
  %v3615 = vpop.f32.mrb[0].mxu0
  %3616 = vdwg.mxu0
  %v3617 = vadd.f32 %v3544, %v3614
  %v3618 = vxor.u32 %v3617, 2147483648
  %v3619 = vmul.f32 %v3618, 1.442695
  %v3620 = vpow.pop %v3619
  %v3621 = vadd.f32 %v3620, 1.0
  %v3622 = vrcp.pop %v3621
  %v3623 = vmul.f32 1.0, %v3622
  %3625 = vrot.lane.b32.xlu0 %v3614, 96
  %v3626 = vpop.permute.xlu0 %3625
  %v3628 = vmul.f32 %v3623, %v3626
  %3630 = vrot.lane.b32.xlu0 %v3628, 32
  %v3631 = vpop.permute.xlu0 %3630
  %v3633 = vadd.f32 %v3544, %v3631
  %v3634 = vtanh.pop %v3633
  %v3635 = vsub.f32 1.0, %v3623
  %v3636 = vmul.f32 %v3635, %v3185
  %3638 = vrot.lane.b32.xlu0 %v3634, 64
  %v3639 = vpop.permute.xlu0 %3638
  %v3641 = vmul.f32 %v3623, %v3639
  %v3642 = vadd.f32 %v3636, %v3641
  %v3643 = vmul.f32 %v3175, %v3642
  %v3644 = vmul.f32 %v3182, %v3185
  %v3645 = vadd.f32 %v3643, %v3644
  %3646 = vrot.lane.b32.xlu0 %v3467, 32
  %v3647 = vpop.permute.xlu0 %3646
  %v3649 = vsel %vm179, %v3645, %v3647
  %vm3650 = vcmask 523264
  %v3652 = vsel %vm3650, %v3649, 0
  %3654 = vmatprep.subr.mxu0 0.0
  %3655 = vmatpush1.msra.mxu0 %v3065
  %3656 = vmatprep.subr.mxu0 0.0
  %3657 = vmatpush1.msra.mxu0 %v3066
  %3658 = vmatprep.subr.mxu0 0.0
  %3659 = vmatpush1.msra.mxu0 %v3067
  %3660 = vmatprep.subr.mxu0 0.0
  %3661 = vmatpush1.msra.mxu0 %v3068
  %3662 = vmatprep.subr.mxu0 0.0
  %3663 = vmatpush1.msra.mxu0 %v3069
  %3664 = vmatprep.subr.mxu0 0.0
  %3665 = vmatpush1.msra.mxu0 %v3070
  %3666 = vmatprep.subr.mxu0 0.0
  %3667 = vmatpush1.msra.mxu0 %v3071
  %3668 = vmatprep.subr.mxu0 0.0
  %3669 = vmatpush1.msra.mxu0 %v3072
  %3670 = vmatprep.subr.mxu0 0.0
  %3671 = vmatpush1.msra.mxu0 0.0
  %3672 = vmatprep.subr.mxu0 0.0
  %3673 = vmatpush1.msra.mxu0 0.0
  %3674 = vmatprep.subr.mxu0 0.0
  %3675 = vmatpush1.msra.mxu0 0.0
  %3676 = vmatprep.subr.mxu0 0.0
  %3677 = vmatpush1.msra.mxu0 0.0
  %3678 = vmatprep.subr.mxu0 0.0
  %3679 = vmatpush1.msra.mxu0 0.0
  %3680 = vmatprep.subr.mxu0 0.0
  %3681 = vmatpush1.msra.mxu0 0.0
  %3682 = vmatprep.subr.mxu0 0.0
  %3683 = vmatpush1.msra.mxu0 0.0
  %3684 = vmatprep.subr.mxu0 0.0
  %3685 = vmatpush1.msra.mxu0 0.0
  %3686 = vmatprep.subr.mxu0 0.0
  %3687 = vmatpush1.msra.mxu0 0.0
  %3688 = vmatprep.subr.mxu0 0.0
  %3689 = vmatpush1.msra.mxu0 0.0
  %3690 = vmatprep.subr.mxu0 0.0
  %3691 = vmatpush1.msra.mxu0 0.0
  %3692 = vmatprep.subr.mxu0 0.0
  %3693 = vmatpush1.msra.mxu0 0.0
  %3694 = vmatprep.subr.mxu0 0.0
  %3695 = vmatpush1.msra.mxu0 0.0
  %3696 = vmatprep.subr.mxu0 0.0
  %3697 = vmatpush1.msra.mxu0 0.0
  %3698 = vmatprep.subr.mxu0 0.0
  %3699 = vmatpush1.msra.mxu0 0.0
  %3700 = vmatprep.subr.mxu0 0.0
  %3701 = vmatpush1.msra.mxu0 0.0
  %3702 = vmatprep.subr.mxu0 0.0
  %3703 = vmatpush1.msra.mxu0 0.0
  %3704 = vmatprep.subr.mxu0 0.0
  %3705 = vmatpush1.msra.mxu0 0.0
  %3706 = vmatprep.subr.mxu0 0.0
  %3707 = vmatpush1.msra.mxu0 0.0
  %3708 = vmatprep.subr.mxu0 0.0
  %3709 = vmatpush1.msra.mxu0 0.0
  %3710 = vmatprep.subr.mxu0 0.0
  %3711 = vmatpush1.msra.mxu0 0.0
  %3712 = vmatprep.subr.mxu0 0.0
  %3713 = vmatpush1.msra.mxu0 0.0
  %3714 = vmatprep.subr.mxu0 0.0
  %3715 = vmatpush1.msra.mxu0 0.0
  %3716 = vmatprep.subr.mxu0 0.0
  %3717 = vmatpush1.msra.mxu0 0.0
  %3718 = vmatprep.mubr.f32.mxu0 0.0
  %3719 = vmatmul.mubr.f32.gmra.mrb[0].mxu0 %v3652
  %v3720 = vpop.f32.mrb[0].mxu0
  %v3721 = vadd.f32 %v3017, %v3720
  %v3722 = vpop.f32.mrb[0].mxu0
  %3723 = vdwg.mxu0
  %3725 = vrot.lane.b32.xlu0 %v3721, 96
  %v3726 = vpop.permute.xlu0 %3725
  %v3728 = vmax.f32 %v3721, %v3726
  %v3729 = vmul.f32 %v3728, %v3175
  %v3731 = vsel %vm179, %v3645, 0
  %3733 = vmatprep.subr.mxu0 0.0
  %3734 = vmatpush1.msra.mxu0 %v3045
  %3735 = vmatprep.subr.mxu0 0.0
  %3736 = vmatpush1.msra.mxu0 %v3046
  %3737 = vmatprep.subr.mxu0 0.0
  %3738 = vmatpush1.msra.mxu0 %v3047
  %3739 = vmatprep.subr.mxu0 0.0
  %3740 = vmatpush1.msra.mxu0 %v3048
  %3741 = vmatprep.subr.mxu0 0.0
  %3742 = vmatpush1.msra.mxu0 0.0
  %3743 = vmatprep.subr.mxu0 0.0
  %3744 = vmatpush1.msra.mxu0 0.0
  %3745 = vmatprep.subr.mxu0 0.0
  %3746 = vmatpush1.msra.mxu0 0.0
  %3747 = vmatprep.subr.mxu0 0.0
  %3748 = vmatpush1.msra.mxu0 0.0
  %3749 = vmatprep.subr.mxu0 0.0
  %3750 = vmatpush1.msra.mxu0 0.0
  %3751 = vmatprep.subr.mxu0 0.0
  %3752 = vmatpush1.msra.mxu0 0.0
  %3753 = vmatprep.subr.mxu0 0.0
  %3754 = vmatpush1.msra.mxu0 0.0
  %3755 = vmatprep.subr.mxu0 0.0
  %3756 = vmatpush1.msra.mxu0 0.0
  %3757 = vmatprep.subr.mxu0 0.0
  %3758 = vmatpush1.msra.mxu0 0.0
  %3759 = vmatprep.subr.mxu0 0.0
  %3760 = vmatpush1.msra.mxu0 0.0
  %3761 = vmatprep.subr.mxu0 0.0
  %3762 = vmatpush1.msra.mxu0 0.0
  %3763 = vmatprep.subr.mxu0 0.0
  %3764 = vmatpush1.msra.mxu0 0.0
  %3765 = vmatprep.subr.mxu0 0.0
  %3766 = vmatpush1.msra.mxu0 0.0
  %3767 = vmatprep.subr.mxu0 0.0
  %3768 = vmatpush1.msra.mxu0 0.0
  %3769 = vmatprep.subr.mxu0 0.0
  %3770 = vmatpush1.msra.mxu0 0.0
  %3771 = vmatprep.subr.mxu0 0.0
  %3772 = vmatpush1.msra.mxu0 0.0
  %3773 = vmatprep.subr.mxu0 0.0
  %3774 = vmatpush1.msra.mxu0 0.0
  %3775 = vmatprep.subr.mxu0 0.0
  %3776 = vmatpush1.msra.mxu0 0.0
  %3777 = vmatprep.subr.mxu0 0.0
  %3778 = vmatpush1.msra.mxu0 0.0
  %3779 = vmatprep.subr.mxu0 0.0
  %3780 = vmatpush1.msra.mxu0 0.0
  %3781 = vmatprep.subr.mxu0 0.0
  %3782 = vmatpush1.msra.mxu0 0.0
  %3783 = vmatprep.subr.mxu0 0.0
  %3784 = vmatpush1.msra.mxu0 0.0
  %3785 = vmatprep.subr.mxu0 0.0
  %3786 = vmatpush1.msra.mxu0 0.0
  %3787 = vmatprep.subr.mxu0 0.0
  %3788 = vmatpush1.msra.mxu0 0.0
  %3789 = vmatprep.subr.mxu0 0.0
  %3790 = vmatpush1.msra.mxu0 0.0
  %3791 = vmatprep.subr.mxu0 0.0
  %3792 = vmatpush1.msra.mxu0 0.0
  %3793 = vmatprep.subr.mxu0 0.0
  %3794 = vmatpush1.msra.mxu0 0.0
  %3795 = vmatprep.subr.mxu0 0.0
  %3796 = vmatpush1.msra.mxu0 0.0
  %3797 = vmatprep.mubr.f32.mxu0 0.0
  %3798 = vmatmul.mubr.f32.gmra.mrb[0].mxu0 %v3731
  %v3799 = vpop.f32.mrb[0].mxu0
  %v3800 = vadd.f32 0.0, %v3799
  %v3801 = vpop.f32.mrb[0].mxu0
  %3802 = vdwg.mxu0
  %v3803 = vadd.f32 %v2934, %v3800
  %v3804 = vxor.u32 %v3803, 2147483648
  %v3805 = vmul.f32 %v3804, 1.442695
  %v3806 = vpow.pop %v3805
  %v3807 = vadd.f32 %v3806, 1.0
  %v3808 = vrcp.pop %v3807
  %v3809 = vmul.f32 1.0, %v3808
  %3811 = vrot.lane.b32.xlu0 %v3800, 96
  %v3812 = vpop.permute.xlu0 %3811
  %v3814 = vmul.f32 %v3809, %v3812
  %3816 = vrot.lane.b32.xlu0 %v3814, 32
  %v3817 = vpop.permute.xlu0 %3816
  %v3819 = vadd.f32 %v2934, %v3817
  %v3820 = vtanh.pop %v3819
  %v3821 = vsub.f32 1.0, %v3809
  %v3822 = vmul.f32 %v3821, %v3645
  %3824 = vrot.lane.b32.xlu0 %v3820, 64
  %v3825 = vpop.permute.xlu0 %3824
  %v3827 = vmul.f32 %v3809, %v3825
  %v3828 = vadd.f32 %v3822, %v3827
  %3830 = vset.pattern.permute.xlu0 0
  %3831 = vperm.xlu0 %3830, %v155
  %v3832 = vpop.permute.xlu0 %3831
  %v3834 = vmul.f32 %v3832, %v3828
  %v3835 = vsub.f32 1.0, %v155
  %3837 = vset.pattern.permute.xlu0 0
  %3838 = vperm.xlu0 %3837, %v3835
  %v3839 = vpop.permute.xlu0 %3838
  %v3841 = vmul.f32 %v3839, %v3645
  %v3842 = vadd.f32 %v3834, %v3841
  %v3844 = vsel %vm179, %v3842, 0
  %3846 = vmatprep.subr.mxu0 0.0
  %3847 = vmatpush1.msra.mxu0 %v3058
  %3848 = vmatprep.subr.mxu0 0.0
  %3849 = vmatpush1.msra.mxu0 %v3059
  %3850 = vmatprep.subr.mxu0 0.0
  %3851 = vmatpush1.msra.mxu0 %v3060
  %3852 = vmatprep.subr.mxu0 0.0
  %3853 = vmatpush1.msra.mxu0 %v3061
  %3854 = vmatprep.subr.mxu0 0.0
  %3855 = vmatpush1.msra.mxu0 0.0
  %3856 = vmatprep.subr.mxu0 0.0
  %3857 = vmatpush1.msra.mxu0 0.0
  %3858 = vmatprep.subr.mxu0 0.0
  %3859 = vmatpush1.msra.mxu0 0.0
  %3860 = vmatprep.subr.mxu0 0.0
  %3861 = vmatpush1.msra.mxu0 0.0
  %3862 = vmatprep.subr.mxu0 0.0
  %3863 = vmatpush1.msra.mxu0 0.0
  %3864 = vmatprep.subr.mxu0 0.0
  %3865 = vmatpush1.msra.mxu0 0.0
  %3866 = vmatprep.subr.mxu0 0.0
  %3867 = vmatpush1.msra.mxu0 0.0
  %3868 = vmatprep.subr.mxu0 0.0
  %3869 = vmatpush1.msra.mxu0 0.0
  %3870 = vmatprep.subr.mxu0 0.0
  %3871 = vmatpush1.msra.mxu0 0.0
  %3872 = vmatprep.subr.mxu0 0.0
  %3873 = vmatpush1.msra.mxu0 0.0
  %3874 = vmatprep.subr.mxu0 0.0
  %3875 = vmatpush1.msra.mxu0 0.0
  %3876 = vmatprep.subr.mxu0 0.0
  %3877 = vmatpush1.msra.mxu0 0.0
  %3878 = vmatprep.subr.mxu0 0.0
  %3879 = vmatpush1.msra.mxu0 0.0
  %3880 = vmatprep.subr.mxu0 0.0
  %3881 = vmatpush1.msra.mxu0 0.0
  %3882 = vmatprep.subr.mxu0 0.0
  %3883 = vmatpush1.msra.mxu0 0.0
  %3884 = vmatprep.subr.mxu0 0.0
  %3885 = vmatpush1.msra.mxu0 0.0
  %3886 = vmatprep.subr.mxu0 0.0
  %3887 = vmatpush1.msra.mxu0 0.0
  %3888 = vmatprep.subr.mxu0 0.0
  %3889 = vmatpush1.msra.mxu0 0.0
  %3890 = vmatprep.subr.mxu0 0.0
  %3891 = vmatpush1.msra.mxu0 0.0
  %3892 = vmatprep.subr.mxu0 0.0
  %3893 = vmatpush1.msra.mxu0 0.0
  %3894 = vmatprep.subr.mxu0 0.0
  %3895 = vmatpush1.msra.mxu0 0.0
  %3896 = vmatprep.subr.mxu0 0.0
  %3897 = vmatpush1.msra.mxu0 0.0
  %3898 = vmatprep.subr.mxu0 0.0
  %3899 = vmatpush1.msra.mxu0 0.0
  %3900 = vmatprep.subr.mxu0 0.0
  %3901 = vmatpush1.msra.mxu0 0.0
  %3902 = vmatprep.subr.mxu0 0.0
  %3903 = vmatpush1.msra.mxu0 0.0
  %3904 = vmatprep.subr.mxu0 0.0
  %3905 = vmatpush1.msra.mxu0 0.0
  %3906 = vmatprep.subr.mxu0 0.0
  %3907 = vmatpush1.msra.mxu0 0.0
  %3908 = vmatprep.subr.mxu0 0.0
  %3909 = vmatpush1.msra.mxu0 0.0
  %3910 = vmatprep.mubr.f32.mxu0 0.0
  %3911 = vmatmul.mubr.f32.gmra.mrb[0].mxu0 %v3844
  %v3912 = vpop.f32.mrb[0].mxu0
  %v3913 = vadd.f32 %v3190, %v3912
  %v3914 = vpop.f32.mrb[0].mxu0
  %3915 = vdwg.mxu0
  %v3916 = vadd.f32 %v2300, %v3913
  %v3917 = vadd.f32 %v2305, %v3913
  %v3918 = vadd.f32 %v2310, %v3913
  %v3919 = vadd.f32 %v2315, %v3913
  %v3920 = vadd.f32 %v2320, %v3913
  %v3921 = vadd.f32 %v2325, %v3913
  %v3922 = vadd.f32 %v2330, %v3913
  %v3923 = vadd.f32 %v2335, %v3913
  %v3924 = vtanh.pop %v3916
  %v3925 = vtanh.pop %v3917
  %v3926 = vtanh.pop %v3918
  %v3927 = vtanh.pop %v3919
  %v3928 = vtanh.pop %v3920
  %v3929 = vtanh.pop %v3921
  %v3930 = vtanh.pop %v3922
  %v3931 = vtanh.pop %v3923
  %v3932 = vmul.f32 %v3924, %v3285
  %v3933 = vmul.f32 %v3925, %v3285
  %v3934 = vmul.f32 %v3926, %v3285
  %v3935 = vmul.f32 %v3927, %v3285
  %v3936 = vmul.f32 %v3928, %v3285
  %v3937 = vmul.f32 %v3929, %v3285
  %v3938 = vmul.f32 %v3930, %v3285
  %v3939 = vmul.f32 %v3931, %v3285
  %v3940 = vsel %vm179, %v3932, 0.0
  %3941 = vadd.xlane.f32.xlu0 %v3940
  %v3942 = vpop.xlane.xlu0 %3941
  %v3943 = vsel %vm179, %v3933, 0.0
  %3944 = vadd.xlane.f32.xlu0 %v3943
  %v3945 = vpop.xlane.xlu0 %3944
  %v3946 = vsel %vm179, %v3934, 0.0
  %3947 = vadd.xlane.f32.xlu0 %v3946
  %v3948 = vpop.xlane.xlu0 %3947
  %v3949 = vsel %vm179, %v3935, 0.0
  %3950 = vadd.xlane.f32.xlu0 %v3949
  %v3951 = vpop.xlane.xlu0 %3950
  %v3952 = vsel %vm179, %v3936, 0.0
  %3953 = vadd.xlane.f32.xlu0 %v3952
  %v3954 = vpop.xlane.xlu0 %3953
  %v3955 = vsel %vm179, %v3937, 0.0
  %3956 = vadd.xlane.f32.xlu0 %v3955
  %v3957 = vpop.xlane.xlu0 %3956
  %v3958 = vsel %vm179, %v3938, 0.0
  %3959 = vadd.xlane.f32.xlu0 %v3958
  %v3960 = vpop.xlane.xlu0 %3959
  %v3961 = vsel %vm179, %v3939, 0.0
  %3962 = vadd.xlane.f32.xlu0 %v3961
  %v3963 = vpop.xlane.xlu0 %3962
  %v3964 = vadd.f32 %v3942, %v3323
  %v3965 = vadd.f32 %v3945, %v3323
  %v3966 = vadd.f32 %v3948, %v3323
  %v3967 = vadd.f32 %v3951, %v3323
  %v3968 = vadd.f32 %v3954, %v3323
  %v3969 = vadd.f32 %v3957, %v3323
  %v3970 = vadd.f32 %v3960, %v3323
  %v3971 = vadd.f32 %v3963, %v3323
  %v3972 = vsel %vm2361, %v3964, -inf
  %v3973 = vsel %vm2361, %v3965, -inf
  %v3974 = vsel %vm2361, %v3966, -inf
  %v3975 = vsel %vm2361, %v3967, -inf
  %v3976 = vsel %vm2361, %v3968, -inf
  %v3977 = vmax.f32 %v3972, %v3976
  %v3978 = vsel %vm2361, %v3969, -inf
  %v3979 = vmax.f32 %v3973, %v3978
  %v3980 = vsel %vm2361, %v3970, -inf
  %v3981 = vmax.f32 %v3974, %v3980
  %v3982 = vsel %vm2361, %v3971, -inf
  %v3983 = vmax.f32 %v3975, %v3982
  %v3984 = vmax.f32 %v3977, %v3979
  %v3985 = vmax.f32 %v3981, %v3983
  %v3986 = vmax.f32 %v3984, %v3985
  %v3987 = vsub.f32 %v3964, %v3986
  %v3988 = vsub.f32 %v3965, %v3986
  %v3989 = vsub.f32 %v3966, %v3986
  %v3990 = vsub.f32 %v3967, %v3986
  %v3991 = vsub.f32 %v3968, %v3986
  %v3992 = vsub.f32 %v3969, %v3986
  %v3993 = vsub.f32 %v3970, %v3986
  %v3994 = vsub.f32 %v3971, %v3986
  %v3995 = vmul.f32 %v3987, 1.442695
  %v3996 = vpow.pop %v3995
  %v3997 = vmul.f32 %v3988, 1.442695
  %v3998 = vpow.pop %v3997
  %v3999 = vmul.f32 %v3989, 1.442695
  %v4000 = vpow.pop %v3999
  %v4001 = vmul.f32 %v3990, 1.442695
  %v4002 = vpow.pop %v4001
  %v4003 = vmul.f32 %v3991, 1.442695
  %v4004 = vpow.pop %v4003
  %v4005 = vmul.f32 %v3992, 1.442695
  %v4006 = vpow.pop %v4005
  %v4007 = vmul.f32 %v3993, 1.442695
  %v4008 = vpow.pop %v4007
  %v4009 = vmul.f32 %v3994, 1.442695
  %v4010 = vpow.pop %v4009
  %v4011 = vmul.f32 %v3996, %v140
  %v4012 = vmul.f32 %v3998, %v141
  %v4013 = vmul.f32 %v4000, %v142
  %v4014 = vmul.f32 %v4002, %v143
  %v4015 = vmul.f32 %v4004, %v144
  %v4016 = vmul.f32 %v4006, %v145
  %v4017 = vmul.f32 %v4008, %v146
  %v4018 = vmul.f32 %v4010, %v147
  %v4019 = vsel %vm2361, %v4011, 0.0
  %v4020 = vsel %vm2361, %v4012, 0.0
  %v4021 = vadd.f32 %v4019, %v4020
  %v4022 = vsel %vm2361, %v4013, 0.0
  %v4023 = vadd.f32 %v4021, %v4022
  %v4024 = vsel %vm2361, %v4014, 0.0
  %v4025 = vadd.f32 %v4023, %v4024
  %v4026 = vsel %vm2361, %v4015, 0.0
  %v4027 = vadd.f32 %v4025, %v4026
  %v4028 = vsel %vm2361, %v4016, 0.0
  %v4029 = vadd.f32 %v4027, %v4028
  %v4030 = vsel %vm2361, %v4017, 0.0
  %v4031 = vadd.f32 %v4029, %v4030
  %v4032 = vsel %vm2361, %v4018, 0.0
  %v4033 = vadd.f32 %v4031, %v4032
  %v4034 = vadd.f32 %v4033, 1e-20
  %v4035 = vrcp.pop %v4034
  %v4036 = vmul.f32 %v4011, %v4035
  %v4037 = vmul.f32 %v4012, %v4035
  %v4038 = vmul.f32 %v4013, %v4035
  %v4039 = vmul.f32 %v4014, %v4035
  %v4040 = vmul.f32 %v4015, %v4035
  %v4041 = vmul.f32 %v4016, %v4035
  %v4042 = vmul.f32 %v4017, %v4035
  %v4043 = vmul.f32 %v4018, %v4035
  %4045 = vset.pattern.permute.xlu0 0
  %4046 = vperm.xlu0 %4045, %v4036
  %v4047 = vpop.permute.xlu0 %4046
  %4050 = vset.pattern.permute.xlu0 0
  %4051 = vperm.xlu0 %4050, %v4037
  %v4052 = vpop.permute.xlu0 %4051
  %4055 = vset.pattern.permute.xlu0 0
  %4056 = vperm.xlu0 %4055, %v4038
  %v4057 = vpop.permute.xlu0 %4056
  %4060 = vset.pattern.permute.xlu0 0
  %4061 = vperm.xlu0 %4060, %v4039
  %v4062 = vpop.permute.xlu0 %4061
  %4065 = vset.pattern.permute.xlu0 0
  %4066 = vperm.xlu0 %4065, %v4040
  %v4067 = vpop.permute.xlu0 %4066
  %4070 = vset.pattern.permute.xlu0 0
  %4071 = vperm.xlu0 %4070, %v4041
  %v4072 = vpop.permute.xlu0 %4071
  %4075 = vset.pattern.permute.xlu0 0
  %4076 = vperm.xlu0 %4075, %v4042
  %v4077 = vpop.permute.xlu0 %4076
  %4080 = vset.pattern.permute.xlu0 0
  %4081 = vperm.xlu0 %4080, %v4043
  %v4082 = vpop.permute.xlu0 %4081
  %v4084 = vmul.f32 %v4047, %v2190
  %v4085 = vmul.f32 %v4052, %v2191
  %v4086 = vmul.f32 %v4057, %v2192
  %v4087 = vmul.f32 %v4062, %v2193
  %v4088 = vmul.f32 %v4067, %v2194
  %v4089 = vmul.f32 %v4072, %v2195
  %v4090 = vmul.f32 %v4077, %v2196
  %v4091 = vmul.f32 %v4082, %v2197
  %v4092 = vsel %vm179, %v4084, 0.0
  %v4093 = vsel %vm179, %v4085, 0.0
  %v4094 = vadd.f32 %v4092, %v4093
  %v4095 = vsel %vm179, %v4086, 0.0
  %v4096 = vadd.f32 %v4094, %v4095
  %v4097 = vsel %vm179, %v4087, 0.0
  %v4098 = vadd.f32 %v4096, %v4097
  %v4099 = vsel %vm179, %v4088, 0.0
  %v4100 = vadd.f32 %v4098, %v4099
  %v4101 = vsel %vm179, %v4089, 0.0
  %v4102 = vadd.f32 %v4100, %v4101
  %v4103 = vsel %vm179, %v4090, 0.0
  %v4104 = vadd.f32 %v4102, %v4103
  %v4105 = vsel %vm179, %v4091, 0.0
  %v4106 = vadd.f32 %v4104, %v4105
  %v4108 = vsel %vm179, %v4106, 0
  %4110 = vmatprep.subr.mxu0 0.0
  %4111 = vmatpush1.msra.mxu0 %v3049
  %4112 = vmatprep.subr.mxu0 0.0
  %4113 = vmatpush1.msra.mxu0 %v3050
  %4114 = vmatprep.subr.mxu0 0.0
  %4115 = vmatpush1.msra.mxu0 %v3051
  %4116 = vmatprep.subr.mxu0 0.0
  %4117 = vmatpush1.msra.mxu0 %v3052
  %4118 = vmatprep.subr.mxu0 0.0
  %4119 = vmatpush1.msra.mxu0 0.0
  %4120 = vmatprep.subr.mxu0 0.0
  %4121 = vmatpush1.msra.mxu0 0.0
  %4122 = vmatprep.subr.mxu0 0.0
  %4123 = vmatpush1.msra.mxu0 0.0
  %4124 = vmatprep.subr.mxu0 0.0
  %4125 = vmatpush1.msra.mxu0 0.0
  %4126 = vmatprep.subr.mxu0 0.0
  %4127 = vmatpush1.msra.mxu0 0.0
  %4128 = vmatprep.subr.mxu0 0.0
  %4129 = vmatpush1.msra.mxu0 0.0
  %4130 = vmatprep.subr.mxu0 0.0
  %4131 = vmatpush1.msra.mxu0 0.0
  %4132 = vmatprep.subr.mxu0 0.0
  %4133 = vmatpush1.msra.mxu0 0.0
  %4134 = vmatprep.subr.mxu0 0.0
  %4135 = vmatpush1.msra.mxu0 0.0
  %4136 = vmatprep.subr.mxu0 0.0
  %4137 = vmatpush1.msra.mxu0 0.0
  %4138 = vmatprep.subr.mxu0 0.0
  %4139 = vmatpush1.msra.mxu0 0.0
  %4140 = vmatprep.subr.mxu0 0.0
  %4141 = vmatpush1.msra.mxu0 0.0
  %4142 = vmatprep.subr.mxu0 0.0
  %4143 = vmatpush1.msra.mxu0 0.0
  %4144 = vmatprep.subr.mxu0 0.0
  %4145 = vmatpush1.msra.mxu0 0.0
  %4146 = vmatprep.subr.mxu0 0.0
  %4147 = vmatpush1.msra.mxu0 0.0
  %4148 = vmatprep.subr.mxu0 0.0
  %4149 = vmatpush1.msra.mxu0 0.0
  %4150 = vmatprep.subr.mxu0 0.0
  %4151 = vmatpush1.msra.mxu0 0.0
  %4152 = vmatprep.subr.mxu0 0.0
  %4153 = vmatpush1.msra.mxu0 0.0
  %4154 = vmatprep.subr.mxu0 0.0
  %4155 = vmatpush1.msra.mxu0 0.0
  %4156 = vmatprep.subr.mxu0 0.0
  %4157 = vmatpush1.msra.mxu0 0.0
  %4158 = vmatprep.subr.mxu0 0.0
  %4159 = vmatpush1.msra.mxu0 0.0
  %4160 = vmatprep.subr.mxu0 0.0
  %4161 = vmatpush1.msra.mxu0 0.0
  %4162 = vmatprep.subr.mxu0 0.0
  %4163 = vmatpush1.msra.mxu0 0.0
  %4164 = vmatprep.subr.mxu0 0.0
  %4165 = vmatpush1.msra.mxu0 0.0
  %4166 = vmatprep.subr.mxu0 0.0
  %4167 = vmatpush1.msra.mxu0 0.0
  %4168 = vmatprep.subr.mxu0 0.0
  %4169 = vmatpush1.msra.mxu0 0.0
  %4170 = vmatprep.subr.mxu0 0.0
  %4171 = vmatpush1.msra.mxu0 0.0
  %4172 = vmatprep.subr.mxu0 0.0
  %4173 = vmatpush1.msra.mxu0 0.0
  %4174 = vmatprep.mubr.f32.mxu0 0.0
  %4175 = vmatmul.mubr.f32.gmra.mrb[0].mxu0 %v4108
  %v4176 = vpop.f32.mrb[0].mxu0
  %v4177 = vadd.f32 %v3472, %v4176
  %v4178 = vpop.f32.mrb[0].mxu0
  %4179 = vdwg.mxu0
  %4180 = vmatprep.subr.mxu0 0.0
  %4181 = vmatpush1.msra.mxu0 %v3053
  %4182 = vmatprep.subr.mxu0 0.0
  %4183 = vmatpush1.msra.mxu0 %v3054
  %4184 = vmatprep.subr.mxu0 0.0
  %4185 = vmatpush1.msra.mxu0 %v3055
  %4186 = vmatprep.subr.mxu0 0.0
  %4187 = vmatpush1.msra.mxu0 %v3056
  %4188 = vmatprep.subr.mxu0 0.0
  %4189 = vmatpush1.msra.mxu0 0.0
  %4190 = vmatprep.subr.mxu0 0.0
  %4191 = vmatpush1.msra.mxu0 0.0
  %4192 = vmatprep.subr.mxu0 0.0
  %4193 = vmatpush1.msra.mxu0 0.0
  %4194 = vmatprep.subr.mxu0 0.0
  %4195 = vmatpush1.msra.mxu0 0.0
  %4196 = vmatprep.subr.mxu0 0.0
  %4197 = vmatpush1.msra.mxu0 0.0
  %4198 = vmatprep.subr.mxu0 0.0
  %4199 = vmatpush1.msra.mxu0 0.0
  %4200 = vmatprep.subr.mxu0 0.0
  %4201 = vmatpush1.msra.mxu0 0.0
  %4202 = vmatprep.subr.mxu0 0.0
  %4203 = vmatpush1.msra.mxu0 0.0
  %4204 = vmatprep.subr.mxu0 0.0
  %4205 = vmatpush1.msra.mxu0 0.0
  %4206 = vmatprep.subr.mxu0 0.0
  %4207 = vmatpush1.msra.mxu0 0.0
  %4208 = vmatprep.subr.mxu0 0.0
  %4209 = vmatpush1.msra.mxu0 0.0
  %4210 = vmatprep.subr.mxu0 0.0
  %4211 = vmatpush1.msra.mxu0 0.0
  %4212 = vmatprep.subr.mxu0 0.0
  %4213 = vmatpush1.msra.mxu0 0.0
  %4214 = vmatprep.subr.mxu0 0.0
  %4215 = vmatpush1.msra.mxu0 0.0
  %4216 = vmatprep.subr.mxu0 0.0
  %4217 = vmatpush1.msra.mxu0 0.0
  %4218 = vmatprep.subr.mxu0 0.0
  %4219 = vmatpush1.msra.mxu0 0.0
  %4220 = vmatprep.subr.mxu0 0.0
  %4221 = vmatpush1.msra.mxu0 0.0
  %4222 = vmatprep.subr.mxu0 0.0
  %4223 = vmatpush1.msra.mxu0 0.0
  %4224 = vmatprep.subr.mxu0 0.0
  %4225 = vmatpush1.msra.mxu0 0.0
  %4226 = vmatprep.subr.mxu0 0.0
  %4227 = vmatpush1.msra.mxu0 0.0
  %4228 = vmatprep.subr.mxu0 0.0
  %4229 = vmatpush1.msra.mxu0 0.0
  %4230 = vmatprep.subr.mxu0 0.0
  %4231 = vmatpush1.msra.mxu0 0.0
  %4232 = vmatprep.subr.mxu0 0.0
  %4233 = vmatpush1.msra.mxu0 0.0
  %4234 = vmatprep.subr.mxu0 0.0
  %4235 = vmatpush1.msra.mxu0 0.0
  %4236 = vmatprep.subr.mxu0 0.0
  %4237 = vmatpush1.msra.mxu0 0.0
  %4238 = vmatprep.subr.mxu0 0.0
  %4239 = vmatpush1.msra.mxu0 0.0
  %4240 = vmatprep.subr.mxu0 0.0
  %4241 = vmatpush1.msra.mxu0 0.0
  %4242 = vmatprep.subr.mxu0 0.0
  %4243 = vmatpush1.msra.mxu0 0.0
  %4244 = vmatprep.mubr.f32.mxu0 0.0
  %4245 = vmatmul.mubr.f32.gmra.mrb[0].mxu0 %v3844
  %v4246 = vpop.f32.mrb[0].mxu0
  %v4247 = vadd.f32 0.0, %v4246
  %v4248 = vpop.f32.mrb[0].mxu0
  %4249 = vdwg.mxu0
  %v4250 = vadd.f32 %v4177, %v4247
  %v4251 = vxor.u32 %v4250, 2147483648
  %v4252 = vmul.f32 %v4251, 1.442695
  %v4253 = vpow.pop %v4252
  %v4254 = vadd.f32 %v4253, 1.0
  %v4255 = vrcp.pop %v4254
  %v4256 = vmul.f32 1.0, %v4255
  %4258 = vrot.lane.b32.xlu0 %v4247, 96
  %v4259 = vpop.permute.xlu0 %4258
  %v4261 = vmul.f32 %v4256, %v4259
  %4263 = vrot.lane.b32.xlu0 %v4261, 32
  %v4264 = vpop.permute.xlu0 %4263
  %v4266 = vadd.f32 %v4177, %v4264
  %v4267 = vtanh.pop %v4266
  %v4268 = vsub.f32 1.0, %v4256
  %v4269 = vmul.f32 %v4268, %v3842
  %4271 = vrot.lane.b32.xlu0 %v4267, 64
  %v4272 = vpop.permute.xlu0 %4271
  %v4274 = vmul.f32 %v4256, %v4272
  %v4275 = vadd.f32 %v4269, %v4274
  %v4276 = vmul.f32 %v3832, %v4275
  %v4277 = vmul.f32 %v3839, %v3842
  %v4278 = vadd.f32 %v4276, %v4277
  %4279 = vrot.lane.b32.xlu0 %v4106, 32
  %v4280 = vpop.permute.xlu0 %4279
  %v4282 = vsel %vm179, %v4278, %v4280
  %v4284 = vsel %vm3650, %v4282, 0
  %4286 = vmatprep.subr.mxu0 0.0
  %4287 = vmatpush1.msra.mxu0 %v3065
  %4288 = vmatprep.subr.mxu0 0.0
  %4289 = vmatpush1.msra.mxu0 %v3066
  %4290 = vmatprep.subr.mxu0 0.0
  %4291 = vmatpush1.msra.mxu0 %v3067
  %4292 = vmatprep.subr.mxu0 0.0
  %4293 = vmatpush1.msra.mxu0 %v3068
  %4294 = vmatprep.subr.mxu0 0.0
  %4295 = vmatpush1.msra.mxu0 %v3069
  %4296 = vmatprep.subr.mxu0 0.0
  %4297 = vmatpush1.msra.mxu0 %v3070
  %4298 = vmatprep.subr.mxu0 0.0
  %4299 = vmatpush1.msra.mxu0 %v3071
  %4300 = vmatprep.subr.mxu0 0.0
  %4301 = vmatpush1.msra.mxu0 %v3072
  %4302 = vmatprep.subr.mxu0 0.0
  %4303 = vmatpush1.msra.mxu0 0.0
  %4304 = vmatprep.subr.mxu0 0.0
  %4305 = vmatpush1.msra.mxu0 0.0
  %4306 = vmatprep.subr.mxu0 0.0
  %4307 = vmatpush1.msra.mxu0 0.0
  %4308 = vmatprep.subr.mxu0 0.0
  %4309 = vmatpush1.msra.mxu0 0.0
  %4310 = vmatprep.subr.mxu0 0.0
  %4311 = vmatpush1.msra.mxu0 0.0
  %4312 = vmatprep.subr.mxu0 0.0
  %4313 = vmatpush1.msra.mxu0 0.0
  %4314 = vmatprep.subr.mxu0 0.0
  %4315 = vmatpush1.msra.mxu0 0.0
  %4316 = vmatprep.subr.mxu0 0.0
  %4317 = vmatpush1.msra.mxu0 0.0
  %4318 = vmatprep.subr.mxu0 0.0
  %4319 = vmatpush1.msra.mxu0 0.0
  %4320 = vmatprep.subr.mxu0 0.0
  %4321 = vmatpush1.msra.mxu0 0.0
  %4322 = vmatprep.subr.mxu0 0.0
  %4323 = vmatpush1.msra.mxu0 0.0
  %4324 = vmatprep.subr.mxu0 0.0
  %4325 = vmatpush1.msra.mxu0 0.0
  %4326 = vmatprep.subr.mxu0 0.0
  %4327 = vmatpush1.msra.mxu0 0.0
  %4328 = vmatprep.subr.mxu0 0.0
  %4329 = vmatpush1.msra.mxu0 0.0
  %4330 = vmatprep.subr.mxu0 0.0
  %4331 = vmatpush1.msra.mxu0 0.0
  %4332 = vmatprep.subr.mxu0 0.0
  %4333 = vmatpush1.msra.mxu0 0.0
  %4334 = vmatprep.subr.mxu0 0.0
  %4335 = vmatpush1.msra.mxu0 0.0
  %4336 = vmatprep.subr.mxu0 0.0
  %4337 = vmatpush1.msra.mxu0 0.0
  %4338 = vmatprep.subr.mxu0 0.0
  %4339 = vmatpush1.msra.mxu0 0.0
  %4340 = vmatprep.subr.mxu0 0.0
  %4341 = vmatpush1.msra.mxu0 0.0
  %4342 = vmatprep.subr.mxu0 0.0
  %4343 = vmatpush1.msra.mxu0 0.0
  %4344 = vmatprep.subr.mxu0 0.0
  %4345 = vmatpush1.msra.mxu0 0.0
  %4346 = vmatprep.subr.mxu0 0.0
  %4347 = vmatpush1.msra.mxu0 0.0
  %4348 = vmatprep.subr.mxu0 0.0
  %4349 = vmatpush1.msra.mxu0 0.0
  %4350 = vmatprep.mubr.f32.mxu0 0.0
  %4351 = vmatmul.mubr.f32.gmra.mrb[0].mxu0 %v4284
  %v4352 = vpop.f32.mrb[0].mxu0
  %v4353 = vadd.f32 %v3022, %v4352
  %v4354 = vpop.f32.mrb[0].mxu0
  %4355 = vdwg.mxu0
  %4357 = vrot.lane.b32.xlu0 %v4353, 96
  %v4358 = vpop.permute.xlu0 %4357
  %v4360 = vmax.f32 %v4353, %v4358
  %v4361 = vmul.f32 %v4360, %v3832
  %v4363 = vsel %vm179, %v4278, 0
  %4365 = vmatprep.subr.mxu0 0.0
  %4366 = vmatpush1.msra.mxu0 %v3045
  %4367 = vmatprep.subr.mxu0 0.0
  %4368 = vmatpush1.msra.mxu0 %v3046
  %4369 = vmatprep.subr.mxu0 0.0
  %4370 = vmatpush1.msra.mxu0 %v3047
  %4371 = vmatprep.subr.mxu0 0.0
  %4372 = vmatpush1.msra.mxu0 %v3048
  %4373 = vmatprep.subr.mxu0 0.0
  %4374 = vmatpush1.msra.mxu0 0.0
  %4375 = vmatprep.subr.mxu0 0.0
  %4376 = vmatpush1.msra.mxu0 0.0
  %4377 = vmatprep.subr.mxu0 0.0
  %4378 = vmatpush1.msra.mxu0 0.0
  %4379 = vmatprep.subr.mxu0 0.0
  %4380 = vmatpush1.msra.mxu0 0.0
  %4381 = vmatprep.subr.mxu0 0.0
  %4382 = vmatpush1.msra.mxu0 0.0
  %4383 = vmatprep.subr.mxu0 0.0
  %4384 = vmatpush1.msra.mxu0 0.0
  %4385 = vmatprep.subr.mxu0 0.0
  %4386 = vmatpush1.msra.mxu0 0.0
  %4387 = vmatprep.subr.mxu0 0.0
  %4388 = vmatpush1.msra.mxu0 0.0
  %4389 = vmatprep.subr.mxu0 0.0
  %4390 = vmatpush1.msra.mxu0 0.0
  %4391 = vmatprep.subr.mxu0 0.0
  %4392 = vmatpush1.msra.mxu0 0.0
  %4393 = vmatprep.subr.mxu0 0.0
  %4394 = vmatpush1.msra.mxu0 0.0
  %4395 = vmatprep.subr.mxu0 0.0
  %4396 = vmatpush1.msra.mxu0 0.0
  %4397 = vmatprep.subr.mxu0 0.0
  %4398 = vmatpush1.msra.mxu0 0.0
  %4399 = vmatprep.subr.mxu0 0.0
  %4400 = vmatpush1.msra.mxu0 0.0
  %4401 = vmatprep.subr.mxu0 0.0
  %4402 = vmatpush1.msra.mxu0 0.0
  %4403 = vmatprep.subr.mxu0 0.0
  %4404 = vmatpush1.msra.mxu0 0.0
  %4405 = vmatprep.subr.mxu0 0.0
  %4406 = vmatpush1.msra.mxu0 0.0
  %4407 = vmatprep.subr.mxu0 0.0
  %4408 = vmatpush1.msra.mxu0 0.0
  %4409 = vmatprep.subr.mxu0 0.0
  %4410 = vmatpush1.msra.mxu0 0.0
  %4411 = vmatprep.subr.mxu0 0.0
  %4412 = vmatpush1.msra.mxu0 0.0
  %4413 = vmatprep.subr.mxu0 0.0
  %4414 = vmatpush1.msra.mxu0 0.0
  %4415 = vmatprep.subr.mxu0 0.0
  %4416 = vmatpush1.msra.mxu0 0.0
  %4417 = vmatprep.subr.mxu0 0.0
  %4418 = vmatpush1.msra.mxu0 0.0
  %4419 = vmatprep.subr.mxu0 0.0
  %4420 = vmatpush1.msra.mxu0 0.0
  %4421 = vmatprep.subr.mxu0 0.0
  %4422 = vmatpush1.msra.mxu0 0.0
  %4423 = vmatprep.subr.mxu0 0.0
  %4424 = vmatpush1.msra.mxu0 0.0
  %4425 = vmatprep.subr.mxu0 0.0
  %4426 = vmatpush1.msra.mxu0 0.0
  %4427 = vmatprep.subr.mxu0 0.0
  %4428 = vmatpush1.msra.mxu0 0.0
  %4429 = vmatprep.mubr.f32.mxu0 0.0
  %4430 = vmatmul.mubr.f32.gmra.mrb[0].mxu0 %v4363
  %v4431 = vpop.f32.mrb[0].mxu0
  %v4432 = vadd.f32 0.0, %v4431
  %v4433 = vpop.f32.mrb[0].mxu0
  %4434 = vdwg.mxu0
  %v4435 = vadd.f32 %v2935, %v4432
  %v4436 = vxor.u32 %v4435, 2147483648
  %v4437 = vmul.f32 %v4436, 1.442695
  %v4438 = vpow.pop %v4437
  %v4439 = vadd.f32 %v4438, 1.0
  %v4440 = vrcp.pop %v4439
  %v4441 = vmul.f32 1.0, %v4440
  %4443 = vrot.lane.b32.xlu0 %v4432, 96
  %v4444 = vpop.permute.xlu0 %4443
  %v4446 = vmul.f32 %v4441, %v4444
  %4448 = vrot.lane.b32.xlu0 %v4446, 32
  %v4449 = vpop.permute.xlu0 %4448
  %v4451 = vadd.f32 %v2935, %v4449
  %v4452 = vtanh.pop %v4451
  %v4453 = vsub.f32 1.0, %v4441
  %v4454 = vmul.f32 %v4453, %v4278
  %4456 = vrot.lane.b32.xlu0 %v4452, 64
  %v4457 = vpop.permute.xlu0 %4456
  %v4459 = vmul.f32 %v4441, %v4457
  %v4460 = vadd.f32 %v4454, %v4459
  %4462 = vset.pattern.permute.xlu0 0
  %4463 = vperm.xlu0 %4462, %v156
  %v4464 = vpop.permute.xlu0 %4463
  %v4466 = vmul.f32 %v4464, %v4460
  %v4467 = vsub.f32 1.0, %v156
  %4469 = vset.pattern.permute.xlu0 0
  %4470 = vperm.xlu0 %4469, %v4467
  %v4471 = vpop.permute.xlu0 %4470
  %v4473 = vmul.f32 %v4471, %v4278
  %v4474 = vadd.f32 %v4466, %v4473
  %v4476 = vsel %vm179, %v4474, 0
  %4478 = vmatprep.subr.mxu0 0.0
  %4479 = vmatpush1.msra.mxu0 %v3058
  %4480 = vmatprep.subr.mxu0 0.0
  %4481 = vmatpush1.msra.mxu0 %v3059
  %4482 = vmatprep.subr.mxu0 0.0
  %4483 = vmatpush1.msra.mxu0 %v3060
  %4484 = vmatprep.subr.mxu0 0.0
  %4485 = vmatpush1.msra.mxu0 %v3061
  %4486 = vmatprep.subr.mxu0 0.0
  %4487 = vmatpush1.msra.mxu0 0.0
  %4488 = vmatprep.subr.mxu0 0.0
  %4489 = vmatpush1.msra.mxu0 0.0
  %4490 = vmatprep.subr.mxu0 0.0
  %4491 = vmatpush1.msra.mxu0 0.0
  %4492 = vmatprep.subr.mxu0 0.0
  %4493 = vmatpush1.msra.mxu0 0.0
  %4494 = vmatprep.subr.mxu0 0.0
  %4495 = vmatpush1.msra.mxu0 0.0
  %4496 = vmatprep.subr.mxu0 0.0
  %4497 = vmatpush1.msra.mxu0 0.0
  %4498 = vmatprep.subr.mxu0 0.0
  %4499 = vmatpush1.msra.mxu0 0.0
  %4500 = vmatprep.subr.mxu0 0.0
  %4501 = vmatpush1.msra.mxu0 0.0
  %4502 = vmatprep.subr.mxu0 0.0
  %4503 = vmatpush1.msra.mxu0 0.0
  %4504 = vmatprep.subr.mxu0 0.0
  %4505 = vmatpush1.msra.mxu0 0.0
  %4506 = vmatprep.subr.mxu0 0.0
  %4507 = vmatpush1.msra.mxu0 0.0
  %4508 = vmatprep.subr.mxu0 0.0
  %4509 = vmatpush1.msra.mxu0 0.0
  %4510 = vmatprep.subr.mxu0 0.0
  %4511 = vmatpush1.msra.mxu0 0.0
  %4512 = vmatprep.subr.mxu0 0.0
  %4513 = vmatpush1.msra.mxu0 0.0
  %4514 = vmatprep.subr.mxu0 0.0
  %4515 = vmatpush1.msra.mxu0 0.0
  %4516 = vmatprep.subr.mxu0 0.0
  %4517 = vmatpush1.msra.mxu0 0.0
  %4518 = vmatprep.subr.mxu0 0.0
  %4519 = vmatpush1.msra.mxu0 0.0
  %4520 = vmatprep.subr.mxu0 0.0
  %4521 = vmatpush1.msra.mxu0 0.0
  %4522 = vmatprep.subr.mxu0 0.0
  %4523 = vmatpush1.msra.mxu0 0.0
  %4524 = vmatprep.subr.mxu0 0.0
  %4525 = vmatpush1.msra.mxu0 0.0
  %4526 = vmatprep.subr.mxu0 0.0
  %4527 = vmatpush1.msra.mxu0 0.0
  %4528 = vmatprep.subr.mxu0 0.0
  %4529 = vmatpush1.msra.mxu0 0.0
  %4530 = vmatprep.subr.mxu0 0.0
  %4531 = vmatpush1.msra.mxu0 0.0
  %4532 = vmatprep.subr.mxu0 0.0
  %4533 = vmatpush1.msra.mxu0 0.0
  %4534 = vmatprep.subr.mxu0 0.0
  %4535 = vmatpush1.msra.mxu0 0.0
  %4536 = vmatprep.subr.mxu0 0.0
  %4537 = vmatpush1.msra.mxu0 0.0
  %4538 = vmatprep.subr.mxu0 0.0
  %4539 = vmatpush1.msra.mxu0 0.0
  %4540 = vmatprep.subr.mxu0 0.0
  %4541 = vmatpush1.msra.mxu0 0.0
  %4542 = vmatprep.mubr.f32.mxu0 0.0
  %4543 = vmatmul.mubr.f32.gmra.mrb[0].mxu0 %v4476
  %v4544 = vpop.f32.mrb[0].mxu0
  %v4545 = vadd.f32 %v3190, %v4544
  %v4546 = vpop.f32.mrb[0].mxu0
  %4547 = vdwg.mxu0
  %v4548 = vadd.f32 %v2300, %v4545
  %v4549 = vadd.f32 %v2305, %v4545
  %v4550 = vadd.f32 %v2310, %v4545
  %v4551 = vadd.f32 %v2315, %v4545
  %v4552 = vadd.f32 %v2320, %v4545
  %v4553 = vadd.f32 %v2325, %v4545
  %v4554 = vadd.f32 %v2330, %v4545
  %v4555 = vadd.f32 %v2335, %v4545
  %v4556 = vtanh.pop %v4548
  %v4557 = vtanh.pop %v4549
  %v4558 = vtanh.pop %v4550
  %v4559 = vtanh.pop %v4551
  %v4560 = vtanh.pop %v4552
  %v4561 = vtanh.pop %v4553
  %v4562 = vtanh.pop %v4554
  %v4563 = vtanh.pop %v4555
  %v4564 = vmul.f32 %v4556, %v3285
  %v4565 = vmul.f32 %v4557, %v3285
  %v4566 = vmul.f32 %v4558, %v3285
  %v4567 = vmul.f32 %v4559, %v3285
  %v4568 = vmul.f32 %v4560, %v3285
  %v4569 = vmul.f32 %v4561, %v3285
  %v4570 = vmul.f32 %v4562, %v3285
  %v4571 = vmul.f32 %v4563, %v3285
  %v4572 = vsel %vm179, %v4564, 0.0
  %4573 = vadd.xlane.f32.xlu0 %v4572
  %v4574 = vpop.xlane.xlu0 %4573
  %v4575 = vsel %vm179, %v4565, 0.0
  %4576 = vadd.xlane.f32.xlu0 %v4575
  %v4577 = vpop.xlane.xlu0 %4576
  %v4578 = vsel %vm179, %v4566, 0.0
  %4579 = vadd.xlane.f32.xlu0 %v4578
  %v4580 = vpop.xlane.xlu0 %4579
  %v4581 = vsel %vm179, %v4567, 0.0
  %4582 = vadd.xlane.f32.xlu0 %v4581
  %v4583 = vpop.xlane.xlu0 %4582
  %v4584 = vsel %vm179, %v4568, 0.0
  %4585 = vadd.xlane.f32.xlu0 %v4584
  %v4586 = vpop.xlane.xlu0 %4585
  %v4587 = vsel %vm179, %v4569, 0.0
  %4588 = vadd.xlane.f32.xlu0 %v4587
  %v4589 = vpop.xlane.xlu0 %4588
  %v4590 = vsel %vm179, %v4570, 0.0
  %4591 = vadd.xlane.f32.xlu0 %v4590
  %v4592 = vpop.xlane.xlu0 %4591
  %v4593 = vsel %vm179, %v4571, 0.0
  %4594 = vadd.xlane.f32.xlu0 %v4593
  %v4595 = vpop.xlane.xlu0 %4594
  %v4596 = vadd.f32 %v4574, %v3323
  %v4597 = vadd.f32 %v4577, %v3323
  %v4598 = vadd.f32 %v4580, %v3323
  %v4599 = vadd.f32 %v4583, %v3323
  %v4600 = vadd.f32 %v4586, %v3323
  %v4601 = vadd.f32 %v4589, %v3323
  %v4602 = vadd.f32 %v4592, %v3323
  %v4603 = vadd.f32 %v4595, %v3323
  %v4604 = vsel %vm2361, %v4596, -inf
  %v4605 = vsel %vm2361, %v4597, -inf
  %v4606 = vsel %vm2361, %v4598, -inf
  %v4607 = vsel %vm2361, %v4599, -inf
  %v4608 = vsel %vm2361, %v4600, -inf
  %v4609 = vmax.f32 %v4604, %v4608
  %v4610 = vsel %vm2361, %v4601, -inf
  %v4611 = vmax.f32 %v4605, %v4610
  %v4612 = vsel %vm2361, %v4602, -inf
  %v4613 = vmax.f32 %v4606, %v4612
  %v4614 = vsel %vm2361, %v4603, -inf
  %v4615 = vmax.f32 %v4607, %v4614
  %v4616 = vmax.f32 %v4609, %v4611
  %v4617 = vmax.f32 %v4613, %v4615
  %v4618 = vmax.f32 %v4616, %v4617
  %v4619 = vsub.f32 %v4596, %v4618
  %v4620 = vsub.f32 %v4597, %v4618
  %v4621 = vsub.f32 %v4598, %v4618
  %v4622 = vsub.f32 %v4599, %v4618
  %v4623 = vsub.f32 %v4600, %v4618
  %v4624 = vsub.f32 %v4601, %v4618
  %v4625 = vsub.f32 %v4602, %v4618
  %v4626 = vsub.f32 %v4603, %v4618
  %v4627 = vmul.f32 %v4619, 1.442695
  %v4628 = vpow.pop %v4627
  %v4629 = vmul.f32 %v4620, 1.442695
  %v4630 = vpow.pop %v4629
  %v4631 = vmul.f32 %v4621, 1.442695
  %v4632 = vpow.pop %v4631
  %v4633 = vmul.f32 %v4622, 1.442695
  %v4634 = vpow.pop %v4633
  %v4635 = vmul.f32 %v4623, 1.442695
  %v4636 = vpow.pop %v4635
  %v4637 = vmul.f32 %v4624, 1.442695
  %v4638 = vpow.pop %v4637
  %v4639 = vmul.f32 %v4625, 1.442695
  %v4640 = vpow.pop %v4639
  %v4641 = vmul.f32 %v4626, 1.442695
  %v4642 = vpow.pop %v4641
  %v4643 = vmul.f32 %v4628, %v140
  %v4644 = vmul.f32 %v4630, %v141
  %v4645 = vmul.f32 %v4632, %v142
  %v4646 = vmul.f32 %v4634, %v143
  %v4647 = vmul.f32 %v4636, %v144
  %v4648 = vmul.f32 %v4638, %v145
  %v4649 = vmul.f32 %v4640, %v146
  %v4650 = vmul.f32 %v4642, %v147
  %v4651 = vsel %vm2361, %v4643, 0.0
  %v4652 = vsel %vm2361, %v4644, 0.0
  %v4653 = vadd.f32 %v4651, %v4652
  %v4654 = vsel %vm2361, %v4645, 0.0
  %v4655 = vadd.f32 %v4653, %v4654
  %v4656 = vsel %vm2361, %v4646, 0.0
  %v4657 = vadd.f32 %v4655, %v4656
  %v4658 = vsel %vm2361, %v4647, 0.0
  %v4659 = vadd.f32 %v4657, %v4658
  %v4660 = vsel %vm2361, %v4648, 0.0
  %v4661 = vadd.f32 %v4659, %v4660
  %v4662 = vsel %vm2361, %v4649, 0.0
  %v4663 = vadd.f32 %v4661, %v4662
  %v4664 = vsel %vm2361, %v4650, 0.0
  %v4665 = vadd.f32 %v4663, %v4664
  %v4666 = vadd.f32 %v4665, 1e-20
  %v4667 = vrcp.pop %v4666
  %v4668 = vmul.f32 %v4643, %v4667
  %v4669 = vmul.f32 %v4644, %v4667
  %v4670 = vmul.f32 %v4645, %v4667
  %v4671 = vmul.f32 %v4646, %v4667
  %v4672 = vmul.f32 %v4647, %v4667
  %v4673 = vmul.f32 %v4648, %v4667
  %v4674 = vmul.f32 %v4649, %v4667
  %v4675 = vmul.f32 %v4650, %v4667
  %4677 = vset.pattern.permute.xlu0 0
  %4678 = vperm.xlu0 %4677, %v4668
  %v4679 = vpop.permute.xlu0 %4678
  %4682 = vset.pattern.permute.xlu0 0
  %4683 = vperm.xlu0 %4682, %v4669
  %v4684 = vpop.permute.xlu0 %4683
  %4687 = vset.pattern.permute.xlu0 0
  %4688 = vperm.xlu0 %4687, %v4670
  %v4689 = vpop.permute.xlu0 %4688
  %4692 = vset.pattern.permute.xlu0 0
  %4693 = vperm.xlu0 %4692, %v4671
  %v4694 = vpop.permute.xlu0 %4693
  %4697 = vset.pattern.permute.xlu0 0
  %4698 = vperm.xlu0 %4697, %v4672
  %v4699 = vpop.permute.xlu0 %4698
  %4702 = vset.pattern.permute.xlu0 0
  %4703 = vperm.xlu0 %4702, %v4673
  %v4704 = vpop.permute.xlu0 %4703
  %4707 = vset.pattern.permute.xlu0 0
  %4708 = vperm.xlu0 %4707, %v4674
  %v4709 = vpop.permute.xlu0 %4708
  %4712 = vset.pattern.permute.xlu0 0
  %4713 = vperm.xlu0 %4712, %v4675
  %v4714 = vpop.permute.xlu0 %4713
  %v4716 = vmul.f32 %v4679, %v2190
  %v4717 = vmul.f32 %v4684, %v2191
  %v4718 = vmul.f32 %v4689, %v2192
  %v4719 = vmul.f32 %v4694, %v2193
  %v4720 = vmul.f32 %v4699, %v2194
  %v4721 = vmul.f32 %v4704, %v2195
  %v4722 = vmul.f32 %v4709, %v2196
  %v4723 = vmul.f32 %v4714, %v2197
  %v4724 = vsel %vm179, %v4716, 0.0
  %v4725 = vsel %vm179, %v4717, 0.0
  %v4726 = vadd.f32 %v4724, %v4725
  %v4727 = vsel %vm179, %v4718, 0.0
  %v4728 = vadd.f32 %v4726, %v4727
  %v4729 = vsel %vm179, %v4719, 0.0
  %v4730 = vadd.f32 %v4728, %v4729
  %v4731 = vsel %vm179, %v4720, 0.0
  %v4732 = vadd.f32 %v4730, %v4731
  %v4733 = vsel %vm179, %v4721, 0.0
  %v4734 = vadd.f32 %v4732, %v4733
  %v4735 = vsel %vm179, %v4722, 0.0
  %v4736 = vadd.f32 %v4734, %v4735
  %v4737 = vsel %vm179, %v4723, 0.0
  %v4738 = vadd.f32 %v4736, %v4737
  %v4740 = vsel %vm179, %v4738, 0
  %4742 = vmatprep.subr.mxu0 0.0
  %4743 = vmatpush1.msra.mxu0 %v3049
  %4744 = vmatprep.subr.mxu0 0.0
  %4745 = vmatpush1.msra.mxu0 %v3050
  %4746 = vmatprep.subr.mxu0 0.0
  %4747 = vmatpush1.msra.mxu0 %v3051
  %4748 = vmatprep.subr.mxu0 0.0
  %4749 = vmatpush1.msra.mxu0 %v3052
  %4750 = vmatprep.subr.mxu0 0.0
  %4751 = vmatpush1.msra.mxu0 0.0
  %4752 = vmatprep.subr.mxu0 0.0
  %4753 = vmatpush1.msra.mxu0 0.0
  %4754 = vmatprep.subr.mxu0 0.0
  %4755 = vmatpush1.msra.mxu0 0.0
  %4756 = vmatprep.subr.mxu0 0.0
  %4757 = vmatpush1.msra.mxu0 0.0
  %4758 = vmatprep.subr.mxu0 0.0
  %4759 = vmatpush1.msra.mxu0 0.0
  %4760 = vmatprep.subr.mxu0 0.0
  %4761 = vmatpush1.msra.mxu0 0.0
  %4762 = vmatprep.subr.mxu0 0.0
  %4763 = vmatpush1.msra.mxu0 0.0
  %4764 = vmatprep.subr.mxu0 0.0
  %4765 = vmatpush1.msra.mxu0 0.0
  %4766 = vmatprep.subr.mxu0 0.0
  %4767 = vmatpush1.msra.mxu0 0.0
  %4768 = vmatprep.subr.mxu0 0.0
  %4769 = vmatpush1.msra.mxu0 0.0
  %4770 = vmatprep.subr.mxu0 0.0
  %4771 = vmatpush1.msra.mxu0 0.0
  %4772 = vmatprep.subr.mxu0 0.0
  %4773 = vmatpush1.msra.mxu0 0.0
  %4774 = vmatprep.subr.mxu0 0.0
  %4775 = vmatpush1.msra.mxu0 0.0
  %4776 = vmatprep.subr.mxu0 0.0
  %4777 = vmatpush1.msra.mxu0 0.0
  %4778 = vmatprep.subr.mxu0 0.0
  %4779 = vmatpush1.msra.mxu0 0.0
  %4780 = vmatprep.subr.mxu0 0.0
  %4781 = vmatpush1.msra.mxu0 0.0
  %4782 = vmatprep.subr.mxu0 0.0
  %4783 = vmatpush1.msra.mxu0 0.0
  %4784 = vmatprep.subr.mxu0 0.0
  %4785 = vmatpush1.msra.mxu0 0.0
  %4786 = vmatprep.subr.mxu0 0.0
  %4787 = vmatpush1.msra.mxu0 0.0
  %4788 = vmatprep.subr.mxu0 0.0
  %4789 = vmatpush1.msra.mxu0 0.0
  %4790 = vmatprep.subr.mxu0 0.0
  %4791 = vmatpush1.msra.mxu0 0.0
  %4792 = vmatprep.subr.mxu0 0.0
  %4793 = vmatpush1.msra.mxu0 0.0
  %4794 = vmatprep.subr.mxu0 0.0
  %4795 = vmatpush1.msra.mxu0 0.0
  %4796 = vmatprep.subr.mxu0 0.0
  %4797 = vmatpush1.msra.mxu0 0.0
  %4798 = vmatprep.subr.mxu0 0.0
  %4799 = vmatpush1.msra.mxu0 0.0
  %4800 = vmatprep.subr.mxu0 0.0
  %4801 = vmatpush1.msra.mxu0 0.0
  %4802 = vmatprep.subr.mxu0 0.0
  %4803 = vmatpush1.msra.mxu0 0.0
  %4804 = vmatprep.subr.mxu0 0.0
  %4805 = vmatpush1.msra.mxu0 0.0
  %4806 = vmatprep.mubr.f32.mxu0 0.0
  %4807 = vmatmul.mubr.f32.gmra.mrb[0].mxu0 %v4740
  %v4808 = vpop.f32.mrb[0].mxu0
  %v4809 = vadd.f32 %v3472, %v4808
  %v4810 = vpop.f32.mrb[0].mxu0
  %4811 = vdwg.mxu0
  %4812 = vmatprep.subr.mxu0 0.0
  %4813 = vmatpush1.msra.mxu0 %v3053
  %4814 = vmatprep.subr.mxu0 0.0
  %4815 = vmatpush1.msra.mxu0 %v3054
  %4816 = vmatprep.subr.mxu0 0.0
  %4817 = vmatpush1.msra.mxu0 %v3055
  %4818 = vmatprep.subr.mxu0 0.0
  %4819 = vmatpush1.msra.mxu0 %v3056
  %4820 = vmatprep.subr.mxu0 0.0
  %4821 = vmatpush1.msra.mxu0 0.0
  %4822 = vmatprep.subr.mxu0 0.0
  %4823 = vmatpush1.msra.mxu0 0.0
  %4824 = vmatprep.subr.mxu0 0.0
  %4825 = vmatpush1.msra.mxu0 0.0
  %4826 = vmatprep.subr.mxu0 0.0
  %4827 = vmatpush1.msra.mxu0 0.0
  %4828 = vmatprep.subr.mxu0 0.0
  %4829 = vmatpush1.msra.mxu0 0.0
  %4830 = vmatprep.subr.mxu0 0.0
  %4831 = vmatpush1.msra.mxu0 0.0
  %4832 = vmatprep.subr.mxu0 0.0
  %4833 = vmatpush1.msra.mxu0 0.0
  %4834 = vmatprep.subr.mxu0 0.0
  %4835 = vmatpush1.msra.mxu0 0.0
  %4836 = vmatprep.subr.mxu0 0.0
  %4837 = vmatpush1.msra.mxu0 0.0
  %4838 = vmatprep.subr.mxu0 0.0
  %4839 = vmatpush1.msra.mxu0 0.0
  %4840 = vmatprep.subr.mxu0 0.0
  %4841 = vmatpush1.msra.mxu0 0.0
  %4842 = vmatprep.subr.mxu0 0.0
  %4843 = vmatpush1.msra.mxu0 0.0
  %4844 = vmatprep.subr.mxu0 0.0
  %4845 = vmatpush1.msra.mxu0 0.0
  %4846 = vmatprep.subr.mxu0 0.0
  %4847 = vmatpush1.msra.mxu0 0.0
  %4848 = vmatprep.subr.mxu0 0.0
  %4849 = vmatpush1.msra.mxu0 0.0
  %4850 = vmatprep.subr.mxu0 0.0
  %4851 = vmatpush1.msra.mxu0 0.0
  %4852 = vmatprep.subr.mxu0 0.0
  %4853 = vmatpush1.msra.mxu0 0.0
  %4854 = vmatprep.subr.mxu0 0.0
  %4855 = vmatpush1.msra.mxu0 0.0
  %4856 = vmatprep.subr.mxu0 0.0
  %4857 = vmatpush1.msra.mxu0 0.0
  %4858 = vmatprep.subr.mxu0 0.0
  %4859 = vmatpush1.msra.mxu0 0.0
  %4860 = vmatprep.subr.mxu0 0.0
  %4861 = vmatpush1.msra.mxu0 0.0
  %4862 = vmatprep.subr.mxu0 0.0
  %4863 = vmatpush1.msra.mxu0 0.0
  %4864 = vmatprep.subr.mxu0 0.0
  %4865 = vmatpush1.msra.mxu0 0.0
  %4866 = vmatprep.subr.mxu0 0.0
  %4867 = vmatpush1.msra.mxu0 0.0
  %4868 = vmatprep.subr.mxu0 0.0
  %4869 = vmatpush1.msra.mxu0 0.0
  %4870 = vmatprep.subr.mxu0 0.0
  %4871 = vmatpush1.msra.mxu0 0.0
  %4872 = vmatprep.subr.mxu0 0.0
  %4873 = vmatpush1.msra.mxu0 0.0
  %4874 = vmatprep.subr.mxu0 0.0
  %4875 = vmatpush1.msra.mxu0 0.0
  %4876 = vmatprep.mubr.f32.mxu0 0.0
  %4877 = vmatmul.mubr.f32.gmra.mrb[0].mxu0 %v4476
  %v4878 = vpop.f32.mrb[0].mxu0
  %v4879 = vadd.f32 0.0, %v4878
  %v4880 = vpop.f32.mrb[0].mxu0
  %4881 = vdwg.mxu0
  %v4882 = vadd.f32 %v4809, %v4879
  %v4883 = vxor.u32 %v4882, 2147483648
  %v4884 = vmul.f32 %v4883, 1.442695
  %v4885 = vpow.pop %v4884
  %v4886 = vadd.f32 %v4885, 1.0
  %v4887 = vrcp.pop %v4886
  %v4888 = vmul.f32 1.0, %v4887
  %4890 = vrot.lane.b32.xlu0 %v4879, 96
  %v4891 = vpop.permute.xlu0 %4890
  %v4893 = vmul.f32 %v4888, %v4891
  %4895 = vrot.lane.b32.xlu0 %v4893, 32
  %v4896 = vpop.permute.xlu0 %4895
  %v4898 = vadd.f32 %v4809, %v4896
  %v4899 = vtanh.pop %v4898
  %v4900 = vsub.f32 1.0, %v4888
  %v4901 = vmul.f32 %v4900, %v4474
  %4903 = vrot.lane.b32.xlu0 %v4899, 64
  %v4904 = vpop.permute.xlu0 %4903
  %v4906 = vmul.f32 %v4888, %v4904
  %v4907 = vadd.f32 %v4901, %v4906
  %v4908 = vmul.f32 %v4464, %v4907
  %v4909 = vmul.f32 %v4471, %v4474
  %v4910 = vadd.f32 %v4908, %v4909
  %4911 = vrot.lane.b32.xlu0 %v4738, 32
  %v4912 = vpop.permute.xlu0 %4911
  %v4914 = vsel %vm179, %v4910, %v4912
  %v4916 = vsel %vm3650, %v4914, 0
  %4918 = vmatprep.subr.mxu0 0.0
  %4919 = vmatpush1.msra.mxu0 %v3065
  %4920 = vmatprep.subr.mxu0 0.0
  %4921 = vmatpush1.msra.mxu0 %v3066
  %4922 = vmatprep.subr.mxu0 0.0
  %4923 = vmatpush1.msra.mxu0 %v3067
  %4924 = vmatprep.subr.mxu0 0.0
  %4925 = vmatpush1.msra.mxu0 %v3068
  %4926 = vmatprep.subr.mxu0 0.0
  %4927 = vmatpush1.msra.mxu0 %v3069
  %4928 = vmatprep.subr.mxu0 0.0
  %4929 = vmatpush1.msra.mxu0 %v3070
  %4930 = vmatprep.subr.mxu0 0.0
  %4931 = vmatpush1.msra.mxu0 %v3071
  %4932 = vmatprep.subr.mxu0 0.0
  %4933 = vmatpush1.msra.mxu0 %v3072
  %4934 = vmatprep.subr.mxu0 0.0
  %4935 = vmatpush1.msra.mxu0 0.0
  %4936 = vmatprep.subr.mxu0 0.0
  %4937 = vmatpush1.msra.mxu0 0.0
  %4938 = vmatprep.subr.mxu0 0.0
  %4939 = vmatpush1.msra.mxu0 0.0
  %4940 = vmatprep.subr.mxu0 0.0
  %4941 = vmatpush1.msra.mxu0 0.0
  %4942 = vmatprep.subr.mxu0 0.0
  %4943 = vmatpush1.msra.mxu0 0.0
  %4944 = vmatprep.subr.mxu0 0.0
  %4945 = vmatpush1.msra.mxu0 0.0
  %4946 = vmatprep.subr.mxu0 0.0
  %4947 = vmatpush1.msra.mxu0 0.0
  %4948 = vmatprep.subr.mxu0 0.0
  %4949 = vmatpush1.msra.mxu0 0.0
  %4950 = vmatprep.subr.mxu0 0.0
  %4951 = vmatpush1.msra.mxu0 0.0
  %4952 = vmatprep.subr.mxu0 0.0
  %4953 = vmatpush1.msra.mxu0 0.0
  %4954 = vmatprep.subr.mxu0 0.0
  %4955 = vmatpush1.msra.mxu0 0.0
  %4956 = vmatprep.subr.mxu0 0.0
  %4957 = vmatpush1.msra.mxu0 0.0
  %4958 = vmatprep.subr.mxu0 0.0
  %4959 = vmatpush1.msra.mxu0 0.0
  %4960 = vmatprep.subr.mxu0 0.0
  %4961 = vmatpush1.msra.mxu0 0.0
  %4962 = vmatprep.subr.mxu0 0.0
  %4963 = vmatpush1.msra.mxu0 0.0
  %4964 = vmatprep.subr.mxu0 0.0
  %4965 = vmatpush1.msra.mxu0 0.0
  %4966 = vmatprep.subr.mxu0 0.0
  %4967 = vmatpush1.msra.mxu0 0.0
  %4968 = vmatprep.subr.mxu0 0.0
  %4969 = vmatpush1.msra.mxu0 0.0
  %4970 = vmatprep.subr.mxu0 0.0
  %4971 = vmatpush1.msra.mxu0 0.0
  %4972 = vmatprep.subr.mxu0 0.0
  %4973 = vmatpush1.msra.mxu0 0.0
  %4974 = vmatprep.subr.mxu0 0.0
  %4975 = vmatpush1.msra.mxu0 0.0
  %4976 = vmatprep.subr.mxu0 0.0
  %4977 = vmatpush1.msra.mxu0 0.0
  %4978 = vmatprep.subr.mxu0 0.0
  %4979 = vmatpush1.msra.mxu0 0.0
  %4980 = vmatprep.subr.mxu0 0.0
  %4981 = vmatpush1.msra.mxu0 0.0
  %4982 = vmatprep.mubr.f32.mxu0 0.0
  %4983 = vmatmul.mubr.f32.gmra.mrb[0].mxu0 %v4916
  %v4984 = vpop.f32.mrb[0].mxu0
  %v4985 = vadd.f32 %v3027, %v4984
  %v4986 = vpop.f32.mrb[0].mxu0
  %4987 = vdwg.mxu0
  %4989 = vrot.lane.b32.xlu0 %v4985, 96
  %v4990 = vpop.permute.xlu0 %4989
  %v4992 = vmax.f32 %v4985, %v4990
  %v4993 = vmul.f32 %v4992, %v4464
  %v4995 = vsel %vm179, %v4910, 0
  %4997 = vmatprep.subr.mxu0 0.0
  %4998 = vmatpush1.msra.mxu0 %v3045
  %4999 = vmatprep.subr.mxu0 0.0
  %5000 = vmatpush1.msra.mxu0 %v3046
  %5001 = vmatprep.subr.mxu0 0.0
  %5002 = vmatpush1.msra.mxu0 %v3047
  %5003 = vmatprep.subr.mxu0 0.0
  %5004 = vmatpush1.msra.mxu0 %v3048
  %5005 = vmatprep.subr.mxu0 0.0
  %5006 = vmatpush1.msra.mxu0 0.0
  %5007 = vmatprep.subr.mxu0 0.0
  %5008 = vmatpush1.msra.mxu0 0.0
  %5009 = vmatprep.subr.mxu0 0.0
  %5010 = vmatpush1.msra.mxu0 0.0
  %5011 = vmatprep.subr.mxu0 0.0
  %5012 = vmatpush1.msra.mxu0 0.0
  %5013 = vmatprep.subr.mxu0 0.0
  %5014 = vmatpush1.msra.mxu0 0.0
  %5015 = vmatprep.subr.mxu0 0.0
  %5016 = vmatpush1.msra.mxu0 0.0
  %5017 = vmatprep.subr.mxu0 0.0
  %5018 = vmatpush1.msra.mxu0 0.0
  %5019 = vmatprep.subr.mxu0 0.0
  %5020 = vmatpush1.msra.mxu0 0.0
  %5021 = vmatprep.subr.mxu0 0.0
  %5022 = vmatpush1.msra.mxu0 0.0
  %5023 = vmatprep.subr.mxu0 0.0
  %5024 = vmatpush1.msra.mxu0 0.0
  %5025 = vmatprep.subr.mxu0 0.0
  %5026 = vmatpush1.msra.mxu0 0.0
  %5027 = vmatprep.subr.mxu0 0.0
  %5028 = vmatpush1.msra.mxu0 0.0
  %5029 = vmatprep.subr.mxu0 0.0
  %5030 = vmatpush1.msra.mxu0 0.0
  %5031 = vmatprep.subr.mxu0 0.0
  %5032 = vmatpush1.msra.mxu0 0.0
  %5033 = vmatprep.subr.mxu0 0.0
  %5034 = vmatpush1.msra.mxu0 0.0
  %5035 = vmatprep.subr.mxu0 0.0
  %5036 = vmatpush1.msra.mxu0 0.0
  %5037 = vmatprep.subr.mxu0 0.0
  %5038 = vmatpush1.msra.mxu0 0.0
  %5039 = vmatprep.subr.mxu0 0.0
  %5040 = vmatpush1.msra.mxu0 0.0
  %5041 = vmatprep.subr.mxu0 0.0
  %5042 = vmatpush1.msra.mxu0 0.0
  %5043 = vmatprep.subr.mxu0 0.0
  %5044 = vmatpush1.msra.mxu0 0.0
  %5045 = vmatprep.subr.mxu0 0.0
  %5046 = vmatpush1.msra.mxu0 0.0
  %5047 = vmatprep.subr.mxu0 0.0
  %5048 = vmatpush1.msra.mxu0 0.0
  %5049 = vmatprep.subr.mxu0 0.0
  %5050 = vmatpush1.msra.mxu0 0.0
  %5051 = vmatprep.subr.mxu0 0.0
  %5052 = vmatpush1.msra.mxu0 0.0
  %5053 = vmatprep.subr.mxu0 0.0
  %5054 = vmatpush1.msra.mxu0 0.0
  %5055 = vmatprep.subr.mxu0 0.0
  %5056 = vmatpush1.msra.mxu0 0.0
  %5057 = vmatprep.subr.mxu0 0.0
  %5058 = vmatpush1.msra.mxu0 0.0
  %5059 = vmatprep.subr.mxu0 0.0
  %5060 = vmatpush1.msra.mxu0 0.0
  %5061 = vmatprep.mubr.f32.mxu0 0.0
  %5062 = vmatmul.mubr.f32.gmra.mrb[0].mxu0 %v4995
  %v5063 = vpop.f32.mrb[0].mxu0
  %v5064 = vadd.f32 0.0, %v5063
  %v5065 = vpop.f32.mrb[0].mxu0
  %5066 = vdwg.mxu0
  %v5067 = vadd.f32 %v2936, %v5064
  %v5068 = vxor.u32 %v5067, 2147483648
  %v5069 = vmul.f32 %v5068, 1.442695
  %v5070 = vpow.pop %v5069
  %v5071 = vadd.f32 %v5070, 1.0
  %v5072 = vrcp.pop %v5071
  %v5073 = vmul.f32 1.0, %v5072
  %5075 = vrot.lane.b32.xlu0 %v5064, 96
  %v5076 = vpop.permute.xlu0 %5075
  %v5078 = vmul.f32 %v5073, %v5076
  %5080 = vrot.lane.b32.xlu0 %v5078, 32
  %v5081 = vpop.permute.xlu0 %5080
  %v5083 = vadd.f32 %v2936, %v5081
  %v5084 = vtanh.pop %v5083
  %v5085 = vsub.f32 1.0, %v5073
  %v5086 = vmul.f32 %v5085, %v4910
  %5088 = vrot.lane.b32.xlu0 %v5084, 64
  %v5089 = vpop.permute.xlu0 %5088
  %v5091 = vmul.f32 %v5073, %v5089
  %v5092 = vadd.f32 %v5086, %v5091
  %5094 = vset.pattern.permute.xlu0 0
  %5095 = vperm.xlu0 %5094, %v157
  %v5096 = vpop.permute.xlu0 %5095
  %v5098 = vmul.f32 %v5096, %v5092
  %v5099 = vsub.f32 1.0, %v157
  %5101 = vset.pattern.permute.xlu0 0
  %5102 = vperm.xlu0 %5101, %v5099
  %v5103 = vpop.permute.xlu0 %5102
  %v5105 = vmul.f32 %v5103, %v4910
  %v5106 = vadd.f32 %v5098, %v5105
  %v5108 = vsel %vm179, %v5106, 0
  %5110 = vmatprep.subr.mxu0 0.0
  %5111 = vmatpush1.msra.mxu0 %v3058
  %5112 = vmatprep.subr.mxu0 0.0
  %5113 = vmatpush1.msra.mxu0 %v3059
  %5114 = vmatprep.subr.mxu0 0.0
  %5115 = vmatpush1.msra.mxu0 %v3060
  %5116 = vmatprep.subr.mxu0 0.0
  %5117 = vmatpush1.msra.mxu0 %v3061
  %5118 = vmatprep.subr.mxu0 0.0
  %5119 = vmatpush1.msra.mxu0 0.0
  %5120 = vmatprep.subr.mxu0 0.0
  %5121 = vmatpush1.msra.mxu0 0.0
  %5122 = vmatprep.subr.mxu0 0.0
  %5123 = vmatpush1.msra.mxu0 0.0
  %5124 = vmatprep.subr.mxu0 0.0
  %5125 = vmatpush1.msra.mxu0 0.0
  %5126 = vmatprep.subr.mxu0 0.0
  %5127 = vmatpush1.msra.mxu0 0.0
  %5128 = vmatprep.subr.mxu0 0.0
  %5129 = vmatpush1.msra.mxu0 0.0
  %5130 = vmatprep.subr.mxu0 0.0
  %5131 = vmatpush1.msra.mxu0 0.0
  %5132 = vmatprep.subr.mxu0 0.0
  %5133 = vmatpush1.msra.mxu0 0.0
  %5134 = vmatprep.subr.mxu0 0.0
  %5135 = vmatpush1.msra.mxu0 0.0
  %5136 = vmatprep.subr.mxu0 0.0
  %5137 = vmatpush1.msra.mxu0 0.0
  %5138 = vmatprep.subr.mxu0 0.0
  %5139 = vmatpush1.msra.mxu0 0.0
  %5140 = vmatprep.subr.mxu0 0.0
  %5141 = vmatpush1.msra.mxu0 0.0
  %5142 = vmatprep.subr.mxu0 0.0
  %5143 = vmatpush1.msra.mxu0 0.0
  %5144 = vmatprep.subr.mxu0 0.0
  %5145 = vmatpush1.msra.mxu0 0.0
  %5146 = vmatprep.subr.mxu0 0.0
  %5147 = vmatpush1.msra.mxu0 0.0
  %5148 = vmatprep.subr.mxu0 0.0
  %5149 = vmatpush1.msra.mxu0 0.0
  %5150 = vmatprep.subr.mxu0 0.0
  %5151 = vmatpush1.msra.mxu0 0.0
  %5152 = vmatprep.subr.mxu0 0.0
  %5153 = vmatpush1.msra.mxu0 0.0
  %5154 = vmatprep.subr.mxu0 0.0
  %5155 = vmatpush1.msra.mxu0 0.0
  %5156 = vmatprep.subr.mxu0 0.0
  %5157 = vmatpush1.msra.mxu0 0.0
  %5158 = vmatprep.subr.mxu0 0.0
  %5159 = vmatpush1.msra.mxu0 0.0
  %5160 = vmatprep.subr.mxu0 0.0
  %5161 = vmatpush1.msra.mxu0 0.0
  %5162 = vmatprep.subr.mxu0 0.0
  %5163 = vmatpush1.msra.mxu0 0.0
  %5164 = vmatprep.subr.mxu0 0.0
  %5165 = vmatpush1.msra.mxu0 0.0
  %5166 = vmatprep.subr.mxu0 0.0
  %5167 = vmatpush1.msra.mxu0 0.0
  %5168 = vmatprep.subr.mxu0 0.0
  %5169 = vmatpush1.msra.mxu0 0.0
  %5170 = vmatprep.subr.mxu0 0.0
  %5171 = vmatpush1.msra.mxu0 0.0
  %5172 = vmatprep.subr.mxu0 0.0
  %5173 = vmatpush1.msra.mxu0 0.0
  %5174 = vmatprep.mubr.f32.mxu0 0.0
  %5175 = vmatmul.mubr.f32.gmra.mrb[0].mxu0 %v5108
  %v5176 = vpop.f32.mrb[0].mxu0
  %v5177 = vadd.f32 %v3190, %v5176
  %v5178 = vpop.f32.mrb[0].mxu0
  %5179 = vdwg.mxu0
  %v5180 = vadd.f32 %v2300, %v5177
  %v5181 = vadd.f32 %v2305, %v5177
  %v5182 = vadd.f32 %v2310, %v5177
  %v5183 = vadd.f32 %v2315, %v5177
  %v5184 = vadd.f32 %v2320, %v5177
  %v5185 = vadd.f32 %v2325, %v5177
  %v5186 = vadd.f32 %v2330, %v5177
  %v5187 = vadd.f32 %v2335, %v5177
  %v5188 = vtanh.pop %v5180
  %v5189 = vtanh.pop %v5181
  %v5190 = vtanh.pop %v5182
  %v5191 = vtanh.pop %v5183
  %v5192 = vtanh.pop %v5184
  %v5193 = vtanh.pop %v5185
  %v5194 = vtanh.pop %v5186
  %v5195 = vtanh.pop %v5187
  %v5196 = vmul.f32 %v5188, %v3285
  %v5197 = vmul.f32 %v5189, %v3285
  %v5198 = vmul.f32 %v5190, %v3285
  %v5199 = vmul.f32 %v5191, %v3285
  %v5200 = vmul.f32 %v5192, %v3285
  %v5201 = vmul.f32 %v5193, %v3285
  %v5202 = vmul.f32 %v5194, %v3285
  %v5203 = vmul.f32 %v5195, %v3285
  %v5204 = vsel %vm179, %v5196, 0.0
  %5205 = vadd.xlane.f32.xlu0 %v5204
  %v5206 = vpop.xlane.xlu0 %5205
  %v5207 = vsel %vm179, %v5197, 0.0
  %5208 = vadd.xlane.f32.xlu0 %v5207
  %v5209 = vpop.xlane.xlu0 %5208
  %v5210 = vsel %vm179, %v5198, 0.0
  %5211 = vadd.xlane.f32.xlu0 %v5210
  %v5212 = vpop.xlane.xlu0 %5211
  %v5213 = vsel %vm179, %v5199, 0.0
  %5214 = vadd.xlane.f32.xlu0 %v5213
  %v5215 = vpop.xlane.xlu0 %5214
  %v5216 = vsel %vm179, %v5200, 0.0
  %5217 = vadd.xlane.f32.xlu0 %v5216
  %v5218 = vpop.xlane.xlu0 %5217
  %v5219 = vsel %vm179, %v5201, 0.0
  %5220 = vadd.xlane.f32.xlu0 %v5219
  %v5221 = vpop.xlane.xlu0 %5220
  %v5222 = vsel %vm179, %v5202, 0.0
  %5223 = vadd.xlane.f32.xlu0 %v5222
  %v5224 = vpop.xlane.xlu0 %5223
  %v5225 = vsel %vm179, %v5203, 0.0
  %5226 = vadd.xlane.f32.xlu0 %v5225
  %v5227 = vpop.xlane.xlu0 %5226
  %v5228 = vadd.f32 %v5206, %v3323
  %v5229 = vadd.f32 %v5209, %v3323
  %v5230 = vadd.f32 %v5212, %v3323
  %v5231 = vadd.f32 %v5215, %v3323
  %v5232 = vadd.f32 %v5218, %v3323
  %v5233 = vadd.f32 %v5221, %v3323
  %v5234 = vadd.f32 %v5224, %v3323
  %v5235 = vadd.f32 %v5227, %v3323
  %v5236 = vsel %vm2361, %v5228, -inf
  %v5237 = vsel %vm2361, %v5229, -inf
  %v5238 = vsel %vm2361, %v5230, -inf
  %v5239 = vsel %vm2361, %v5231, -inf
  %v5240 = vsel %vm2361, %v5232, -inf
  %v5241 = vmax.f32 %v5236, %v5240
  %v5242 = vsel %vm2361, %v5233, -inf
  %v5243 = vmax.f32 %v5237, %v5242
  %v5244 = vsel %vm2361, %v5234, -inf
  %v5245 = vmax.f32 %v5238, %v5244
  %v5246 = vsel %vm2361, %v5235, -inf
  %v5247 = vmax.f32 %v5239, %v5246
  %v5248 = vmax.f32 %v5241, %v5243
  %v5249 = vmax.f32 %v5245, %v5247
  %v5250 = vmax.f32 %v5248, %v5249
  %v5251 = vsub.f32 %v5228, %v5250
  %v5252 = vsub.f32 %v5229, %v5250
  %v5253 = vsub.f32 %v5230, %v5250
  %v5254 = vsub.f32 %v5231, %v5250
  %v5255 = vsub.f32 %v5232, %v5250
  %v5256 = vsub.f32 %v5233, %v5250
  %v5257 = vsub.f32 %v5234, %v5250
  %v5258 = vsub.f32 %v5235, %v5250
  %v5259 = vmul.f32 %v5251, 1.442695
  %v5260 = vpow.pop %v5259
  %v5261 = vmul.f32 %v5252, 1.442695
  %v5262 = vpow.pop %v5261
  %v5263 = vmul.f32 %v5253, 1.442695
  %v5264 = vpow.pop %v5263
  %v5265 = vmul.f32 %v5254, 1.442695
  %v5266 = vpow.pop %v5265
  %v5267 = vmul.f32 %v5255, 1.442695
  %v5268 = vpow.pop %v5267
  %v5269 = vmul.f32 %v5256, 1.442695
  %v5270 = vpow.pop %v5269
  %v5271 = vmul.f32 %v5257, 1.442695
  %v5272 = vpow.pop %v5271
  %v5273 = vmul.f32 %v5258, 1.442695
  %v5274 = vpow.pop %v5273
  %v5275 = vmul.f32 %v5260, %v140
  %v5276 = vmul.f32 %v5262, %v141
  %v5277 = vmul.f32 %v5264, %v142
  %v5278 = vmul.f32 %v5266, %v143
  %v5279 = vmul.f32 %v5268, %v144
  %v5280 = vmul.f32 %v5270, %v145
  %v5281 = vmul.f32 %v5272, %v146
  %v5282 = vmul.f32 %v5274, %v147
  %v5283 = vsel %vm2361, %v5275, 0.0
  %v5284 = vsel %vm2361, %v5276, 0.0
  %v5285 = vadd.f32 %v5283, %v5284
  %v5286 = vsel %vm2361, %v5277, 0.0
  %v5287 = vadd.f32 %v5285, %v5286
  %v5288 = vsel %vm2361, %v5278, 0.0
  %v5289 = vadd.f32 %v5287, %v5288
  %v5290 = vsel %vm2361, %v5279, 0.0
  %v5291 = vadd.f32 %v5289, %v5290
  %v5292 = vsel %vm2361, %v5280, 0.0
  %v5293 = vadd.f32 %v5291, %v5292
  %v5294 = vsel %vm2361, %v5281, 0.0
  %v5295 = vadd.f32 %v5293, %v5294
  %v5296 = vsel %vm2361, %v5282, 0.0
  %v5297 = vadd.f32 %v5295, %v5296
  %v5298 = vadd.f32 %v5297, 1e-20
  %v5299 = vrcp.pop %v5298
  %v5300 = vmul.f32 %v5275, %v5299
  %v5301 = vmul.f32 %v5276, %v5299
  %v5302 = vmul.f32 %v5277, %v5299
  %v5303 = vmul.f32 %v5278, %v5299
  %v5304 = vmul.f32 %v5279, %v5299
  %v5305 = vmul.f32 %v5280, %v5299
  %v5306 = vmul.f32 %v5281, %v5299
  %v5307 = vmul.f32 %v5282, %v5299
  %5309 = vset.pattern.permute.xlu0 0
  %5310 = vperm.xlu0 %5309, %v5300
  %v5311 = vpop.permute.xlu0 %5310
  %5314 = vset.pattern.permute.xlu0 0
  %5315 = vperm.xlu0 %5314, %v5301
  %v5316 = vpop.permute.xlu0 %5315
  %5319 = vset.pattern.permute.xlu0 0
  %5320 = vperm.xlu0 %5319, %v5302
  %v5321 = vpop.permute.xlu0 %5320
  %5324 = vset.pattern.permute.xlu0 0
  %5325 = vperm.xlu0 %5324, %v5303
  %v5326 = vpop.permute.xlu0 %5325
  %5329 = vset.pattern.permute.xlu0 0
  %5330 = vperm.xlu0 %5329, %v5304
  %v5331 = vpop.permute.xlu0 %5330
  %5334 = vset.pattern.permute.xlu0 0
  %5335 = vperm.xlu0 %5334, %v5305
  %v5336 = vpop.permute.xlu0 %5335
  %5339 = vset.pattern.permute.xlu0 0
  %5340 = vperm.xlu0 %5339, %v5306
  %v5341 = vpop.permute.xlu0 %5340
  %5344 = vset.pattern.permute.xlu0 0
  %5345 = vperm.xlu0 %5344, %v5307
  %v5346 = vpop.permute.xlu0 %5345
  %v5348 = vmul.f32 %v5311, %v2190
  %v5349 = vmul.f32 %v5316, %v2191
  %v5350 = vmul.f32 %v5321, %v2192
  %v5351 = vmul.f32 %v5326, %v2193
  %v5352 = vmul.f32 %v5331, %v2194
  %v5353 = vmul.f32 %v5336, %v2195
  %v5354 = vmul.f32 %v5341, %v2196
  %v5355 = vmul.f32 %v5346, %v2197
  %v5356 = vsel %vm179, %v5348, 0.0
  %v5357 = vsel %vm179, %v5349, 0.0
  %v5358 = vadd.f32 %v5356, %v5357
  %v5359 = vsel %vm179, %v5350, 0.0
  %v5360 = vadd.f32 %v5358, %v5359
  %v5361 = vsel %vm179, %v5351, 0.0
  %v5362 = vadd.f32 %v5360, %v5361
  %v5363 = vsel %vm179, %v5352, 0.0
  %v5364 = vadd.f32 %v5362, %v5363
  %v5365 = vsel %vm179, %v5353, 0.0
  %v5366 = vadd.f32 %v5364, %v5365
  %v5367 = vsel %vm179, %v5354, 0.0
  %v5368 = vadd.f32 %v5366, %v5367
  %v5369 = vsel %vm179, %v5355, 0.0
  %v5370 = vadd.f32 %v5368, %v5369
  %v5372 = vsel %vm179, %v5370, 0
  %5374 = vmatprep.subr.mxu0 0.0
  %5375 = vmatpush1.msra.mxu0 %v3049
  %5376 = vmatprep.subr.mxu0 0.0
  %5377 = vmatpush1.msra.mxu0 %v3050
  %5378 = vmatprep.subr.mxu0 0.0
  %5379 = vmatpush1.msra.mxu0 %v3051
  %5380 = vmatprep.subr.mxu0 0.0
  %5381 = vmatpush1.msra.mxu0 %v3052
  %5382 = vmatprep.subr.mxu0 0.0
  %5383 = vmatpush1.msra.mxu0 0.0
  %5384 = vmatprep.subr.mxu0 0.0
  %5385 = vmatpush1.msra.mxu0 0.0
  %5386 = vmatprep.subr.mxu0 0.0
  %5387 = vmatpush1.msra.mxu0 0.0
  %5388 = vmatprep.subr.mxu0 0.0
  %5389 = vmatpush1.msra.mxu0 0.0
  %5390 = vmatprep.subr.mxu0 0.0
  %5391 = vmatpush1.msra.mxu0 0.0
  %5392 = vmatprep.subr.mxu0 0.0
  %5393 = vmatpush1.msra.mxu0 0.0
  %5394 = vmatprep.subr.mxu0 0.0
  %5395 = vmatpush1.msra.mxu0 0.0
  %5396 = vmatprep.subr.mxu0 0.0
  %5397 = vmatpush1.msra.mxu0 0.0
  %5398 = vmatprep.subr.mxu0 0.0
  %5399 = vmatpush1.msra.mxu0 0.0
  %5400 = vmatprep.subr.mxu0 0.0
  %5401 = vmatpush1.msra.mxu0 0.0
  %5402 = vmatprep.subr.mxu0 0.0
  %5403 = vmatpush1.msra.mxu0 0.0
  %5404 = vmatprep.subr.mxu0 0.0
  %5405 = vmatpush1.msra.mxu0 0.0
  %5406 = vmatprep.subr.mxu0 0.0
  %5407 = vmatpush1.msra.mxu0 0.0
  %5408 = vmatprep.subr.mxu0 0.0
  %5409 = vmatpush1.msra.mxu0 0.0
  %5410 = vmatprep.subr.mxu0 0.0
  %5411 = vmatpush1.msra.mxu0 0.0
  %5412 = vmatprep.subr.mxu0 0.0
  %5413 = vmatpush1.msra.mxu0 0.0
  %5414 = vmatprep.subr.mxu0 0.0
  %5415 = vmatpush1.msra.mxu0 0.0
  %5416 = vmatprep.subr.mxu0 0.0
  %5417 = vmatpush1.msra.mxu0 0.0
  %5418 = vmatprep.subr.mxu0 0.0
  %5419 = vmatpush1.msra.mxu0 0.0
  %5420 = vmatprep.subr.mxu0 0.0
  %5421 = vmatpush1.msra.mxu0 0.0
  %5422 = vmatprep.subr.mxu0 0.0
  %5423 = vmatpush1.msra.mxu0 0.0
  %5424 = vmatprep.subr.mxu0 0.0
  %5425 = vmatpush1.msra.mxu0 0.0
  %5426 = vmatprep.subr.mxu0 0.0
  %5427 = vmatpush1.msra.mxu0 0.0
  %5428 = vmatprep.subr.mxu0 0.0
  %5429 = vmatpush1.msra.mxu0 0.0
  %5430 = vmatprep.subr.mxu0 0.0
  %5431 = vmatpush1.msra.mxu0 0.0
  %5432 = vmatprep.subr.mxu0 0.0
  %5433 = vmatpush1.msra.mxu0 0.0
  %5434 = vmatprep.subr.mxu0 0.0
  %5435 = vmatpush1.msra.mxu0 0.0
  %5436 = vmatprep.subr.mxu0 0.0
  %5437 = vmatpush1.msra.mxu0 0.0
  %5438 = vmatprep.mubr.f32.mxu0 0.0
  %5439 = vmatmul.mubr.f32.gmra.mrb[0].mxu0 %v5372
  %v5440 = vpop.f32.mrb[0].mxu0
  %v5441 = vadd.f32 %v3472, %v5440
  %v5442 = vpop.f32.mrb[0].mxu0
  %5443 = vdwg.mxu0
  %5444 = vmatprep.subr.mxu0 0.0
  %5445 = vmatpush1.msra.mxu0 %v3053
  %5446 = vmatprep.subr.mxu0 0.0
  %5447 = vmatpush1.msra.mxu0 %v3054
  %5448 = vmatprep.subr.mxu0 0.0
  %5449 = vmatpush1.msra.mxu0 %v3055
  %5450 = vmatprep.subr.mxu0 0.0
  %5451 = vmatpush1.msra.mxu0 %v3056
  %5452 = vmatprep.subr.mxu0 0.0
  %5453 = vmatpush1.msra.mxu0 0.0
  %5454 = vmatprep.subr.mxu0 0.0
  %5455 = vmatpush1.msra.mxu0 0.0
  %5456 = vmatprep.subr.mxu0 0.0
  %5457 = vmatpush1.msra.mxu0 0.0
  %5458 = vmatprep.subr.mxu0 0.0
  %5459 = vmatpush1.msra.mxu0 0.0
  %5460 = vmatprep.subr.mxu0 0.0
  %5461 = vmatpush1.msra.mxu0 0.0
  %5462 = vmatprep.subr.mxu0 0.0
  %5463 = vmatpush1.msra.mxu0 0.0
  %5464 = vmatprep.subr.mxu0 0.0
  %5465 = vmatpush1.msra.mxu0 0.0
  %5466 = vmatprep.subr.mxu0 0.0
  %5467 = vmatpush1.msra.mxu0 0.0
  %5468 = vmatprep.subr.mxu0 0.0
  %5469 = vmatpush1.msra.mxu0 0.0
  %5470 = vmatprep.subr.mxu0 0.0
  %5471 = vmatpush1.msra.mxu0 0.0
  %5472 = vmatprep.subr.mxu0 0.0
  %5473 = vmatpush1.msra.mxu0 0.0
  %5474 = vmatprep.subr.mxu0 0.0
  %5475 = vmatpush1.msra.mxu0 0.0
  %5476 = vmatprep.subr.mxu0 0.0
  %5477 = vmatpush1.msra.mxu0 0.0
  %5478 = vmatprep.subr.mxu0 0.0
  %5479 = vmatpush1.msra.mxu0 0.0
  %5480 = vmatprep.subr.mxu0 0.0
  %5481 = vmatpush1.msra.mxu0 0.0
  %5482 = vmatprep.subr.mxu0 0.0
  %5483 = vmatpush1.msra.mxu0 0.0
  %5484 = vmatprep.subr.mxu0 0.0
  %5485 = vmatpush1.msra.mxu0 0.0
  %5486 = vmatprep.subr.mxu0 0.0
  %5487 = vmatpush1.msra.mxu0 0.0
  %5488 = vmatprep.subr.mxu0 0.0
  %5489 = vmatpush1.msra.mxu0 0.0
  %5490 = vmatprep.subr.mxu0 0.0
  %5491 = vmatpush1.msra.mxu0 0.0
  %5492 = vmatprep.subr.mxu0 0.0
  %5493 = vmatpush1.msra.mxu0 0.0
  %5494 = vmatprep.subr.mxu0 0.0
  %5495 = vmatpush1.msra.mxu0 0.0
  %5496 = vmatprep.subr.mxu0 0.0
  %5497 = vmatpush1.msra.mxu0 0.0
  %5498 = vmatprep.subr.mxu0 0.0
  %5499 = vmatpush1.msra.mxu0 0.0
  %5500 = vmatprep.subr.mxu0 0.0
  %5501 = vmatpush1.msra.mxu0 0.0
  %5502 = vmatprep.subr.mxu0 0.0
  %5503 = vmatpush1.msra.mxu0 0.0
  %5504 = vmatprep.subr.mxu0 0.0
  %5505 = vmatpush1.msra.mxu0 0.0
  %5506 = vmatprep.subr.mxu0 0.0
  %5507 = vmatpush1.msra.mxu0 0.0
  %5508 = vmatprep.mubr.f32.mxu0 0.0
  %5509 = vmatmul.mubr.f32.gmra.mrb[0].mxu0 %v5108
  %v5510 = vpop.f32.mrb[0].mxu0
  %v5511 = vadd.f32 0.0, %v5510
  %v5512 = vpop.f32.mrb[0].mxu0
  %5513 = vdwg.mxu0
  %v5514 = vadd.f32 %v5441, %v5511
  %v5515 = vxor.u32 %v5514, 2147483648
  %v5516 = vmul.f32 %v5515, 1.442695
  %v5517 = vpow.pop %v5516
  %v5518 = vadd.f32 %v5517, 1.0
  %v5519 = vrcp.pop %v5518
  %v5520 = vmul.f32 1.0, %v5519
  %5522 = vrot.lane.b32.xlu0 %v5511, 96
  %v5523 = vpop.permute.xlu0 %5522
  %v5525 = vmul.f32 %v5520, %v5523
  %5527 = vrot.lane.b32.xlu0 %v5525, 32
  %v5528 = vpop.permute.xlu0 %5527
  %v5530 = vadd.f32 %v5441, %v5528
  %v5531 = vtanh.pop %v5530
  %v5532 = vsub.f32 1.0, %v5520
  %v5533 = vmul.f32 %v5532, %v5106
  %5535 = vrot.lane.b32.xlu0 %v5531, 64
  %v5536 = vpop.permute.xlu0 %5535
  %v5538 = vmul.f32 %v5520, %v5536
  %v5539 = vadd.f32 %v5533, %v5538
  %v5540 = vmul.f32 %v5096, %v5539
  %v5541 = vmul.f32 %v5103, %v5106
  %v5542 = vadd.f32 %v5540, %v5541
  %5543 = vrot.lane.b32.xlu0 %v5370, 32
  %v5544 = vpop.permute.xlu0 %5543
  %v5546 = vsel %vm179, %v5542, %v5544
  %v5548 = vsel %vm3650, %v5546, 0
  %5550 = vmatprep.subr.mxu0 0.0
  %5551 = vmatpush1.msra.mxu0 %v3065
  %5552 = vmatprep.subr.mxu0 0.0
  %5553 = vmatpush1.msra.mxu0 %v3066
  %5554 = vmatprep.subr.mxu0 0.0
  %5555 = vmatpush1.msra.mxu0 %v3067
  %5556 = vmatprep.subr.mxu0 0.0
  %5557 = vmatpush1.msra.mxu0 %v3068
  %5558 = vmatprep.subr.mxu0 0.0
  %5559 = vmatpush1.msra.mxu0 %v3069
  %5560 = vmatprep.subr.mxu0 0.0
  %5561 = vmatpush1.msra.mxu0 %v3070
  %5562 = vmatprep.subr.mxu0 0.0
  %5563 = vmatpush1.msra.mxu0 %v3071
  %5564 = vmatprep.subr.mxu0 0.0
  %5565 = vmatpush1.msra.mxu0 %v3072
  %5566 = vmatprep.subr.mxu0 0.0
  %5567 = vmatpush1.msra.mxu0 0.0
  %5568 = vmatprep.subr.mxu0 0.0
  %5569 = vmatpush1.msra.mxu0 0.0
  %5570 = vmatprep.subr.mxu0 0.0
  %5571 = vmatpush1.msra.mxu0 0.0
  %5572 = vmatprep.subr.mxu0 0.0
  %5573 = vmatpush1.msra.mxu0 0.0
  %5574 = vmatprep.subr.mxu0 0.0
  %5575 = vmatpush1.msra.mxu0 0.0
  %5576 = vmatprep.subr.mxu0 0.0
  %5577 = vmatpush1.msra.mxu0 0.0
  %5578 = vmatprep.subr.mxu0 0.0
  %5579 = vmatpush1.msra.mxu0 0.0
  %5580 = vmatprep.subr.mxu0 0.0
  %5581 = vmatpush1.msra.mxu0 0.0
  %5582 = vmatprep.subr.mxu0 0.0
  %5583 = vmatpush1.msra.mxu0 0.0
  %5584 = vmatprep.subr.mxu0 0.0
  %5585 = vmatpush1.msra.mxu0 0.0
  %5586 = vmatprep.subr.mxu0 0.0
  %5587 = vmatpush1.msra.mxu0 0.0
  %5588 = vmatprep.subr.mxu0 0.0
  %5589 = vmatpush1.msra.mxu0 0.0
  %5590 = vmatprep.subr.mxu0 0.0
  %5591 = vmatpush1.msra.mxu0 0.0
  %5592 = vmatprep.subr.mxu0 0.0
  %5593 = vmatpush1.msra.mxu0 0.0
  %5594 = vmatprep.subr.mxu0 0.0
  %5595 = vmatpush1.msra.mxu0 0.0
  %5596 = vmatprep.subr.mxu0 0.0
  %5597 = vmatpush1.msra.mxu0 0.0
  %5598 = vmatprep.subr.mxu0 0.0
  %5599 = vmatpush1.msra.mxu0 0.0
  %5600 = vmatprep.subr.mxu0 0.0
  %5601 = vmatpush1.msra.mxu0 0.0
  %5602 = vmatprep.subr.mxu0 0.0
  %5603 = vmatpush1.msra.mxu0 0.0
  %5604 = vmatprep.subr.mxu0 0.0
  %5605 = vmatpush1.msra.mxu0 0.0
  %5606 = vmatprep.subr.mxu0 0.0
  %5607 = vmatpush1.msra.mxu0 0.0
  %5608 = vmatprep.subr.mxu0 0.0
  %5609 = vmatpush1.msra.mxu0 0.0
  %5610 = vmatprep.subr.mxu0 0.0
  %5611 = vmatpush1.msra.mxu0 0.0
  %5612 = vmatprep.subr.mxu0 0.0
  %5613 = vmatpush1.msra.mxu0 0.0
  %5614 = vmatprep.mubr.f32.mxu0 0.0
  %5615 = vmatmul.mubr.f32.gmra.mrb[0].mxu0 %v5548
  %v5616 = vpop.f32.mrb[0].mxu0
  %v5617 = vadd.f32 %v3032, %v5616
  %v5618 = vpop.f32.mrb[0].mxu0
  %5619 = vdwg.mxu0
  %5621 = vrot.lane.b32.xlu0 %v5617, 96
  %v5622 = vpop.permute.xlu0 %5621
  %v5624 = vmax.f32 %v5617, %v5622
  %v5625 = vmul.f32 %v5624, %v5096
  %v5627 = vsel %vm179, %v5542, 0
  %5629 = vmatprep.subr.mxu0 0.0
  %5630 = vmatpush1.msra.mxu0 %v3045
  %5631 = vmatprep.subr.mxu0 0.0
  %5632 = vmatpush1.msra.mxu0 %v3046
  %5633 = vmatprep.subr.mxu0 0.0
  %5634 = vmatpush1.msra.mxu0 %v3047
  %5635 = vmatprep.subr.mxu0 0.0
  %5636 = vmatpush1.msra.mxu0 %v3048
  %5637 = vmatprep.subr.mxu0 0.0
  %5638 = vmatpush1.msra.mxu0 0.0
  %5639 = vmatprep.subr.mxu0 0.0
  %5640 = vmatpush1.msra.mxu0 0.0
  %5641 = vmatprep.subr.mxu0 0.0
  %5642 = vmatpush1.msra.mxu0 0.0
  %5643 = vmatprep.subr.mxu0 0.0
  %5644 = vmatpush1.msra.mxu0 0.0
  %5645 = vmatprep.subr.mxu0 0.0
  %5646 = vmatpush1.msra.mxu0 0.0
  %5647 = vmatprep.subr.mxu0 0.0
  %5648 = vmatpush1.msra.mxu0 0.0
  %5649 = vmatprep.subr.mxu0 0.0
  %5650 = vmatpush1.msra.mxu0 0.0
  %5651 = vmatprep.subr.mxu0 0.0
  %5652 = vmatpush1.msra.mxu0 0.0
  %5653 = vmatprep.subr.mxu0 0.0
  %5654 = vmatpush1.msra.mxu0 0.0
  %5655 = vmatprep.subr.mxu0 0.0
  %5656 = vmatpush1.msra.mxu0 0.0
  %5657 = vmatprep.subr.mxu0 0.0
  %5658 = vmatpush1.msra.mxu0 0.0
  %5659 = vmatprep.subr.mxu0 0.0
  %5660 = vmatpush1.msra.mxu0 0.0
  %5661 = vmatprep.subr.mxu0 0.0
  %5662 = vmatpush1.msra.mxu0 0.0
  %5663 = vmatprep.subr.mxu0 0.0
  %5664 = vmatpush1.msra.mxu0 0.0
  %5665 = vmatprep.subr.mxu0 0.0
  %5666 = vmatpush1.msra.mxu0 0.0
  %5667 = vmatprep.subr.mxu0 0.0
  %5668 = vmatpush1.msra.mxu0 0.0
  %5669 = vmatprep.subr.mxu0 0.0
  %5670 = vmatpush1.msra.mxu0 0.0
  %5671 = vmatprep.subr.mxu0 0.0
  %5672 = vmatpush1.msra.mxu0 0.0
  %5673 = vmatprep.subr.mxu0 0.0
  %5674 = vmatpush1.msra.mxu0 0.0
  %5675 = vmatprep.subr.mxu0 0.0
  %5676 = vmatpush1.msra.mxu0 0.0
  %5677 = vmatprep.subr.mxu0 0.0
  %5678 = vmatpush1.msra.mxu0 0.0
  %5679 = vmatprep.subr.mxu0 0.0
  %5680 = vmatpush1.msra.mxu0 0.0
  %5681 = vmatprep.subr.mxu0 0.0
  %5682 = vmatpush1.msra.mxu0 0.0
  %5683 = vmatprep.subr.mxu0 0.0
  %5684 = vmatpush1.msra.mxu0 0.0
  %5685 = vmatprep.subr.mxu0 0.0
  %5686 = vmatpush1.msra.mxu0 0.0
  %5687 = vmatprep.subr.mxu0 0.0
  %5688 = vmatpush1.msra.mxu0 0.0
  %5689 = vmatprep.subr.mxu0 0.0
  %5690 = vmatpush1.msra.mxu0 0.0
  %5691 = vmatprep.subr.mxu0 0.0
  %5692 = vmatpush1.msra.mxu0 0.0
  %5693 = vmatprep.mubr.f32.mxu0 0.0
  %5694 = vmatmul.mubr.f32.gmra.mrb[0].mxu0 %v5627
  %v5695 = vpop.f32.mrb[0].mxu0
  %v5696 = vadd.f32 0.0, %v5695
  %v5697 = vpop.f32.mrb[0].mxu0
  %5698 = vdwg.mxu0
  %v5699 = vadd.f32 %v2937, %v5696
  %v5700 = vxor.u32 %v5699, 2147483648
  %v5701 = vmul.f32 %v5700, 1.442695
  %v5702 = vpow.pop %v5701
  %v5703 = vadd.f32 %v5702, 1.0
  %v5704 = vrcp.pop %v5703
  %v5705 = vmul.f32 1.0, %v5704
  %5707 = vrot.lane.b32.xlu0 %v5696, 96
  %v5708 = vpop.permute.xlu0 %5707
  %v5710 = vmul.f32 %v5705, %v5708
  %5712 = vrot.lane.b32.xlu0 %v5710, 32
  %v5713 = vpop.permute.xlu0 %5712
  %v5715 = vadd.f32 %v2937, %v5713
  %v5716 = vtanh.pop %v5715
  %v5717 = vsub.f32 1.0, %v5705
  %v5718 = vmul.f32 %v5717, %v5542
  %5720 = vrot.lane.b32.xlu0 %v5716, 64
  %v5721 = vpop.permute.xlu0 %5720
  %v5723 = vmul.f32 %v5705, %v5721
  %v5724 = vadd.f32 %v5718, %v5723
  %5726 = vset.pattern.permute.xlu0 0
  %5727 = vperm.xlu0 %5726, %v158
  %v5728 = vpop.permute.xlu0 %5727
  %v5730 = vmul.f32 %v5728, %v5724
  %v5731 = vsub.f32 1.0, %v158
  %5733 = vset.pattern.permute.xlu0 0
  %5734 = vperm.xlu0 %5733, %v5731
  %v5735 = vpop.permute.xlu0 %5734
  %v5737 = vmul.f32 %v5735, %v5542
  %v5738 = vadd.f32 %v5730, %v5737
  %v5740 = vsel %vm179, %v5738, 0
  %5742 = vmatprep.subr.mxu0 0.0
  %5743 = vmatpush1.msra.mxu0 %v3058
  %5744 = vmatprep.subr.mxu0 0.0
  %5745 = vmatpush1.msra.mxu0 %v3059
  %5746 = vmatprep.subr.mxu0 0.0
  %5747 = vmatpush1.msra.mxu0 %v3060
  %5748 = vmatprep.subr.mxu0 0.0
  %5749 = vmatpush1.msra.mxu0 %v3061
  %5750 = vmatprep.subr.mxu0 0.0
  %5751 = vmatpush1.msra.mxu0 0.0
  %5752 = vmatprep.subr.mxu0 0.0
  %5753 = vmatpush1.msra.mxu0 0.0
  %5754 = vmatprep.subr.mxu0 0.0
  %5755 = vmatpush1.msra.mxu0 0.0
  %5756 = vmatprep.subr.mxu0 0.0
  %5757 = vmatpush1.msra.mxu0 0.0
  %5758 = vmatprep.subr.mxu0 0.0
  %5759 = vmatpush1.msra.mxu0 0.0
  %5760 = vmatprep.subr.mxu0 0.0
  %5761 = vmatpush1.msra.mxu0 0.0
  %5762 = vmatprep.subr.mxu0 0.0
  %5763 = vmatpush1.msra.mxu0 0.0
  %5764 = vmatprep.subr.mxu0 0.0
  %5765 = vmatpush1.msra.mxu0 0.0
  %5766 = vmatprep.subr.mxu0 0.0
  %5767 = vmatpush1.msra.mxu0 0.0
  %5768 = vmatprep.subr.mxu0 0.0
  %5769 = vmatpush1.msra.mxu0 0.0
  %5770 = vmatprep.subr.mxu0 0.0
  %5771 = vmatpush1.msra.mxu0 0.0
  %5772 = vmatprep.subr.mxu0 0.0
  %5773 = vmatpush1.msra.mxu0 0.0
  %5774 = vmatprep.subr.mxu0 0.0
  %5775 = vmatpush1.msra.mxu0 0.0
  %5776 = vmatprep.subr.mxu0 0.0
  %5777 = vmatpush1.msra.mxu0 0.0
  %5778 = vmatprep.subr.mxu0 0.0
  %5779 = vmatpush1.msra.mxu0 0.0
  %5780 = vmatprep.subr.mxu0 0.0
  %5781 = vmatpush1.msra.mxu0 0.0
  %5782 = vmatprep.subr.mxu0 0.0
  %5783 = vmatpush1.msra.mxu0 0.0
  %5784 = vmatprep.subr.mxu0 0.0
  %5785 = vmatpush1.msra.mxu0 0.0
  %5786 = vmatprep.subr.mxu0 0.0
  %5787 = vmatpush1.msra.mxu0 0.0
  %5788 = vmatprep.subr.mxu0 0.0
  %5789 = vmatpush1.msra.mxu0 0.0
  %5790 = vmatprep.subr.mxu0 0.0
  %5791 = vmatpush1.msra.mxu0 0.0
  %5792 = vmatprep.subr.mxu0 0.0
  %5793 = vmatpush1.msra.mxu0 0.0
  %5794 = vmatprep.subr.mxu0 0.0
  %5795 = vmatpush1.msra.mxu0 0.0
  %5796 = vmatprep.subr.mxu0 0.0
  %5797 = vmatpush1.msra.mxu0 0.0
  %5798 = vmatprep.subr.mxu0 0.0
  %5799 = vmatpush1.msra.mxu0 0.0
  %5800 = vmatprep.subr.mxu0 0.0
  %5801 = vmatpush1.msra.mxu0 0.0
  %5802 = vmatprep.subr.mxu0 0.0
  %5803 = vmatpush1.msra.mxu0 0.0
  %5804 = vmatprep.subr.mxu0 0.0
  %5805 = vmatpush1.msra.mxu0 0.0
  %5806 = vmatprep.mubr.f32.mxu0 0.0
  %5807 = vmatmul.mubr.f32.gmra.mrb[0].mxu0 %v5740
  %v5808 = vpop.f32.mrb[0].mxu0
  %v5809 = vadd.f32 %v3190, %v5808
  %v5810 = vpop.f32.mrb[0].mxu0
  %5811 = vdwg.mxu0
  %v5812 = vadd.f32 %v2300, %v5809
  %v5813 = vadd.f32 %v2305, %v5809
  %v5814 = vadd.f32 %v2310, %v5809
  %v5815 = vadd.f32 %v2315, %v5809
  %v5816 = vadd.f32 %v2320, %v5809
  %v5817 = vadd.f32 %v2325, %v5809
  %v5818 = vadd.f32 %v2330, %v5809
  %v5819 = vadd.f32 %v2335, %v5809
  %v5820 = vtanh.pop %v5812
  %v5821 = vtanh.pop %v5813
  %v5822 = vtanh.pop %v5814
  %v5823 = vtanh.pop %v5815
  %v5824 = vtanh.pop %v5816
  %v5825 = vtanh.pop %v5817
  %v5826 = vtanh.pop %v5818
  %v5827 = vtanh.pop %v5819
  %v5828 = vmul.f32 %v5820, %v3285
  %v5829 = vmul.f32 %v5821, %v3285
  %v5830 = vmul.f32 %v5822, %v3285
  %v5831 = vmul.f32 %v5823, %v3285
  %v5832 = vmul.f32 %v5824, %v3285
  %v5833 = vmul.f32 %v5825, %v3285
  %v5834 = vmul.f32 %v5826, %v3285
  %v5835 = vmul.f32 %v5827, %v3285
  %v5836 = vsel %vm179, %v5828, 0.0
  %5837 = vadd.xlane.f32.xlu0 %v5836
  %v5838 = vpop.xlane.xlu0 %5837
  %v5839 = vsel %vm179, %v5829, 0.0
  %5840 = vadd.xlane.f32.xlu0 %v5839
  %v5841 = vpop.xlane.xlu0 %5840
  %v5842 = vsel %vm179, %v5830, 0.0
  %5843 = vadd.xlane.f32.xlu0 %v5842
  %v5844 = vpop.xlane.xlu0 %5843
  %v5845 = vsel %vm179, %v5831, 0.0
  %5846 = vadd.xlane.f32.xlu0 %v5845
  %v5847 = vpop.xlane.xlu0 %5846
  %v5848 = vsel %vm179, %v5832, 0.0
  %5849 = vadd.xlane.f32.xlu0 %v5848
  %v5850 = vpop.xlane.xlu0 %5849
  %v5851 = vsel %vm179, %v5833, 0.0
  %5852 = vadd.xlane.f32.xlu0 %v5851
  %v5853 = vpop.xlane.xlu0 %5852
  %v5854 = vsel %vm179, %v5834, 0.0
  %5855 = vadd.xlane.f32.xlu0 %v5854
  %v5856 = vpop.xlane.xlu0 %5855
  %v5857 = vsel %vm179, %v5835, 0.0
  %5858 = vadd.xlane.f32.xlu0 %v5857
  %v5859 = vpop.xlane.xlu0 %5858
  %v5860 = vadd.f32 %v5838, %v3323
  %v5861 = vadd.f32 %v5841, %v3323
  %v5862 = vadd.f32 %v5844, %v3323
  %v5863 = vadd.f32 %v5847, %v3323
  %v5864 = vadd.f32 %v5850, %v3323
  %v5865 = vadd.f32 %v5853, %v3323
  %v5866 = vadd.f32 %v5856, %v3323
  %v5867 = vadd.f32 %v5859, %v3323
  %v5868 = vsel %vm2361, %v5860, -inf
  %v5869 = vsel %vm2361, %v5861, -inf
  %v5870 = vsel %vm2361, %v5862, -inf
  %v5871 = vsel %vm2361, %v5863, -inf
  %v5872 = vsel %vm2361, %v5864, -inf
  %v5873 = vmax.f32 %v5868, %v5872
  %v5874 = vsel %vm2361, %v5865, -inf
  %v5875 = vmax.f32 %v5869, %v5874
  %v5876 = vsel %vm2361, %v5866, -inf
  %v5877 = vmax.f32 %v5870, %v5876
  %v5878 = vsel %vm2361, %v5867, -inf
  %v5879 = vmax.f32 %v5871, %v5878
  %v5880 = vmax.f32 %v5873, %v5875
  %v5881 = vmax.f32 %v5877, %v5879
  %v5882 = vmax.f32 %v5880, %v5881
  %v5883 = vsub.f32 %v5860, %v5882
  %v5884 = vsub.f32 %v5861, %v5882
  %v5885 = vsub.f32 %v5862, %v5882
  %v5886 = vsub.f32 %v5863, %v5882
  %v5887 = vsub.f32 %v5864, %v5882
  %v5888 = vsub.f32 %v5865, %v5882
  %v5889 = vsub.f32 %v5866, %v5882
  %v5890 = vsub.f32 %v5867, %v5882
  %v5891 = vmul.f32 %v5883, 1.442695
  %v5892 = vpow.pop %v5891
  %v5893 = vmul.f32 %v5884, 1.442695
  %v5894 = vpow.pop %v5893
  %v5895 = vmul.f32 %v5885, 1.442695
  %v5896 = vpow.pop %v5895
  %v5897 = vmul.f32 %v5886, 1.442695
  %v5898 = vpow.pop %v5897
  %v5899 = vmul.f32 %v5887, 1.442695
  %v5900 = vpow.pop %v5899
  %v5901 = vmul.f32 %v5888, 1.442695
  %v5902 = vpow.pop %v5901
  %v5903 = vmul.f32 %v5889, 1.442695
  %v5904 = vpow.pop %v5903
  %v5905 = vmul.f32 %v5890, 1.442695
  %v5906 = vpow.pop %v5905
  %v5907 = vmul.f32 %v5892, %v140
  %v5908 = vmul.f32 %v5894, %v141
  %v5909 = vmul.f32 %v5896, %v142
  %v5910 = vmul.f32 %v5898, %v143
  %v5911 = vmul.f32 %v5900, %v144
  %v5912 = vmul.f32 %v5902, %v145
  %v5913 = vmul.f32 %v5904, %v146
  %v5914 = vmul.f32 %v5906, %v147
  %v5915 = vsel %vm2361, %v5907, 0.0
  %v5916 = vsel %vm2361, %v5908, 0.0
  %v5917 = vadd.f32 %v5915, %v5916
  %v5918 = vsel %vm2361, %v5909, 0.0
  %v5919 = vadd.f32 %v5917, %v5918
  %v5920 = vsel %vm2361, %v5910, 0.0
  %v5921 = vadd.f32 %v5919, %v5920
  %v5922 = vsel %vm2361, %v5911, 0.0
  %v5923 = vadd.f32 %v5921, %v5922
  %v5924 = vsel %vm2361, %v5912, 0.0
  %v5925 = vadd.f32 %v5923, %v5924
  %v5926 = vsel %vm2361, %v5913, 0.0
  %v5927 = vadd.f32 %v5925, %v5926
  %v5928 = vsel %vm2361, %v5914, 0.0
  %v5929 = vadd.f32 %v5927, %v5928
  %v5930 = vadd.f32 %v5929, 1e-20
  %v5931 = vrcp.pop %v5930
  %v5932 = vmul.f32 %v5907, %v5931
  %v5933 = vmul.f32 %v5908, %v5931
  %v5934 = vmul.f32 %v5909, %v5931
  %v5935 = vmul.f32 %v5910, %v5931
  %v5936 = vmul.f32 %v5911, %v5931
  %v5937 = vmul.f32 %v5912, %v5931
  %v5938 = vmul.f32 %v5913, %v5931
  %v5939 = vmul.f32 %v5914, %v5931
  %5941 = vset.pattern.permute.xlu0 0
  %5942 = vperm.xlu0 %5941, %v5932
  %v5943 = vpop.permute.xlu0 %5942
  %5946 = vset.pattern.permute.xlu0 0
  %5947 = vperm.xlu0 %5946, %v5933
  %v5948 = vpop.permute.xlu0 %5947
  %5951 = vset.pattern.permute.xlu0 0
  %5952 = vperm.xlu0 %5951, %v5934
  %v5953 = vpop.permute.xlu0 %5952
  %5956 = vset.pattern.permute.xlu0 0
  %5957 = vperm.xlu0 %5956, %v5935
  %v5958 = vpop.permute.xlu0 %5957
  %5961 = vset.pattern.permute.xlu0 0
  %5962 = vperm.xlu0 %5961, %v5936
  %v5963 = vpop.permute.xlu0 %5962
  %5966 = vset.pattern.permute.xlu0 0
  %5967 = vperm.xlu0 %5966, %v5937
  %v5968 = vpop.permute.xlu0 %5967
  %5971 = vset.pattern.permute.xlu0 0
  %5972 = vperm.xlu0 %5971, %v5938
  %v5973 = vpop.permute.xlu0 %5972
  %5976 = vset.pattern.permute.xlu0 0
  %5977 = vperm.xlu0 %5976, %v5939
  %v5978 = vpop.permute.xlu0 %5977
  %v5980 = vmul.f32 %v5943, %v2190
  %v5981 = vmul.f32 %v5948, %v2191
  %v5982 = vmul.f32 %v5953, %v2192
  %v5983 = vmul.f32 %v5958, %v2193
  %v5984 = vmul.f32 %v5963, %v2194
  %v5985 = vmul.f32 %v5968, %v2195
  %v5986 = vmul.f32 %v5973, %v2196
  %v5987 = vmul.f32 %v5978, %v2197
  %v5988 = vsel %vm179, %v5980, 0.0
  %v5989 = vsel %vm179, %v5981, 0.0
  %v5990 = vadd.f32 %v5988, %v5989
  %v5991 = vsel %vm179, %v5982, 0.0
  %v5992 = vadd.f32 %v5990, %v5991
  %v5993 = vsel %vm179, %v5983, 0.0
  %v5994 = vadd.f32 %v5992, %v5993
  %v5995 = vsel %vm179, %v5984, 0.0
  %v5996 = vadd.f32 %v5994, %v5995
  %v5997 = vsel %vm179, %v5985, 0.0
  %v5998 = vadd.f32 %v5996, %v5997
  %v5999 = vsel %vm179, %v5986, 0.0
  %v6000 = vadd.f32 %v5998, %v5999
  %v6001 = vsel %vm179, %v5987, 0.0
  %v6002 = vadd.f32 %v6000, %v6001
  %v6004 = vsel %vm179, %v6002, 0
  %6006 = vmatprep.subr.mxu0 0.0
  %6007 = vmatpush1.msra.mxu0 %v3049
  %6008 = vmatprep.subr.mxu0 0.0
  %6009 = vmatpush1.msra.mxu0 %v3050
  %6010 = vmatprep.subr.mxu0 0.0
  %6011 = vmatpush1.msra.mxu0 %v3051
  %6012 = vmatprep.subr.mxu0 0.0
  %6013 = vmatpush1.msra.mxu0 %v3052
  %6014 = vmatprep.subr.mxu0 0.0
  %6015 = vmatpush1.msra.mxu0 0.0
  %6016 = vmatprep.subr.mxu0 0.0
  %6017 = vmatpush1.msra.mxu0 0.0
  %6018 = vmatprep.subr.mxu0 0.0
  %6019 = vmatpush1.msra.mxu0 0.0
  %6020 = vmatprep.subr.mxu0 0.0
  %6021 = vmatpush1.msra.mxu0 0.0
  %6022 = vmatprep.subr.mxu0 0.0
  %6023 = vmatpush1.msra.mxu0 0.0
  %6024 = vmatprep.subr.mxu0 0.0
  %6025 = vmatpush1.msra.mxu0 0.0
  %6026 = vmatprep.subr.mxu0 0.0
  %6027 = vmatpush1.msra.mxu0 0.0
  %6028 = vmatprep.subr.mxu0 0.0
  %6029 = vmatpush1.msra.mxu0 0.0
  %6030 = vmatprep.subr.mxu0 0.0
  %6031 = vmatpush1.msra.mxu0 0.0
  %6032 = vmatprep.subr.mxu0 0.0
  %6033 = vmatpush1.msra.mxu0 0.0
  %6034 = vmatprep.subr.mxu0 0.0
  %6035 = vmatpush1.msra.mxu0 0.0
  %6036 = vmatprep.subr.mxu0 0.0
  %6037 = vmatpush1.msra.mxu0 0.0
  %6038 = vmatprep.subr.mxu0 0.0
  %6039 = vmatpush1.msra.mxu0 0.0
  %6040 = vmatprep.subr.mxu0 0.0
  %6041 = vmatpush1.msra.mxu0 0.0
  %6042 = vmatprep.subr.mxu0 0.0
  %6043 = vmatpush1.msra.mxu0 0.0
  %6044 = vmatprep.subr.mxu0 0.0
  %6045 = vmatpush1.msra.mxu0 0.0
  %6046 = vmatprep.subr.mxu0 0.0
  %6047 = vmatpush1.msra.mxu0 0.0
  %6048 = vmatprep.subr.mxu0 0.0
  %6049 = vmatpush1.msra.mxu0 0.0
  %6050 = vmatprep.subr.mxu0 0.0
  %6051 = vmatpush1.msra.mxu0 0.0
  %6052 = vmatprep.subr.mxu0 0.0
  %6053 = vmatpush1.msra.mxu0 0.0
  %6054 = vmatprep.subr.mxu0 0.0
  %6055 = vmatpush1.msra.mxu0 0.0
  %6056 = vmatprep.subr.mxu0 0.0
  %6057 = vmatpush1.msra.mxu0 0.0
  %6058 = vmatprep.subr.mxu0 0.0
  %6059 = vmatpush1.msra.mxu0 0.0
  %6060 = vmatprep.subr.mxu0 0.0
  %6061 = vmatpush1.msra.mxu0 0.0
  %6062 = vmatprep.subr.mxu0 0.0
  %6063 = vmatpush1.msra.mxu0 0.0
  %6064 = vmatprep.subr.mxu0 0.0
  %6065 = vmatpush1.msra.mxu0 0.0
  %6066 = vmatprep.subr.mxu0 0.0
  %6067 = vmatpush1.msra.mxu0 0.0
  %6068 = vmatprep.subr.mxu0 0.0
  %6069 = vmatpush1.msra.mxu0 0.0
  %6070 = vmatprep.mubr.f32.mxu0 0.0
  %6071 = vmatmul.mubr.f32.gmra.mrb[0].mxu0 %v6004
  %v6072 = vpop.f32.mrb[0].mxu0
  %v6073 = vadd.f32 %v3472, %v6072
  %v6074 = vpop.f32.mrb[0].mxu0
  %6075 = vdwg.mxu0
  %6076 = vmatprep.subr.mxu0 0.0
  %6077 = vmatpush1.msra.mxu0 %v3053
  %6078 = vmatprep.subr.mxu0 0.0
  %6079 = vmatpush1.msra.mxu0 %v3054
  %6080 = vmatprep.subr.mxu0 0.0
  %6081 = vmatpush1.msra.mxu0 %v3055
  %6082 = vmatprep.subr.mxu0 0.0
  %6083 = vmatpush1.msra.mxu0 %v3056
  %6084 = vmatprep.subr.mxu0 0.0
  %6085 = vmatpush1.msra.mxu0 0.0
  %6086 = vmatprep.subr.mxu0 0.0
  %6087 = vmatpush1.msra.mxu0 0.0
  %6088 = vmatprep.subr.mxu0 0.0
  %6089 = vmatpush1.msra.mxu0 0.0
  %6090 = vmatprep.subr.mxu0 0.0
  %6091 = vmatpush1.msra.mxu0 0.0
  %6092 = vmatprep.subr.mxu0 0.0
  %6093 = vmatpush1.msra.mxu0 0.0
  %6094 = vmatprep.subr.mxu0 0.0
  %6095 = vmatpush1.msra.mxu0 0.0
  %6096 = vmatprep.subr.mxu0 0.0
  %6097 = vmatpush1.msra.mxu0 0.0
  %6098 = vmatprep.subr.mxu0 0.0
  %6099 = vmatpush1.msra.mxu0 0.0
  %6100 = vmatprep.subr.mxu0 0.0
  %6101 = vmatpush1.msra.mxu0 0.0
  %6102 = vmatprep.subr.mxu0 0.0
  %6103 = vmatpush1.msra.mxu0 0.0
  %6104 = vmatprep.subr.mxu0 0.0
  %6105 = vmatpush1.msra.mxu0 0.0
  %6106 = vmatprep.subr.mxu0 0.0
  %6107 = vmatpush1.msra.mxu0 0.0
  %6108 = vmatprep.subr.mxu0 0.0
  %6109 = vmatpush1.msra.mxu0 0.0
  %6110 = vmatprep.subr.mxu0 0.0
  %6111 = vmatpush1.msra.mxu0 0.0
  %6112 = vmatprep.subr.mxu0 0.0
  %6113 = vmatpush1.msra.mxu0 0.0
  %6114 = vmatprep.subr.mxu0 0.0
  %6115 = vmatpush1.msra.mxu0 0.0
  %6116 = vmatprep.subr.mxu0 0.0
  %6117 = vmatpush1.msra.mxu0 0.0
  %6118 = vmatprep.subr.mxu0 0.0
  %6119 = vmatpush1.msra.mxu0 0.0
  %6120 = vmatprep.subr.mxu0 0.0
  %6121 = vmatpush1.msra.mxu0 0.0
  %6122 = vmatprep.subr.mxu0 0.0
  %6123 = vmatpush1.msra.mxu0 0.0
  %6124 = vmatprep.subr.mxu0 0.0
  %6125 = vmatpush1.msra.mxu0 0.0
  %6126 = vmatprep.subr.mxu0 0.0
  %6127 = vmatpush1.msra.mxu0 0.0
  %6128 = vmatprep.subr.mxu0 0.0
  %6129 = vmatpush1.msra.mxu0 0.0
  %6130 = vmatprep.subr.mxu0 0.0
  %6131 = vmatpush1.msra.mxu0 0.0
  %6132 = vmatprep.subr.mxu0 0.0
  %6133 = vmatpush1.msra.mxu0 0.0
  %6134 = vmatprep.subr.mxu0 0.0
  %6135 = vmatpush1.msra.mxu0 0.0
  %6136 = vmatprep.subr.mxu0 0.0
  %6137 = vmatpush1.msra.mxu0 0.0
  %6138 = vmatprep.subr.mxu0 0.0
  %6139 = vmatpush1.msra.mxu0 0.0
  %6140 = vmatprep.mubr.f32.mxu0 0.0
  %6141 = vmatmul.mubr.f32.gmra.mrb[0].mxu0 %v5740
  %v6142 = vpop.f32.mrb[0].mxu0
  %v6143 = vadd.f32 0.0, %v6142
  %v6144 = vpop.f32.mrb[0].mxu0
  %6145 = vdwg.mxu0
  %v6146 = vadd.f32 %v6073, %v6143
  %v6147 = vxor.u32 %v6146, 2147483648
  %v6148 = vmul.f32 %v6147, 1.442695
  %v6149 = vpow.pop %v6148
  %v6150 = vadd.f32 %v6149, 1.0
  %v6151 = vrcp.pop %v6150
  %v6152 = vmul.f32 1.0, %v6151
  %6154 = vrot.lane.b32.xlu0 %v6143, 96
  %v6155 = vpop.permute.xlu0 %6154
  %v6157 = vmul.f32 %v6152, %v6155
  %6159 = vrot.lane.b32.xlu0 %v6157, 32
  %v6160 = vpop.permute.xlu0 %6159
  %v6162 = vadd.f32 %v6073, %v6160
  %v6163 = vtanh.pop %v6162
  %v6164 = vsub.f32 1.0, %v6152
  %v6165 = vmul.f32 %v6164, %v5738
  %6167 = vrot.lane.b32.xlu0 %v6163, 64
  %v6168 = vpop.permute.xlu0 %6167
  %v6170 = vmul.f32 %v6152, %v6168
  %v6171 = vadd.f32 %v6165, %v6170
  %v6172 = vmul.f32 %v5728, %v6171
  %v6173 = vmul.f32 %v5735, %v5738
  %v6174 = vadd.f32 %v6172, %v6173
  %6175 = vrot.lane.b32.xlu0 %v6002, 32
  %v6176 = vpop.permute.xlu0 %6175
  %v6178 = vsel %vm179, %v6174, %v6176
  %v6180 = vsel %vm3650, %v6178, 0
  %6182 = vmatprep.subr.mxu0 0.0
  %6183 = vmatpush1.msra.mxu0 %v3065
  %6184 = vmatprep.subr.mxu0 0.0
  %6185 = vmatpush1.msra.mxu0 %v3066
  %6186 = vmatprep.subr.mxu0 0.0
  %6187 = vmatpush1.msra.mxu0 %v3067
  %6188 = vmatprep.subr.mxu0 0.0
  %6189 = vmatpush1.msra.mxu0 %v3068
  %6190 = vmatprep.subr.mxu0 0.0
  %6191 = vmatpush1.msra.mxu0 %v3069
  %6192 = vmatprep.subr.mxu0 0.0
  %6193 = vmatpush1.msra.mxu0 %v3070
  %6194 = vmatprep.subr.mxu0 0.0
  %6195 = vmatpush1.msra.mxu0 %v3071
  %6196 = vmatprep.subr.mxu0 0.0
  %6197 = vmatpush1.msra.mxu0 %v3072
  %6198 = vmatprep.subr.mxu0 0.0
  %6199 = vmatpush1.msra.mxu0 0.0
  %6200 = vmatprep.subr.mxu0 0.0
  %6201 = vmatpush1.msra.mxu0 0.0
  %6202 = vmatprep.subr.mxu0 0.0
  %6203 = vmatpush1.msra.mxu0 0.0
  %6204 = vmatprep.subr.mxu0 0.0
  %6205 = vmatpush1.msra.mxu0 0.0
  %6206 = vmatprep.subr.mxu0 0.0
  %6207 = vmatpush1.msra.mxu0 0.0
  %6208 = vmatprep.subr.mxu0 0.0
  %6209 = vmatpush1.msra.mxu0 0.0
  %6210 = vmatprep.subr.mxu0 0.0
  %6211 = vmatpush1.msra.mxu0 0.0
  %6212 = vmatprep.subr.mxu0 0.0
  %6213 = vmatpush1.msra.mxu0 0.0
  %6214 = vmatprep.subr.mxu0 0.0
  %6215 = vmatpush1.msra.mxu0 0.0
  %6216 = vmatprep.subr.mxu0 0.0
  %6217 = vmatpush1.msra.mxu0 0.0
  %6218 = vmatprep.subr.mxu0 0.0
  %6219 = vmatpush1.msra.mxu0 0.0
  %6220 = vmatprep.subr.mxu0 0.0
  %6221 = vmatpush1.msra.mxu0 0.0
  %6222 = vmatprep.subr.mxu0 0.0
  %6223 = vmatpush1.msra.mxu0 0.0
  %6224 = vmatprep.subr.mxu0 0.0
  %6225 = vmatpush1.msra.mxu0 0.0
  %6226 = vmatprep.subr.mxu0 0.0
  %6227 = vmatpush1.msra.mxu0 0.0
  %6228 = vmatprep.subr.mxu0 0.0
  %6229 = vmatpush1.msra.mxu0 0.0
  %6230 = vmatprep.subr.mxu0 0.0
  %6231 = vmatpush1.msra.mxu0 0.0
  %6232 = vmatprep.subr.mxu0 0.0
  %6233 = vmatpush1.msra.mxu0 0.0
  %6234 = vmatprep.subr.mxu0 0.0
  %6235 = vmatpush1.msra.mxu0 0.0
  %6236 = vmatprep.subr.mxu0 0.0
  %6237 = vmatpush1.msra.mxu0 0.0
  %6238 = vmatprep.subr.mxu0 0.0
  %6239 = vmatpush1.msra.mxu0 0.0
  %6240 = vmatprep.subr.mxu0 0.0
  %6241 = vmatpush1.msra.mxu0 0.0
  %6242 = vmatprep.subr.mxu0 0.0
  %6243 = vmatpush1.msra.mxu0 0.0
  %6244 = vmatprep.subr.mxu0 0.0
  %6245 = vmatpush1.msra.mxu0 0.0
  %6246 = vmatprep.mubr.f32.mxu0 0.0
  %6247 = vmatmul.mubr.f32.gmra.mrb[0].mxu0 %v6180
  %v6248 = vpop.f32.mrb[0].mxu0
  %v6249 = vadd.f32 %v3037, %v6248
  %v6250 = vpop.f32.mrb[0].mxu0
  %6251 = vdwg.mxu0
  %6253 = vrot.lane.b32.xlu0 %v6249, 96
  %v6254 = vpop.permute.xlu0 %6253
  %v6256 = vmax.f32 %v6249, %v6254
  %v6257 = vmul.f32 %v6256, %v5728
  %v6259 = vsel %vm179, %v6174, 0
  %6261 = vmatprep.subr.mxu0 0.0
  %6262 = vmatpush1.msra.mxu0 %v3045
  %6263 = vmatprep.subr.mxu0 0.0
  %6264 = vmatpush1.msra.mxu0 %v3046
  %6265 = vmatprep.subr.mxu0 0.0
  %6266 = vmatpush1.msra.mxu0 %v3047
  %6267 = vmatprep.subr.mxu0 0.0
  %6268 = vmatpush1.msra.mxu0 %v3048
  %6269 = vmatprep.subr.mxu0 0.0
  %6270 = vmatpush1.msra.mxu0 0.0
  %6271 = vmatprep.subr.mxu0 0.0
  %6272 = vmatpush1.msra.mxu0 0.0
  %6273 = vmatprep.subr.mxu0 0.0
  %6274 = vmatpush1.msra.mxu0 0.0
  %6275 = vmatprep.subr.mxu0 0.0
  %6276 = vmatpush1.msra.mxu0 0.0
  %6277 = vmatprep.subr.mxu0 0.0
  %6278 = vmatpush1.msra.mxu0 0.0
  %6279 = vmatprep.subr.mxu0 0.0
  %6280 = vmatpush1.msra.mxu0 0.0
  %6281 = vmatprep.subr.mxu0 0.0
  %6282 = vmatpush1.msra.mxu0 0.0
  %6283 = vmatprep.subr.mxu0 0.0
  %6284 = vmatpush1.msra.mxu0 0.0
  %6285 = vmatprep.subr.mxu0 0.0
  %6286 = vmatpush1.msra.mxu0 0.0
  %6287 = vmatprep.subr.mxu0 0.0
  %6288 = vmatpush1.msra.mxu0 0.0
  %6289 = vmatprep.subr.mxu0 0.0
  %6290 = vmatpush1.msra.mxu0 0.0
  %6291 = vmatprep.subr.mxu0 0.0
  %6292 = vmatpush1.msra.mxu0 0.0
  %6293 = vmatprep.subr.mxu0 0.0
  %6294 = vmatpush1.msra.mxu0 0.0
  %6295 = vmatprep.subr.mxu0 0.0
  %6296 = vmatpush1.msra.mxu0 0.0
  %6297 = vmatprep.subr.mxu0 0.0
  %6298 = vmatpush1.msra.mxu0 0.0
  %6299 = vmatprep.subr.mxu0 0.0
  %6300 = vmatpush1.msra.mxu0 0.0
  %6301 = vmatprep.subr.mxu0 0.0
  %6302 = vmatpush1.msra.mxu0 0.0
  %6303 = vmatprep.subr.mxu0 0.0
  %6304 = vmatpush1.msra.mxu0 0.0
  %6305 = vmatprep.subr.mxu0 0.0
  %6306 = vmatpush1.msra.mxu0 0.0
  %6307 = vmatprep.subr.mxu0 0.0
  %6308 = vmatpush1.msra.mxu0 0.0
  %6309 = vmatprep.subr.mxu0 0.0
  %6310 = vmatpush1.msra.mxu0 0.0
  %6311 = vmatprep.subr.mxu0 0.0
  %6312 = vmatpush1.msra.mxu0 0.0
  %6313 = vmatprep.subr.mxu0 0.0
  %6314 = vmatpush1.msra.mxu0 0.0
  %6315 = vmatprep.subr.mxu0 0.0
  %6316 = vmatpush1.msra.mxu0 0.0
  %6317 = vmatprep.subr.mxu0 0.0
  %6318 = vmatpush1.msra.mxu0 0.0
  %6319 = vmatprep.subr.mxu0 0.0
  %6320 = vmatpush1.msra.mxu0 0.0
  %6321 = vmatprep.subr.mxu0 0.0
  %6322 = vmatpush1.msra.mxu0 0.0
  %6323 = vmatprep.subr.mxu0 0.0
  %6324 = vmatpush1.msra.mxu0 0.0
  %6325 = vmatprep.mubr.f32.mxu0 0.0
  %6326 = vmatmul.mubr.f32.gmra.mrb[0].mxu0 %v6259
  %v6327 = vpop.f32.mrb[0].mxu0
  %v6328 = vadd.f32 0.0, %v6327
  %v6329 = vpop.f32.mrb[0].mxu0
  %6330 = vdwg.mxu0
  %v6331 = vadd.f32 %v2938, %v6328
  %v6332 = vxor.u32 %v6331, 2147483648
  %v6333 = vmul.f32 %v6332, 1.442695
  %v6334 = vpow.pop %v6333
  %v6335 = vadd.f32 %v6334, 1.0
  %v6336 = vrcp.pop %v6335
  %v6337 = vmul.f32 1.0, %v6336
  %6339 = vrot.lane.b32.xlu0 %v6328, 96
  %v6340 = vpop.permute.xlu0 %6339
  %v6342 = vmul.f32 %v6337, %v6340
  %6344 = vrot.lane.b32.xlu0 %v6342, 32
  %v6345 = vpop.permute.xlu0 %6344
  %v6347 = vadd.f32 %v2938, %v6345
  %v6348 = vtanh.pop %v6347
  %v6349 = vsub.f32 1.0, %v6337
  %v6350 = vmul.f32 %v6349, %v6174
  %6352 = vrot.lane.b32.xlu0 %v6348, 64
  %v6353 = vpop.permute.xlu0 %6352
  %v6355 = vmul.f32 %v6337, %v6353
  %v6356 = vadd.f32 %v6350, %v6355
  %6358 = vset.pattern.permute.xlu0 0
  %6359 = vperm.xlu0 %6358, %v159
  %v6360 = vpop.permute.xlu0 %6359
  %v6362 = vmul.f32 %v6360, %v6356
  %v6363 = vsub.f32 1.0, %v159
  %6365 = vset.pattern.permute.xlu0 0
  %6366 = vperm.xlu0 %6365, %v6363
  %v6367 = vpop.permute.xlu0 %6366
  %v6369 = vmul.f32 %v6367, %v6174
  %v6370 = vadd.f32 %v6362, %v6369
  %v6372 = vsel %vm179, %v6370, 0
  %6374 = vmatprep.subr.mxu0 0.0
  %6375 = vmatpush1.msra.mxu0 %v3058
  %6376 = vmatprep.subr.mxu0 0.0
  %6377 = vmatpush1.msra.mxu0 %v3059
  %6378 = vmatprep.subr.mxu0 0.0
  %6379 = vmatpush1.msra.mxu0 %v3060
  %6380 = vmatprep.subr.mxu0 0.0
  %6381 = vmatpush1.msra.mxu0 %v3061
  %6382 = vmatprep.subr.mxu0 0.0
  %6383 = vmatpush1.msra.mxu0 0.0
  %6384 = vmatprep.subr.mxu0 0.0
  %6385 = vmatpush1.msra.mxu0 0.0
  %6386 = vmatprep.subr.mxu0 0.0
  %6387 = vmatpush1.msra.mxu0 0.0
  %6388 = vmatprep.subr.mxu0 0.0
  %6389 = vmatpush1.msra.mxu0 0.0
  %6390 = vmatprep.subr.mxu0 0.0
  %6391 = vmatpush1.msra.mxu0 0.0
  %6392 = vmatprep.subr.mxu0 0.0
  %6393 = vmatpush1.msra.mxu0 0.0
  %6394 = vmatprep.subr.mxu0 0.0
  %6395 = vmatpush1.msra.mxu0 0.0
  %6396 = vmatprep.subr.mxu0 0.0
  %6397 = vmatpush1.msra.mxu0 0.0
  %6398 = vmatprep.subr.mxu0 0.0
  %6399 = vmatpush1.msra.mxu0 0.0
  %6400 = vmatprep.subr.mxu0 0.0
  %6401 = vmatpush1.msra.mxu0 0.0
  %6402 = vmatprep.subr.mxu0 0.0
  %6403 = vmatpush1.msra.mxu0 0.0
  %6404 = vmatprep.subr.mxu0 0.0
  %6405 = vmatpush1.msra.mxu0 0.0
  %6406 = vmatprep.subr.mxu0 0.0
  %6407 = vmatpush1.msra.mxu0 0.0
  %6408 = vmatprep.subr.mxu0 0.0
  %6409 = vmatpush1.msra.mxu0 0.0
  %6410 = vmatprep.subr.mxu0 0.0
  %6411 = vmatpush1.msra.mxu0 0.0
  %6412 = vmatprep.subr.mxu0 0.0
  %6413 = vmatpush1.msra.mxu0 0.0
  %6414 = vmatprep.subr.mxu0 0.0
  %6415 = vmatpush1.msra.mxu0 0.0
  %6416 = vmatprep.subr.mxu0 0.0
  %6417 = vmatpush1.msra.mxu0 0.0
  %6418 = vmatprep.subr.mxu0 0.0
  %6419 = vmatpush1.msra.mxu0 0.0
  %6420 = vmatprep.subr.mxu0 0.0
  %6421 = vmatpush1.msra.mxu0 0.0
  %6422 = vmatprep.subr.mxu0 0.0
  %6423 = vmatpush1.msra.mxu0 0.0
  %6424 = vmatprep.subr.mxu0 0.0
  %6425 = vmatpush1.msra.mxu0 0.0
  %6426 = vmatprep.subr.mxu0 0.0
  %6427 = vmatpush1.msra.mxu0 0.0
  %6428 = vmatprep.subr.mxu0 0.0
  %6429 = vmatpush1.msra.mxu0 0.0
  %6430 = vmatprep.subr.mxu0 0.0
  %6431 = vmatpush1.msra.mxu0 0.0
  %6432 = vmatprep.subr.mxu0 0.0
  %6433 = vmatpush1.msra.mxu0 0.0
  %6434 = vmatprep.subr.mxu0 0.0
  %6435 = vmatpush1.msra.mxu0 0.0
  %6436 = vmatprep.subr.mxu0 0.0
  %6437 = vmatpush1.msra.mxu0 0.0
  %6438 = vmatprep.mubr.f32.mxu0 0.0
  %6439 = vmatmul.mubr.f32.gmra.mrb[0].mxu0 %v6372
  %v6440 = vpop.f32.mrb[0].mxu0
  %v6441 = vadd.f32 %v3190, %v6440
  %v6442 = vpop.f32.mrb[0].mxu0
  %6443 = vdwg.mxu0
  %v6444 = vadd.f32 %v2300, %v6441
  %v6445 = vadd.f32 %v2305, %v6441
  %v6446 = vadd.f32 %v2310, %v6441
  %v6447 = vadd.f32 %v2315, %v6441
  %v6448 = vadd.f32 %v2320, %v6441
  %v6449 = vadd.f32 %v2325, %v6441
  %v6450 = vadd.f32 %v2330, %v6441
  %v6451 = vadd.f32 %v2335, %v6441
  %v6452 = vtanh.pop %v6444
  %v6453 = vtanh.pop %v6445
  %v6454 = vtanh.pop %v6446
  %v6455 = vtanh.pop %v6447
  %v6456 = vtanh.pop %v6448
  %v6457 = vtanh.pop %v6449
  %v6458 = vtanh.pop %v6450
  %v6459 = vtanh.pop %v6451
  %v6460 = vmul.f32 %v6452, %v3285
  %v6461 = vmul.f32 %v6453, %v3285
  %v6462 = vmul.f32 %v6454, %v3285
  %v6463 = vmul.f32 %v6455, %v3285
  %v6464 = vmul.f32 %v6456, %v3285
  %v6465 = vmul.f32 %v6457, %v3285
  %v6466 = vmul.f32 %v6458, %v3285
  %v6467 = vmul.f32 %v6459, %v3285
  %v6468 = vsel %vm179, %v6460, 0.0
  %6469 = vadd.xlane.f32.xlu0 %v6468
  %v6470 = vpop.xlane.xlu0 %6469
  %v6471 = vsel %vm179, %v6461, 0.0
  %6472 = vadd.xlane.f32.xlu0 %v6471
  %v6473 = vpop.xlane.xlu0 %6472
  %v6474 = vsel %vm179, %v6462, 0.0
  %6475 = vadd.xlane.f32.xlu0 %v6474
  %v6476 = vpop.xlane.xlu0 %6475
  %v6477 = vsel %vm179, %v6463, 0.0
  %6478 = vadd.xlane.f32.xlu0 %v6477
  %v6479 = vpop.xlane.xlu0 %6478
  %v6480 = vsel %vm179, %v6464, 0.0
  %6481 = vadd.xlane.f32.xlu0 %v6480
  %v6482 = vpop.xlane.xlu0 %6481
  %v6483 = vsel %vm179, %v6465, 0.0
  %6484 = vadd.xlane.f32.xlu0 %v6483
  %v6485 = vpop.xlane.xlu0 %6484
  %v6486 = vsel %vm179, %v6466, 0.0
  %6487 = vadd.xlane.f32.xlu0 %v6486
  %v6488 = vpop.xlane.xlu0 %6487
  %v6489 = vsel %vm179, %v6467, 0.0
  %6490 = vadd.xlane.f32.xlu0 %v6489
  %v6491 = vpop.xlane.xlu0 %6490
  %v6492 = vadd.f32 %v6470, %v3323
  %v6493 = vadd.f32 %v6473, %v3323
  %v6494 = vadd.f32 %v6476, %v3323
  %v6495 = vadd.f32 %v6479, %v3323
  %v6496 = vadd.f32 %v6482, %v3323
  %v6497 = vadd.f32 %v6485, %v3323
  %v6498 = vadd.f32 %v6488, %v3323
  %v6499 = vadd.f32 %v6491, %v3323
  %v6500 = vsel %vm2361, %v6492, -inf
  %v6501 = vsel %vm2361, %v6493, -inf
  %v6502 = vsel %vm2361, %v6494, -inf
  %v6503 = vsel %vm2361, %v6495, -inf
  %v6504 = vsel %vm2361, %v6496, -inf
  %v6505 = vmax.f32 %v6500, %v6504
  %v6506 = vsel %vm2361, %v6497, -inf
  %v6507 = vmax.f32 %v6501, %v6506
  %v6508 = vsel %vm2361, %v6498, -inf
  %v6509 = vmax.f32 %v6502, %v6508
  %v6510 = vsel %vm2361, %v6499, -inf
  %v6511 = vmax.f32 %v6503, %v6510
  %v6512 = vmax.f32 %v6505, %v6507
  %v6513 = vmax.f32 %v6509, %v6511
  %v6514 = vmax.f32 %v6512, %v6513
  %v6515 = vsub.f32 %v6492, %v6514
  %v6516 = vsub.f32 %v6493, %v6514
  %v6517 = vsub.f32 %v6494, %v6514
  %v6518 = vsub.f32 %v6495, %v6514
  %v6519 = vsub.f32 %v6496, %v6514
  %v6520 = vsub.f32 %v6497, %v6514
  %v6521 = vsub.f32 %v6498, %v6514
  %v6522 = vsub.f32 %v6499, %v6514
  %v6523 = vmul.f32 %v6515, 1.442695
  %v6524 = vpow.pop %v6523
  %v6525 = vmul.f32 %v6516, 1.442695
  %v6526 = vpow.pop %v6525
  %v6527 = vmul.f32 %v6517, 1.442695
  %v6528 = vpow.pop %v6527
  %v6529 = vmul.f32 %v6518, 1.442695
  %v6530 = vpow.pop %v6529
  %v6531 = vmul.f32 %v6519, 1.442695
  %v6532 = vpow.pop %v6531
  %v6533 = vmul.f32 %v6520, 1.442695
  %v6534 = vpow.pop %v6533
  %v6535 = vmul.f32 %v6521, 1.442695
  %v6536 = vpow.pop %v6535
  %v6537 = vmul.f32 %v6522, 1.442695
  %v6538 = vpow.pop %v6537
  %v6539 = vmul.f32 %v6524, %v140
  %v6540 = vmul.f32 %v6526, %v141
  %v6541 = vmul.f32 %v6528, %v142
  %v6542 = vmul.f32 %v6530, %v143
  %v6543 = vmul.f32 %v6532, %v144
  %v6544 = vmul.f32 %v6534, %v145
  %v6545 = vmul.f32 %v6536, %v146
  %v6546 = vmul.f32 %v6538, %v147
  %v6547 = vsel %vm2361, %v6539, 0.0
  %v6548 = vsel %vm2361, %v6540, 0.0
  %v6549 = vadd.f32 %v6547, %v6548
  %v6550 = vsel %vm2361, %v6541, 0.0
  %v6551 = vadd.f32 %v6549, %v6550
  %v6552 = vsel %vm2361, %v6542, 0.0
  %v6553 = vadd.f32 %v6551, %v6552
  %v6554 = vsel %vm2361, %v6543, 0.0
  %v6555 = vadd.f32 %v6553, %v6554
  %v6556 = vsel %vm2361, %v6544, 0.0
  %v6557 = vadd.f32 %v6555, %v6556
  %v6558 = vsel %vm2361, %v6545, 0.0
  %v6559 = vadd.f32 %v6557, %v6558
  %v6560 = vsel %vm2361, %v6546, 0.0
  %v6561 = vadd.f32 %v6559, %v6560
  %v6562 = vadd.f32 %v6561, 1e-20
  %v6563 = vrcp.pop %v6562
  %v6564 = vmul.f32 %v6539, %v6563
  %v6565 = vmul.f32 %v6540, %v6563
  %v6566 = vmul.f32 %v6541, %v6563
  %v6567 = vmul.f32 %v6542, %v6563
  %v6568 = vmul.f32 %v6543, %v6563
  %v6569 = vmul.f32 %v6544, %v6563
  %v6570 = vmul.f32 %v6545, %v6563
  %v6571 = vmul.f32 %v6546, %v6563
  %6573 = vset.pattern.permute.xlu0 0
  %6574 = vperm.xlu0 %6573, %v6564
  %v6575 = vpop.permute.xlu0 %6574
  %6578 = vset.pattern.permute.xlu0 0
  %6579 = vperm.xlu0 %6578, %v6565
  %v6580 = vpop.permute.xlu0 %6579
  %6583 = vset.pattern.permute.xlu0 0
  %6584 = vperm.xlu0 %6583, %v6566
  %v6585 = vpop.permute.xlu0 %6584
  %6588 = vset.pattern.permute.xlu0 0
  %6589 = vperm.xlu0 %6588, %v6567
  %v6590 = vpop.permute.xlu0 %6589
  %6593 = vset.pattern.permute.xlu0 0
  %6594 = vperm.xlu0 %6593, %v6568
  %v6595 = vpop.permute.xlu0 %6594
  %6598 = vset.pattern.permute.xlu0 0
  %6599 = vperm.xlu0 %6598, %v6569
  %v6600 = vpop.permute.xlu0 %6599
  %6603 = vset.pattern.permute.xlu0 0
  %6604 = vperm.xlu0 %6603, %v6570
  %v6605 = vpop.permute.xlu0 %6604
  %6608 = vset.pattern.permute.xlu0 0
  %6609 = vperm.xlu0 %6608, %v6571
  %v6610 = vpop.permute.xlu0 %6609
  %v6612 = vmul.f32 %v6575, %v2190
  %v6613 = vmul.f32 %v6580, %v2191
  %v6614 = vmul.f32 %v6585, %v2192
  %v6615 = vmul.f32 %v6590, %v2193
  %v6616 = vmul.f32 %v6595, %v2194
  %v6617 = vmul.f32 %v6600, %v2195
  %v6618 = vmul.f32 %v6605, %v2196
  %v6619 = vmul.f32 %v6610, %v2197
  %v6620 = vsel %vm179, %v6612, 0.0
  %v6621 = vsel %vm179, %v6613, 0.0
  %v6622 = vadd.f32 %v6620, %v6621
  %v6623 = vsel %vm179, %v6614, 0.0
  %v6624 = vadd.f32 %v6622, %v6623
  %v6625 = vsel %vm179, %v6615, 0.0
  %v6626 = vadd.f32 %v6624, %v6625
  %v6627 = vsel %vm179, %v6616, 0.0
  %v6628 = vadd.f32 %v6626, %v6627
  %v6629 = vsel %vm179, %v6617, 0.0
  %v6630 = vadd.f32 %v6628, %v6629
  %v6631 = vsel %vm179, %v6618, 0.0
  %v6632 = vadd.f32 %v6630, %v6631
  %v6633 = vsel %vm179, %v6619, 0.0
  %v6634 = vadd.f32 %v6632, %v6633
  %v6636 = vsel %vm179, %v6634, 0
  %6638 = vmatprep.subr.mxu0 0.0
  %6639 = vmatpush1.msra.mxu0 %v3049
  %6640 = vmatprep.subr.mxu0 0.0
  %6641 = vmatpush1.msra.mxu0 %v3050
  %6642 = vmatprep.subr.mxu0 0.0
  %6643 = vmatpush1.msra.mxu0 %v3051
  %6644 = vmatprep.subr.mxu0 0.0
  %6645 = vmatpush1.msra.mxu0 %v3052
  %6646 = vmatprep.subr.mxu0 0.0
  %6647 = vmatpush1.msra.mxu0 0.0
  %6648 = vmatprep.subr.mxu0 0.0
  %6649 = vmatpush1.msra.mxu0 0.0
  %6650 = vmatprep.subr.mxu0 0.0
  %6651 = vmatpush1.msra.mxu0 0.0
  %6652 = vmatprep.subr.mxu0 0.0
  %6653 = vmatpush1.msra.mxu0 0.0
  %6654 = vmatprep.subr.mxu0 0.0
  %6655 = vmatpush1.msra.mxu0 0.0
  %6656 = vmatprep.subr.mxu0 0.0
  %6657 = vmatpush1.msra.mxu0 0.0
  %6658 = vmatprep.subr.mxu0 0.0
  %6659 = vmatpush1.msra.mxu0 0.0
  %6660 = vmatprep.subr.mxu0 0.0
  %6661 = vmatpush1.msra.mxu0 0.0
  %6662 = vmatprep.subr.mxu0 0.0
  %6663 = vmatpush1.msra.mxu0 0.0
  %6664 = vmatprep.subr.mxu0 0.0
  %6665 = vmatpush1.msra.mxu0 0.0
  %6666 = vmatprep.subr.mxu0 0.0
  %6667 = vmatpush1.msra.mxu0 0.0
  %6668 = vmatprep.subr.mxu0 0.0
  %6669 = vmatpush1.msra.mxu0 0.0
  %6670 = vmatprep.subr.mxu0 0.0
  %6671 = vmatpush1.msra.mxu0 0.0
  %6672 = vmatprep.subr.mxu0 0.0
  %6673 = vmatpush1.msra.mxu0 0.0
  %6674 = vmatprep.subr.mxu0 0.0
  %6675 = vmatpush1.msra.mxu0 0.0
  %6676 = vmatprep.subr.mxu0 0.0
  %6677 = vmatpush1.msra.mxu0 0.0
  %6678 = vmatprep.subr.mxu0 0.0
  %6679 = vmatpush1.msra.mxu0 0.0
  %6680 = vmatprep.subr.mxu0 0.0
  %6681 = vmatpush1.msra.mxu0 0.0
  %6682 = vmatprep.subr.mxu0 0.0
  %6683 = vmatpush1.msra.mxu0 0.0
  %6684 = vmatprep.subr.mxu0 0.0
  %6685 = vmatpush1.msra.mxu0 0.0
  %6686 = vmatprep.subr.mxu0 0.0
  %6687 = vmatpush1.msra.mxu0 0.0
  %6688 = vmatprep.subr.mxu0 0.0
  %6689 = vmatpush1.msra.mxu0 0.0
  %6690 = vmatprep.subr.mxu0 0.0
  %6691 = vmatpush1.msra.mxu0 0.0
  %6692 = vmatprep.subr.mxu0 0.0
  %6693 = vmatpush1.msra.mxu0 0.0
  %6694 = vmatprep.subr.mxu0 0.0
  %6695 = vmatpush1.msra.mxu0 0.0
  %6696 = vmatprep.subr.mxu0 0.0
  %6697 = vmatpush1.msra.mxu0 0.0
  %6698 = vmatprep.subr.mxu0 0.0
  %6699 = vmatpush1.msra.mxu0 0.0
  %6700 = vmatprep.subr.mxu0 0.0
  %6701 = vmatpush1.msra.mxu0 0.0
  %6702 = vmatprep.mubr.f32.mxu0 0.0
  %6703 = vmatmul.mubr.f32.gmra.mrb[0].mxu0 %v6636
  %v6704 = vpop.f32.mrb[0].mxu0
  %v6705 = vadd.f32 %v3472, %v6704
  %v6706 = vpop.f32.mrb[0].mxu0
  %6707 = vdwg.mxu0
  %6708 = vmatprep.subr.mxu0 0.0
  %6709 = vmatpush1.msra.mxu0 %v3053
  %6710 = vmatprep.subr.mxu0 0.0
  %6711 = vmatpush1.msra.mxu0 %v3054
  %6712 = vmatprep.subr.mxu0 0.0
  %6713 = vmatpush1.msra.mxu0 %v3055
  %6714 = vmatprep.subr.mxu0 0.0
  %6715 = vmatpush1.msra.mxu0 %v3056
  %6716 = vmatprep.subr.mxu0 0.0
  %6717 = vmatpush1.msra.mxu0 0.0
  %6718 = vmatprep.subr.mxu0 0.0
  %6719 = vmatpush1.msra.mxu0 0.0
  %6720 = vmatprep.subr.mxu0 0.0
  %6721 = vmatpush1.msra.mxu0 0.0
  %6722 = vmatprep.subr.mxu0 0.0
  %6723 = vmatpush1.msra.mxu0 0.0
  %6724 = vmatprep.subr.mxu0 0.0
  %6725 = vmatpush1.msra.mxu0 0.0
  %6726 = vmatprep.subr.mxu0 0.0
  %6727 = vmatpush1.msra.mxu0 0.0
  %6728 = vmatprep.subr.mxu0 0.0
  %6729 = vmatpush1.msra.mxu0 0.0
  %6730 = vmatprep.subr.mxu0 0.0
  %6731 = vmatpush1.msra.mxu0 0.0
  %6732 = vmatprep.subr.mxu0 0.0
  %6733 = vmatpush1.msra.mxu0 0.0
  %6734 = vmatprep.subr.mxu0 0.0
  %6735 = vmatpush1.msra.mxu0 0.0
  %6736 = vmatprep.subr.mxu0 0.0
  %6737 = vmatpush1.msra.mxu0 0.0
  %6738 = vmatprep.subr.mxu0 0.0
  %6739 = vmatpush1.msra.mxu0 0.0
  %6740 = vmatprep.subr.mxu0 0.0
  %6741 = vmatpush1.msra.mxu0 0.0
  %6742 = vmatprep.subr.mxu0 0.0
  %6743 = vmatpush1.msra.mxu0 0.0
  %6744 = vmatprep.subr.mxu0 0.0
  %6745 = vmatpush1.msra.mxu0 0.0
  %6746 = vmatprep.subr.mxu0 0.0
  %6747 = vmatpush1.msra.mxu0 0.0
  %6748 = vmatprep.subr.mxu0 0.0
  %6749 = vmatpush1.msra.mxu0 0.0
  %6750 = vmatprep.subr.mxu0 0.0
  %6751 = vmatpush1.msra.mxu0 0.0
  %6752 = vmatprep.subr.mxu0 0.0
  %6753 = vmatpush1.msra.mxu0 0.0
  %6754 = vmatprep.subr.mxu0 0.0
  %6755 = vmatpush1.msra.mxu0 0.0
  %6756 = vmatprep.subr.mxu0 0.0
  %6757 = vmatpush1.msra.mxu0 0.0
  %6758 = vmatprep.subr.mxu0 0.0
  %6759 = vmatpush1.msra.mxu0 0.0
  %6760 = vmatprep.subr.mxu0 0.0
  %6761 = vmatpush1.msra.mxu0 0.0
  %6762 = vmatprep.subr.mxu0 0.0
  %6763 = vmatpush1.msra.mxu0 0.0
  %6764 = vmatprep.subr.mxu0 0.0
  %6765 = vmatpush1.msra.mxu0 0.0
  %6766 = vmatprep.subr.mxu0 0.0
  %6767 = vmatpush1.msra.mxu0 0.0
  %6768 = vmatprep.subr.mxu0 0.0
  %6769 = vmatpush1.msra.mxu0 0.0
  %6770 = vmatprep.subr.mxu0 0.0
  %6771 = vmatpush1.msra.mxu0 0.0
  %6772 = vmatprep.mubr.f32.mxu0 0.0
  %6773 = vmatmul.mubr.f32.gmra.mrb[0].mxu0 %v6372
  %v6774 = vpop.f32.mrb[0].mxu0
  %v6775 = vadd.f32 0.0, %v6774
  %v6776 = vpop.f32.mrb[0].mxu0
  %6777 = vdwg.mxu0
  %v6778 = vadd.f32 %v6705, %v6775
  %v6779 = vxor.u32 %v6778, 2147483648
  %v6780 = vmul.f32 %v6779, 1.442695
  %v6781 = vpow.pop %v6780
  %v6782 = vadd.f32 %v6781, 1.0
  %v6783 = vrcp.pop %v6782
  %v6784 = vmul.f32 1.0, %v6783
  %6786 = vrot.lane.b32.xlu0 %v6775, 96
  %v6787 = vpop.permute.xlu0 %6786
  %v6789 = vmul.f32 %v6784, %v6787
  %6791 = vrot.lane.b32.xlu0 %v6789, 32
  %v6792 = vpop.permute.xlu0 %6791
  %v6794 = vadd.f32 %v6705, %v6792
  %v6795 = vtanh.pop %v6794
  %v6796 = vsub.f32 1.0, %v6784
  %v6797 = vmul.f32 %v6796, %v6370
  %6799 = vrot.lane.b32.xlu0 %v6795, 64
  %v6800 = vpop.permute.xlu0 %6799
  %v6802 = vmul.f32 %v6784, %v6800
  %v6803 = vadd.f32 %v6797, %v6802
  %v6804 = vmul.f32 %v6360, %v6803
  %v6805 = vmul.f32 %v6367, %v6370
  %v6806 = vadd.f32 %v6804, %v6805
  %6807 = vrot.lane.b32.xlu0 %v6634, 32
  %v6808 = vpop.permute.xlu0 %6807
  %v6810 = vsel %vm179, %v6806, %v6808
  %v6812 = vsel %vm3650, %v6810, 0
  %6814 = vmatprep.subr.mxu0 0.0
  %6815 = vmatpush1.msra.mxu0 %v3065
  %6816 = vmatprep.subr.mxu0 0.0
  %6817 = vmatpush1.msra.mxu0 %v3066
  %6818 = vmatprep.subr.mxu0 0.0
  %6819 = vmatpush1.msra.mxu0 %v3067
  %6820 = vmatprep.subr.mxu0 0.0
  %6821 = vmatpush1.msra.mxu0 %v3068
  %6822 = vmatprep.subr.mxu0 0.0
  %6823 = vmatpush1.msra.mxu0 %v3069
  %6824 = vmatprep.subr.mxu0 0.0
  %6825 = vmatpush1.msra.mxu0 %v3070
  %6826 = vmatprep.subr.mxu0 0.0
  %6827 = vmatpush1.msra.mxu0 %v3071
  %6828 = vmatprep.subr.mxu0 0.0
  %6829 = vmatpush1.msra.mxu0 %v3072
  %6830 = vmatprep.subr.mxu0 0.0
  %6831 = vmatpush1.msra.mxu0 0.0
  %6832 = vmatprep.subr.mxu0 0.0
  %6833 = vmatpush1.msra.mxu0 0.0
  %6834 = vmatprep.subr.mxu0 0.0
  %6835 = vmatpush1.msra.mxu0 0.0
  %6836 = vmatprep.subr.mxu0 0.0
  %6837 = vmatpush1.msra.mxu0 0.0
  %6838 = vmatprep.subr.mxu0 0.0
  %6839 = vmatpush1.msra.mxu0 0.0
  %6840 = vmatprep.subr.mxu0 0.0
  %6841 = vmatpush1.msra.mxu0 0.0
  %6842 = vmatprep.subr.mxu0 0.0
  %6843 = vmatpush1.msra.mxu0 0.0
  %6844 = vmatprep.subr.mxu0 0.0
  %6845 = vmatpush1.msra.mxu0 0.0
  %6846 = vmatprep.subr.mxu0 0.0
  %6847 = vmatpush1.msra.mxu0 0.0
  %6848 = vmatprep.subr.mxu0 0.0
  %6849 = vmatpush1.msra.mxu0 0.0
  %6850 = vmatprep.subr.mxu0 0.0
  %6851 = vmatpush1.msra.mxu0 0.0
  %6852 = vmatprep.subr.mxu0 0.0
  %6853 = vmatpush1.msra.mxu0 0.0
  %6854 = vmatprep.subr.mxu0 0.0
  %6855 = vmatpush1.msra.mxu0 0.0
  %6856 = vmatprep.subr.mxu0 0.0
  %6857 = vmatpush1.msra.mxu0 0.0
  %6858 = vmatprep.subr.mxu0 0.0
  %6859 = vmatpush1.msra.mxu0 0.0
  %6860 = vmatprep.subr.mxu0 0.0
  %6861 = vmatpush1.msra.mxu0 0.0
  %6862 = vmatprep.subr.mxu0 0.0
  %6863 = vmatpush1.msra.mxu0 0.0
  %6864 = vmatprep.subr.mxu0 0.0
  %6865 = vmatpush1.msra.mxu0 0.0
  %6866 = vmatprep.subr.mxu0 0.0
  %6867 = vmatpush1.msra.mxu0 0.0
  %6868 = vmatprep.subr.mxu0 0.0
  %6869 = vmatpush1.msra.mxu0 0.0
  %6870 = vmatprep.subr.mxu0 0.0
  %6871 = vmatpush1.msra.mxu0 0.0
  %6872 = vmatprep.subr.mxu0 0.0
  %6873 = vmatpush1.msra.mxu0 0.0
  %6874 = vmatprep.subr.mxu0 0.0
  %6875 = vmatpush1.msra.mxu0 0.0
  %6876 = vmatprep.subr.mxu0 0.0
  %6877 = vmatpush1.msra.mxu0 0.0
  %6878 = vmatprep.mubr.f32.mxu0 0.0
  %6879 = vmatmul.mubr.f32.gmra.mrb[0].mxu0 %v6812
  %v6880 = vpop.f32.mrb[0].mxu0
  %v6881 = vadd.f32 %v3042, %v6880
  %v6882 = vpop.f32.mrb[0].mxu0
  %6883 = vdwg.mxu0
  %6885 = vrot.lane.b32.xlu0 %v6881, 96
  %v6886 = vpop.permute.xlu0 %6885
  %v6888 = vmax.f32 %v6881, %v6886
  %v6889 = vmul.f32 %v6888, %v6360
  %6890 = vst.msk [vmem:[%s63] sm:$0xff] %vm179, %v3729
  %6891 = vst.msk [vmem:[%s63 + $0x8] sm:$0xff] %vm179, %v4361
  %6892 = vst.msk [vmem:[%s63 + $0x10] sm:$0xff] %vm179, %v4993
  %6893 = vst.msk [vmem:[%s63 + $0x18] sm:$0xff] %vm179, %v5625
  %6894 = vst.msk [vmem:[%s63 + $0x20] sm:$0xff] %vm179, %v6257
  %6895 = vst.msk [vmem:[%s63 + $0x28] sm:$0xff] %vm179, %v6889
  // Predicated region
  $region126: #{nmt_forward.1} parent=0 // pred_check
    _
  $region127: #{nmt_forward.1} parent=0 // pred_check_branch
    %6897 = sbr.rel (0) target = $region129
  $region128: #{nmt_forward.1} parent=0 // pred_region
    _
  $region129: #{nmt_forward.1} parent=0 // pred_fallthru
    _
  // Predicated region
  $region130: #{nmt_forward.1} parent=0 // pred_check
    _
  $region131: #{nmt_forward.1} parent=0 // pred_check_branch
    %6899 = sbr.rel (0) target = $region133
  $region132: #{nmt_forward.1} parent=0 // pred_region
    _
  $region133: #{nmt_forward.1} parent=0 // pred_fallthru
    _

</llo_original>
